<compile_context>
chip_gen: v7x
topology: tpu7x:2x2x1
jax: 0.10.0
libtpu: 0.0.40
codegen_flags: <defaults>
</compile_context>

<pallas_src>
import functools
import math

import jax
import jax.numpy as jnp
import numpy as np
from jax import lax
from jax.experimental import pallas as pl
from jax.experimental.pallas import tpu as pltpu


def _avg_pool(y, ph, pw):
    """AvgPool2d((ph, pw)) on a (B, H, W, C) f32 value via reshape-sums."""
    B, H, W, C = y.shape
    if pw > 1:
        y = y.reshape(B, H, W // pw, pw, C).sum(axis=3) * (1.0 / pw)
    if ph > 1:
        y = y.reshape(B, H // ph, ph, W // pw, C).sum(axis=2) * (1.0 / ph)
    return y.reshape(B, H // ph, W // pw, C)


def fused_cnn_kernel(col1_ref, w1_ref, w2_ref, w3_ref, sc_ref, sh_ref, o_ref,
                     pad1, pad2, *, B, H, W, C, pools):
    """B batch samples per step: 3 fused conv blocks, intermediates stay in VMEM.

    col1_ref: (B, H*W, 16)  f32   block-1 im2col (9 taps + zero pad), Cin=1
    w1_ref  : (16, C)       f32   block-1 weights, im2col rows (rows 9..15 zero)
    w2_ref  : (9, C, C)     bf16  block-2 weights, one (Cin,Cout) tile per tap
    w3_ref  : (9, C, C)     bf16  block-3 weights
    sc_ref, sh_ref: (3, C)  f32   folded BN scale/shift per block
    o_ref   : (B, H3, W3*C) f32   output slab (lane-dense when W3*C >= 128)
    pad1/pad2: bf16 VMEM scratch holding the SAME-padded block-2/3 inputs
    """
    KH = KW = 3

    # ---------------- Block 1 (Cin = 1): one shallow-K MXU matmul ----------------
    k1p = col1_ref.shape[-1]
    col1 = col1_ref[...].reshape(B * H * W, k1p)                     # (M, 16) f32
    z = jnp.dot(col1, w1_ref[...], preferred_element_type=jnp.float32)  # (M, C)
    z = jnp.maximum(z * sc_ref[0] + sh_ref[0], 0.0)
    ph, pw = pools[0]
    y = _avg_pool(z.reshape(B, H, W, C), ph, pw)                     # (B,H1,W1,C)
    Hc, Wc = H // ph, W // pw

    # -------- Blocks 2/3: bf16 halo scratch + 9 accumulating MXU matmuls --------
    def conv_block(y, Hc, Wc, pad_ref, w_ref, blk):
        # Write the interior once (f32 -> bf16 cast happens here); zero only the
        # 1-px halo border. Done every step: correct under megacore sharding,
        # and the interior is fully overwritten anyway.
        pad_ref[:, 1:1 + Hc, 1:1 + Wc, :] = y.astype(pad_ref.dtype)
        zrow = jnp.zeros((B, 1, Wc + 2, C), pad_ref.dtype)
        zcol = jnp.zeros((B, Hc + 2, 1, C), pad_ref.dtype)
        pad_ref[:, 0:1, :, :] = zrow
        pad_ref[:, Hc + 1:Hc + 2, :, :] = zrow
        pad_ref[:, :, 0:1, :] = zcol
        pad_ref[:, :, Wc + 1:Wc + 2, :] = zcol

        # Concat-free im2col: 9 taps, each a (B*Hc*Wc, C) x (C, C) MXU push,
        # bf16 operands, f32 accumulation.
        acc = jnp.zeros((B * Hc * Wc, C), jnp.float32)
        for dy in range(KH):
            for dx in range(KW):
                tap = pad_ref[:, dy:dy + Hc, dx:dx + Wc, :].reshape(B * Hc * Wc, C)
                acc = acc + jnp.dot(tap, w_ref[dy * KW + dx],
                                    preferred_element_type=jnp.float32)
        z = jnp.maximum(acc * sc_ref[blk] + sh_ref[blk], 0.0)
        ph, pw = pools[blk]
        return _avg_pool(z.reshape(B, Hc, Wc, C), ph, pw)

    y = conv_block(y, Hc, Wc, pad1, w2_ref, 1)
    Hc, Wc = Hc // pools[1][0], Wc // pools[1][1]
    y = conv_block(y, Hc, Wc, pad2, w3_ref, 2)
    Hc, Wc = Hc // pools[2][0], Wc // pools[2][1]

    # Slab writeback: (B, H3, W3*C). Lane-dense when W3*C is a multiple of 128;
    # at the toy config W3 == 1 so this is just a squeeze.
    o_ref[...] = y.reshape(B, Hc, Wc * C).astype(o_ref.dtype)


def _pick_batch_tile(N):
    """Largest per-step batch tile that still leaves >= 2 grid steps (keeps both
    TensorCores busy on v7x) while amortizing the ~0.35 us/step grid cost."""
    best = 1
    for b in range(1, N + 1):
        if N % b == 0 and N // b >= 2:
            best = b
    return best


def _im2col_cin1(x_nhw, k1p):
    """Wrapper-side im2col for the Cin=1 first conv (pure layout plumbing).

    x_nhw: (N, H, W) f32 -> (N, H*W, k1p) f32 with the 9 SAME-padded 3x3 taps
    in columns 0..8 and zeros in columns 9..k1p-1.
    """
    N, H, W = x_nhw.shape
    xp = jnp.pad(x_nhw, ((0, 0), (1, 1), (1, 1)))
    taps = [xp[:, dy:dy + H, dx:dx + W].reshape(N, H * W)
            for dy in range(3) for dx in range(3)]
    col = jnp.stack(taps, axis=-1)                        # (N, H*W, 9)
    if k1p > 9:
        col = jnp.pad(col, ((0, 0), (0, 0), (0, k1p - 9)))
    return col


def cnn_forward(x_nchw, params, pooling, batch_tile=None):
    """Fused CNN forward. Input/output are NCHW (PyTorch convention)."""
    N, Cin, H, W = x_nchw.shape
    assert Cin == 1, "fused kernel specialised for n_in_channel=1"
    assert len(params) == 3 and len(pooling) == 3
    C = params[0]["w"].shape[-1]
    for p in params:
        assert p["w"].shape[0] == 3 and p["w"].shape[1] == 3
        assert p["w"].shape[-1] == C
    pools = tuple((int(a), int(b)) for a, b in pooling)

    sizes = []
    Hc, Wc = H, W
    for ph, pw in pools:
        assert Hc % ph == 0 and Wc % pw == 0, "AvgPool requires divisible dims"
        Hc, Wc = Hc // ph, Wc // pw
        sizes.append((Hc, Wc))
    (H1, W1), (H2, W2), (H3, W3) = sizes

    if batch_tile is None:
        batch_tile = _pick_batch_tile(N)
    assert N % batch_tile == 0
    B = batch_tile
    n_steps = N // B

    K1P = 16                                  # 9 taps padded to 16 (sublane align)
    col1 = _im2col_cin1(x_nchw[:, 0], K1P)    # (N, H*W, 16) f32
    w1 = params[0]["w"][:, :, 0, :].reshape(9, C)
    w1 = jnp.concatenate([w1, jnp.zeros((K1P - 9, C), w1.dtype)], axis=0)  # (16, C)
    w2 = params[1]["w"].reshape(9, C, C).astype(jnp.bfloat16)
    w3 = params[2]["w"].reshape(9, C, C).astype(jnp.bfloat16)
    sc = jnp.stack([p["scale"] for p in params]).astype(jnp.float32)   # (3, C)
    sh = jnp.stack([p["shift"] for p in params]).astype(jnp.float32)   # (3, C)

    kernel = functools.partial(fused_cnn_kernel, B=B, H=H, W=W, C=C, pools=pools)

    flops = 2 * N * 9 * C * (H * W + H1 * W1 * C + H2 * W2 * C)
    bytes_accessed = (col1.size * 4 + w1.size * 4 + (w2.size + w3.size) * 2
                      + (sc.size + sh.size) * 4 + N * H3 * W3 * C * 4)

    out = pl.pallas_call(
        kernel,
        out_shape=jax.ShapeDtypeStruct((N, H3, W3 * C), jnp.float32),
        grid=(n_steps,),
        in_specs=[
            pl.BlockSpec((B, H * W, K1P), lambda n: (n, 0, 0)),
            pl.BlockSpec((K1P, C), lambda n: (0, 0)),
            pl.BlockSpec((9, C, C), lambda n: (0, 0, 0)),
            pl.BlockSpec((9, C, C), lambda n: (0, 0, 0)),
            pl.BlockSpec((3, C), lambda n: (0, 0)),
            pl.BlockSpec((3, C), lambda n: (0, 0)),
        ],
        out_specs=pl.BlockSpec((B, H3, W3 * C), lambda n: (n, 0, 0)),
        scratch_shapes=[
            pltpu.VMEM((B, H1 + 2, W1 + 2, C), jnp.bfloat16),  # padded block-2 in
            pltpu.VMEM((B, H2 + 2, W2 + 2, C), jnp.bfloat16),  # padded block-3 in
        ],
        compiler_params=pltpu.CompilerParams(
            dimension_semantics=("parallel",),        # batch tiles -> both TCs (v7x)
            vmem_limit_bytes=32 * 1024 * 1024),       # re-budget if tiles grow
        cost_estimate=pl.CostEstimate(flops=flops, transcendentals=0,
                                      bytes_accessed=bytes_accessed),
    )(col1, w1, w2, w3, sc, sh)                       # (N, H3, W3*C)

    # Layout plumbing (slab -> NCHW) kept outside the kernel.
    return jnp.transpose(out.reshape(N, H3, W3, C), (0, 3, 1, 2))


def init_cnn_params(key, n_in_channel, nb_filters, kernel_size, eps=1e-3):
    """Deterministic parameter init mirroring the module's shapes (HWIO)."""
    params = []
    cin = n_in_channel
    for i, cout in enumerate(nb_filters):
        key, kw, kg, kb, km, kv = jax.random.split(key, 6)
        k = kernel_size[i]
        fan_in = cin * k * k
        bound = 1.0 / math.sqrt(fan_in)
        w = jax.random.uniform(kw, (k, k, cin, cout), jnp.float32,
                               minval=-bound, maxval=bound)
        gamma = jax.random.uniform(kg, (cout,), jnp.float32, 0.5, 1.5)
        beta = jax.random.uniform(kb, (cout,), jnp.float32, -0.1, 0.1)
        rmean = jax.random.uniform(km, (cout,), jnp.float32, -0.1, 0.1)
        rvar = jax.random.uniform(kv, (cout,), jnp.float32, 0.5, 1.5)
        scale = gamma / jnp.sqrt(rvar + eps)
        shift = beta - rmean * scale
        params.append(dict(w=w, scale=scale, shift=shift))
        cin = cout
    return params


def cnn_forward_reference(x_nchw, params, pooling):
    """Pure-JAX reference (mirrors the kernel's bf16-operand convention for
    blocks 2-3 so comparisons are apples-to-apples; accumulation is f32)."""
    x = jnp.transpose(x_nchw, (0, 2, 3, 1))
    for i, (p, (ph, pw)) in enumerate(zip(params, pooling)):
        if i == 0:
            lhs, rhs = x, p["w"]                              # block 1: f32
        else:
            lhs, rhs = x.astype(jnp.bfloat16), p["w"].astype(jnp.bfloat16)
        y = lax.conv_general_dilated(
            lhs, rhs, window_strides=(1, 1), padding="SAME",
            dimension_numbers=("NHWC", "HWIO", "NHWC"),
            preferred_element_type=jnp.float32)
        y = y * p["scale"] + p["shift"]
        y = jnp.maximum(y, 0.0)
        N, H, W, C = y.shape
        y = y.reshape(N, H // ph, ph, W // pw, pw, C).mean(axis=(2, 4))
        x = y
    return jnp.transpose(x, (0, 3, 1, 2))


if __name__ == "__main__":
    # Module config (defaults): kernel 3, stride 1, pad 1, no conv bias,
    # BatchNorm (eps=1e-3), ReLU, dropout 0, AvgPool (1, 4) per block.
    n_in_channel = 1
    nb_filters = [64, 64, 64]
    kernel_size = [3, 3, 3]
    pooling = [(1, 4), (1, 4), (1, 4)]

    key = jax.random.PRNGKey(0)
    key_p, key_x = jax.random.split(key)
    params = init_cnn_params(key_p, n_in_channel, nb_filters, kernel_size)

    # Small NCHW input: (batch=2, channels=1, time=8, freq=64).
    x = jax.random.normal(key_x, (2, n_in_channel, 8, 64), jnp.float32)

    out = jax.block_until_ready(cnn_forward(x, params, pooling))
    ref = jax.block_until_ready(cnn_forward_reference(x, params, pooling))

    assert out.shape == (2, 64, 8, 1), out.shape
    np.testing.assert_allclose(np.asarray(out), np.asarray(ref),
                               rtol=2e-3, atol=2e-3)
    print("KERNEL_OK")
</pallas_src>

<mosaic_0001>
module attributes {stable_mosaic.version = 11 : i64} {
  func.func @fused_cnn_kernel(%arg0: i32, %arg1: memref<1x512x16xf32, #tpu.memory_space<vmem>>, %arg2: memref<16x64xf32, #tpu.memory_space<vmem>>, %arg3: memref<9x64x64xbf16, #tpu.memory_space<vmem>>, %arg4: memref<9x64x64xbf16, #tpu.memory_space<vmem>>, %arg5: memref<3x64xf32, #tpu.memory_space<vmem>>, %arg6: memref<3x64xf32, #tpu.memory_space<vmem>>, %arg7: memref<1x8x64xf32, #tpu.memory_space<vmem>>, %arg8: memref<1x10x18x64xbf16, #tpu.memory_space<vmem>>, %arg9: memref<1x10x6x64xbf16, #tpu.memory_space<vmem>>) attributes {dimension_semantics = [#tpu.dimension_semantics<parallel>], iteration_bounds = array<i64: 2>, scalar_prefetch = 0 : i64, scratch_operands = 2 : i64, tpu.core_type = #tpu.core_type<tc>, window_params = [{transform_indices = @transform_0, window_bounds = array<i64: 1, 512, 16>}, {pipeline_mode = #tpu.pipeline_mode<synchronous>, transform_indices = @transform_1, window_bounds = array<i64: 16, 64>}, {pipeline_mode = #tpu.pipeline_mode<synchronous>, transform_indices = @transform_2, window_bounds = array<i64: 9, 64, 64>}, {pipeline_mode = #tpu.pipeline_mode<synchronous>, transform_indices = @transform_3, window_bounds = array<i64: 9, 64, 64>}, {pipeline_mode = #tpu.pipeline_mode<synchronous>, transform_indices = @transform_4, window_bounds = array<i64: 3, 64>}, {pipeline_mode = #tpu.pipeline_mode<synchronous>, transform_indices = @transform_5, window_bounds = array<i64: 3, 64>}, {transform_indices = @transform_6, window_bounds = array<i64: 1, 8, 64>}]} {
    %c0 = arith.constant 0 : index
    %c0_0 = arith.constant 0 : index
    %c0_1 = arith.constant 0 : index
    %0 = vector.load %arg1[%c0, %c0_0, %c0_1] : memref<1x512x16xf32, #tpu.memory_space<vmem>>, vector<1x512x16xf32>
    %1 = vector.shape_cast %0 : vector<1x512x16xf32> to vector<512x16xf32>
    %c0_2 = arith.constant 0 : index
    %c0_3 = arith.constant 0 : index
    %2 = vector.load %arg2[%c0_2, %c0_3] : memref<16x64xf32, #tpu.memory_space<vmem>>, vector<16x64xf32>
    %cst = arith.constant dense<0.000000e+00> : vector<512x64xf32>
    %3 = tpu.matmul %1, %2, %cst {dimension_numbers = #tpu.dot_dimension_numbers<[1], [0], [0], [1], [0, 0, 1, 1], [], []>} : vector<512x16xf32>, vector<16x64xf32>, vector<512x64xf32> -> vector<512x64xf32>
    %c0_4 = arith.constant 0 : index
    %c0_5 = arith.constant 0 : index
    %4 = vector.load %arg5[%c0_4, %c0_5] : memref<3x64xf32, #tpu.memory_space<vmem>>, vector<1x64xf32>
    %5 = vector.shape_cast %4 : vector<1x64xf32> to vector<64xf32>
    %6 = vector.shape_cast %5 : vector<64xf32> to vector<1x64xf32>
    %7 = vector.broadcast %6 : vector<1x64xf32> to vector<512x64xf32>
    %8 = arith.mulf %3, %7 : vector<512x64xf32>
    %c0_6 = arith.constant 0 : index
    %c0_7 = arith.constant 0 : index
    %9 = vector.load %arg6[%c0_6, %c0_7] : memref<3x64xf32, #tpu.memory_space<vmem>>, vector<1x64xf32>
    %10 = vector.shape_cast %9 : vector<1x64xf32> to vector<64xf32>
    %11 = vector.shape_cast %10 : vector<64xf32> to vector<1x64xf32>
    %12 = vector.broadcast %11 : vector<1x64xf32> to vector<512x64xf32>
    %13 = arith.addf %8, %12 : vector<512x64xf32>
    %cst_8 = arith.constant 0.000000e+00 : f32
    %14 = vector.broadcast %cst_8 : f32 to vector<512x64xf32>
    %15 = arith.maximumf %13, %14 : vector<512x64xf32>
    %16 = vector.shape_cast %15 : vector<512x64xf32> to vector<1x8x64x64xf32>
    %17 = vector.shape_cast %16 : vector<1x8x64x64xf32> to vector<1x8x16x4x64xf32>
    %cst_9 = arith.constant dense<0.000000e+00> : vector<1x8x16x64xf32>
    %18 = vector.multi_reduction <add>, %17, %cst_9 [3] : vector<1x8x16x4x64xf32> to vector<1x8x16x64xf32>
    %cst_10 = arith.constant 2.500000e-01 : f32
    %19 = vector.broadcast %cst_10 : f32 to vector<1x8x16x64xf32>
    %20 = arith.mulf %18, %19 : vector<1x8x16x64xf32>
    %21 = arith.truncf %20 : vector<1x8x16x64xf32> to vector<1x8x16x64xbf16>
    %c0_11 = arith.constant 0 : index
    %c1 = arith.constant 1 : index
    %c1_12 = arith.constant 1 : index
    %c0_13 = arith.constant 0 : index
    %22 = vector.load %arg8[%c0_11, %c1, %c1_12, %c0_13] : memref<1x10x18x64xbf16, #tpu.memory_space<vmem>>, vector<1x8x16x64xbf16>
    tpu.vector_store %arg8[%c0_11, %c1, %c1_12, %c0_13], %21 {strides = array<i32>} : memref<1x10x18x64xbf16, #tpu.memory_space<vmem>>, vector<1x8x16x64xbf16>,
    %cst_14 = arith.constant 0.000000e+00 : bf16
    %23 = vector.broadcast %cst_14 : bf16 to vector<1x1x18x64xbf16>
    %cst_15 = arith.constant 0.000000e+00 : bf16
    %24 = vector.broadcast %cst_15 : bf16 to vector<1x10x1x64xbf16>
    %c0_16 = arith.constant 0 : index
    %c0_17 = arith.constant 0 : index
    %c0_18 = arith.constant 0 : index
    %c0_19 = arith.constant 0 : index
    %25 = vector.load %arg8[%c0_16, %c0_17, %c0_18, %c0_19] : memref<1x10x18x64xbf16, #tpu.memory_space<vmem>>, vector<1x1x18x64xbf16>
    tpu.vector_store %arg8[%c0_16, %c0_17, %c0_18, %c0_19], %23 {strides = array<i32>} : memref<1x10x18x64xbf16, #tpu.memory_space<vmem>>, vector<1x1x18x64xbf16>,
    %c0_20 = arith.constant 0 : index
    %c9 = arith.constant 9 : index
    %c0_21 = arith.constant 0 : index
    %c0_22 = arith.constant 0 : index
    %26 = vector.load %arg8[%c0_20, %c9, %c0_21, %c0_22] : memref<1x10x18x64xbf16, #tpu.memory_space<vmem>>, vector<1x1x18x64xbf16>
    tpu.vector_store %arg8[%c0_20, %c9, %c0_21, %c0_22], %23 {strides = array<i32>} : memref<1x10x18x64xbf16, #tpu.memory_space<vmem>>, vector<1x1x18x64xbf16>,
    %c0_23 = arith.constant 0 : index
    %c0_24 = arith.constant 0 : index
    %c0_25 = arith.constant 0 : index
    %c0_26 = arith.constant 0 : index
    %27 = vector.load %arg8[%c0_23, %c0_24, %c0_25, %c0_26] : memref<1x10x18x64xbf16, #tpu.memory_space<vmem>>, vector<1x10x1x64xbf16>
    tpu.vector_store %arg8[%c0_23, %c0_24, %c0_25, %c0_26], %24 {strides = array<i32>} : memref<1x10x18x64xbf16, #tpu.memory_space<vmem>>, vector<1x10x1x64xbf16>,
    %c0_27 = arith.constant 0 : index
    %c0_28 = arith.constant 0 : index
    %c17 = arith.constant 17 : index
    %c0_29 = arith.constant 0 : index
    %28 = vector.load %arg8[%c0_27, %c0_28, %c17, %c0_29] : memref<1x10x18x64xbf16, #tpu.memory_space<vmem>>, vector<1x10x1x64xbf16>
    tpu.vector_store %arg8[%c0_27, %c0_28, %c17, %c0_29], %24 {strides = array<i32>} : memref<1x10x18x64xbf16, #tpu.memory_space<vmem>>, vector<1x10x1x64xbf16>,
    %cst_30 = arith.constant 0.000000e+00 : f32
    %29 = vector.broadcast %cst_30 : f32 to vector<128x64xf32>
    %c0_31 = arith.constant 0 : index
    %c0_32 = arith.constant 0 : index
    %c0_33 = arith.constant 0 : index
    %c0_34 = arith.constant 0 : index
    %30 = vector.load %arg8[%c0_31, %c0_32, %c0_33, %c0_34] : memref<1x10x18x64xbf16, #tpu.memory_space<vmem>>, vector<1x8x16x64xbf16>
    %31 = vector.shape_cast %30 : vector<1x8x16x64xbf16> to vector<128x64xbf16>
    %c0_35 = arith.constant 0 : index
    %c0_36 = arith.constant 0 : index
    %c0_37 = arith.constant 0 : index
    %32 = vector.load %arg3[%c0_35, %c0_36, %c0_37] : memref<9x64x64xbf16, #tpu.memory_space<vmem>>, vector<1x64x64xbf16>
    %33 = vector.shape_cast %32 : vector<1x64x64xbf16> to vector<64x64xbf16>
    %cst_38 = arith.constant dense<0.000000e+00> : vector<128x64xf32>
    %34 = tpu.matmul %31, %33, %cst_38 {dimension_numbers = #tpu.dot_dimension_numbers<[1], [0], [0], [1], [0, 0, 1, 1], [], []>} : vector<128x64xbf16>, vector<64x64xbf16>, vector<128x64xf32> -> vector<128x64xf32>
    %35 = arith.addf %29, %34 : vector<128x64xf32>
    %c0_39 = arith.constant 0 : index
    %c0_40 = arith.constant 0 : index
    %c1_41 = arith.constant 1 : index
    %c0_42 = arith.constant 0 : index
    %36 = vector.load %arg8[%c0_39, %c0_40, %c1_41, %c0_42] : memref<1x10x18x64xbf16, #tpu.memory_space<vmem>>, vector<1x8x16x64xbf16>
    %37 = vector.shape_cast %36 : vector<1x8x16x64xbf16> to vector<128x64xbf16>
    %c1_43 = arith.constant 1 : index
    %c0_44 = arith.constant 0 : index
    %c0_45 = arith.constant 0 : index
    %38 = vector.load %arg3[%c1_43, %c0_44, %c0_45] : memref<9x64x64xbf16, #tpu.memory_space<vmem>>, vector<1x64x64xbf16>
    %39 = vector.shape_cast %38 : vector<1x64x64xbf16> to vector<64x64xbf16>
    %cst_46 = arith.constant dense<0.000000e+00> : vector<128x64xf32>
    %40 = tpu.matmul %37, %39, %cst_46 {dimension_numbers = #tpu.dot_dimension_numbers<[1], [0], [0], [1], [0, 0, 1, 1], [], []>} : vector<128x64xbf16>, vector<64x64xbf16>, vector<128x64xf32> -> vector<128x64xf32>
    %41 = arith.addf %35, %40 : vector<128x64xf32>
    %c0_47 = arith.constant 0 : index
    %c0_48 = arith.constant 0 : index
    %c2 = arith.constant 2 : index
    %c0_49 = arith.constant 0 : index
    %42 = vector.load %arg8[%c0_47, %c0_48, %c2, %c0_49] : memref<1x10x18x64xbf16, #tpu.memory_space<vmem>>, vector<1x8x16x64xbf16>
    %43 = vector.shape_cast %42 : vector<1x8x16x64xbf16> to vector<128x64xbf16>
    %c2_50 = arith.constant 2 : index
    %c0_51 = arith.constant 0 : index
    %c0_52 = arith.constant 0 : index
    %44 = vector.load %arg3[%c2_50, %c0_51, %c0_52] : memref<9x64x64xbf16, #tpu.memory_space<vmem>>, vector<1x64x64xbf16>
    %45 = vector.shape_cast %44 : vector<1x64x64xbf16> to vector<64x64xbf16>
    %cst_53 = arith.constant dense<0.000000e+00> : vector<128x64xf32>
    %46 = tpu.matmul %43, %45, %cst_53 {dimension_numbers = #tpu.dot_dimension_numbers<[1], [0], [0], [1], [0, 0, 1, 1], [], []>} : vector<128x64xbf16>, vector<64x64xbf16>, vector<128x64xf32> -> vector<128x64xf32>
    %47 = arith.addf %41, %46 : vector<128x64xf32>
    %c0_54 = arith.constant 0 : index
    %c1_55 = arith.constant 1 : index
    %c0_56 = arith.constant 0 : index
    %c0_57 = arith.constant 0 : index
    %48 = vector.load %arg8[%c0_54, %c1_55, %c0_56, %c0_57] : memref<1x10x18x64xbf16, #tpu.memory_space<vmem>>, vector<1x8x16x64xbf16>
    %49 = vector.shape_cast %48 : vector<1x8x16x64xbf16> to vector<128x64xbf16>
    %c3 = arith.constant 3 : index
    %c0_58 = arith.constant 0 : index
    %c0_59 = arith.constant 0 : index
    %50 = vector.load %arg3[%c3, %c0_58, %c0_59] : memref<9x64x64xbf16, #tpu.memory_space<vmem>>, vector<1x64x64xbf16>
    %51 = vector.shape_cast %50 : vector<1x64x64xbf16> to vector<64x64xbf16>
    %cst_60 = arith.constant dense<0.000000e+00> : vector<128x64xf32>
    %52 = tpu.matmul %49, %51, %cst_60 {dimension_numbers = #tpu.dot_dimension_numbers<[1], [0], [0], [1], [0, 0, 1, 1], [], []>} : vector<128x64xbf16>, vector<64x64xbf16>, vector<128x64xf32> -> vector<128x64xf32>
    %53 = arith.addf %47, %52 : vector<128x64xf32>
    %c0_61 = arith.constant 0 : index
    %c1_62 = arith.constant 1 : index
    %c1_63 = arith.constant 1 : index
    %c0_64 = arith.constant 0 : index
    %54 = vector.load %arg8[%c0_61, %c1_62, %c1_63, %c0_64] : memref<1x10x18x64xbf16, #tpu.memory_space<vmem>>, vector<1x8x16x64xbf16>
    %55 = vector.shape_cast %54 : vector<1x8x16x64xbf16> to vector<128x64xbf16>
    %c4 = arith.constant 4 : index
    %c0_65 = arith.constant 0 : index
    %c0_66 = arith.constant 0 : index
    %56 = vector.load %arg3[%c4, %c0_65, %c0_66] : memref<9x64x64xbf16, #tpu.memory_space<vmem>>, vector<1x64x64xbf16>
    %57 = vector.shape_cast %56 : vector<1x64x64xbf16> to vector<64x64xbf16>
    %cst_67 = arith.constant dense<0.000000e+00> : vector<128x64xf32>
    %58 = tpu.matmul %55, %57, %cst_67 {dimension_numbers = #tpu.dot_dimension_numbers<[1], [0], [0], [1], [0, 0, 1, 1], [], []>} : vector<128x64xbf16>, vector<64x64xbf16>, vector<128x64xf32> -> vector<128x64xf32>
    %59 = arith.addf %53, %58 : vector<128x64xf32>
    %c0_68 = arith.constant 0 : index
    %c1_69 = arith.constant 1 : index
    %c2_70 = arith.constant 2 : index
    %c0_71 = arith.constant 0 : index
    %60 = vector.load %arg8[%c0_68, %c1_69, %c2_70, %c0_71] : memref<1x10x18x64xbf16, #tpu.memory_space<vmem>>, vector<1x8x16x64xbf16>
    %61 = vector.shape_cast %60 : vector<1x8x16x64xbf16> to vector<128x64xbf16>
    %c5 = arith.constant 5 : index
    %c0_72 = arith.constant 0 : index
    %c0_73 = arith.constant 0 : index
    %62 = vector.load %arg3[%c5, %c0_72, %c0_73] : memref<9x64x64xbf16, #tpu.memory_space<vmem>>, vector<1x64x64xbf16>
    %63 = vector.shape_cast %62 : vector<1x64x64xbf16> to vector<64x64xbf16>
    %cst_74 = arith.constant dense<0.000000e+00> : vector<128x64xf32>
    %64 = tpu.matmul %61, %63, %cst_74 {dimension_numbers = #tpu.dot_dimension_numbers<[1], [0], [0], [1], [0, 0, 1, 1], [], []>} : vector<128x64xbf16>, vector<64x64xbf16>, vector<128x64xf32> -> vector<128x64xf32>
    %65 = arith.addf %59, %64 : vector<128x64xf32>
    %c0_75 = arith.constant 0 : index
    %c2_76 = arith.constant 2 : index
    %c0_77 = arith.constant 0 : index
    %c0_78 = arith.constant 0 : index
    %66 = vector.load %arg8[%c0_75, %c2_76, %c0_77, %c0_78] : memref<1x10x18x64xbf16, #tpu.memory_space<vmem>>, vector<1x8x16x64xbf16>
    %67 = vector.shape_cast %66 : vector<1x8x16x64xbf16> to vector<128x64xbf16>
    %c6 = arith.constant 6 : index
    %c0_79 = arith.constant 0 : index
    %c0_80 = arith.constant 0 : index
    %68 = vector.load %arg3[%c6, %c0_79, %c0_80] : memref<9x64x64xbf16, #tpu.memory_space<vmem>>, vector<1x64x64xbf16>
    %69 = vector.shape_cast %68 : vector<1x64x64xbf16> to vector<64x64xbf16>
    %cst_81 = arith.constant dense<0.000000e+00> : vector<128x64xf32>
    %70 = tpu.matmul %67, %69, %cst_81 {dimension_numbers = #tpu.dot_dimension_numbers<[1], [0], [0], [1], [0, 0, 1, 1], [], []>} : vector<128x64xbf16>, vector<64x64xbf16>, vector<128x64xf32> -> vector<128x64xf32>
    %71 = arith.addf %65, %70 : vector<128x64xf32>
    %c0_82 = arith.constant 0 : index
    %c2_83 = arith.constant 2 : index
    %c1_84 = arith.constant 1 : index
    %c0_85 = arith.constant 0 : index
    %72 = vector.load %arg8[%c0_82, %c2_83, %c1_84, %c0_85] : memref<1x10x18x64xbf16, #tpu.memory_space<vmem>>, vector<1x8x16x64xbf16>
    %73 = vector.shape_cast %72 : vector<1x8x16x64xbf16> to vector<128x64xbf16>
    %c7 = arith.constant 7 : index
    %c0_86 = arith.constant 0 : index
    %c0_87 = arith.constant 0 : index
    %74 = vector.load %arg3[%c7, %c0_86, %c0_87] : memref<9x64x64xbf16, #tpu.memory_space<vmem>>, vector<1x64x64xbf16>
    %75 = vector.shape_cast %74 : vector<1x64x64xbf16> to vector<64x64xbf16>
    %cst_88 = arith.constant dense<0.000000e+00> : vector<128x64xf32>
    %76 = tpu.matmul %73, %75, %cst_88 {dimension_numbers = #tpu.dot_dimension_numbers<[1], [0], [0], [1], [0, 0, 1, 1], [], []>} : vector<128x64xbf16>, vector<64x64xbf16>, vector<128x64xf32> -> vector<128x64xf32>
    %77 = arith.addf %71, %76 : vector<128x64xf32>
    %c0_89 = arith.constant 0 : index
    %c2_90 = arith.constant 2 : index
    %c2_91 = arith.constant 2 : index
    %c0_92 = arith.constant 0 : index
    %78 = vector.load %arg8[%c0_89, %c2_90, %c2_91, %c0_92] : memref<1x10x18x64xbf16, #tpu.memory_space<vmem>>, vector<1x8x16x64xbf16>
    %79 = vector.shape_cast %78 : vector<1x8x16x64xbf16> to vector<128x64xbf16>
    %c8 = arith.constant 8 : index
    %c0_93 = arith.constant 0 : index
    %c0_94 = arith.constant 0 : index
    %80 = vector.load %arg3[%c8, %c0_93, %c0_94] : memref<9x64x64xbf16, #tpu.memory_space<vmem>>, vector<1x64x64xbf16>
    %81 = vector.shape_cast %80 : vector<1x64x64xbf16> to vector<64x64xbf16>
    %cst_95 = arith.constant dense<0.000000e+00> : vector<128x64xf32>
    %82 = tpu.matmul %79, %81, %cst_95 {dimension_numbers = #tpu.dot_dimension_numbers<[1], [0], [0], [1], [0, 0, 1, 1], [], []>} : vector<128x64xbf16>, vector<64x64xbf16>, vector<128x64xf32> -> vector<128x64xf32>
    %83 = arith.addf %77, %82 : vector<128x64xf32>
    %c1_96 = arith.constant 1 : index
    %c0_97 = arith.constant 0 : index
    %84 = vector.load %arg5[%c1_96, %c0_97] : memref<3x64xf32, #tpu.memory_space<vmem>>, vector<1x64xf32>
    %85 = vector.shape_cast %84 : vector<1x64xf32> to vector<64xf32>
    %86 = vector.shape_cast %85 : vector<64xf32> to vector<1x64xf32>
    %87 = vector.broadcast %86 : vector<1x64xf32> to vector<128x64xf32>
    %88 = arith.mulf %83, %87 : vector<128x64xf32>
    %c1_98 = arith.constant 1 : index
    %c0_99 = arith.constant 0 : index
    %89 = vector.load %arg6[%c1_98, %c0_99] : memref<3x64xf32, #tpu.memory_space<vmem>>, vector<1x64xf32>
    %90 = vector.shape_cast %89 : vector<1x64xf32> to vector<64xf32>
    %91 = vector.shape_cast %90 : vector<64xf32> to vector<1x64xf32>
    %92 = vector.broadcast %91 : vector<1x64xf32> to vector<128x64xf32>
    %93 = arith.addf %88, %92 : vector<128x64xf32>
    %cst_100 = arith.constant 0.000000e+00 : f32
    %94 = vector.broadcast %cst_100 : f32 to vector<128x64xf32>
    %95 = arith.maximumf %93, %94 : vector<128x64xf32>
    %96 = vector.shape_cast %95 : vector<128x64xf32> to vector<1x8x16x64xf32>
    %97 = vector.shape_cast %96 : vector<1x8x16x64xf32> to vector<1x8x4x4x64xf32>
    %cst_101 = arith.constant dense<0.000000e+00> : vector<1x8x4x64xf32>
    %98 = vector.multi_reduction <add>, %97, %cst_101 [3] : vector<1x8x4x4x64xf32> to vector<1x8x4x64xf32>
    %cst_102 = arith.constant 2.500000e-01 : f32
    %99 = vector.broadcast %cst_102 : f32 to vector<1x8x4x64xf32>
    %100 = arith.mulf %98, %99 : vector<1x8x4x64xf32>
    %101 = arith.truncf %100 : vector<1x8x4x64xf32> to vector<1x8x4x64xbf16>
    %c0_103 = arith.constant 0 : index
    %c1_104 = arith.constant 1 : index
    %c1_105 = arith.constant 1 : index
    %c0_106 = arith.constant 0 : index
    %102 = vector.load %arg9[%c0_103, %c1_104, %c1_105, %c0_106] : memref<1x10x6x64xbf16, #tpu.memory_space<vmem>>, vector<1x8x4x64xbf16>
    tpu.vector_store %arg9[%c0_103, %c1_104, %c1_105, %c0_106], %101 {strides = array<i32>} : memref<1x10x6x64xbf16, #tpu.memory_space<vmem>>, vector<1x8x4x64xbf16>,
    %cst_107 = arith.constant 0.000000e+00 : bf16
    %103 = vector.broadcast %cst_107 : bf16 to vector<1x1x6x64xbf16>
    %cst_108 = arith.constant 0.000000e+00 : bf16
    %104 = vector.broadcast %cst_108 : bf16 to vector<1x10x1x64xbf16>
    %c0_109 = arith.constant 0 : index
    %c0_110 = arith.constant 0 : index
    %c0_111 = arith.constant 0 : index
    %c0_112 = arith.constant 0 : index
    %105 = vector.load %arg9[%c0_109, %c0_110, %c0_111, %c0_112] : memref<1x10x6x64xbf16, #tpu.memory_space<vmem>>, vector<1x1x6x64xbf16>
    tpu.vector_store %arg9[%c0_109, %c0_110, %c0_111, %c0_112], %103 {strides = array<i32>} : memref<1x10x6x64xbf16, #tpu.memory_space<vmem>>, vector<1x1x6x64xbf16>,
    %c0_113 = arith.constant 0 : index
    %c9_114 = arith.constant 9 : index
    %c0_115 = arith.constant 0 : index
    %c0_116 = arith.constant 0 : index
    %106 = vector.load %arg9[%c0_113, %c9_114, %c0_115, %c0_116] : memref<1x10x6x64xbf16, #tpu.memory_space<vmem>>, vector<1x1x6x64xbf16>
    tpu.vector_store %arg9[%c0_113, %c9_114, %c0_115, %c0_116], %103 {strides = array<i32>} : memref<1x10x6x64xbf16, #tpu.memory_space<vmem>>, vector<1x1x6x64xbf16>,
    %c0_117 = arith.constant 0 : index
    %c0_118 = arith.constant 0 : index
    %c0_119 = arith.constant 0 : index
    %c0_120 = arith.constant 0 : index
    %107 = vector.load %arg9[%c0_117, %c0_118, %c0_119, %c0_120] : memref<1x10x6x64xbf16, #tpu.memory_space<vmem>>, vector<1x10x1x64xbf16>
    tpu.vector_store %arg9[%c0_117, %c0_118, %c0_119, %c0_120], %104 {strides = array<i32>} : memref<1x10x6x64xbf16, #tpu.memory_space<vmem>>, vector<1x10x1x64xbf16>,
    %c0_121 = arith.constant 0 : index
    %c0_122 = arith.constant 0 : index
    %c5_123 = arith.constant 5 : index
    %c0_124 = arith.constant 0 : index
    %108 = vector.load %arg9[%c0_121, %c0_122, %c5_123, %c0_124] : memref<1x10x6x64xbf16, #tpu.memory_space<vmem>>, vector<1x10x1x64xbf16>
    tpu.vector_store %arg9[%c0_121, %c0_122, %c5_123, %c0_124], %104 {strides = array<i32>} : memref<1x10x6x64xbf16, #tpu.memory_space<vmem>>, vector<1x10x1x64xbf16>,
    %cst_125 = arith.constant 0.000000e+00 : f32
    %109 = vector.broadcast %cst_125 : f32 to vector<32x64xf32>
    %c0_126 = arith.constant 0 : index
    %c0_127 = arith.constant 0 : index
    %c0_128 = arith.constant 0 : index
    %c0_129 = arith.constant 0 : index
    %110 = vector.load %arg9[%c0_126, %c0_127, %c0_128, %c0_129] : memref<1x10x6x64xbf16, #tpu.memory_space<vmem>>, vector<1x8x4x64xbf16>
    %111 = vector.shape_cast %110 : vector<1x8x4x64xbf16> to vector<32x64xbf16>
    %c0_130 = arith.constant 0 : index
    %c0_131 = arith.constant 0 : index
    %c0_132 = arith.constant 0 : index
    %112 = vector.load %arg4[%c0_130, %c0_131, %c0_132] : memref<9x64x64xbf16, #tpu.memory_space<vmem>>, vector<1x64x64xbf16>
    %113 = vector.shape_cast %112 : vector<1x64x64xbf16> to vector<64x64xbf16>
    %cst_133 = arith.constant dense<0.000000e+00> : vector<32x64xf32>
    %114 = tpu.matmul %111, %113, %cst_133 {dimension_numbers = #tpu.dot_dimension_numbers<[1], [0], [0], [1], [0, 0, 1, 1], [], []>} : vector<32x64xbf16>, vector<64x64xbf16>, vector<32x64xf32> -> vector<32x64xf32>
    %115 = arith.addf %109, %114 : vector<32x64xf32>
    %c0_134 = arith.constant 0 : index
    %c0_135 = arith.constant 0 : index
    %c1_136 = arith.constant 1 : index
    %c0_137 = arith.constant 0 : index
    %116 = vector.load %arg9[%c0_134, %c0_135, %c1_136, %c0_137] : memref<1x10x6x64xbf16, #tpu.memory_space<vmem>>, vector<1x8x4x64xbf16>
    %117 = vector.shape_cast %116 : vector<1x8x4x64xbf16> to vector<32x64xbf16>
    %c1_138 = arith.constant 1 : index
    %c0_139 = arith.constant 0 : index
    %c0_140 = arith.constant 0 : index
    %118 = vector.load %arg4[%c1_138, %c0_139, %c0_140] : memref<9x64x64xbf16, #tpu.memory_space<vmem>>, vector<1x64x64xbf16>
    %119 = vector.shape_cast %118 : vector<1x64x64xbf16> to vector<64x64xbf16>
    %cst_141 = arith.constant dense<0.000000e+00> : vector<32x64xf32>
    %120 = tpu.matmul %117, %119, %cst_141 {dimension_numbers = #tpu.dot_dimension_numbers<[1], [0], [0], [1], [0, 0, 1, 1], [], []>} : vector<32x64xbf16>, vector<64x64xbf16>, vector<32x64xf32> -> vector<32x64xf32>
    %121 = arith.addf %115, %120 : vector<32x64xf32>
    %c0_142 = arith.constant 0 : index
    %c0_143 = arith.constant 0 : index
    %c2_144 = arith.constant 2 : index
    %c0_145 = arith.constant 0 : index
    %122 = vector.load %arg9[%c0_142, %c0_143, %c2_144, %c0_145] : memref<1x10x6x64xbf16, #tpu.memory_space<vmem>>, vector<1x8x4x64xbf16>
    %123 = vector.shape_cast %122 : vector<1x8x4x64xbf16> to vector<32x64xbf16>
    %c2_146 = arith.constant 2 : index
    %c0_147 = arith.constant 0 : index
    %c0_148 = arith.constant 0 : index
    %124 = vector.load %arg4[%c2_146, %c0_147, %c0_148] : memref<9x64x64xbf16, #tpu.memory_space<vmem>>, vector<1x64x64xbf16>
    %125 = vector.shape_cast %124 : vector<1x64x64xbf16> to vector<64x64xbf16>
    %cst_149 = arith.constant dense<0.000000e+00> : vector<32x64xf32>
    %126 = tpu.matmul %123, %125, %cst_149 {dimension_numbers = #tpu.dot_dimension_numbers<[1], [0], [0], [1], [0, 0, 1, 1], [], []>} : vector<32x64xbf16>, vector<64x64xbf16>, vector<32x64xf32> -> vector<32x64xf32>
    %127 = arith.addf %121, %126 : vector<32x64xf32>
    %c0_150 = arith.constant 0 : index
    %c1_151 = arith.constant 1 : index
    %c0_152 = arith.constant 0 : index
    %c0_153 = arith.constant 0 : index
    %128 = vector.load %arg9[%c0_150, %c1_151, %c0_152, %c0_153] : memref<1x10x6x64xbf16, #tpu.memory_space<vmem>>, vector<1x8x4x64xbf16>
    %129 = vector.shape_cast %128 : vector<1x8x4x64xbf16> to vector<32x64xbf16>
    %c3_154 = arith.constant 3 : index
    %c0_155 = arith.constant 0 : index
    %c0_156 = arith.constant 0 : index
    %130 = vector.load %arg4[%c3_154, %c0_155, %c0_156] : memref<9x64x64xbf16, #tpu.memory_space<vmem>>, vector<1x64x64xbf16>
    %131 = vector.shape_cast %130 : vector<1x64x64xbf16> to vector<64x64xbf16>
    %cst_157 = arith.constant dense<0.000000e+00> : vector<32x64xf32>
    %132 = tpu.matmul %129, %131, %cst_157 {dimension_numbers = #tpu.dot_dimension_numbers<[1], [0], [0], [1], [0, 0, 1, 1], [], []>} : vector<32x64xbf16>, vector<64x64xbf16>, vector<32x64xf32> -> vector<32x64xf32>
    %133 = arith.addf %127, %132 : vector<32x64xf32>
    %c0_158 = arith.constant 0 : index
    %c1_159 = arith.constant 1 : index
    %c1_160 = arith.constant 1 : index
    %c0_161 = arith.constant 0 : index
    %134 = vector.load %arg9[%c0_158, %c1_159, %c1_160, %c0_161] : memref<1x10x6x64xbf16, #tpu.memory_space<vmem>>, vector<1x8x4x64xbf16>
    %135 = vector.shape_cast %134 : vector<1x8x4x64xbf16> to vector<32x64xbf16>
    %c4_162 = arith.constant 4 : index
    %c0_163 = arith.constant 0 : index
    %c0_164 = arith.constant 0 : index
    %136 = vector.load %arg4[%c4_162, %c0_163, %c0_164] : memref<9x64x64xbf16, #tpu.memory_space<vmem>>, vector<1x64x64xbf16>
    %137 = vector.shape_cast %136 : vector<1x64x64xbf16> to vector<64x64xbf16>
    %cst_165 = arith.constant dense<0.000000e+00> : vector<32x64xf32>
    %138 = tpu.matmul %135, %137, %cst_165 {dimension_numbers = #tpu.dot_dimension_numbers<[1], [0], [0], [1], [0, 0, 1, 1], [], []>} : vector<32x64xbf16>, vector<64x64xbf16>, vector<32x64xf32> -> vector<32x64xf32>
    %139 = arith.addf %133, %138 : vector<32x64xf32>
    %c0_166 = arith.constant 0 : index
    %c1_167 = arith.constant 1 : index
    %c2_168 = arith.constant 2 : index
    %c0_169 = arith.constant 0 : index
    %140 = vector.load %arg9[%c0_166, %c1_167, %c2_168, %c0_169] : memref<1x10x6x64xbf16, #tpu.memory_space<vmem>>, vector<1x8x4x64xbf16>
    %141 = vector.shape_cast %140 : vector<1x8x4x64xbf16> to vector<32x64xbf16>
    %c5_170 = arith.constant 5 : index
    %c0_171 = arith.constant 0 : index
    %c0_172 = arith.constant 0 : index
    %142 = vector.load %arg4[%c5_170, %c0_171, %c0_172] : memref<9x64x64xbf16, #tpu.memory_space<vmem>>, vector<1x64x64xbf16>
    %143 = vector.shape_cast %142 : vector<1x64x64xbf16> to vector<64x64xbf16>
    %cst_173 = arith.constant dense<0.000000e+00> : vector<32x64xf32>
    %144 = tpu.matmul %141, %143, %cst_173 {dimension_numbers = #tpu.dot_dimension_numbers<[1], [0], [0], [1], [0, 0, 1, 1], [], []>} : vector<32x64xbf16>, vector<64x64xbf16>, vector<32x64xf32> -> vector<32x64xf32>
    %145 = arith.addf %139, %144 : vector<32x64xf32>
    %c0_174 = arith.constant 0 : index
    %c2_175 = arith.constant 2 : index
    %c0_176 = arith.constant 0 : index
    %c0_177 = arith.constant 0 : index
    %146 = vector.load %arg9[%c0_174, %c2_175, %c0_176, %c0_177] : memref<1x10x6x64xbf16, #tpu.memory_space<vmem>>, vector<1x8x4x64xbf16>
    %147 = vector.shape_cast %146 : vector<1x8x4x64xbf16> to vector<32x64xbf16>
    %c6_178 = arith.constant 6 : index
    %c0_179 = arith.constant 0 : index
    %c0_180 = arith.constant 0 : index
    %148 = vector.load %arg4[%c6_178, %c0_179, %c0_180] : memref<9x64x64xbf16, #tpu.memory_space<vmem>>, vector<1x64x64xbf16>
    %149 = vector.shape_cast %148 : vector<1x64x64xbf16> to vector<64x64xbf16>
    %cst_181 = arith.constant dense<0.000000e+00> : vector<32x64xf32>
    %150 = tpu.matmul %147, %149, %cst_181 {dimension_numbers = #tpu.dot_dimension_numbers<[1], [0], [0], [1], [0, 0, 1, 1], [], []>} : vector<32x64xbf16>, vector<64x64xbf16>, vector<32x64xf32> -> vector<32x64xf32>
    %151 = arith.addf %145, %150 : vector<32x64xf32>
    %c0_182 = arith.constant 0 : index
    %c2_183 = arith.constant 2 : index
    %c1_184 = arith.constant 1 : index
    %c0_185 = arith.constant 0 : index
    %152 = vector.load %arg9[%c0_182, %c2_183, %c1_184, %c0_185] : memref<1x10x6x64xbf16, #tpu.memory_space<vmem>>, vector<1x8x4x64xbf16>
    %153 = vector.shape_cast %152 : vector<1x8x4x64xbf16> to vector<32x64xbf16>
    %c7_186 = arith.constant 7 : index
    %c0_187 = arith.constant 0 : index
    %c0_188 = arith.constant 0 : index
    %154 = vector.load %arg4[%c7_186, %c0_187, %c0_188] : memref<9x64x64xbf16, #tpu.memory_space<vmem>>, vector<1x64x64xbf16>
    %155 = vector.shape_cast %154 : vector<1x64x64xbf16> to vector<64x64xbf16>
    %cst_189 = arith.constant dense<0.000000e+00> : vector<32x64xf32>
    %156 = tpu.matmul %153, %155, %cst_189 {dimension_numbers = #tpu.dot_dimension_numbers<[1], [0], [0], [1], [0, 0, 1, 1], [], []>} : vector<32x64xbf16>, vector<64x64xbf16>, vector<32x64xf32> -> vector<32x64xf32>
    %157 = arith.addf %151, %156 : vector<32x64xf32>
    %c0_190 = arith.constant 0 : index
    %c2_191 = arith.constant 2 : index
    %c2_192 = arith.constant 2 : index
    %c0_193 = arith.constant 0 : index
    %158 = vector.load %arg9[%c0_190, %c2_191, %c2_192, %c0_193] : memref<1x10x6x64xbf16, #tpu.memory_space<vmem>>, vector<1x8x4x64xbf16>
    %159 = vector.shape_cast %158 : vector<1x8x4x64xbf16> to vector<32x64xbf16>
    %c8_194 = arith.constant 8 : index
    %c0_195 = arith.constant 0 : index
    %c0_196 = arith.constant 0 : index
    %160 = vector.load %arg4[%c8_194, %c0_195, %c0_196] : memref<9x64x64xbf16, #tpu.memory_space<vmem>>, vector<1x64x64xbf16>
    %161 = vector.shape_cast %160 : vector<1x64x64xbf16> to vector<64x64xbf16>
    %cst_197 = arith.constant dense<0.000000e+00> : vector<32x64xf32>
    %162 = tpu.matmul %159, %161, %cst_197 {dimension_numbers = #tpu.dot_dimension_numbers<[1], [0], [0], [1], [0, 0, 1, 1], [], []>} : vector<32x64xbf16>, vector<64x64xbf16>, vector<32x64xf32> -> vector<32x64xf32>
    %163 = arith.addf %157, %162 : vector<32x64xf32>
    %c2_198 = arith.constant 2 : index
    %c0_199 = arith.constant 0 : index
    %164 = vector.load %arg5[%c2_198, %c0_199] : memref<3x64xf32, #tpu.memory_space<vmem>>, vector<1x64xf32>
    %165 = vector.shape_cast %164 : vector<1x64xf32> to vector<64xf32>
    %166 = vector.shape_cast %165 : vector<64xf32> to vector<1x64xf32>
    %167 = vector.broadcast %166 : vector<1x64xf32> to vector<32x64xf32>
    %168 = arith.mulf %163, %167 : vector<32x64xf32>
    %c2_200 = arith.constant 2 : index
    %c0_201 = arith.constant 0 : index
    %169 = vector.load %arg6[%c2_200, %c0_201] : memref<3x64xf32, #tpu.memory_space<vmem>>, vector<1x64xf32>
    %170 = vector.shape_cast %169 : vector<1x64xf32> to vector<64xf32>
    %171 = vector.shape_cast %170 : vector<64xf32> to vector<1x64xf32>
    %172 = vector.broadcast %171 : vector<1x64xf32> to vector<32x64xf32>
    %173 = arith.addf %168, %172 : vector<32x64xf32>
    %cst_202 = arith.constant 0.000000e+00 : f32
    %174 = vector.broadcast %cst_202 : f32 to vector<32x64xf32>
    %175 = arith.maximumf %173, %174 : vector<32x64xf32>
    %176 = vector.shape_cast %175 : vector<32x64xf32> to vector<1x8x4x64xf32>
    %177 = vector.shape_cast %176 : vector<1x8x4x64xf32> to vector<1x8x1x4x64xf32>
    %cst_203 = arith.constant dense<0.000000e+00> : vector<1x8x1x64xf32>
    %178 = vector.multi_reduction <add>, %177, %cst_203 [3] : vector<1x8x1x4x64xf32> to vector<1x8x1x64xf32>
    %cst_204 = arith.constant 2.500000e-01 : f32
    %179 = vector.broadcast %cst_204 : f32 to vector<1x8x1x64xf32>
    %180 = arith.mulf %178, %179 : vector<1x8x1x64xf32>
    %181 = vector.shape_cast %180 : vector<1x8x1x64xf32> to vector<1x8x64xf32>
    %c0_205 = arith.constant 0 : index
    %c0_206 = arith.constant 0 : index
    %c0_207 = arith.constant 0 : index
    %182 = vector.load %arg7[%c0_205, %c0_206, %c0_207] : memref<1x8x64xf32, #tpu.memory_space<vmem>>, vector<1x8x64xf32>
    tpu.vector_store %arg7[%c0_205, %c0_206, %c0_207], %181 {strides = array<i32>} : memref<1x8x64xf32, #tpu.memory_space<vmem>>, vector<1x8x64xf32>,
    return
  }
  func.func @transform_0(%arg0: i32) -> (i32, i32, i32) {
    %c0_i32 = arith.constant 0 : i32
    %c0_i32_0 = arith.constant 0 : i32
    %c0_i32_1 = arith.constant 0 : i32
    return %arg0, %c0_i32, %c0_i32_0 : i32, i32, i32
  }
  func.func @transform_1(%arg0: i32) -> (i32, i32) {
    %c0_i32 = arith.constant 0 : i32
    %c0_i32_0 = arith.constant 0 : i32
    %c0_i32_1 = arith.constant 0 : i32
    return %c0_i32, %c0_i32_0 : i32, i32
  }
  func.func @transform_2(%arg0: i32) -> (i32, i32, i32) {
    %c0_i32 = arith.constant 0 : i32
    %c0_i32_0 = arith.constant 0 : i32
    %c0_i32_1 = arith.constant 0 : i32
    %c0_i32_2 = arith.constant 0 : i32
    return %c0_i32, %c0_i32_0, %c0_i32_1 : i32, i32, i32
  }
  func.func @transform_3(%arg0: i32) -> (i32, i32, i32) {
    %c0_i32 = arith.constant 0 : i32
    %c0_i32_0 = arith.constant 0 : i32
    %c0_i32_1 = arith.constant 0 : i32
    %c0_i32_2 = arith.constant 0 : i32
    return %c0_i32, %c0_i32_0, %c0_i32_1 : i32, i32, i32
  }
  func.func @transform_4(%arg0: i32) -> (i32, i32) {
    %c0_i32 = arith.constant 0 : i32
    %c0_i32_0 = arith.constant 0 : i32
    %c0_i32_1 = arith.constant 0 : i32
    return %c0_i32, %c0_i32_0 : i32, i32
  }
  func.func @transform_5(%arg0: i32) -> (i32, i32) {
    %c0_i32 = arith.constant 0 : i32
    %c0_i32_0 = arith.constant 0 : i32
    %c0_i32_1 = arith.constant 0 : i32
    return %c0_i32, %c0_i32_0 : i32, i32
  }
  func.func @transform_6(%arg0: i32) -> (i32, i32, i32) {
    %c0_i32 = arith.constant 0 : i32
    %c0_i32_0 = arith.constant 0 : i32
    %c0_i32_1 = arith.constant 0 : i32
    return %arg0, %c0_i32, %c0_i32_0 : i32, i32, i32
  }
}

</mosaic_0001>

<llo_original>
// kernel: tpu_custom_call.1
$region0: #{tpu_custom_call.1}
  #allocation0 [shape = 'u32[]', space=smem, size = 0x4, offset = 0x4, fixed_abs, tag = 'smem constant byte address 0x4 - core index']
  #allocation1 [shape = 'u32[144,128]{1,0:T(1,128)}', space=vmem, size = 0x12000, scoped, tag = 'internal scratch']
  #allocation2 [shape = 'bf16[1,10,18,64]{3,2,1,0:T(8,128)(2,1)}', space=vmem, size = 0xf000, scoped, tag = 'scratch operand']
  #allocation3 [shape = 'bf16[1,10,6,64]{3,2,1,0:T(8,128)(2,1)}', space=vmem, size = 0x5000, scoped, tag = 'scratch operand']
  %s0 = inlined_call_operand.vmem [shape: f32[2,512,16], index: 0, kind: input, shape index: {}]
  %s1 = inlined_call_operand.vmem [shape: f32[16,64], index: 1, kind: input, shape index: {}]
  %s2 = inlined_call_operand.vmem [shape: bf16[9,64,64], index: 2, kind: input, shape index: {}]
  %s3 = inlined_call_operand.vmem [shape: bf16[9,64,64], index: 3, kind: input, shape index: {}]
  %s4 = inlined_call_operand.vmem [shape: f32[3,64], index: 4, kind: input, shape index: {}]
  %s5 = inlined_call_operand.vmem [shape: f32[3,64], index: 5, kind: input, shape index: {}]
  %s6 = inlined_call_operand.hbm [shape: f32[2,8,64], index: 6, kind: output, shape index: {}]
  %s7 = sld [smem:[#allocation0]]
  $region57: #{tpu_custom_call.1} parent=0
    _
  %s9 = ssub.s32 1, %s7
  %s10 = scalar_select 0, %s9, %s7
  $region1: #{tpu_custom_call.1} parent=0
    #allocation4 [shape = 'u8[8192]{0}', space=vmem, size = 0x2000, scoped, tag = 'output window, operand 0']
    #allocation5 [shape = 's32[2]{0}', space=sflag, size = 0x8, scoped, tag = 'scoped memory for tpu_custom_call.1']
    %11 = vsyncpa [#allocation5], 0
    %s12 = scalar_lea.sflag [#allocation5], 1
    %13 = vsyncpa %s12, 0
    loop: start=0, step=1, limit=4
    $region2: #{tpu_custom_call.1} parent=1 // loop_pre_header
      _
    $region3: #{tpu_custom_call.1} parent=1 // loop_header
      %s15 = sphi 0, %s19
      %p16 = scmp.ge.s32.totalorder %s15, 4
      %s25 = sphi 0, %s27
      %s28 = sphi 0, %s25
      %s29 = sphi 0, %s28
      %s45 = sphi 0, %s29
      %s49 = sphi 0, %s49
      %s51 = sphi 0, %s49
      %s52 = sphi 0, %s51
      %s66 = sphi 0, %s52
      %s70 = sphi 0, %s70
      %s72 = sphi 0, %s70
      %s73 = sphi 0, %s72
      %s87 = sphi 0, %s73
      %s91 = sphi 0, %s91
      %s93 = sphi 0, %s91
      %s94 = sphi 0, %s93
      %s108 = sphi 0, %s94
      %s112 = sphi 0, %s112
      %s114 = sphi 0, %s112
      %s115 = sphi 0, %s114
      %s129 = sphi 0, %s115
      %s133 = sphi 0, %s133
      %s135 = sphi 0, %s133
      %s136 = sphi 0, %s135
      %s150 = sphi 0, %s136
      %s156 = sphi 0, %s158
      %s159 = sphi 0, %s156
      %s160 = sphi 0, %s159
      %s176 = sphi 0, %s160
    $region4: #{tpu_custom_call.1} parent=1 // loop_header_branch
      %18 = sbr.rel (%p16) target = $region8
    $region5: #{tpu_custom_call.1} parent=1 // loop_body
      %s20 = ssub.s32 %s15, 1
      %s21 = ssub.s32 %s15, 2
      %s22 = sadd.s32 %s15, 1
      %s23 = ssub.s32 %s15, %s22
      %p24 = scmp.eq.s32.totalorder %s23, 0
      %s26 = sadd.s32 %s25, 1
      %s27 = scalar_select %p24, %s25, %s26
      %p30 = pneg %p24
      %p31 = scmp.eq.s32.totalorder %s15, 1
      %p32 = por %p30, %p31
      %p33 = scmp.ne.s32.totalorder %s25, %s28
      %p34 = scmp.eq.s32.totalorder %s15, 0
      %p35 = por %p33, %p34
      %p36 = scmp.ne.s32.totalorder %s25, %s28
      %p37 = scmp.eq.s32.totalorder %s20, 1
      %p38 = por %p36, %p37
      %p39 = scmp.ne.s32.totalorder %s28, %s29
      %p40 = scmp.eq.s32.totalorder %s20, 0
      %p41 = por %p39, %p40
      %p42 = scmp.ne.s32.totalorder %s28, %s29
      %p43 = scmp.eq.s32.totalorder %s21, 1
      %p44 = por %p42, %p43
      %p46 = scmp.ne.s32.totalorder %s29, %s45
      %p47 = scmp.eq.s32.totalorder %s21, 0
      %p48 = por %p46, %p47
      %s50 = sadd.s32 %s49, 1
      %p53 = scmp.eq.s32.totalorder %s15, 1
      %p54 = scmp.ne.s32.totalorder %s49, %s51
      %p55 = scmp.eq.s32.totalorder %s15, 0
      %p56 = por %p54, %p55
      %p57 = scmp.ne.s32.totalorder %s49, %s51
      %p58 = scmp.eq.s32.totalorder %s20, 1
      %p59 = por %p57, %p58
      %p60 = scmp.ne.s32.totalorder %s51, %s52
      %p61 = scmp.eq.s32.totalorder %s20, 0
      %p62 = por %p60, %p61
      %p63 = scmp.ne.s32.totalorder %s51, %s52
      %p64 = scmp.eq.s32.totalorder %s21, 1
      %p65 = por %p63, %p64
      %p67 = scmp.ne.s32.totalorder %s52, %s66
      %p68 = scmp.eq.s32.totalorder %s21, 0
      %p69 = por %p67, %p68
      %s71 = sadd.s32 %s70, 1
      %p74 = scmp.eq.s32.totalorder %s15, 1
      %p75 = scmp.ne.s32.totalorder %s70, %s72
      %p76 = scmp.eq.s32.totalorder %s15, 0
      %p77 = por %p75, %p76
      %p78 = scmp.ne.s32.totalorder %s70, %s72
      %p79 = scmp.eq.s32.totalorder %s20, 1
      %p80 = por %p78, %p79
      %p81 = scmp.ne.s32.totalorder %s72, %s73
      %p82 = scmp.eq.s32.totalorder %s20, 0
      %p83 = por %p81, %p82
      %p84 = scmp.ne.s32.totalorder %s72, %s73
      %p85 = scmp.eq.s32.totalorder %s21, 1
      %p86 = por %p84, %p85
      %p88 = scmp.ne.s32.totalorder %s73, %s87
      %p89 = scmp.eq.s32.totalorder %s21, 0
      %p90 = por %p88, %p89
      %s92 = sadd.s32 %s91, 1
      %p95 = scmp.eq.s32.totalorder %s15, 1
      %p96 = scmp.ne.s32.totalorder %s91, %s93
      %p97 = scmp.eq.s32.totalorder %s15, 0
      %p98 = por %p96, %p97
      %p99 = scmp.ne.s32.totalorder %s91, %s93
      %p100 = scmp.eq.s32.totalorder %s20, 1
      %p101 = por %p99, %p100
      %p102 = scmp.ne.s32.totalorder %s93, %s94
      %p103 = scmp.eq.s32.totalorder %s20, 0
      %p104 = por %p102, %p103
      %p105 = scmp.ne.s32.totalorder %s93, %s94
      %p106 = scmp.eq.s32.totalorder %s21, 1
      %p107 = por %p105, %p106
      %p109 = scmp.ne.s32.totalorder %s94, %s108
      %p110 = scmp.eq.s32.totalorder %s21, 0
      %p111 = por %p109, %p110
      %s113 = sadd.s32 %s112, 1
      %p116 = scmp.eq.s32.totalorder %s15, 1
      %p117 = scmp.ne.s32.totalorder %s112, %s114
      %p118 = scmp.eq.s32.totalorder %s15, 0
      %p119 = por %p117, %p118
      %p120 = scmp.ne.s32.totalorder %s112, %s114
      %p121 = scmp.eq.s32.totalorder %s20, 1
      %p122 = por %p120, %p121
      %p123 = scmp.ne.s32.totalorder %s114, %s115
      %p124 = scmp.eq.s32.totalorder %s20, 0
      %p125 = por %p123, %p124
      %p126 = scmp.ne.s32.totalorder %s114, %s115
      %p127 = scmp.eq.s32.totalorder %s21, 1
      %p128 = por %p126, %p127
      %p130 = scmp.ne.s32.totalorder %s115, %s129
      %p131 = scmp.eq.s32.totalorder %s21, 0
      %p132 = por %p130, %p131
      %s134 = sadd.s32 %s133, 1
      %p137 = scmp.eq.s32.totalorder %s15, 1
      %p138 = scmp.ne.s32.totalorder %s133, %s135
      %p139 = scmp.eq.s32.totalorder %s15, 0
      %p140 = por %p138, %p139
      %p141 = scmp.ne.s32.totalorder %s133, %s135
      %p142 = scmp.eq.s32.totalorder %s20, 1
      %p143 = por %p141, %p142
      %p144 = scmp.ne.s32.totalorder %s135, %s136
      %p145 = scmp.eq.s32.totalorder %s20, 0
      %p146 = por %p144, %p145
      %p147 = scmp.ne.s32.totalorder %s135, %s136
      %p148 = scmp.eq.s32.totalorder %s21, 1
      %p149 = por %p147, %p148
      %p151 = scmp.ne.s32.totalorder %s136, %s150
      %p152 = scmp.eq.s32.totalorder %s21, 0
      %p153 = por %p151, %p152
      %s154 = ssub.s32 %s15, %s22
      %p155 = scmp.eq.s32.totalorder %s154, 0
      %s157 = sadd.s32 %s156, 1
      %s158 = scalar_select %p155, %s156, %s157
      %p161 = pneg %p155
      %p162 = scmp.eq.s32.totalorder %s15, 1
      %p163 = por %p161, %p162
      %p164 = scmp.ne.s32.totalorder %s156, %s159
      %p165 = scmp.eq.s32.totalorder %s15, 0
      %p166 = por %p164, %p165
      %p167 = scmp.ne.s32.totalorder %s156, %s159
      %p168 = scmp.eq.s32.totalorder %s20, 1
      %p169 = por %p167, %p168
      %p170 = scmp.ne.s32.totalorder %s159, %s160
      %p171 = scmp.eq.s32.totalorder %s20, 0
      %p172 = por %p170, %p171
      %p173 = scmp.ne.s32.totalorder %s159, %s160
      %p174 = scmp.eq.s32.totalorder %s21, 1
      %p175 = por %p173, %p174
      %p177 = scmp.ne.s32.totalorder %s160, %s176
      %p178 = scmp.eq.s32.totalorder %s21, 0
      %p179 = por %p177, %p178
      %p180 = scmp.le.s32.totalorder 1, %s15
      %p181 = scmp.lt.s32.totalorder %s15, 3
      %p182 = pnand %p180, %p181
      %p183 = pneg %p182
      // Predicated region
      $region9: #{tpu_custom_call.1} parent=5 // pred_check
        _
      $region10: #{tpu_custom_call.1} parent=5 // pred_check_branch
        %185 = sbr.rel (%p182) target = $region12
      $region11: #{tpu_custom_call.1} parent=5 // pred_region
        %s186 = ssub.s32 %s15, 1
        // Predicated region
        $region13: #{tpu_custom_call.1} parent=11 // pred_check
          %p187 = pneg %p62
        $region14: #{tpu_custom_call.1} parent=11 // pred_check_branch
          %189 = sbr.rel (%p187) target = $region16
        $region15: #{tpu_custom_call.1} parent=11 // pred_region
          _
        $region16: #{tpu_custom_call.1} parent=11 // pred_fallthru
          _
        // Predicated region
        $region17: #{tpu_custom_call.1} parent=11 // pred_check
          %p190 = pneg %p83
        $region18: #{tpu_custom_call.1} parent=11 // pred_check_branch
          %192 = sbr.rel (%p190) target = $region20
        $region19: #{tpu_custom_call.1} parent=11 // pred_region
          _
        $region20: #{tpu_custom_call.1} parent=11 // pred_fallthru
          _
        // Predicated region
        $region21: #{tpu_custom_call.1} parent=11 // pred_check
          %p193 = pneg %p104
        $region22: #{tpu_custom_call.1} parent=11 // pred_check_branch
          %195 = sbr.rel (%p193) target = $region24
        $region23: #{tpu_custom_call.1} parent=11 // pred_region
          _
        $region24: #{tpu_custom_call.1} parent=11 // pred_fallthru
          _
        // Predicated region
        $region25: #{tpu_custom_call.1} parent=11 // pred_check
          %p196 = pneg %p125
        $region26: #{tpu_custom_call.1} parent=11 // pred_check_branch
          %198 = sbr.rel (%p196) target = $region28
        $region27: #{tpu_custom_call.1} parent=11 // pred_region
          _
        $region28: #{tpu_custom_call.1} parent=11 // pred_fallthru
          _
        // Predicated region
        $region29: #{tpu_custom_call.1} parent=11 // pred_check
          %p199 = pneg %p146
        $region30: #{tpu_custom_call.1} parent=11 // pred_check_branch
          %201 = sbr.rel (%p199) target = $region32
        $region31: #{tpu_custom_call.1} parent=11 // pred_region
          _
        $region32: #{tpu_custom_call.1} parent=11 // pred_fallthru
          _
      $region12: #{tpu_custom_call.1} parent=5 // pred_fallthru
        _
      %p202 = scmp.lt.s32.totalorder %s15, 2
      // Predicated region
      $region33: #{tpu_custom_call.1} parent=5 // pred_check
        %p203 = pneg %p202
      $region34: #{tpu_custom_call.1} parent=5 // pred_check_branch
        %205 = sbr.rel (%p203) target = $region36
      $region35: #{tpu_custom_call.1} parent=5 // pred_region
        // Predicated region
        $region37: #{tpu_custom_call.1} parent=35 // pred_check
          %p206 = pneg %p35
        $region38: #{tpu_custom_call.1} parent=35 // pred_check_branch
          %208 = sbr.rel (%p206) target = $region40
        $region39: #{tpu_custom_call.1} parent=35 // pred_region
          %p209 = scmp.lt.s32.totalorder %s15, 1
          %s210 = scalar_select %p209, %s15, 1
          %s211 = smul.addr %s210, 64
          %s212 = smul.addr %s211, 8
          %s213 = scalar_lea.vmem %s0, %s212
        $region40: #{tpu_custom_call.1} parent=35 // pred_fallthru
          _
      $region36: #{tpu_custom_call.1} parent=5 // pred_fallthru
        _
      %p214 = scmp.le.s32.totalorder 1, %s15
      %p215 = scmp.lt.s32.totalorder %s15, 3
      %p216 = pnand %p214, %p215
      %p217 = pneg %p216
      // Predicated region
      $region41: #{tpu_custom_call.1} parent=5 // pred_check
        _
      $region42: #{tpu_custom_call.1} parent=5 // pred_check_branch
        %219 = sbr.rel (%p216) target = $region44
      $region43: #{tpu_custom_call.1} parent=5 // pred_region
        %s220 = ssub.s32 %s15, 1
        %p221 = scmp.lt.s32.totalorder %s20, 1
        %s222 = scalar_select %p221, %s20, 1
        %s223 = smul.addr %s222, 64
        %s224 = smul.addr %s223, 8
        %s225 = scalar_lea.vmem %s0, %s224
        %p226 = pneg %p41
        %p227 = pneg %p38
        %p228 = pneg %p62
        %p229 = pneg %p59
        %p230 = pneg %p83
        %p231 = pneg %p80
        %p232 = pneg %p104
        %p233 = pneg %p101
        %p234 = pneg %p125
        %p235 = pneg %p122
        %p236 = pneg %p146
        %p237 = pneg %p143
        %p238 = pneg %p172
        %p239 = pneg %p169
        %s240 = sand.u32 %s159, 1
        %s241 = scalar_lea.sflag [#allocation5], %s240
        %s242 = sand.u32 %s159, 1
        %s243 = smul.addr %s242, 8
        %s244 = scalar_lea.vmem [#allocation4], %s243
        %p245 = scmp.lt.s32.totalorder %s20, 1
        %s246 = scalar_select %p245, %s20, 1
        %s247 = smul.addr %s246, 64
        %s248 = smul.addr %s247, 8
        %s249 = scalar_lea.vmem %s0, %s248
        %v251 = vld [vmem:[%s249] sm:$0xff]
        %v252 = vld [vmem:[%s249 + $0x8] sm:$0xff]
        %v253 = vld [vmem:[%s249 + $0x10] sm:$0xff]
        %v254 = vld [vmem:[%s249 + $0x18] sm:$0xff]
        %v255 = vld [vmem:[%s249 + $0x20] sm:$0xff]
        %v256 = vld [vmem:[%s249 + $0x28] sm:$0xff]
        %v257 = vld [vmem:[%s249 + $0x30] sm:$0xff]
        %v258 = vld [vmem:[%s249 + $0x38] sm:$0xff]
        %v259 = vld [vmem:[%s249 + $0x40] sm:$0xff]
        %v260 = vld [vmem:[%s249 + $0x48] sm:$0xff]
        %v261 = vld [vmem:[%s249 + $0x50] sm:$0xff]
        %v262 = vld [vmem:[%s249 + $0x58] sm:$0xff]
        %v263 = vld [vmem:[%s249 + $0x60] sm:$0xff]
        %v264 = vld [vmem:[%s249 + $0x68] sm:$0xff]
        %v265 = vld [vmem:[%s249 + $0x70] sm:$0xff]
        %v266 = vld [vmem:[%s249 + $0x78] sm:$0xff]
        %v267 = vld [vmem:[%s249 + $0x80] sm:$0xff]
        %v268 = vld [vmem:[%s249 + $0x88] sm:$0xff]
        %v269 = vld [vmem:[%s249 + $0x90] sm:$0xff]
        %v270 = vld [vmem:[%s249 + $0x98] sm:$0xff]
        %v271 = vld [vmem:[%s249 + $0xa0] sm:$0xff]
        %v272 = vld [vmem:[%s249 + $0xa8] sm:$0xff]
        %v273 = vld [vmem:[%s249 + $0xb0] sm:$0xff]
        %v274 = vld [vmem:[%s249 + $0xb8] sm:$0xff]
        %v275 = vld [vmem:[%s249 + $0xc0] sm:$0xff]
        %v276 = vld [vmem:[%s249 + $0xc8] sm:$0xff]
        %v277 = vld [vmem:[%s249 + $0xd0] sm:$0xff]
        %v278 = vld [vmem:[%s249 + $0xd8] sm:$0xff]
        %v279 = vld [vmem:[%s249 + $0xe0] sm:$0xff]
        %v280 = vld [vmem:[%s249 + $0xe8] sm:$0xff]
        %v281 = vld [vmem:[%s249 + $0xf0] sm:$0xff]
        %v282 = vld [vmem:[%s249 + $0xf8] sm:$0xff]
        %v283 = vld [vmem:[%s249 + $0x100] sm:$0xff]
        %v284 = vld [vmem:[%s249 + $0x108] sm:$0xff]
        %v285 = vld [vmem:[%s249 + $0x110] sm:$0xff]
        %v286 = vld [vmem:[%s249 + $0x118] sm:$0xff]
        %v287 = vld [vmem:[%s249 + $0x120] sm:$0xff]
        %v288 = vld [vmem:[%s249 + $0x128] sm:$0xff]
        %v289 = vld [vmem:[%s249 + $0x130] sm:$0xff]
        %v290 = vld [vmem:[%s249 + $0x138] sm:$0xff]
        %v291 = vld [vmem:[%s249 + $0x140] sm:$0xff]
        %v292 = vld [vmem:[%s249 + $0x148] sm:$0xff]
        %v293 = vld [vmem:[%s249 + $0x150] sm:$0xff]
        %v294 = vld [vmem:[%s249 + $0x158] sm:$0xff]
        %v295 = vld [vmem:[%s249 + $0x160] sm:$0xff]
        %v296 = vld [vmem:[%s249 + $0x168] sm:$0xff]
        %v297 = vld [vmem:[%s249 + $0x170] sm:$0xff]
        %v298 = vld [vmem:[%s249 + $0x178] sm:$0xff]
        %v299 = vld [vmem:[%s249 + $0x180] sm:$0xff]
        %v300 = vld [vmem:[%s249 + $0x188] sm:$0xff]
        %v301 = vld [vmem:[%s249 + $0x190] sm:$0xff]
        %v302 = vld [vmem:[%s249 + $0x198] sm:$0xff]
        %v303 = vld [vmem:[%s249 + $0x1a0] sm:$0xff]
        %v304 = vld [vmem:[%s249 + $0x1a8] sm:$0xff]
        %v305 = vld [vmem:[%s249 + $0x1b0] sm:$0xff]
        %v306 = vld [vmem:[%s249 + $0x1b8] sm:$0xff]
        %v307 = vld [vmem:[%s249 + $0x1c0] sm:$0xff]
        %v308 = vld [vmem:[%s249 + $0x1c8] sm:$0xff]
        %v309 = vld [vmem:[%s249 + $0x1d0] sm:$0xff]
        %v310 = vld [vmem:[%s249 + $0x1d8] sm:$0xff]
        %v311 = vld [vmem:[%s249 + $0x1e0] sm:$0xff]
        %v312 = vld [vmem:[%s249 + $0x1e8] sm:$0xff]
        %v313 = vld [vmem:[%s249 + $0x1f0] sm:$0xff]
        %v314 = vld [vmem:[%s249 + $0x1f8] sm:$0xff]
        %v315 = vld [vmem:[%s1] sm:$0xff]
        %v316 = vld [vmem:[%s1 + $0x8] sm:$0xff]
        %vm317 = vcmask 130048
        %v319 = vsel %vm317, %v251, 0
        %v322 = vsel %vm317, %v252, 0
        %v325 = vsel %vm317, %v253, 0
        %v328 = vsel %vm317, %v254, 0
        %v331 = vsel %vm317, %v255, 0
        %v334 = vsel %vm317, %v256, 0
        %v337 = vsel %vm317, %v257, 0
        %v340 = vsel %vm317, %v258, 0
        %v343 = vsel %vm317, %v259, 0
        %v346 = vsel %vm317, %v260, 0
        %v349 = vsel %vm317, %v261, 0
        %v352 = vsel %vm317, %v262, 0
        %v355 = vsel %vm317, %v263, 0
        %v358 = vsel %vm317, %v264, 0
        %v361 = vsel %vm317, %v265, 0
        %v364 = vsel %vm317, %v266, 0
        %v367 = vsel %vm317, %v267, 0
        %v370 = vsel %vm317, %v268, 0
        %v373 = vsel %vm317, %v269, 0
        %v376 = vsel %vm317, %v270, 0
        %v379 = vsel %vm317, %v271, 0
        %v382 = vsel %vm317, %v272, 0
        %v385 = vsel %vm317, %v273, 0
        %v388 = vsel %vm317, %v274, 0
        %v391 = vsel %vm317, %v275, 0
        %v394 = vsel %vm317, %v276, 0
        %v397 = vsel %vm317, %v277, 0
        %v400 = vsel %vm317, %v278, 0
        %v403 = vsel %vm317, %v279, 0
        %v406 = vsel %vm317, %v280, 0
        %v409 = vsel %vm317, %v281, 0
        %v412 = vsel %vm317, %v282, 0
        %v415 = vsel %vm317, %v283, 0
        %v418 = vsel %vm317, %v284, 0
        %v421 = vsel %vm317, %v285, 0
        %v424 = vsel %vm317, %v286, 0
        %v427 = vsel %vm317, %v287, 0
        %v430 = vsel %vm317, %v288, 0
        %v433 = vsel %vm317, %v289, 0
        %v436 = vsel %vm317, %v290, 0
        %v439 = vsel %vm317, %v291, 0
        %v442 = vsel %vm317, %v292, 0
        %v445 = vsel %vm317, %v293, 0
        %v448 = vsel %vm317, %v294, 0
        %v451 = vsel %vm317, %v295, 0
        %v454 = vsel %vm317, %v296, 0
        %v457 = vsel %vm317, %v297, 0
        %v460 = vsel %vm317, %v298, 0
        %v463 = vsel %vm317, %v299, 0
        %v466 = vsel %vm317, %v300, 0
        %v469 = vsel %vm317, %v301, 0
        %v472 = vsel %vm317, %v302, 0
        %v475 = vsel %vm317, %v303, 0
        %v478 = vsel %vm317, %v304, 0
        %v481 = vsel %vm317, %v305, 0
        %v484 = vsel %vm317, %v306, 0
        %v487 = vsel %vm317, %v307, 0
        %v490 = vsel %vm317, %v308, 0
        %v493 = vsel %vm317, %v309, 0
        %v496 = vsel %vm317, %v310, 0
        %v499 = vsel %vm317, %v311, 0
        %v502 = vsel %vm317, %v312, 0
        %v505 = vsel %vm317, %v313, 0
        %v508 = vsel %vm317, %v314, 0
        %510 = vmatprep.subr.mxu0 0.0
        %511 = vmatpush1.msra.mxu0 %v315
        %512 = vmatprep.subr.mxu0 0.0
        %513 = vmatpush1.msra.mxu0 %v316
        %514 = vmatprep.subr.mxu0 0.0
        %515 = vmatpush1.msra.mxu0 0.0
        %516 = vmatprep.subr.mxu0 0.0
        %517 = vmatpush1.msra.mxu0 0.0
        %518 = vmatprep.subr.mxu0 0.0
        %519 = vmatpush1.msra.mxu0 0.0
        %520 = vmatprep.subr.mxu0 0.0
        %521 = vmatpush1.msra.mxu0 0.0
        %522 = vmatprep.subr.mxu0 0.0
        %523 = vmatpush1.msra.mxu0 0.0
        %524 = vmatprep.subr.mxu0 0.0
        %525 = vmatpush1.msra.mxu0 0.0
        %526 = vmatprep.subr.mxu0 0.0
        %527 = vmatpush1.msra.mxu0 0.0
        %528 = vmatprep.subr.mxu0 0.0
        %529 = vmatpush1.msra.mxu0 0.0
        %530 = vmatprep.subr.mxu0 0.0
        %531 = vmatpush1.msra.mxu0 0.0
        %532 = vmatprep.subr.mxu0 0.0
        %533 = vmatpush1.msra.mxu0 0.0
        %534 = vmatprep.subr.mxu0 0.0
        %535 = vmatpush1.msra.mxu0 0.0
        %536 = vmatprep.subr.mxu0 0.0
        %537 = vmatpush1.msra.mxu0 0.0
        %538 = vmatprep.subr.mxu0 0.0
        %539 = vmatpush1.msra.mxu0 0.0
        %540 = vmatprep.subr.mxu0 0.0
        %541 = vmatpush1.msra.mxu0 0.0
        %542 = vmatprep.subr.mxu0 0.0
        %543 = vmatpush1.msra.mxu0 0.0
        %544 = vmatprep.subr.mxu0 0.0
        %545 = vmatpush1.msra.mxu0 0.0
        %546 = vmatprep.subr.mxu0 0.0
        %547 = vmatpush1.msra.mxu0 0.0
        %548 = vmatprep.subr.mxu0 0.0
        %549 = vmatpush1.msra.mxu0 0.0
        %550 = vmatprep.subr.mxu0 0.0
        %551 = vmatpush1.msra.mxu0 0.0
        %552 = vmatprep.subr.mxu0 0.0
        %553 = vmatpush1.msra.mxu0 0.0
        %554 = vmatprep.subr.mxu0 0.0
        %555 = vmatpush1.msra.mxu0 0.0
        %556 = vmatprep.subr.mxu0 0.0
        %557 = vmatpush1.msra.mxu0 0.0
        %558 = vmatprep.subr.mxu0 0.0
        %559 = vmatpush1.msra.mxu0 0.0
        %560 = vmatprep.subr.mxu0 0.0
        %561 = vmatpush1.msra.mxu0 0.0
        %562 = vmatprep.subr.mxu0 0.0
        %563 = vmatpush1.msra.mxu0 0.0
        %564 = vmatprep.subr.mxu0 0.0
        %565 = vmatpush1.msra.mxu0 0.0
        %566 = vmatprep.subr.mxu0 0.0
        %567 = vmatpush1.msra.mxu0 0.0
        %568 = vmatprep.subr.mxu0 0.0
        %569 = vmatpush1.msra.mxu0 0.0
        %570 = vmatprep.subr.mxu0 0.0
        %571 = vmatpush1.msra.mxu0 0.0
        %572 = vmatprep.subr.mxu0 0.0
        %573 = vmatpush1.msra.mxu0 0.0
        %574 = vmatprep.mubr.f32.mxu0 0.0
        %575 = vmatmul.mubr.f32.gmra.mrb[0].mxu0 %v319
        %v576 = vpop.f32.mrb[0].mxu0
        %v577 = vadd.f32 0.0, %v576
        %v578 = vpop.f32.mrb[0].mxu0
        %579 = vmatprep.mubr.f32.mxu0 0.0
        %580 = vmatmul.mubr.f32.gmra.mrb[0].mxu0 %v322
        %v581 = vpop.f32.mrb[0].mxu0
        %v582 = vadd.f32 0.0, %v581
        %v583 = vpop.f32.mrb[0].mxu0
        %584 = vmatprep.mubr.f32.mxu0 0.0
        %585 = vmatmul.mubr.f32.gmra.mrb[0].mxu0 %v325
        %v586 = vpop.f32.mrb[0].mxu0
        %v587 = vadd.f32 0.0, %v586
        %v588 = vpop.f32.mrb[0].mxu0
        %589 = vmatprep.mubr.f32.mxu0 0.0
        %590 = vmatmul.mubr.f32.gmra.mrb[0].mxu0 %v328
        %v591 = vpop.f32.mrb[0].mxu0
        %v592 = vadd.f32 0.0, %v591
        %v593 = vpop.f32.mrb[0].mxu0
        %594 = vmatprep.mubr.f32.mxu0 0.0
        %595 = vmatmul.mubr.f32.gmra.mrb[0].mxu0 %v331
        %v596 = vpop.f32.mrb[0].mxu0
        %v597 = vadd.f32 0.0, %v596
        %v598 = vpop.f32.mrb[0].mxu0
        %599 = vmatprep.mubr.f32.mxu0 0.0
        %600 = vmatmul.mubr.f32.gmra.mrb[0].mxu0 %v334
        %v601 = vpop.f32.mrb[0].mxu0
        %v602 = vadd.f32 0.0, %v601
        %v603 = vpop.f32.mrb[0].mxu0
        %604 = vmatprep.mubr.f32.mxu0 0.0
        %605 = vmatmul.mubr.f32.gmra.mrb[0].mxu0 %v337
        %v606 = vpop.f32.mrb[0].mxu0
        %v607 = vadd.f32 0.0, %v606
        %v608 = vpop.f32.mrb[0].mxu0
        %609 = vmatprep.mubr.f32.mxu0 0.0
        %610 = vmatmul.mubr.f32.gmra.mrb[0].mxu0 %v340
        %v611 = vpop.f32.mrb[0].mxu0
        %v612 = vadd.f32 0.0, %v611
        %v613 = vpop.f32.mrb[0].mxu0
        %614 = vmatprep.mubr.f32.mxu0 0.0
        %615 = vmatmul.mubr.f32.gmra.mrb[0].mxu0 %v343
        %v616 = vpop.f32.mrb[0].mxu0
        %v617 = vadd.f32 0.0, %v616
        %v618 = vpop.f32.mrb[0].mxu0
        %619 = vmatprep.mubr.f32.mxu0 0.0
        %620 = vmatmul.mubr.f32.gmra.mrb[0].mxu0 %v346
        %v621 = vpop.f32.mrb[0].mxu0
        %v622 = vadd.f32 0.0, %v621
        %v623 = vpop.f32.mrb[0].mxu0
        %624 = vmatprep.mubr.f32.mxu0 0.0
        %625 = vmatmul.mubr.f32.gmra.mrb[0].mxu0 %v349
        %v626 = vpop.f32.mrb[0].mxu0
        %v627 = vadd.f32 0.0, %v626
        %v628 = vpop.f32.mrb[0].mxu0
        %629 = vmatprep.mubr.f32.mxu0 0.0
        %630 = vmatmul.mubr.f32.gmra.mrb[0].mxu0 %v352
        %v631 = vpop.f32.mrb[0].mxu0
        %v632 = vadd.f32 0.0, %v631
        %v633 = vpop.f32.mrb[0].mxu0
        %634 = vmatprep.mubr.f32.mxu0 0.0
        %635 = vmatmul.mubr.f32.gmra.mrb[0].mxu0 %v355
        %v636 = vpop.f32.mrb[0].mxu0
        %v637 = vadd.f32 0.0, %v636
        %v638 = vpop.f32.mrb[0].mxu0
        %639 = vmatprep.mubr.f32.mxu0 0.0
        %640 = vmatmul.mubr.f32.gmra.mrb[0].mxu0 %v358
        %v641 = vpop.f32.mrb[0].mxu0
        %v642 = vadd.f32 0.0, %v641
        %v643 = vpop.f32.mrb[0].mxu0
        %644 = vmatprep.mubr.f32.mxu0 0.0
        %645 = vmatmul.mubr.f32.gmra.mrb[0].mxu0 %v361
        %v646 = vpop.f32.mrb[0].mxu0
        %v647 = vadd.f32 0.0, %v646
        %v648 = vpop.f32.mrb[0].mxu0
        %649 = vmatprep.mubr.f32.mxu0 0.0
        %650 = vmatmul.mubr.f32.gmra.mrb[0].mxu0 %v364
        %v651 = vpop.f32.mrb[0].mxu0
        %v652 = vadd.f32 0.0, %v651
        %v653 = vpop.f32.mrb[0].mxu0
        %654 = vmatprep.mubr.f32.mxu0 0.0
        %655 = vmatmul.mubr.f32.gmra.mrb[0].mxu0 %v367
        %v656 = vpop.f32.mrb[0].mxu0
        %v657 = vadd.f32 0.0, %v656
        %v658 = vpop.f32.mrb[0].mxu0
        %659 = vmatprep.mubr.f32.mxu0 0.0
        %660 = vmatmul.mubr.f32.gmra.mrb[0].mxu0 %v370
        %v661 = vpop.f32.mrb[0].mxu0
        %v662 = vadd.f32 0.0, %v661
        %v663 = vpop.f32.mrb[0].mxu0
        %664 = vmatprep.mubr.f32.mxu0 0.0
        %665 = vmatmul.mubr.f32.gmra.mrb[0].mxu0 %v373
        %v666 = vpop.f32.mrb[0].mxu0
        %v667 = vadd.f32 0.0, %v666
        %v668 = vpop.f32.mrb[0].mxu0
        %669 = vmatprep.mubr.f32.mxu0 0.0
        %670 = vmatmul.mubr.f32.gmra.mrb[0].mxu0 %v376
        %v671 = vpop.f32.mrb[0].mxu0
        %v672 = vadd.f32 0.0, %v671
        %v673 = vpop.f32.mrb[0].mxu0
        %674 = vmatprep.mubr.f32.mxu0 0.0
        %675 = vmatmul.mubr.f32.gmra.mrb[0].mxu0 %v379
        %v676 = vpop.f32.mrb[0].mxu0
        %v677 = vadd.f32 0.0, %v676
        %v678 = vpop.f32.mrb[0].mxu0
        %679 = vmatprep.mubr.f32.mxu0 0.0
        %680 = vmatmul.mubr.f32.gmra.mrb[0].mxu0 %v382
        %v681 = vpop.f32.mrb[0].mxu0
        %v682 = vadd.f32 0.0, %v681
        %v683 = vpop.f32.mrb[0].mxu0
        %684 = vmatprep.mubr.f32.mxu0 0.0
        %685 = vmatmul.mubr.f32.gmra.mrb[0].mxu0 %v385
        %v686 = vpop.f32.mrb[0].mxu0
        %v687 = vadd.f32 0.0, %v686
        %v688 = vpop.f32.mrb[0].mxu0
        %689 = vmatprep.mubr.f32.mxu0 0.0
        %690 = vmatmul.mubr.f32.gmra.mrb[0].mxu0 %v388
        %v691 = vpop.f32.mrb[0].mxu0
        %v692 = vadd.f32 0.0, %v691
        %v693 = vpop.f32.mrb[0].mxu0
        %694 = vmatprep.mubr.f32.mxu0 0.0
        %695 = vmatmul.mubr.f32.gmra.mrb[0].mxu0 %v391
        %v696 = vpop.f32.mrb[0].mxu0
        %v697 = vadd.f32 0.0, %v696
        %v698 = vpop.f32.mrb[0].mxu0
        %699 = vmatprep.mubr.f32.mxu0 0.0
        %700 = vmatmul.mubr.f32.gmra.mrb[0].mxu0 %v394
        %v701 = vpop.f32.mrb[0].mxu0
        %v702 = vadd.f32 0.0, %v701
        %v703 = vpop.f32.mrb[0].mxu0
        %704 = vmatprep.mubr.f32.mxu0 0.0
        %705 = vmatmul.mubr.f32.gmra.mrb[0].mxu0 %v397
        %v706 = vpop.f32.mrb[0].mxu0
        %v707 = vadd.f32 0.0, %v706
        %v708 = vpop.f32.mrb[0].mxu0
        %709 = vmatprep.mubr.f32.mxu0 0.0
        %710 = vmatmul.mubr.f32.gmra.mrb[0].mxu0 %v400
        %v711 = vpop.f32.mrb[0].mxu0
        %v712 = vadd.f32 0.0, %v711
        %v713 = vpop.f32.mrb[0].mxu0
        %714 = vmatprep.mubr.f32.mxu0 0.0
        %715 = vmatmul.mubr.f32.gmra.mrb[0].mxu0 %v403
        %v716 = vpop.f32.mrb[0].mxu0
        %v717 = vadd.f32 0.0, %v716
        %v718 = vpop.f32.mrb[0].mxu0
        %719 = vmatprep.mubr.f32.mxu0 0.0
        %720 = vmatmul.mubr.f32.gmra.mrb[0].mxu0 %v406
        %v721 = vpop.f32.mrb[0].mxu0
        %v722 = vadd.f32 0.0, %v721
        %v723 = vpop.f32.mrb[0].mxu0
        %724 = vmatprep.mubr.f32.mxu0 0.0
        %725 = vmatmul.mubr.f32.gmra.mrb[0].mxu0 %v409
        %v726 = vpop.f32.mrb[0].mxu0
        %v727 = vadd.f32 0.0, %v726
        %v728 = vpop.f32.mrb[0].mxu0
        %729 = vmatprep.mubr.f32.mxu0 0.0
        %730 = vmatmul.mubr.f32.gmra.mrb[0].mxu0 %v412
        %v731 = vpop.f32.mrb[0].mxu0
        %v732 = vadd.f32 0.0, %v731
        %v733 = vpop.f32.mrb[0].mxu0
        %734 = vmatprep.mubr.f32.mxu0 0.0
        %735 = vmatmul.mubr.f32.gmra.mrb[0].mxu0 %v415
        %v736 = vpop.f32.mrb[0].mxu0
        %v737 = vadd.f32 0.0, %v736
        %v738 = vpop.f32.mrb[0].mxu0
        %739 = vmatprep.mubr.f32.mxu0 0.0
        %740 = vmatmul.mubr.f32.gmra.mrb[0].mxu0 %v418
        %v741 = vpop.f32.mrb[0].mxu0
        %v742 = vadd.f32 0.0, %v741
        %v743 = vpop.f32.mrb[0].mxu0
        %744 = vmatprep.mubr.f32.mxu0 0.0
        %745 = vmatmul.mubr.f32.gmra.mrb[0].mxu0 %v421
        %v746 = vpop.f32.mrb[0].mxu0
        %v747 = vadd.f32 0.0, %v746
        %v748 = vpop.f32.mrb[0].mxu0
        %749 = vmatprep.mubr.f32.mxu0 0.0
        %750 = vmatmul.mubr.f32.gmra.mrb[0].mxu0 %v424
        %v751 = vpop.f32.mrb[0].mxu0
        %v752 = vadd.f32 0.0, %v751
        %v753 = vpop.f32.mrb[0].mxu0
        %754 = vmatprep.mubr.f32.mxu0 0.0
        %755 = vmatmul.mubr.f32.gmra.mrb[0].mxu0 %v427
        %v756 = vpop.f32.mrb[0].mxu0
        %v757 = vadd.f32 0.0, %v756
        %v758 = vpop.f32.mrb[0].mxu0
        %759 = vmatprep.mubr.f32.mxu0 0.0
        %760 = vmatmul.mubr.f32.gmra.mrb[0].mxu0 %v430
        %v761 = vpop.f32.mrb[0].mxu0
        %v762 = vadd.f32 0.0, %v761
        %v763 = vpop.f32.mrb[0].mxu0
        %764 = vmatprep.mubr.f32.mxu0 0.0
        %765 = vmatmul.mubr.f32.gmra.mrb[0].mxu0 %v433
        %v766 = vpop.f32.mrb[0].mxu0
        %v767 = vadd.f32 0.0, %v766
        %v768 = vpop.f32.mrb[0].mxu0
        %769 = vmatprep.mubr.f32.mxu0 0.0
        %770 = vmatmul.mubr.f32.gmra.mrb[0].mxu0 %v436
        %v771 = vpop.f32.mrb[0].mxu0
        %v772 = vadd.f32 0.0, %v771
        %v773 = vpop.f32.mrb[0].mxu0
        %774 = vmatprep.mubr.f32.mxu0 0.0
        %775 = vmatmul.mubr.f32.gmra.mrb[0].mxu0 %v439
        %v776 = vpop.f32.mrb[0].mxu0
        %v777 = vadd.f32 0.0, %v776
        %v778 = vpop.f32.mrb[0].mxu0
        %779 = vmatprep.mubr.f32.mxu0 0.0
        %780 = vmatmul.mubr.f32.gmra.mrb[0].mxu0 %v442
        %v781 = vpop.f32.mrb[0].mxu0
        %v782 = vadd.f32 0.0, %v781
        %v783 = vpop.f32.mrb[0].mxu0
        %784 = vmatprep.mubr.f32.mxu0 0.0
        %785 = vmatmul.mubr.f32.gmra.mrb[0].mxu0 %v445
        %v786 = vpop.f32.mrb[0].mxu0
        %v787 = vadd.f32 0.0, %v786
        %v788 = vpop.f32.mrb[0].mxu0
        %789 = vmatprep.mubr.f32.mxu0 0.0
        %790 = vmatmul.mubr.f32.gmra.mrb[0].mxu0 %v448
        %v791 = vpop.f32.mrb[0].mxu0
        %v792 = vadd.f32 0.0, %v791
        %v793 = vpop.f32.mrb[0].mxu0
        %794 = vmatprep.mubr.f32.mxu0 0.0
        %795 = vmatmul.mubr.f32.gmra.mrb[0].mxu0 %v451
        %v796 = vpop.f32.mrb[0].mxu0
        %v797 = vadd.f32 0.0, %v796
        %v798 = vpop.f32.mrb[0].mxu0
        %799 = vmatprep.mubr.f32.mxu0 0.0
        %800 = vmatmul.mubr.f32.gmra.mrb[0].mxu0 %v454
        %v801 = vpop.f32.mrb[0].mxu0
        %v802 = vadd.f32 0.0, %v801
        %v803 = vpop.f32.mrb[0].mxu0
        %804 = vmatprep.mubr.f32.mxu0 0.0
        %805 = vmatmul.mubr.f32.gmra.mrb[0].mxu0 %v457
        %v806 = vpop.f32.mrb[0].mxu0
        %v807 = vadd.f32 0.0, %v806
        %v808 = vpop.f32.mrb[0].mxu0
        %809 = vmatprep.mubr.f32.mxu0 0.0
        %810 = vmatmul.mubr.f32.gmra.mrb[0].mxu0 %v460
        %v811 = vpop.f32.mrb[0].mxu0
        %v812 = vadd.f32 0.0, %v811
        %v813 = vpop.f32.mrb[0].mxu0
        %814 = vmatprep.mubr.f32.mxu0 0.0
        %815 = vmatmul.mubr.f32.gmra.mrb[0].mxu0 %v463
        %v816 = vpop.f32.mrb[0].mxu0
        %v817 = vadd.f32 0.0, %v816
        %v818 = vpop.f32.mrb[0].mxu0
        %819 = vmatprep.mubr.f32.mxu0 0.0
        %820 = vmatmul.mubr.f32.gmra.mrb[0].mxu0 %v466
        %v821 = vpop.f32.mrb[0].mxu0
        %v822 = vadd.f32 0.0, %v821
        %v823 = vpop.f32.mrb[0].mxu0
        %824 = vmatprep.mubr.f32.mxu0 0.0
        %825 = vmatmul.mubr.f32.gmra.mrb[0].mxu0 %v469
        %v826 = vpop.f32.mrb[0].mxu0
        %v827 = vadd.f32 0.0, %v826
        %v828 = vpop.f32.mrb[0].mxu0
        %829 = vmatprep.mubr.f32.mxu0 0.0
        %830 = vmatmul.mubr.f32.gmra.mrb[0].mxu0 %v472
        %v831 = vpop.f32.mrb[0].mxu0
        %v832 = vadd.f32 0.0, %v831
        %v833 = vpop.f32.mrb[0].mxu0
        %834 = vmatprep.mubr.f32.mxu0 0.0
        %835 = vmatmul.mubr.f32.gmra.mrb[0].mxu0 %v475
        %v836 = vpop.f32.mrb[0].mxu0
        %v837 = vadd.f32 0.0, %v836
        %v838 = vpop.f32.mrb[0].mxu0
        %839 = vmatprep.mubr.f32.mxu0 0.0
        %840 = vmatmul.mubr.f32.gmra.mrb[0].mxu0 %v478
        %v841 = vpop.f32.mrb[0].mxu0
        %v842 = vadd.f32 0.0, %v841
        %v843 = vpop.f32.mrb[0].mxu0
        %844 = vmatprep.mubr.f32.mxu0 0.0
        %845 = vmatmul.mubr.f32.gmra.mrb[0].mxu0 %v481
        %v846 = vpop.f32.mrb[0].mxu0
        %v847 = vadd.f32 0.0, %v846
        %v848 = vpop.f32.mrb[0].mxu0
        %849 = vmatprep.mubr.f32.mxu0 0.0
        %850 = vmatmul.mubr.f32.gmra.mrb[0].mxu0 %v484
        %v851 = vpop.f32.mrb[0].mxu0
        %v852 = vadd.f32 0.0, %v851
        %v853 = vpop.f32.mrb[0].mxu0
        %854 = vmatprep.mubr.f32.mxu0 0.0
        %855 = vmatmul.mubr.f32.gmra.mrb[0].mxu0 %v487
        %v856 = vpop.f32.mrb[0].mxu0
        %v857 = vadd.f32 0.0, %v856
        %v858 = vpop.f32.mrb[0].mxu0
        %859 = vmatprep.mubr.f32.mxu0 0.0
        %860 = vmatmul.mubr.f32.gmra.mrb[0].mxu0 %v490
        %v861 = vpop.f32.mrb[0].mxu0
        %v862 = vadd.f32 0.0, %v861
        %v863 = vpop.f32.mrb[0].mxu0
        %864 = vmatprep.mubr.f32.mxu0 0.0
        %865 = vmatmul.mubr.f32.gmra.mrb[0].mxu0 %v493
        %v866 = vpop.f32.mrb[0].mxu0
        %v867 = vadd.f32 0.0, %v866
        %v868 = vpop.f32.mrb[0].mxu0
        %869 = vmatprep.mubr.f32.mxu0 0.0
        %870 = vmatmul.mubr.f32.gmra.mrb[0].mxu0 %v496
        %v871 = vpop.f32.mrb[0].mxu0
        %v872 = vadd.f32 0.0, %v871
        %v873 = vpop.f32.mrb[0].mxu0
        %874 = vmatprep.mubr.f32.mxu0 0.0
        %875 = vmatmul.mubr.f32.gmra.mrb[0].mxu0 %v499
        %v876 = vpop.f32.mrb[0].mxu0
        %v877 = vadd.f32 0.0, %v876
        %v878 = vpop.f32.mrb[0].mxu0
        %879 = vmatprep.mubr.f32.mxu0 0.0
        %880 = vmatmul.mubr.f32.gmra.mrb[0].mxu0 %v502
        %v881 = vpop.f32.mrb[0].mxu0
        %v882 = vadd.f32 0.0, %v881
        %v883 = vpop.f32.mrb[0].mxu0
        %884 = vmatprep.mubr.f32.mxu0 0.0
        %885 = vmatmul.mubr.f32.gmra.mrb[0].mxu0 %v505
        %v886 = vpop.f32.mrb[0].mxu0
        %v887 = vadd.f32 0.0, %v886
        %v888 = vpop.f32.mrb[0].mxu0
        %889 = vmatprep.mubr.f32.mxu0 0.0
        %890 = vmatmul.mubr.f32.gmra.mrb[0].mxu0 %v508
        %v891 = vpop.f32.mrb[0].mxu0
        %v892 = vadd.f32 0.0, %v891
        %v893 = vpop.f32.mrb[0].mxu0
        %894 = vdwg.mxu0
        %v895 = vld [vmem:[%s4] sm:$0x1]
        %v896 = vlaneseq
        %v897 = vshrl.u32 %v896, 7
        %v898 = vsub.s32 0, %v897
        %v899 = vrot.slane %v895, %v898
        %v900 = vmul.f32 %v577, %v899
        %v901 = vmul.f32 %v582, %v899
        %v902 = vmul.f32 %v587, %v899
        %v903 = vmul.f32 %v592, %v899
        %v904 = vmul.f32 %v597, %v899
        %v905 = vmul.f32 %v602, %v899
        %v906 = vmul.f32 %v607, %v899
        %v907 = vmul.f32 %v612, %v899
        %v908 = vmul.f32 %v617, %v899
        %v909 = vmul.f32 %v622, %v899
        %v910 = vmul.f32 %v627, %v899
        %v911 = vmul.f32 %v632, %v899
        %v912 = vmul.f32 %v637, %v899
        %v913 = vmul.f32 %v642, %v899
        %v914 = vmul.f32 %v647, %v899
        %v915 = vmul.f32 %v652, %v899
        %v916 = vmul.f32 %v657, %v899
        %v917 = vmul.f32 %v662, %v899
        %v918 = vmul.f32 %v667, %v899
        %v919 = vmul.f32 %v672, %v899
        %v920 = vmul.f32 %v677, %v899
        %v921 = vmul.f32 %v682, %v899
        %v922 = vmul.f32 %v687, %v899
        %v923 = vmul.f32 %v692, %v899
        %v924 = vmul.f32 %v697, %v899
        %v925 = vmul.f32 %v702, %v899
        %v926 = vmul.f32 %v707, %v899
        %v927 = vmul.f32 %v712, %v899
        %v928 = vmul.f32 %v717, %v899
        %v929 = vmul.f32 %v722, %v899
        %v930 = vmul.f32 %v727, %v899
        %v931 = vmul.f32 %v732, %v899
        %v932 = vmul.f32 %v737, %v899
        %v933 = vmul.f32 %v742, %v899
        %v934 = vmul.f32 %v747, %v899
        %v935 = vmul.f32 %v752, %v899
        %v936 = vmul.f32 %v757, %v899
        %v937 = vmul.f32 %v762, %v899
        %v938 = vmul.f32 %v767, %v899
        %v939 = vmul.f32 %v772, %v899
        %v940 = vmul.f32 %v777, %v899
        %v941 = vmul.f32 %v782, %v899
        %v942 = vmul.f32 %v787, %v899
        %v943 = vmul.f32 %v792, %v899
        %v944 = vmul.f32 %v797, %v899
        %v945 = vmul.f32 %v802, %v899
        %v946 = vmul.f32 %v807, %v899
        %v947 = vmul.f32 %v812, %v899
        %v948 = vmul.f32 %v817, %v899
        %v949 = vmul.f32 %v822, %v899
        %v950 = vmul.f32 %v827, %v899
        %v951 = vmul.f32 %v832, %v899
        %v952 = vmul.f32 %v837, %v899
        %v953 = vmul.f32 %v842, %v899
        %v954 = vmul.f32 %v847, %v899
        %v955 = vmul.f32 %v852, %v899
        %v956 = vmul.f32 %v857, %v899
        %v957 = vmul.f32 %v862, %v899
        %v958 = vmul.f32 %v867, %v899
        %v959 = vmul.f32 %v872, %v899
        %v960 = vmul.f32 %v877, %v899
        %v961 = vmul.f32 %v882, %v899
        %v962 = vmul.f32 %v887, %v899
        %v963 = vmul.f32 %v892, %v899
        %v964 = vld [vmem:[%s5] sm:$0x1]
        %v965 = vlaneseq
        %v966 = vshrl.u32 %v965, 7
        %v967 = vsub.s32 0, %v966
        %v968 = vrot.slane %v964, %v967
        %v969 = vadd.f32 %v900, %v968
        %v970 = vadd.f32 %v901, %v968
        %v971 = vadd.f32 %v902, %v968
        %v972 = vadd.f32 %v903, %v968
        %v973 = vadd.f32 %v904, %v968
        %v974 = vadd.f32 %v905, %v968
        %v975 = vadd.f32 %v906, %v968
        %v976 = vadd.f32 %v907, %v968
        %v977 = vadd.f32 %v908, %v968
        %v978 = vadd.f32 %v909, %v968
        %v979 = vadd.f32 %v910, %v968
        %v980 = vadd.f32 %v911, %v968
        %v981 = vadd.f32 %v912, %v968
        %v982 = vadd.f32 %v913, %v968
        %v983 = vadd.f32 %v914, %v968
        %v984 = vadd.f32 %v915, %v968
        %v985 = vadd.f32 %v916, %v968
        %v986 = vadd.f32 %v917, %v968
        %v987 = vadd.f32 %v918, %v968
        %v988 = vadd.f32 %v919, %v968
        %v989 = vadd.f32 %v920, %v968
        %v990 = vadd.f32 %v921, %v968
        %v991 = vadd.f32 %v922, %v968
        %v992 = vadd.f32 %v923, %v968
        %v993 = vadd.f32 %v924, %v968
        %v994 = vadd.f32 %v925, %v968
        %v995 = vadd.f32 %v926, %v968
        %v996 = vadd.f32 %v927, %v968
        %v997 = vadd.f32 %v928, %v968
        %v998 = vadd.f32 %v929, %v968
        %v999 = vadd.f32 %v930, %v968
        %v1000 = vadd.f32 %v931, %v968
        %v1001 = vadd.f32 %v932, %v968
        %v1002 = vadd.f32 %v933, %v968
        %v1003 = vadd.f32 %v934, %v968
        %v1004 = vadd.f32 %v935, %v968
        %v1005 = vadd.f32 %v936, %v968
        %v1006 = vadd.f32 %v937, %v968
        %v1007 = vadd.f32 %v938, %v968
        %v1008 = vadd.f32 %v939, %v968
        %v1009 = vadd.f32 %v940, %v968
        %v1010 = vadd.f32 %v941, %v968
        %v1011 = vadd.f32 %v942, %v968
        %v1012 = vadd.f32 %v943, %v968
        %v1013 = vadd.f32 %v944, %v968
        %v1014 = vadd.f32 %v945, %v968
        %v1015 = vadd.f32 %v946, %v968
        %v1016 = vadd.f32 %v947, %v968
        %v1017 = vadd.f32 %v948, %v968
        %v1018 = vadd.f32 %v949, %v968
        %v1019 = vadd.f32 %v950, %v968
        %v1020 = vadd.f32 %v951, %v968
        %v1021 = vadd.f32 %v952, %v968
        %v1022 = vadd.f32 %v953, %v968
        %v1023 = vadd.f32 %v954, %v968
        %v1024 = vadd.f32 %v955, %v968
        %v1025 = vadd.f32 %v956, %v968
        %v1026 = vadd.f32 %v957, %v968
        %v1027 = vadd.f32 %v958, %v968
        %v1028 = vadd.f32 %v959, %v968
        %v1029 = vadd.f32 %v960, %v968
        %v1030 = vadd.f32 %v961, %v968
        %v1031 = vadd.f32 %v962, %v968
        %v1032 = vadd.f32 %v963, %v968
        %v1033 = vmax.f32 %v969, 0.0
        %v1034 = vmax.f32 %v970, 0.0
        %v1035 = vmax.f32 %v971, 0.0
        %v1036 = vmax.f32 %v972, 0.0
        %v1037 = vmax.f32 %v973, 0.0
        %v1038 = vmax.f32 %v974, 0.0
        %v1039 = vmax.f32 %v975, 0.0
        %v1040 = vmax.f32 %v976, 0.0
        %v1041 = vmax.f32 %v977, 0.0
        %v1042 = vmax.f32 %v978, 0.0
        %v1043 = vmax.f32 %v979, 0.0
        %v1044 = vmax.f32 %v980, 0.0
        %v1045 = vmax.f32 %v981, 0.0
        %v1046 = vmax.f32 %v982, 0.0
        %v1047 = vmax.f32 %v983, 0.0
        %v1048 = vmax.f32 %v984, 0.0
        %v1049 = vmax.f32 %v985, 0.0
        %v1050 = vmax.f32 %v986, 0.0
        %v1051 = vmax.f32 %v987, 0.0
        %v1052 = vmax.f32 %v988, 0.0
        %v1053 = vmax.f32 %v989, 0.0
        %v1054 = vmax.f32 %v990, 0.0
        %v1055 = vmax.f32 %v991, 0.0
        %v1056 = vmax.f32 %v992, 0.0
        %v1057 = vmax.f32 %v993, 0.0
        %v1058 = vmax.f32 %v994, 0.0
        %v1059 = vmax.f32 %v995, 0.0
        %v1060 = vmax.f32 %v996, 0.0
        %v1061 = vmax.f32 %v997, 0.0
        %v1062 = vmax.f32 %v998, 0.0
        %v1063 = vmax.f32 %v999, 0.0
        %v1064 = vmax.f32 %v1000, 0.0
        %v1065 = vmax.f32 %v1001, 0.0
        %v1066 = vmax.f32 %v1002, 0.0
        %v1067 = vmax.f32 %v1003, 0.0
        %v1068 = vmax.f32 %v1004, 0.0
        %v1069 = vmax.f32 %v1005, 0.0
        %v1070 = vmax.f32 %v1006, 0.0
        %v1071 = vmax.f32 %v1007, 0.0
        %v1072 = vmax.f32 %v1008, 0.0
        %v1073 = vmax.f32 %v1009, 0.0
        %v1074 = vmax.f32 %v1010, 0.0
        %v1075 = vmax.f32 %v1011, 0.0
        %v1076 = vmax.f32 %v1012, 0.0
        %v1077 = vmax.f32 %v1013, 0.0
        %v1078 = vmax.f32 %v1014, 0.0
        %v1079 = vmax.f32 %v1015, 0.0
        %v1080 = vmax.f32 %v1016, 0.0
        %v1081 = vmax.f32 %v1017, 0.0
        %v1082 = vmax.f32 %v1018, 0.0
        %v1083 = vmax.f32 %v1019, 0.0
        %v1084 = vmax.f32 %v1020, 0.0
        %v1085 = vmax.f32 %v1021, 0.0
        %v1086 = vmax.f32 %v1022, 0.0
        %v1087 = vmax.f32 %v1023, 0.0
        %v1088 = vmax.f32 %v1024, 0.0
        %v1089 = vmax.f32 %v1025, 0.0
        %v1090 = vmax.f32 %v1026, 0.0
        %v1091 = vmax.f32 %v1027, 0.0
        %v1092 = vmax.f32 %v1028, 0.0
        %v1093 = vmax.f32 %v1029, 0.0
        %v1094 = vmax.f32 %v1030, 0.0
        %v1095 = vmax.f32 %v1031, 0.0
        %v1096 = vmax.f32 %v1032, 0.0
        %v1161 = vcombine.high %v1033, %v1033
        %v1162 = vcombine.high %v1034, %v1034
        %v1163 = vcombine.high %v1035, %v1035
        %v1164 = vcombine.high %v1036, %v1036
        %v1165 = vcombine.high %v1037, %v1037
        %v1166 = vcombine.high %v1038, %v1038
        %v1167 = vcombine.high %v1039, %v1039
        %v1168 = vcombine.high %v1040, %v1040
        %v1169 = vcombine.high %v1041, %v1041
        %v1170 = vcombine.high %v1042, %v1042
        %v1171 = vcombine.high %v1043, %v1043
        %v1172 = vcombine.high %v1044, %v1044
        %v1173 = vcombine.high %v1045, %v1045
        %v1174 = vcombine.high %v1046, %v1046
        %v1175 = vcombine.high %v1047, %v1047
        %v1176 = vcombine.high %v1048, %v1048
        %v1177 = vcombine.high %v1049, %v1049
        %v1178 = vcombine.high %v1050, %v1050
        %v1179 = vcombine.high %v1051, %v1051
        %v1180 = vcombine.high %v1052, %v1052
        %v1181 = vcombine.high %v1053, %v1053
        %v1182 = vcombine.high %v1054, %v1054
        %v1183 = vcombine.high %v1055, %v1055
        %v1184 = vcombine.high %v1056, %v1056
        %v1185 = vcombine.high %v1057, %v1057
        %v1186 = vcombine.high %v1058, %v1058
        %v1187 = vcombine.high %v1059, %v1059
        %v1188 = vcombine.high %v1060, %v1060
        %v1189 = vcombine.high %v1061, %v1061
        %v1190 = vcombine.high %v1062, %v1062
        %v1191 = vcombine.high %v1063, %v1063
        %v1192 = vcombine.high %v1064, %v1064
        %v1193 = vcombine.high %v1065, %v1065
        %v1194 = vcombine.high %v1066, %v1066
        %v1195 = vcombine.high %v1067, %v1067
        %v1196 = vcombine.high %v1068, %v1068
        %v1197 = vcombine.high %v1069, %v1069
        %v1198 = vcombine.high %v1070, %v1070
        %v1199 = vcombine.high %v1071, %v1071
        %v1200 = vcombine.high %v1072, %v1072
        %v1201 = vcombine.high %v1073, %v1073
        %v1202 = vcombine.high %v1074, %v1074
        %v1203 = vcombine.high %v1075, %v1075
        %v1204 = vcombine.high %v1076, %v1076
        %v1205 = vcombine.high %v1077, %v1077
        %v1206 = vcombine.high %v1078, %v1078
        %v1207 = vcombine.high %v1079, %v1079
        %v1208 = vcombine.high %v1080, %v1080
        %v1209 = vcombine.high %v1081, %v1081
        %v1210 = vcombine.high %v1082, %v1082
        %v1211 = vcombine.high %v1083, %v1083
        %v1212 = vcombine.high %v1084, %v1084
        %v1213 = vcombine.high %v1085, %v1085
        %v1214 = vcombine.high %v1086, %v1086
        %v1215 = vcombine.high %v1087, %v1087
        %v1216 = vcombine.high %v1088, %v1088
        %v1217 = vcombine.high %v1089, %v1089
        %v1218 = vcombine.high %v1090, %v1090
        %v1219 = vcombine.high %v1091, %v1091
        %v1220 = vcombine.high %v1092, %v1092
        %v1221 = vcombine.high %v1093, %v1093
        %v1222 = vcombine.high %v1094, %v1094
        %v1223 = vcombine.high %v1095, %v1095
        %v1224 = vcombine.high %v1096, %v1096
        %vm1289 = vcmask 519168
        %v1290 = vsel %vm1289, %v1033, 0.0
        %v1291 = vrot.slane %v1290, 4
        %v1292 = vadd.f32 %v1290, %v1291
        %v1293 = vrot.slane %v1292, 2
        %v1294 = vadd.f32 %v1292, %v1293
        %v1295 = vrot.slane %v1294, 1
        %v1296 = vadd.f32 %v1294, %v1295
        %v1297 = vsel %vm1289, %v1161, 0.0
        %v1298 = vrot.slane %v1297, 4
        %v1299 = vadd.f32 %v1297, %v1298
        %v1300 = vrot.slane %v1299, 2
        %v1301 = vadd.f32 %v1299, %v1300
        %v1302 = vrot.slane %v1301, 1
        %v1303 = vadd.f32 %v1301, %v1302
        %v1304 = vsel %vm1289, %v1034, 0.0
        %v1305 = vrot.slane %v1304, 4
        %v1306 = vadd.f32 %v1304, %v1305
        %v1307 = vrot.slane %v1306, 2
        %v1308 = vadd.f32 %v1306, %v1307
        %v1309 = vrot.slane %v1308, 1
        %v1310 = vadd.f32 %v1308, %v1309
        %v1311 = vsel %vm1289, %v1162, 0.0
        %v1312 = vrot.slane %v1311, 4
        %v1313 = vadd.f32 %v1311, %v1312
        %v1314 = vrot.slane %v1313, 2
        %v1315 = vadd.f32 %v1313, %v1314
        %v1316 = vrot.slane %v1315, 1
        %v1317 = vadd.f32 %v1315, %v1316
        %v1318 = vsel %vm1289, %v1035, 0.0
        %v1319 = vrot.slane %v1318, 4
        %v1320 = vadd.f32 %v1318, %v1319
        %v1321 = vrot.slane %v1320, 2
        %v1322 = vadd.f32 %v1320, %v1321
        %v1323 = vrot.slane %v1322, 1
        %v1324 = vadd.f32 %v1322, %v1323
        %v1325 = vsel %vm1289, %v1163, 0.0
        %v1326 = vrot.slane %v1325, 4
        %v1327 = vadd.f32 %v1325, %v1326
        %v1328 = vrot.slane %v1327, 2
        %v1329 = vadd.f32 %v1327, %v1328
        %v1330 = vrot.slane %v1329, 1
        %v1331 = vadd.f32 %v1329, %v1330
        %v1332 = vsel %vm1289, %v1036, 0.0
        %v1333 = vrot.slane %v1332, 4
        %v1334 = vadd.f32 %v1332, %v1333
        %v1335 = vrot.slane %v1334, 2
        %v1336 = vadd.f32 %v1334, %v1335
        %v1337 = vrot.slane %v1336, 1
        %v1338 = vadd.f32 %v1336, %v1337
        %v1339 = vsel %vm1289, %v1164, 0.0
        %v1340 = vrot.slane %v1339, 4
        %v1341 = vadd.f32 %v1339, %v1340
        %v1342 = vrot.slane %v1341, 2
        %v1343 = vadd.f32 %v1341, %v1342
        %v1344 = vrot.slane %v1343, 1
        %v1345 = vadd.f32 %v1343, %v1344
        %v1346 = vsel %vm1289, %v1037, 0.0
        %v1347 = vrot.slane %v1346, 4
        %v1348 = vadd.f32 %v1346, %v1347
        %v1349 = vrot.slane %v1348, 2
        %v1350 = vadd.f32 %v1348, %v1349
        %v1351 = vrot.slane %v1350, 1
        %v1352 = vadd.f32 %v1350, %v1351
        %v1353 = vsel %vm1289, %v1165, 0.0
        %v1354 = vrot.slane %v1353, 4
        %v1355 = vadd.f32 %v1353, %v1354
        %v1356 = vrot.slane %v1355, 2
        %v1357 = vadd.f32 %v1355, %v1356
        %v1358 = vrot.slane %v1357, 1
        %v1359 = vadd.f32 %v1357, %v1358
        %v1360 = vsel %vm1289, %v1038, 0.0
        %v1361 = vrot.slane %v1360, 4
        %v1362 = vadd.f32 %v1360, %v1361
        %v1363 = vrot.slane %v1362, 2
        %v1364 = vadd.f32 %v1362, %v1363
        %v1365 = vrot.slane %v1364, 1
        %v1366 = vadd.f32 %v1364, %v1365
        %v1367 = vsel %vm1289, %v1166, 0.0
        %v1368 = vrot.slane %v1367, 4
        %v1369 = vadd.f32 %v1367, %v1368
        %v1370 = vrot.slane %v1369, 2
        %v1371 = vadd.f32 %v1369, %v1370
        %v1372 = vrot.slane %v1371, 1
        %v1373 = vadd.f32 %v1371, %v1372
        %v1374 = vsel %vm1289, %v1039, 0.0
        %v1375 = vrot.slane %v1374, 4
        %v1376 = vadd.f32 %v1374, %v1375
        %v1377 = vrot.slane %v1376, 2
        %v1378 = vadd.f32 %v1376, %v1377
        %v1379 = vrot.slane %v1378, 1
        %v1380 = vadd.f32 %v1378, %v1379
        %v1381 = vsel %vm1289, %v1167, 0.0
        %v1382 = vrot.slane %v1381, 4
        %v1383 = vadd.f32 %v1381, %v1382
        %v1384 = vrot.slane %v1383, 2
        %v1385 = vadd.f32 %v1383, %v1384
        %v1386 = vrot.slane %v1385, 1
        %v1387 = vadd.f32 %v1385, %v1386
        %v1388 = vsel %vm1289, %v1040, 0.0
        %v1389 = vrot.slane %v1388, 4
        %v1390 = vadd.f32 %v1388, %v1389
        %v1391 = vrot.slane %v1390, 2
        %v1392 = vadd.f32 %v1390, %v1391
        %v1393 = vrot.slane %v1392, 1
        %v1394 = vadd.f32 %v1392, %v1393
        %v1395 = vsel %vm1289, %v1168, 0.0
        %v1396 = vrot.slane %v1395, 4
        %v1397 = vadd.f32 %v1395, %v1396
        %v1398 = vrot.slane %v1397, 2
        %v1399 = vadd.f32 %v1397, %v1398
        %v1400 = vrot.slane %v1399, 1
        %v1401 = vadd.f32 %v1399, %v1400
        %v1402 = vsel %vm1289, %v1041, 0.0
        %v1403 = vrot.slane %v1402, 4
        %v1404 = vadd.f32 %v1402, %v1403
        %v1405 = vrot.slane %v1404, 2
        %v1406 = vadd.f32 %v1404, %v1405
        %v1407 = vrot.slane %v1406, 1
        %v1408 = vadd.f32 %v1406, %v1407
        %v1409 = vsel %vm1289, %v1169, 0.0
        %v1410 = vrot.slane %v1409, 4
        %v1411 = vadd.f32 %v1409, %v1410
        %v1412 = vrot.slane %v1411, 2
        %v1413 = vadd.f32 %v1411, %v1412
        %v1414 = vrot.slane %v1413, 1
        %v1415 = vadd.f32 %v1413, %v1414
        %v1416 = vsel %vm1289, %v1042, 0.0
        %v1417 = vrot.slane %v1416, 4
        %v1418 = vadd.f32 %v1416, %v1417
        %v1419 = vrot.slane %v1418, 2
        %v1420 = vadd.f32 %v1418, %v1419
        %v1421 = vrot.slane %v1420, 1
        %v1422 = vadd.f32 %v1420, %v1421
        %v1423 = vsel %vm1289, %v1170, 0.0
        %v1424 = vrot.slane %v1423, 4
        %v1425 = vadd.f32 %v1423, %v1424
        %v1426 = vrot.slane %v1425, 2
        %v1427 = vadd.f32 %v1425, %v1426
        %v1428 = vrot.slane %v1427, 1
        %v1429 = vadd.f32 %v1427, %v1428
        %v1430 = vsel %vm1289, %v1043, 0.0
        %v1431 = vrot.slane %v1430, 4
        %v1432 = vadd.f32 %v1430, %v1431
        %v1433 = vrot.slane %v1432, 2
        %v1434 = vadd.f32 %v1432, %v1433
        %v1435 = vrot.slane %v1434, 1
        %v1436 = vadd.f32 %v1434, %v1435
        %v1437 = vsel %vm1289, %v1171, 0.0
        %v1438 = vrot.slane %v1437, 4
        %v1439 = vadd.f32 %v1437, %v1438
        %v1440 = vrot.slane %v1439, 2
        %v1441 = vadd.f32 %v1439, %v1440
        %v1442 = vrot.slane %v1441, 1
        %v1443 = vadd.f32 %v1441, %v1442
        %v1444 = vsel %vm1289, %v1044, 0.0
        %v1445 = vrot.slane %v1444, 4
        %v1446 = vadd.f32 %v1444, %v1445
        %v1447 = vrot.slane %v1446, 2
        %v1448 = vadd.f32 %v1446, %v1447
        %v1449 = vrot.slane %v1448, 1
        %v1450 = vadd.f32 %v1448, %v1449
        %v1451 = vsel %vm1289, %v1172, 0.0
        %v1452 = vrot.slane %v1451, 4
        %v1453 = vadd.f32 %v1451, %v1452
        %v1454 = vrot.slane %v1453, 2
        %v1455 = vadd.f32 %v1453, %v1454
        %v1456 = vrot.slane %v1455, 1
        %v1457 = vadd.f32 %v1455, %v1456
        %v1458 = vsel %vm1289, %v1045, 0.0
        %v1459 = vrot.slane %v1458, 4
        %v1460 = vadd.f32 %v1458, %v1459
        %v1461 = vrot.slane %v1460, 2
        %v1462 = vadd.f32 %v1460, %v1461
        %v1463 = vrot.slane %v1462, 1
        %v1464 = vadd.f32 %v1462, %v1463
        %v1465 = vsel %vm1289, %v1173, 0.0
        %v1466 = vrot.slane %v1465, 4
        %v1467 = vadd.f32 %v1465, %v1466
        %v1468 = vrot.slane %v1467, 2
        %v1469 = vadd.f32 %v1467, %v1468
        %v1470 = vrot.slane %v1469, 1
        %v1471 = vadd.f32 %v1469, %v1470
        %v1472 = vsel %vm1289, %v1046, 0.0
        %v1473 = vrot.slane %v1472, 4
        %v1474 = vadd.f32 %v1472, %v1473
        %v1475 = vrot.slane %v1474, 2
        %v1476 = vadd.f32 %v1474, %v1475
        %v1477 = vrot.slane %v1476, 1
        %v1478 = vadd.f32 %v1476, %v1477
        %v1479 = vsel %vm1289, %v1174, 0.0
        %v1480 = vrot.slane %v1479, 4
        %v1481 = vadd.f32 %v1479, %v1480
        %v1482 = vrot.slane %v1481, 2
        %v1483 = vadd.f32 %v1481, %v1482
        %v1484 = vrot.slane %v1483, 1
        %v1485 = vadd.f32 %v1483, %v1484
        %v1486 = vsel %vm1289, %v1047, 0.0
        %v1487 = vrot.slane %v1486, 4
        %v1488 = vadd.f32 %v1486, %v1487
        %v1489 = vrot.slane %v1488, 2
        %v1490 = vadd.f32 %v1488, %v1489
        %v1491 = vrot.slane %v1490, 1
        %v1492 = vadd.f32 %v1490, %v1491
        %v1493 = vsel %vm1289, %v1175, 0.0
        %v1494 = vrot.slane %v1493, 4
        %v1495 = vadd.f32 %v1493, %v1494
        %v1496 = vrot.slane %v1495, 2
        %v1497 = vadd.f32 %v1495, %v1496
        %v1498 = vrot.slane %v1497, 1
        %v1499 = vadd.f32 %v1497, %v1498
        %v1500 = vsel %vm1289, %v1048, 0.0
        %v1501 = vrot.slane %v1500, 4
        %v1502 = vadd.f32 %v1500, %v1501
        %v1503 = vrot.slane %v1502, 2
        %v1504 = vadd.f32 %v1502, %v1503
        %v1505 = vrot.slane %v1504, 1
        %v1506 = vadd.f32 %v1504, %v1505
        %v1507 = vsel %vm1289, %v1176, 0.0
        %v1508 = vrot.slane %v1507, 4
        %v1509 = vadd.f32 %v1507, %v1508
        %v1510 = vrot.slane %v1509, 2
        %v1511 = vadd.f32 %v1509, %v1510
        %v1512 = vrot.slane %v1511, 1
        %v1513 = vadd.f32 %v1511, %v1512
        %v1514 = vsel %vm1289, %v1049, 0.0
        %v1515 = vrot.slane %v1514, 4
        %v1516 = vadd.f32 %v1514, %v1515
        %v1517 = vrot.slane %v1516, 2
        %v1518 = vadd.f32 %v1516, %v1517
        %v1519 = vrot.slane %v1518, 1
        %v1520 = vadd.f32 %v1518, %v1519
        %v1521 = vsel %vm1289, %v1177, 0.0
        %v1522 = vrot.slane %v1521, 4
        %v1523 = vadd.f32 %v1521, %v1522
        %v1524 = vrot.slane %v1523, 2
        %v1525 = vadd.f32 %v1523, %v1524
        %v1526 = vrot.slane %v1525, 1
        %v1527 = vadd.f32 %v1525, %v1526
        %v1528 = vsel %vm1289, %v1050, 0.0
        %v1529 = vrot.slane %v1528, 4
        %v1530 = vadd.f32 %v1528, %v1529
        %v1531 = vrot.slane %v1530, 2
        %v1532 = vadd.f32 %v1530, %v1531
        %v1533 = vrot.slane %v1532, 1
        %v1534 = vadd.f32 %v1532, %v1533
        %v1535 = vsel %vm1289, %v1178, 0.0
        %v1536 = vrot.slane %v1535, 4
        %v1537 = vadd.f32 %v1535, %v1536
        %v1538 = vrot.slane %v1537, 2
        %v1539 = vadd.f32 %v1537, %v1538
        %v1540 = vrot.slane %v1539, 1
        %v1541 = vadd.f32 %v1539, %v1540
        %v1542 = vsel %vm1289, %v1051, 0.0
        %v1543 = vrot.slane %v1542, 4
        %v1544 = vadd.f32 %v1542, %v1543
        %v1545 = vrot.slane %v1544, 2
        %v1546 = vadd.f32 %v1544, %v1545
        %v1547 = vrot.slane %v1546, 1
        %v1548 = vadd.f32 %v1546, %v1547
        %v1549 = vsel %vm1289, %v1179, 0.0
        %v1550 = vrot.slane %v1549, 4
        %v1551 = vadd.f32 %v1549, %v1550
        %v1552 = vrot.slane %v1551, 2
        %v1553 = vadd.f32 %v1551, %v1552
        %v1554 = vrot.slane %v1553, 1
        %v1555 = vadd.f32 %v1553, %v1554
        %v1556 = vsel %vm1289, %v1052, 0.0
        %v1557 = vrot.slane %v1556, 4
        %v1558 = vadd.f32 %v1556, %v1557
        %v1559 = vrot.slane %v1558, 2
        %v1560 = vadd.f32 %v1558, %v1559
        %v1561 = vrot.slane %v1560, 1
        %v1562 = vadd.f32 %v1560, %v1561
        %v1563 = vsel %vm1289, %v1180, 0.0
        %v1564 = vrot.slane %v1563, 4
        %v1565 = vadd.f32 %v1563, %v1564
        %v1566 = vrot.slane %v1565, 2
        %v1567 = vadd.f32 %v1565, %v1566
        %v1568 = vrot.slane %v1567, 1
        %v1569 = vadd.f32 %v1567, %v1568
        %v1570 = vsel %vm1289, %v1053, 0.0
        %v1571 = vrot.slane %v1570, 4
        %v1572 = vadd.f32 %v1570, %v1571
        %v1573 = vrot.slane %v1572, 2
        %v1574 = vadd.f32 %v1572, %v1573
        %v1575 = vrot.slane %v1574, 1
        %v1576 = vadd.f32 %v1574, %v1575
        %v1577 = vsel %vm1289, %v1181, 0.0
        %v1578 = vrot.slane %v1577, 4
        %v1579 = vadd.f32 %v1577, %v1578
        %v1580 = vrot.slane %v1579, 2
        %v1581 = vadd.f32 %v1579, %v1580
        %v1582 = vrot.slane %v1581, 1
        %v1583 = vadd.f32 %v1581, %v1582
        %v1584 = vsel %vm1289, %v1054, 0.0
        %v1585 = vrot.slane %v1584, 4
        %v1586 = vadd.f32 %v1584, %v1585
        %v1587 = vrot.slane %v1586, 2
        %v1588 = vadd.f32 %v1586, %v1587
        %v1589 = vrot.slane %v1588, 1
        %v1590 = vadd.f32 %v1588, %v1589
        %v1591 = vsel %vm1289, %v1182, 0.0
        %v1592 = vrot.slane %v1591, 4
        %v1593 = vadd.f32 %v1591, %v1592
        %v1594 = vrot.slane %v1593, 2
        %v1595 = vadd.f32 %v1593, %v1594
        %v1596 = vrot.slane %v1595, 1
        %v1597 = vadd.f32 %v1595, %v1596
        %v1598 = vsel %vm1289, %v1055, 0.0
        %v1599 = vrot.slane %v1598, 4
        %v1600 = vadd.f32 %v1598, %v1599
        %v1601 = vrot.slane %v1600, 2
        %v1602 = vadd.f32 %v1600, %v1601
        %v1603 = vrot.slane %v1602, 1
        %v1604 = vadd.f32 %v1602, %v1603
        %v1605 = vsel %vm1289, %v1183, 0.0
        %v1606 = vrot.slane %v1605, 4
        %v1607 = vadd.f32 %v1605, %v1606
        %v1608 = vrot.slane %v1607, 2
        %v1609 = vadd.f32 %v1607, %v1608
        %v1610 = vrot.slane %v1609, 1
        %v1611 = vadd.f32 %v1609, %v1610
        %v1612 = vsel %vm1289, %v1056, 0.0
        %v1613 = vrot.slane %v1612, 4
        %v1614 = vadd.f32 %v1612, %v1613
        %v1615 = vrot.slane %v1614, 2
        %v1616 = vadd.f32 %v1614, %v1615
        %v1617 = vrot.slane %v1616, 1
        %v1618 = vadd.f32 %v1616, %v1617
        %v1619 = vsel %vm1289, %v1184, 0.0
        %v1620 = vrot.slane %v1619, 4
        %v1621 = vadd.f32 %v1619, %v1620
        %v1622 = vrot.slane %v1621, 2
        %v1623 = vadd.f32 %v1621, %v1622
        %v1624 = vrot.slane %v1623, 1
        %v1625 = vadd.f32 %v1623, %v1624
        %v1626 = vsel %vm1289, %v1057, 0.0
        %v1627 = vrot.slane %v1626, 4
        %v1628 = vadd.f32 %v1626, %v1627
        %v1629 = vrot.slane %v1628, 2
        %v1630 = vadd.f32 %v1628, %v1629
        %v1631 = vrot.slane %v1630, 1
        %v1632 = vadd.f32 %v1630, %v1631
        %v1633 = vsel %vm1289, %v1185, 0.0
        %v1634 = vrot.slane %v1633, 4
        %v1635 = vadd.f32 %v1633, %v1634
        %v1636 = vrot.slane %v1635, 2
        %v1637 = vadd.f32 %v1635, %v1636
        %v1638 = vrot.slane %v1637, 1
        %v1639 = vadd.f32 %v1637, %v1638
        %v1640 = vsel %vm1289, %v1058, 0.0
        %v1641 = vrot.slane %v1640, 4
        %v1642 = vadd.f32 %v1640, %v1641
        %v1643 = vrot.slane %v1642, 2
        %v1644 = vadd.f32 %v1642, %v1643
        %v1645 = vrot.slane %v1644, 1
        %v1646 = vadd.f32 %v1644, %v1645
        %v1647 = vsel %vm1289, %v1186, 0.0
        %v1648 = vrot.slane %v1647, 4
        %v1649 = vadd.f32 %v1647, %v1648
        %v1650 = vrot.slane %v1649, 2
        %v1651 = vadd.f32 %v1649, %v1650
        %v1652 = vrot.slane %v1651, 1
        %v1653 = vadd.f32 %v1651, %v1652
        %v1654 = vsel %vm1289, %v1059, 0.0
        %v1655 = vrot.slane %v1654, 4
        %v1656 = vadd.f32 %v1654, %v1655
        %v1657 = vrot.slane %v1656, 2
        %v1658 = vadd.f32 %v1656, %v1657
        %v1659 = vrot.slane %v1658, 1
        %v1660 = vadd.f32 %v1658, %v1659
        %v1661 = vsel %vm1289, %v1187, 0.0
        %v1662 = vrot.slane %v1661, 4
        %v1663 = vadd.f32 %v1661, %v1662
        %v1664 = vrot.slane %v1663, 2
        %v1665 = vadd.f32 %v1663, %v1664
        %v1666 = vrot.slane %v1665, 1
        %v1667 = vadd.f32 %v1665, %v1666
        %v1668 = vsel %vm1289, %v1060, 0.0
        %v1669 = vrot.slane %v1668, 4
        %v1670 = vadd.f32 %v1668, %v1669
        %v1671 = vrot.slane %v1670, 2
        %v1672 = vadd.f32 %v1670, %v1671
        %v1673 = vrot.slane %v1672, 1
        %v1674 = vadd.f32 %v1672, %v1673
        %v1675 = vsel %vm1289, %v1188, 0.0
        %v1676 = vrot.slane %v1675, 4
        %v1677 = vadd.f32 %v1675, %v1676
        %v1678 = vrot.slane %v1677, 2
        %v1679 = vadd.f32 %v1677, %v1678
        %v1680 = vrot.slane %v1679, 1
        %v1681 = vadd.f32 %v1679, %v1680
        %v1682 = vsel %vm1289, %v1061, 0.0
        %v1683 = vrot.slane %v1682, 4
        %v1684 = vadd.f32 %v1682, %v1683
        %v1685 = vrot.slane %v1684, 2
        %v1686 = vadd.f32 %v1684, %v1685
        %v1687 = vrot.slane %v1686, 1
        %v1688 = vadd.f32 %v1686, %v1687
        %v1689 = vsel %vm1289, %v1189, 0.0
        %v1690 = vrot.slane %v1689, 4
        %v1691 = vadd.f32 %v1689, %v1690
        %v1692 = vrot.slane %v1691, 2
        %v1693 = vadd.f32 %v1691, %v1692
        %v1694 = vrot.slane %v1693, 1
        %v1695 = vadd.f32 %v1693, %v1694
        %v1696 = vsel %vm1289, %v1062, 0.0
        %v1697 = vrot.slane %v1696, 4
        %v1698 = vadd.f32 %v1696, %v1697
        %v1699 = vrot.slane %v1698, 2
        %v1700 = vadd.f32 %v1698, %v1699
        %v1701 = vrot.slane %v1700, 1
        %v1702 = vadd.f32 %v1700, %v1701
        %v1703 = vsel %vm1289, %v1190, 0.0
        %v1704 = vrot.slane %v1703, 4
        %v1705 = vadd.f32 %v1703, %v1704
        %v1706 = vrot.slane %v1705, 2
        %v1707 = vadd.f32 %v1705, %v1706
        %v1708 = vrot.slane %v1707, 1
        %v1709 = vadd.f32 %v1707, %v1708
        %v1710 = vsel %vm1289, %v1063, 0.0
        %v1711 = vrot.slane %v1710, 4
        %v1712 = vadd.f32 %v1710, %v1711
        %v1713 = vrot.slane %v1712, 2
        %v1714 = vadd.f32 %v1712, %v1713
        %v1715 = vrot.slane %v1714, 1
        %v1716 = vadd.f32 %v1714, %v1715
        %v1717 = vsel %vm1289, %v1191, 0.0
        %v1718 = vrot.slane %v1717, 4
        %v1719 = vadd.f32 %v1717, %v1718
        %v1720 = vrot.slane %v1719, 2
        %v1721 = vadd.f32 %v1719, %v1720
        %v1722 = vrot.slane %v1721, 1
        %v1723 = vadd.f32 %v1721, %v1722
        %v1724 = vsel %vm1289, %v1064, 0.0
        %v1725 = vrot.slane %v1724, 4
        %v1726 = vadd.f32 %v1724, %v1725
        %v1727 = vrot.slane %v1726, 2
        %v1728 = vadd.f32 %v1726, %v1727
        %v1729 = vrot.slane %v1728, 1
        %v1730 = vadd.f32 %v1728, %v1729
        %v1731 = vsel %vm1289, %v1192, 0.0
        %v1732 = vrot.slane %v1731, 4
        %v1733 = vadd.f32 %v1731, %v1732
        %v1734 = vrot.slane %v1733, 2
        %v1735 = vadd.f32 %v1733, %v1734
        %v1736 = vrot.slane %v1735, 1
        %v1737 = vadd.f32 %v1735, %v1736
        %v1738 = vsel %vm1289, %v1065, 0.0
        %v1739 = vrot.slane %v1738, 4
        %v1740 = vadd.f32 %v1738, %v1739
        %v1741 = vrot.slane %v1740, 2
        %v1742 = vadd.f32 %v1740, %v1741
        %v1743 = vrot.slane %v1742, 1
        %v1744 = vadd.f32 %v1742, %v1743
        %v1745 = vsel %vm1289, %v1193, 0.0
        %v1746 = vrot.slane %v1745, 4
        %v1747 = vadd.f32 %v1745, %v1746
        %v1748 = vrot.slane %v1747, 2
        %v1749 = vadd.f32 %v1747, %v1748
        %v1750 = vrot.slane %v1749, 1
        %v1751 = vadd.f32 %v1749, %v1750
        %v1752 = vsel %vm1289, %v1066, 0.0
        %v1753 = vrot.slane %v1752, 4
        %v1754 = vadd.f32 %v1752, %v1753
        %v1755 = vrot.slane %v1754, 2
        %v1756 = vadd.f32 %v1754, %v1755
        %v1757 = vrot.slane %v1756, 1
        %v1758 = vadd.f32 %v1756, %v1757
        %v1759 = vsel %vm1289, %v1194, 0.0
        %v1760 = vrot.slane %v1759, 4
        %v1761 = vadd.f32 %v1759, %v1760
        %v1762 = vrot.slane %v1761, 2
        %v1763 = vadd.f32 %v1761, %v1762
        %v1764 = vrot.slane %v1763, 1
        %v1765 = vadd.f32 %v1763, %v1764
        %v1766 = vsel %vm1289, %v1067, 0.0
        %v1767 = vrot.slane %v1766, 4
        %v1768 = vadd.f32 %v1766, %v1767
        %v1769 = vrot.slane %v1768, 2
        %v1770 = vadd.f32 %v1768, %v1769
        %v1771 = vrot.slane %v1770, 1
        %v1772 = vadd.f32 %v1770, %v1771
        %v1773 = vsel %vm1289, %v1195, 0.0
        %v1774 = vrot.slane %v1773, 4
        %v1775 = vadd.f32 %v1773, %v1774
        %v1776 = vrot.slane %v1775, 2
        %v1777 = vadd.f32 %v1775, %v1776
        %v1778 = vrot.slane %v1777, 1
        %v1779 = vadd.f32 %v1777, %v1778
        %v1780 = vsel %vm1289, %v1068, 0.0
        %v1781 = vrot.slane %v1780, 4
        %v1782 = vadd.f32 %v1780, %v1781
        %v1783 = vrot.slane %v1782, 2
        %v1784 = vadd.f32 %v1782, %v1783
        %v1785 = vrot.slane %v1784, 1
        %v1786 = vadd.f32 %v1784, %v1785
        %v1787 = vsel %vm1289, %v1196, 0.0
        %v1788 = vrot.slane %v1787, 4
        %v1789 = vadd.f32 %v1787, %v1788
        %v1790 = vrot.slane %v1789, 2
        %v1791 = vadd.f32 %v1789, %v1790
        %v1792 = vrot.slane %v1791, 1
        %v1793 = vadd.f32 %v1791, %v1792
        %v1794 = vsel %vm1289, %v1069, 0.0
        %v1795 = vrot.slane %v1794, 4
        %v1796 = vadd.f32 %v1794, %v1795
        %v1797 = vrot.slane %v1796, 2
        %v1798 = vadd.f32 %v1796, %v1797
        %v1799 = vrot.slane %v1798, 1
        %v1800 = vadd.f32 %v1798, %v1799
        %v1801 = vsel %vm1289, %v1197, 0.0
        %v1802 = vrot.slane %v1801, 4
        %v1803 = vadd.f32 %v1801, %v1802
        %v1804 = vrot.slane %v1803, 2
        %v1805 = vadd.f32 %v1803, %v1804
        %v1806 = vrot.slane %v1805, 1
        %v1807 = vadd.f32 %v1805, %v1806
        %v1808 = vsel %vm1289, %v1070, 0.0
        %v1809 = vrot.slane %v1808, 4
        %v1810 = vadd.f32 %v1808, %v1809
        %v1811 = vrot.slane %v1810, 2
        %v1812 = vadd.f32 %v1810, %v1811
        %v1813 = vrot.slane %v1812, 1
        %v1814 = vadd.f32 %v1812, %v1813
        %v1815 = vsel %vm1289, %v1198, 0.0
        %v1816 = vrot.slane %v1815, 4
        %v1817 = vadd.f32 %v1815, %v1816
        %v1818 = vrot.slane %v1817, 2
        %v1819 = vadd.f32 %v1817, %v1818
        %v1820 = vrot.slane %v1819, 1
        %v1821 = vadd.f32 %v1819, %v1820
        %v1822 = vsel %vm1289, %v1071, 0.0
        %v1823 = vrot.slane %v1822, 4
        %v1824 = vadd.f32 %v1822, %v1823
        %v1825 = vrot.slane %v1824, 2
        %v1826 = vadd.f32 %v1824, %v1825
        %v1827 = vrot.slane %v1826, 1
        %v1828 = vadd.f32 %v1826, %v1827
        %v1829 = vsel %vm1289, %v1199, 0.0
        %v1830 = vrot.slane %v1829, 4
        %v1831 = vadd.f32 %v1829, %v1830
        %v1832 = vrot.slane %v1831, 2
        %v1833 = vadd.f32 %v1831, %v1832
        %v1834 = vrot.slane %v1833, 1
        %v1835 = vadd.f32 %v1833, %v1834
        %v1836 = vsel %vm1289, %v1072, 0.0
        %v1837 = vrot.slane %v1836, 4
        %v1838 = vadd.f32 %v1836, %v1837
        %v1839 = vrot.slane %v1838, 2
        %v1840 = vadd.f32 %v1838, %v1839
        %v1841 = vrot.slane %v1840, 1
        %v1842 = vadd.f32 %v1840, %v1841
        %v1843 = vsel %vm1289, %v1200, 0.0
        %v1844 = vrot.slane %v1843, 4
        %v1845 = vadd.f32 %v1843, %v1844
        %v1846 = vrot.slane %v1845, 2
        %v1847 = vadd.f32 %v1845, %v1846
        %v1848 = vrot.slane %v1847, 1
        %v1849 = vadd.f32 %v1847, %v1848
        %v1850 = vsel %vm1289, %v1073, 0.0
        %v1851 = vrot.slane %v1850, 4
        %v1852 = vadd.f32 %v1850, %v1851
        %v1853 = vrot.slane %v1852, 2
        %v1854 = vadd.f32 %v1852, %v1853
        %v1855 = vrot.slane %v1854, 1
        %v1856 = vadd.f32 %v1854, %v1855
        %v1857 = vsel %vm1289, %v1201, 0.0
        %v1858 = vrot.slane %v1857, 4
        %v1859 = vadd.f32 %v1857, %v1858
        %v1860 = vrot.slane %v1859, 2
        %v1861 = vadd.f32 %v1859, %v1860
        %v1862 = vrot.slane %v1861, 1
        %v1863 = vadd.f32 %v1861, %v1862
        %v1864 = vsel %vm1289, %v1074, 0.0
        %v1865 = vrot.slane %v1864, 4
        %v1866 = vadd.f32 %v1864, %v1865
        %v1867 = vrot.slane %v1866, 2
        %v1868 = vadd.f32 %v1866, %v1867
        %v1869 = vrot.slane %v1868, 1
        %v1870 = vadd.f32 %v1868, %v1869
        %v1871 = vsel %vm1289, %v1202, 0.0
        %v1872 = vrot.slane %v1871, 4
        %v1873 = vadd.f32 %v1871, %v1872
        %v1874 = vrot.slane %v1873, 2
        %v1875 = vadd.f32 %v1873, %v1874
        %v1876 = vrot.slane %v1875, 1
        %v1877 = vadd.f32 %v1875, %v1876
        %v1878 = vsel %vm1289, %v1075, 0.0
        %v1879 = vrot.slane %v1878, 4
        %v1880 = vadd.f32 %v1878, %v1879
        %v1881 = vrot.slane %v1880, 2
        %v1882 = vadd.f32 %v1880, %v1881
        %v1883 = vrot.slane %v1882, 1
        %v1884 = vadd.f32 %v1882, %v1883
        %v1885 = vsel %vm1289, %v1203, 0.0
        %v1886 = vrot.slane %v1885, 4
        %v1887 = vadd.f32 %v1885, %v1886
        %v1888 = vrot.slane %v1887, 2
        %v1889 = vadd.f32 %v1887, %v1888
        %v1890 = vrot.slane %v1889, 1
        %v1891 = vadd.f32 %v1889, %v1890
        %v1892 = vsel %vm1289, %v1076, 0.0
        %v1893 = vrot.slane %v1892, 4
        %v1894 = vadd.f32 %v1892, %v1893
        %v1895 = vrot.slane %v1894, 2
        %v1896 = vadd.f32 %v1894, %v1895
        %v1897 = vrot.slane %v1896, 1
        %v1898 = vadd.f32 %v1896, %v1897
        %v1899 = vsel %vm1289, %v1204, 0.0
        %v1900 = vrot.slane %v1899, 4
        %v1901 = vadd.f32 %v1899, %v1900
        %v1902 = vrot.slane %v1901, 2
        %v1903 = vadd.f32 %v1901, %v1902
        %v1904 = vrot.slane %v1903, 1
        %v1905 = vadd.f32 %v1903, %v1904
        %v1906 = vsel %vm1289, %v1077, 0.0
        %v1907 = vrot.slane %v1906, 4
        %v1908 = vadd.f32 %v1906, %v1907
        %v1909 = vrot.slane %v1908, 2
        %v1910 = vadd.f32 %v1908, %v1909
        %v1911 = vrot.slane %v1910, 1
        %v1912 = vadd.f32 %v1910, %v1911
        %v1913 = vsel %vm1289, %v1205, 0.0
        %v1914 = vrot.slane %v1913, 4
        %v1915 = vadd.f32 %v1913, %v1914
        %v1916 = vrot.slane %v1915, 2
        %v1917 = vadd.f32 %v1915, %v1916
        %v1918 = vrot.slane %v1917, 1
        %v1919 = vadd.f32 %v1917, %v1918
        %v1920 = vsel %vm1289, %v1078, 0.0
        %v1921 = vrot.slane %v1920, 4
        %v1922 = vadd.f32 %v1920, %v1921
        %v1923 = vrot.slane %v1922, 2
        %v1924 = vadd.f32 %v1922, %v1923
        %v1925 = vrot.slane %v1924, 1
        %v1926 = vadd.f32 %v1924, %v1925
        %v1927 = vsel %vm1289, %v1206, 0.0
        %v1928 = vrot.slane %v1927, 4
        %v1929 = vadd.f32 %v1927, %v1928
        %v1930 = vrot.slane %v1929, 2
        %v1931 = vadd.f32 %v1929, %v1930
        %v1932 = vrot.slane %v1931, 1
        %v1933 = vadd.f32 %v1931, %v1932
        %v1934 = vsel %vm1289, %v1079, 0.0
        %v1935 = vrot.slane %v1934, 4
        %v1936 = vadd.f32 %v1934, %v1935
        %v1937 = vrot.slane %v1936, 2
        %v1938 = vadd.f32 %v1936, %v1937
        %v1939 = vrot.slane %v1938, 1
        %v1940 = vadd.f32 %v1938, %v1939
        %v1941 = vsel %vm1289, %v1207, 0.0
        %v1942 = vrot.slane %v1941, 4
        %v1943 = vadd.f32 %v1941, %v1942
        %v1944 = vrot.slane %v1943, 2
        %v1945 = vadd.f32 %v1943, %v1944
        %v1946 = vrot.slane %v1945, 1
        %v1947 = vadd.f32 %v1945, %v1946
        %v1948 = vsel %vm1289, %v1080, 0.0
        %v1949 = vrot.slane %v1948, 4
        %v1950 = vadd.f32 %v1948, %v1949
        %v1951 = vrot.slane %v1950, 2
        %v1952 = vadd.f32 %v1950, %v1951
        %v1953 = vrot.slane %v1952, 1
        %v1954 = vadd.f32 %v1952, %v1953
        %v1955 = vsel %vm1289, %v1208, 0.0
        %v1956 = vrot.slane %v1955, 4
        %v1957 = vadd.f32 %v1955, %v1956
        %v1958 = vrot.slane %v1957, 2
        %v1959 = vadd.f32 %v1957, %v1958
        %v1960 = vrot.slane %v1959, 1
        %v1961 = vadd.f32 %v1959, %v1960
        %v1962 = vsel %vm1289, %v1081, 0.0
        %v1963 = vrot.slane %v1962, 4
        %v1964 = vadd.f32 %v1962, %v1963
        %v1965 = vrot.slane %v1964, 2
        %v1966 = vadd.f32 %v1964, %v1965
        %v1967 = vrot.slane %v1966, 1
        %v1968 = vadd.f32 %v1966, %v1967
        %v1969 = vsel %vm1289, %v1209, 0.0
        %v1970 = vrot.slane %v1969, 4
        %v1971 = vadd.f32 %v1969, %v1970
        %v1972 = vrot.slane %v1971, 2
        %v1973 = vadd.f32 %v1971, %v1972
        %v1974 = vrot.slane %v1973, 1
        %v1975 = vadd.f32 %v1973, %v1974
        %v1976 = vsel %vm1289, %v1082, 0.0
        %v1977 = vrot.slane %v1976, 4
        %v1978 = vadd.f32 %v1976, %v1977
        %v1979 = vrot.slane %v1978, 2
        %v1980 = vadd.f32 %v1978, %v1979
        %v1981 = vrot.slane %v1980, 1
        %v1982 = vadd.f32 %v1980, %v1981
        %v1983 = vsel %vm1289, %v1210, 0.0
        %v1984 = vrot.slane %v1983, 4
        %v1985 = vadd.f32 %v1983, %v1984
        %v1986 = vrot.slane %v1985, 2
        %v1987 = vadd.f32 %v1985, %v1986
        %v1988 = vrot.slane %v1987, 1
        %v1989 = vadd.f32 %v1987, %v1988
        %v1990 = vsel %vm1289, %v1083, 0.0
        %v1991 = vrot.slane %v1990, 4
        %v1992 = vadd.f32 %v1990, %v1991
        %v1993 = vrot.slane %v1992, 2
        %v1994 = vadd.f32 %v1992, %v1993
        %v1995 = vrot.slane %v1994, 1
        %v1996 = vadd.f32 %v1994, %v1995
        %v1997 = vsel %vm1289, %v1211, 0.0
        %v1998 = vrot.slane %v1997, 4
        %v1999 = vadd.f32 %v1997, %v1998
        %v2000 = vrot.slane %v1999, 2
        %v2001 = vadd.f32 %v1999, %v2000
        %v2002 = vrot.slane %v2001, 1
        %v2003 = vadd.f32 %v2001, %v2002
        %v2004 = vsel %vm1289, %v1084, 0.0
        %v2005 = vrot.slane %v2004, 4
        %v2006 = vadd.f32 %v2004, %v2005
        %v2007 = vrot.slane %v2006, 2
        %v2008 = vadd.f32 %v2006, %v2007
        %v2009 = vrot.slane %v2008, 1
        %v2010 = vadd.f32 %v2008, %v2009
        %v2011 = vsel %vm1289, %v1212, 0.0
        %v2012 = vrot.slane %v2011, 4
        %v2013 = vadd.f32 %v2011, %v2012
        %v2014 = vrot.slane %v2013, 2
        %v2015 = vadd.f32 %v2013, %v2014
        %v2016 = vrot.slane %v2015, 1
        %v2017 = vadd.f32 %v2015, %v2016
        %v2018 = vsel %vm1289, %v1085, 0.0
        %v2019 = vrot.slane %v2018, 4
        %v2020 = vadd.f32 %v2018, %v2019
        %v2021 = vrot.slane %v2020, 2
        %v2022 = vadd.f32 %v2020, %v2021
        %v2023 = vrot.slane %v2022, 1
        %v2024 = vadd.f32 %v2022, %v2023
        %v2025 = vsel %vm1289, %v1213, 0.0
        %v2026 = vrot.slane %v2025, 4
        %v2027 = vadd.f32 %v2025, %v2026
        %v2028 = vrot.slane %v2027, 2
        %v2029 = vadd.f32 %v2027, %v2028
        %v2030 = vrot.slane %v2029, 1
        %v2031 = vadd.f32 %v2029, %v2030
        %v2032 = vsel %vm1289, %v1086, 0.0
        %v2033 = vrot.slane %v2032, 4
        %v2034 = vadd.f32 %v2032, %v2033
        %v2035 = vrot.slane %v2034, 2
        %v2036 = vadd.f32 %v2034, %v2035
        %v2037 = vrot.slane %v2036, 1
        %v2038 = vadd.f32 %v2036, %v2037
        %v2039 = vsel %vm1289, %v1214, 0.0
        %v2040 = vrot.slane %v2039, 4
        %v2041 = vadd.f32 %v2039, %v2040
        %v2042 = vrot.slane %v2041, 2
        %v2043 = vadd.f32 %v2041, %v2042
        %v2044 = vrot.slane %v2043, 1
        %v2045 = vadd.f32 %v2043, %v2044
        %v2046 = vsel %vm1289, %v1087, 0.0
        %v2047 = vrot.slane %v2046, 4
        %v2048 = vadd.f32 %v2046, %v2047
        %v2049 = vrot.slane %v2048, 2
        %v2050 = vadd.f32 %v2048, %v2049
        %v2051 = vrot.slane %v2050, 1
        %v2052 = vadd.f32 %v2050, %v2051
        %v2053 = vsel %vm1289, %v1215, 0.0
        %v2054 = vrot.slane %v2053, 4
        %v2055 = vadd.f32 %v2053, %v2054
        %v2056 = vrot.slane %v2055, 2
        %v2057 = vadd.f32 %v2055, %v2056
        %v2058 = vrot.slane %v2057, 1
        %v2059 = vadd.f32 %v2057, %v2058
        %v2060 = vsel %vm1289, %v1088, 0.0
        %v2061 = vrot.slane %v2060, 4
        %v2062 = vadd.f32 %v2060, %v2061
        %v2063 = vrot.slane %v2062, 2
        %v2064 = vadd.f32 %v2062, %v2063
        %v2065 = vrot.slane %v2064, 1
        %v2066 = vadd.f32 %v2064, %v2065
        %v2067 = vsel %vm1289, %v1216, 0.0
        %v2068 = vrot.slane %v2067, 4
        %v2069 = vadd.f32 %v2067, %v2068
        %v2070 = vrot.slane %v2069, 2
        %v2071 = vadd.f32 %v2069, %v2070
        %v2072 = vrot.slane %v2071, 1
        %v2073 = vadd.f32 %v2071, %v2072
        %v2074 = vsel %vm1289, %v1089, 0.0
        %v2075 = vrot.slane %v2074, 4
        %v2076 = vadd.f32 %v2074, %v2075
        %v2077 = vrot.slane %v2076, 2
        %v2078 = vadd.f32 %v2076, %v2077
        %v2079 = vrot.slane %v2078, 1
        %v2080 = vadd.f32 %v2078, %v2079
        %v2081 = vsel %vm1289, %v1217, 0.0
        %v2082 = vrot.slane %v2081, 4
        %v2083 = vadd.f32 %v2081, %v2082
        %v2084 = vrot.slane %v2083, 2
        %v2085 = vadd.f32 %v2083, %v2084
        %v2086 = vrot.slane %v2085, 1
        %v2087 = vadd.f32 %v2085, %v2086
        %v2088 = vsel %vm1289, %v1090, 0.0
        %v2089 = vrot.slane %v2088, 4
        %v2090 = vadd.f32 %v2088, %v2089
        %v2091 = vrot.slane %v2090, 2
        %v2092 = vadd.f32 %v2090, %v2091
        %v2093 = vrot.slane %v2092, 1
        %v2094 = vadd.f32 %v2092, %v2093
        %v2095 = vsel %vm1289, %v1218, 0.0
        %v2096 = vrot.slane %v2095, 4
        %v2097 = vadd.f32 %v2095, %v2096
        %v2098 = vrot.slane %v2097, 2
        %v2099 = vadd.f32 %v2097, %v2098
        %v2100 = vrot.slane %v2099, 1
        %v2101 = vadd.f32 %v2099, %v2100
        %v2102 = vsel %vm1289, %v1091, 0.0
        %v2103 = vrot.slane %v2102, 4
        %v2104 = vadd.f32 %v2102, %v2103
        %v2105 = vrot.slane %v2104, 2
        %v2106 = vadd.f32 %v2104, %v2105
        %v2107 = vrot.slane %v2106, 1
        %v2108 = vadd.f32 %v2106, %v2107
        %v2109 = vsel %vm1289, %v1219, 0.0
        %v2110 = vrot.slane %v2109, 4
        %v2111 = vadd.f32 %v2109, %v2110
        %v2112 = vrot.slane %v2111, 2
        %v2113 = vadd.f32 %v2111, %v2112
        %v2114 = vrot.slane %v2113, 1
        %v2115 = vadd.f32 %v2113, %v2114
        %v2116 = vsel %vm1289, %v1092, 0.0
        %v2117 = vrot.slane %v2116, 4
        %v2118 = vadd.f32 %v2116, %v2117
        %v2119 = vrot.slane %v2118, 2
        %v2120 = vadd.f32 %v2118, %v2119
        %v2121 = vrot.slane %v2120, 1
        %v2122 = vadd.f32 %v2120, %v2121
        %v2123 = vsel %vm1289, %v1220, 0.0
        %v2124 = vrot.slane %v2123, 4
        %v2125 = vadd.f32 %v2123, %v2124
        %v2126 = vrot.slane %v2125, 2
        %v2127 = vadd.f32 %v2125, %v2126
        %v2128 = vrot.slane %v2127, 1
        %v2129 = vadd.f32 %v2127, %v2128
        %v2130 = vsel %vm1289, %v1093, 0.0
        %v2131 = vrot.slane %v2130, 4
        %v2132 = vadd.f32 %v2130, %v2131
        %v2133 = vrot.slane %v2132, 2
        %v2134 = vadd.f32 %v2132, %v2133
        %v2135 = vrot.slane %v2134, 1
        %v2136 = vadd.f32 %v2134, %v2135
        %v2137 = vsel %vm1289, %v1221, 0.0
        %v2138 = vrot.slane %v2137, 4
        %v2139 = vadd.f32 %v2137, %v2138
        %v2140 = vrot.slane %v2139, 2
        %v2141 = vadd.f32 %v2139, %v2140
        %v2142 = vrot.slane %v2141, 1
        %v2143 = vadd.f32 %v2141, %v2142
        %v2144 = vsel %vm1289, %v1094, 0.0
        %v2145 = vrot.slane %v2144, 4
        %v2146 = vadd.f32 %v2144, %v2145
        %v2147 = vrot.slane %v2146, 2
        %v2148 = vadd.f32 %v2146, %v2147
        %v2149 = vrot.slane %v2148, 1
        %v2150 = vadd.f32 %v2148, %v2149
        %v2151 = vsel %vm1289, %v1222, 0.0
        %v2152 = vrot.slane %v2151, 4
        %v2153 = vadd.f32 %v2151, %v2152
        %v2154 = vrot.slane %v2153, 2
        %v2155 = vadd.f32 %v2153, %v2154
        %v2156 = vrot.slane %v2155, 1
        %v2157 = vadd.f32 %v2155, %v2156
        %v2158 = vsel %vm1289, %v1095, 0.0
        %v2159 = vrot.slane %v2158, 4
        %v2160 = vadd.f32 %v2158, %v2159
        %v2161 = vrot.slane %v2160, 2
        %v2162 = vadd.f32 %v2160, %v2161
        %v2163 = vrot.slane %v2162, 1
        %v2164 = vadd.f32 %v2162, %v2163
        %v2165 = vsel %vm1289, %v1223, 0.0
        %v2166 = vrot.slane %v2165, 4
        %v2167 = vadd.f32 %v2165, %v2166
        %v2168 = vrot.slane %v2167, 2
        %v2169 = vadd.f32 %v2167, %v2168
        %v2170 = vrot.slane %v2169, 1
        %v2171 = vadd.f32 %v2169, %v2170
        %v2172 = vsel %vm1289, %v1096, 0.0
        %v2173 = vrot.slane %v2172, 4
        %v2174 = vadd.f32 %v2172, %v2173
        %v2175 = vrot.slane %v2174, 2
        %v2176 = vadd.f32 %v2174, %v2175
        %v2177 = vrot.slane %v2176, 1
        %v2178 = vadd.f32 %v2176, %v2177
        %v2179 = vsel %vm1289, %v1224, 0.0
        %v2180 = vrot.slane %v2179, 4
        %v2181 = vadd.f32 %v2179, %v2180
        %v2182 = vrot.slane %v2181, 2
        %v2183 = vadd.f32 %v2181, %v2182
        %v2184 = vrot.slane %v2183, 1
        %v2185 = vadd.f32 %v2183, %v2184
        %v2186 = vmul.f32 %v1296, 0.25
        %v2187 = vmul.f32 %v1303, 0.25
        %v2188 = vmul.f32 %v1310, 0.25
        %v2189 = vmul.f32 %v1317, 0.25
        %v2190 = vmul.f32 %v1324, 0.25
        %v2191 = vmul.f32 %v1331, 0.25
        %v2192 = vmul.f32 %v1338, 0.25
        %v2193 = vmul.f32 %v1345, 0.25
        %v2194 = vmul.f32 %v1352, 0.25
        %v2195 = vmul.f32 %v1359, 0.25
        %v2196 = vmul.f32 %v1366, 0.25
        %v2197 = vmul.f32 %v1373, 0.25
        %v2198 = vmul.f32 %v1380, 0.25
        %v2199 = vmul.f32 %v1387, 0.25
        %v2200 = vmul.f32 %v1394, 0.25
        %v2201 = vmul.f32 %v1401, 0.25
        %v2202 = vmul.f32 %v1408, 0.25
        %v2203 = vmul.f32 %v1415, 0.25
        %v2204 = vmul.f32 %v1422, 0.25
        %v2205 = vmul.f32 %v1429, 0.25
        %v2206 = vmul.f32 %v1436, 0.25
        %v2207 = vmul.f32 %v1443, 0.25
        %v2208 = vmul.f32 %v1450, 0.25
        %v2209 = vmul.f32 %v1457, 0.25
        %v2210 = vmul.f32 %v1464, 0.25
        %v2211 = vmul.f32 %v1471, 0.25
        %v2212 = vmul.f32 %v1478, 0.25
        %v2213 = vmul.f32 %v1485, 0.25
        %v2214 = vmul.f32 %v1492, 0.25
        %v2215 = vmul.f32 %v1499, 0.25
        %v2216 = vmul.f32 %v1506, 0.25
        %v2217 = vmul.f32 %v1513, 0.25
        %v2218 = vmul.f32 %v1520, 0.25
        %v2219 = vmul.f32 %v1527, 0.25
        %v2220 = vmul.f32 %v1534, 0.25
        %v2221 = vmul.f32 %v1541, 0.25
        %v2222 = vmul.f32 %v1548, 0.25
        %v2223 = vmul.f32 %v1555, 0.25
        %v2224 = vmul.f32 %v1562, 0.25
        %v2225 = vmul.f32 %v1569, 0.25
        %v2226 = vmul.f32 %v1576, 0.25
        %v2227 = vmul.f32 %v1583, 0.25
        %v2228 = vmul.f32 %v1590, 0.25
        %v2229 = vmul.f32 %v1597, 0.25
        %v2230 = vmul.f32 %v1604, 0.25
        %v2231 = vmul.f32 %v1611, 0.25
        %v2232 = vmul.f32 %v1618, 0.25
        %v2233 = vmul.f32 %v1625, 0.25
        %v2234 = vmul.f32 %v1632, 0.25
        %v2235 = vmul.f32 %v1639, 0.25
        %v2236 = vmul.f32 %v1646, 0.25
        %v2237 = vmul.f32 %v1653, 0.25
        %v2238 = vmul.f32 %v1660, 0.25
        %v2239 = vmul.f32 %v1667, 0.25
        %v2240 = vmul.f32 %v1674, 0.25
        %v2241 = vmul.f32 %v1681, 0.25
        %v2242 = vmul.f32 %v1688, 0.25
        %v2243 = vmul.f32 %v1695, 0.25
        %v2244 = vmul.f32 %v1702, 0.25
        %v2245 = vmul.f32 %v1709, 0.25
        %v2246 = vmul.f32 %v1716, 0.25
        %v2247 = vmul.f32 %v1723, 0.25
        %v2248 = vmul.f32 %v1730, 0.25
        %v2249 = vmul.f32 %v1737, 0.25
        %v2250 = vmul.f32 %v1744, 0.25
        %v2251 = vmul.f32 %v1751, 0.25
        %v2252 = vmul.f32 %v1758, 0.25
        %v2253 = vmul.f32 %v1765, 0.25
        %v2254 = vmul.f32 %v1772, 0.25
        %v2255 = vmul.f32 %v1779, 0.25
        %v2256 = vmul.f32 %v1786, 0.25
        %v2257 = vmul.f32 %v1793, 0.25
        %v2258 = vmul.f32 %v1800, 0.25
        %v2259 = vmul.f32 %v1807, 0.25
        %v2260 = vmul.f32 %v1814, 0.25
        %v2261 = vmul.f32 %v1821, 0.25
        %v2262 = vmul.f32 %v1828, 0.25
        %v2263 = vmul.f32 %v1835, 0.25
        %v2264 = vmul.f32 %v1842, 0.25
        %v2265 = vmul.f32 %v1849, 0.25
        %v2266 = vmul.f32 %v1856, 0.25
        %v2267 = vmul.f32 %v1863, 0.25
        %v2268 = vmul.f32 %v1870, 0.25
        %v2269 = vmul.f32 %v1877, 0.25
        %v2270 = vmul.f32 %v1884, 0.25
        %v2271 = vmul.f32 %v1891, 0.25
        %v2272 = vmul.f32 %v1898, 0.25
        %v2273 = vmul.f32 %v1905, 0.25
        %v2274 = vmul.f32 %v1912, 0.25
        %v2275 = vmul.f32 %v1919, 0.25
        %v2276 = vmul.f32 %v1926, 0.25
        %v2277 = vmul.f32 %v1933, 0.25
        %v2278 = vmul.f32 %v1940, 0.25
        %v2279 = vmul.f32 %v1947, 0.25
        %v2280 = vmul.f32 %v1954, 0.25
        %v2281 = vmul.f32 %v1961, 0.25
        %v2282 = vmul.f32 %v1968, 0.25
        %v2283 = vmul.f32 %v1975, 0.25
        %v2284 = vmul.f32 %v1982, 0.25
        %v2285 = vmul.f32 %v1989, 0.25
        %v2286 = vmul.f32 %v1996, 0.25
        %v2287 = vmul.f32 %v2003, 0.25
        %v2288 = vmul.f32 %v2010, 0.25
        %v2289 = vmul.f32 %v2017, 0.25
        %v2290 = vmul.f32 %v2024, 0.25
        %v2291 = vmul.f32 %v2031, 0.25
        %v2292 = vmul.f32 %v2038, 0.25
        %v2293 = vmul.f32 %v2045, 0.25
        %v2294 = vmul.f32 %v2052, 0.25
        %v2295 = vmul.f32 %v2059, 0.25
        %v2296 = vmul.f32 %v2066, 0.25
        %v2297 = vmul.f32 %v2073, 0.25
        %v2298 = vmul.f32 %v2080, 0.25
        %v2299 = vmul.f32 %v2087, 0.25
        %v2300 = vmul.f32 %v2094, 0.25
        %v2301 = vmul.f32 %v2101, 0.25
        %v2302 = vmul.f32 %v2108, 0.25
        %v2303 = vmul.f32 %v2115, 0.25
        %v2304 = vmul.f32 %v2122, 0.25
        %v2305 = vmul.f32 %v2129, 0.25
        %v2306 = vmul.f32 %v2136, 0.25
        %v2307 = vmul.f32 %v2143, 0.25
        %v2308 = vmul.f32 %v2150, 0.25
        %v2309 = vmul.f32 %v2157, 0.25
        %v2310 = vmul.f32 %v2164, 0.25
        %v2311 = vmul.f32 %v2171, 0.25
        %v2312 = vmul.f32 %v2178, 0.25
        %v2313 = vmul.f32 %v2185, 0.25
        %v2314 = vpack.c.bf16 %v2186, %v2186
        %v2315 = vpack.c.bf16 %v2187, %v2187
        %v2316 = vpack.c.bf16 %v2188, %v2188
        %v2317 = vpack.c.bf16 %v2189, %v2189
        %v2318 = vpack.c.bf16 %v2190, %v2190
        %v2319 = vpack.c.bf16 %v2191, %v2191
        %v2320 = vpack.c.bf16 %v2192, %v2192
        %v2321 = vpack.c.bf16 %v2193, %v2193
        %v2322 = vpack.c.bf16 %v2194, %v2194
        %v2323 = vpack.c.bf16 %v2195, %v2195
        %v2324 = vpack.c.bf16 %v2196, %v2196
        %v2325 = vpack.c.bf16 %v2197, %v2197
        %v2326 = vpack.c.bf16 %v2198, %v2198
        %v2327 = vpack.c.bf16 %v2199, %v2199
        %v2328 = vpack.c.bf16 %v2200, %v2200
        %v2329 = vpack.c.bf16 %v2201, %v2201
        %v2330 = vpack.c.bf16 %v2202, %v2202
        %v2331 = vpack.c.bf16 %v2203, %v2203
        %v2332 = vpack.c.bf16 %v2204, %v2204
        %v2333 = vpack.c.bf16 %v2205, %v2205
        %v2334 = vpack.c.bf16 %v2206, %v2206
        %v2335 = vpack.c.bf16 %v2207, %v2207
        %v2336 = vpack.c.bf16 %v2208, %v2208
        %v2337 = vpack.c.bf16 %v2209, %v2209
        %v2338 = vpack.c.bf16 %v2210, %v2210
        %v2339 = vpack.c.bf16 %v2211, %v2211
        %v2340 = vpack.c.bf16 %v2212, %v2212
        %v2341 = vpack.c.bf16 %v2213, %v2213
        %v2342 = vpack.c.bf16 %v2214, %v2214
        %v2343 = vpack.c.bf16 %v2215, %v2215
        %v2344 = vpack.c.bf16 %v2216, %v2216
        %v2345 = vpack.c.bf16 %v2217, %v2217
        %v2346 = vpack.c.bf16 %v2218, %v2218
        %v2347 = vpack.c.bf16 %v2219, %v2219
        %v2348 = vpack.c.bf16 %v2220, %v2220
        %v2349 = vpack.c.bf16 %v2221, %v2221
        %v2350 = vpack.c.bf16 %v2222, %v2222
        %v2351 = vpack.c.bf16 %v2223, %v2223
        %v2352 = vpack.c.bf16 %v2224, %v2224
        %v2353 = vpack.c.bf16 %v2225, %v2225
        %v2354 = vpack.c.bf16 %v2226, %v2226
        %v2355 = vpack.c.bf16 %v2227, %v2227
        %v2356 = vpack.c.bf16 %v2228, %v2228
        %v2357 = vpack.c.bf16 %v2229, %v2229
        %v2358 = vpack.c.bf16 %v2230, %v2230
        %v2359 = vpack.c.bf16 %v2231, %v2231
        %v2360 = vpack.c.bf16 %v2232, %v2232
        %v2361 = vpack.c.bf16 %v2233, %v2233
        %v2362 = vpack.c.bf16 %v2234, %v2234
        %v2363 = vpack.c.bf16 %v2235, %v2235
        %v2364 = vpack.c.bf16 %v2236, %v2236
        %v2365 = vpack.c.bf16 %v2237, %v2237
        %v2366 = vpack.c.bf16 %v2238, %v2238
        %v2367 = vpack.c.bf16 %v2239, %v2239
        %v2368 = vpack.c.bf16 %v2240, %v2240
        %v2369 = vpack.c.bf16 %v2241, %v2241
        %v2370 = vpack.c.bf16 %v2242, %v2242
        %v2371 = vpack.c.bf16 %v2243, %v2243
        %v2372 = vpack.c.bf16 %v2244, %v2244
        %v2373 = vpack.c.bf16 %v2245, %v2245
        %v2374 = vpack.c.bf16 %v2246, %v2246
        %v2375 = vpack.c.bf16 %v2247, %v2247
        %v2376 = vpack.c.bf16 %v2248, %v2248
        %v2377 = vpack.c.bf16 %v2249, %v2249
        %v2378 = vpack.c.bf16 %v2250, %v2250
        %v2379 = vpack.c.bf16 %v2251, %v2251
        %v2380 = vpack.c.bf16 %v2252, %v2252
        %v2381 = vpack.c.bf16 %v2253, %v2253
        %v2382 = vpack.c.bf16 %v2254, %v2254
        %v2383 = vpack.c.bf16 %v2255, %v2255
        %v2384 = vpack.c.bf16 %v2256, %v2256
        %v2385 = vpack.c.bf16 %v2257, %v2257
        %v2386 = vpack.c.bf16 %v2258, %v2258
        %v2387 = vpack.c.bf16 %v2259, %v2259
        %v2388 = vpack.c.bf16 %v2260, %v2260
        %v2389 = vpack.c.bf16 %v2261, %v2261
        %v2390 = vpack.c.bf16 %v2262, %v2262
        %v2391 = vpack.c.bf16 %v2263, %v2263
        %v2392 = vpack.c.bf16 %v2264, %v2264
        %v2393 = vpack.c.bf16 %v2265, %v2265
        %v2394 = vpack.c.bf16 %v2266, %v2266
        %v2395 = vpack.c.bf16 %v2267, %v2267
        %v2396 = vpack.c.bf16 %v2268, %v2268
        %v2397 = vpack.c.bf16 %v2269, %v2269
        %v2398 = vpack.c.bf16 %v2270, %v2270
        %v2399 = vpack.c.bf16 %v2271, %v2271
        %v2400 = vpack.c.bf16 %v2272, %v2272
        %v2401 = vpack.c.bf16 %v2273, %v2273
        %v2402 = vpack.c.bf16 %v2274, %v2274
        %v2403 = vpack.c.bf16 %v2275, %v2275
        %v2404 = vpack.c.bf16 %v2276, %v2276
        %v2405 = vpack.c.bf16 %v2277, %v2277
        %v2406 = vpack.c.bf16 %v2278, %v2278
        %v2407 = vpack.c.bf16 %v2279, %v2279
        %v2408 = vpack.c.bf16 %v2280, %v2280
        %v2409 = vpack.c.bf16 %v2281, %v2281
        %v2410 = vpack.c.bf16 %v2282, %v2282
        %v2411 = vpack.c.bf16 %v2283, %v2283
        %v2412 = vpack.c.bf16 %v2284, %v2284
        %v2413 = vpack.c.bf16 %v2285, %v2285
        %v2414 = vpack.c.bf16 %v2286, %v2286
        %v2415 = vpack.c.bf16 %v2287, %v2287
        %v2416 = vpack.c.bf16 %v2288, %v2288
        %v2417 = vpack.c.bf16 %v2289, %v2289
        %v2418 = vpack.c.bf16 %v2290, %v2290
        %v2419 = vpack.c.bf16 %v2291, %v2291
        %v2420 = vpack.c.bf16 %v2292, %v2292
        %v2421 = vpack.c.bf16 %v2293, %v2293
        %v2422 = vpack.c.bf16 %v2294, %v2294
        %v2423 = vpack.c.bf16 %v2295, %v2295
        %v2424 = vpack.c.bf16 %v2296, %v2296
        %v2425 = vpack.c.bf16 %v2297, %v2297
        %v2426 = vpack.c.bf16 %v2298, %v2298
        %v2427 = vpack.c.bf16 %v2299, %v2299
        %v2428 = vpack.c.bf16 %v2300, %v2300
        %v2429 = vpack.c.bf16 %v2301, %v2301
        %v2430 = vpack.c.bf16 %v2302, %v2302
        %v2431 = vpack.c.bf16 %v2303, %v2303
        %v2432 = vpack.c.bf16 %v2304, %v2304
        %v2433 = vpack.c.bf16 %v2305, %v2305
        %v2434 = vpack.c.bf16 %v2306, %v2306
        %v2435 = vpack.c.bf16 %v2307, %v2307
        %v2436 = vpack.c.bf16 %v2308, %v2308
        %v2437 = vpack.c.bf16 %v2309, %v2309
        %v2438 = vpack.c.bf16 %v2310, %v2310
        %v2439 = vpack.c.bf16 %v2311, %v2311
        %v2440 = vpack.c.bf16 %v2312, %v2312
        %v2441 = vpack.c.bf16 %v2313, %v2313
        %v2570 = vunpack.c.l.b16 %v2314
        %v2571 = vunpack.c.l.b16 %v2315
        %v2572 = vunpack.c.l.b16 %v2316
        %v2573 = vunpack.c.l.b16 %v2317
        %v2574 = vunpack.c.l.b16 %v2318
        %v2575 = vunpack.c.l.b16 %v2319
        %v2576 = vunpack.c.l.b16 %v2320
        %v2577 = vunpack.c.l.b16 %v2321
        %v2578 = vunpack.c.l.b16 %v2322
        %v2579 = vunpack.c.l.b16 %v2323
        %v2580 = vunpack.c.l.b16 %v2324
        %v2581 = vunpack.c.l.b16 %v2325
        %v2582 = vunpack.c.l.b16 %v2326
        %v2583 = vunpack.c.l.b16 %v2327
        %v2584 = vunpack.c.l.b16 %v2328
        %v2585 = vunpack.c.l.b16 %v2329
        %v2586 = vunpack.c.l.b16 %v2330
        %v2587 = vunpack.c.l.b16 %v2331
        %v2588 = vunpack.c.l.b16 %v2332
        %v2589 = vunpack.c.l.b16 %v2333
        %v2590 = vunpack.c.l.b16 %v2334
        %v2591 = vunpack.c.l.b16 %v2335
        %v2592 = vunpack.c.l.b16 %v2336
        %v2593 = vunpack.c.l.b16 %v2337
        %v2594 = vunpack.c.l.b16 %v2338
        %v2595 = vunpack.c.l.b16 %v2339
        %v2596 = vunpack.c.l.b16 %v2340
        %v2597 = vunpack.c.l.b16 %v2341
        %v2598 = vunpack.c.l.b16 %v2342
        %v2599 = vunpack.c.l.b16 %v2343
        %v2600 = vunpack.c.l.b16 %v2344
        %v2601 = vunpack.c.l.b16 %v2345
        %v2602 = vunpack.c.l.b16 %v2346
        %v2603 = vunpack.c.l.b16 %v2347
        %v2604 = vunpack.c.l.b16 %v2348
        %v2605 = vunpack.c.l.b16 %v2349
        %v2606 = vunpack.c.l.b16 %v2350
        %v2607 = vunpack.c.l.b16 %v2351
        %v2608 = vunpack.c.l.b16 %v2352
        %v2609 = vunpack.c.l.b16 %v2353
        %v2610 = vunpack.c.l.b16 %v2354
        %v2611 = vunpack.c.l.b16 %v2355
        %v2612 = vunpack.c.l.b16 %v2356
        %v2613 = vunpack.c.l.b16 %v2357
        %v2614 = vunpack.c.l.b16 %v2358
        %v2615 = vunpack.c.l.b16 %v2359
        %v2616 = vunpack.c.l.b16 %v2360
        %v2617 = vunpack.c.l.b16 %v2361
        %v2618 = vunpack.c.l.b16 %v2362
        %v2619 = vunpack.c.l.b16 %v2363
        %v2620 = vunpack.c.l.b16 %v2364
        %v2621 = vunpack.c.l.b16 %v2365
        %v2622 = vunpack.c.l.b16 %v2366
        %v2623 = vunpack.c.l.b16 %v2367
        %v2624 = vunpack.c.l.b16 %v2368
        %v2625 = vunpack.c.l.b16 %v2369
        %v2626 = vunpack.c.l.b16 %v2370
        %v2627 = vunpack.c.l.b16 %v2371
        %v2628 = vunpack.c.l.b16 %v2372
        %v2629 = vunpack.c.l.b16 %v2373
        %v2630 = vunpack.c.l.b16 %v2374
        %v2631 = vunpack.c.l.b16 %v2375
        %v2632 = vunpack.c.l.b16 %v2376
        %v2633 = vunpack.c.l.b16 %v2377
        %v2634 = vunpack.c.l.b16 %v2378
        %v2635 = vunpack.c.l.b16 %v2379
        %v2636 = vunpack.c.l.b16 %v2380
        %v2637 = vunpack.c.l.b16 %v2381
        %v2638 = vunpack.c.l.b16 %v2382
        %v2639 = vunpack.c.l.b16 %v2383
        %v2640 = vunpack.c.l.b16 %v2384
        %v2641 = vunpack.c.l.b16 %v2385
        %v2642 = vunpack.c.l.b16 %v2386
        %v2643 = vunpack.c.l.b16 %v2387
        %v2644 = vunpack.c.l.b16 %v2388
        %v2645 = vunpack.c.l.b16 %v2389
        %v2646 = vunpack.c.l.b16 %v2390
        %v2647 = vunpack.c.l.b16 %v2391
        %v2648 = vunpack.c.l.b16 %v2392
        %v2649 = vunpack.c.l.b16 %v2393
        %v2650 = vunpack.c.l.b16 %v2394
        %v2651 = vunpack.c.l.b16 %v2395
        %v2652 = vunpack.c.l.b16 %v2396
        %v2653 = vunpack.c.l.b16 %v2397
        %v2654 = vunpack.c.l.b16 %v2398
        %v2655 = vunpack.c.l.b16 %v2399
        %v2656 = vunpack.c.l.b16 %v2400
        %v2657 = vunpack.c.l.b16 %v2401
        %v2658 = vunpack.c.l.b16 %v2402
        %v2659 = vunpack.c.l.b16 %v2403
        %v2660 = vunpack.c.l.b16 %v2404
        %v2661 = vunpack.c.l.b16 %v2405
        %v2662 = vunpack.c.l.b16 %v2406
        %v2663 = vunpack.c.l.b16 %v2407
        %v2664 = vunpack.c.l.b16 %v2408
        %v2665 = vunpack.c.l.b16 %v2409
        %v2666 = vunpack.c.l.b16 %v2410
        %v2667 = vunpack.c.l.b16 %v2411
        %v2668 = vunpack.c.l.b16 %v2412
        %v2669 = vunpack.c.l.b16 %v2413
        %v2670 = vunpack.c.l.b16 %v2414
        %v2671 = vunpack.c.l.b16 %v2415
        %v2672 = vunpack.c.l.b16 %v2416
        %v2673 = vunpack.c.l.b16 %v2417
        %v2674 = vunpack.c.l.b16 %v2418
        %v2675 = vunpack.c.l.b16 %v2419
        %v2676 = vunpack.c.l.b16 %v2420
        %v2677 = vunpack.c.l.b16 %v2421
        %v2678 = vunpack.c.l.b16 %v2422
        %v2679 = vunpack.c.l.b16 %v2423
        %v2680 = vunpack.c.l.b16 %v2424
        %v2681 = vunpack.c.l.b16 %v2425
        %v2682 = vunpack.c.l.b16 %v2426
        %v2683 = vunpack.c.l.b16 %v2427
        %v2684 = vunpack.c.l.b16 %v2428
        %v2685 = vunpack.c.l.b16 %v2429
        %v2686 = vunpack.c.l.b16 %v2430
        %v2687 = vunpack.c.l.b16 %v2431
        %v2688 = vunpack.c.l.b16 %v2432
        %v2689 = vunpack.c.l.b16 %v2433
        %v2690 = vunpack.c.l.b16 %v2434
        %v2691 = vunpack.c.l.b16 %v2435
        %v2692 = vunpack.c.l.b16 %v2436
        %v2693 = vunpack.c.l.b16 %v2437
        %v2694 = vunpack.c.l.b16 %v2438
        %v2695 = vunpack.c.l.b16 %v2439
        %v2696 = vunpack.c.l.b16 %v2440
        %v2697 = vunpack.c.l.b16 %v2441
        %v2698 = vpack.c.b16 %v2570, %v2570
        %v2699 = vpack.c.b16 %v2571, %v2571
        %v2700 = vpack.c.b16 %v2572, %v2572
        %v2701 = vpack.c.b16 %v2573, %v2573
        %v2702 = vpack.c.b16 %v2574, %v2574
        %v2703 = vpack.c.b16 %v2575, %v2575
        %v2704 = vpack.c.b16 %v2576, %v2576
        %v2705 = vpack.c.b16 %v2577, %v2577
        %v2706 = vpack.c.b16 %v2578, %v2578
        %v2707 = vpack.c.b16 %v2579, %v2579
        %v2708 = vpack.c.b16 %v2580, %v2580
        %v2709 = vpack.c.b16 %v2581, %v2581
        %v2710 = vpack.c.b16 %v2582, %v2582
        %v2711 = vpack.c.b16 %v2583, %v2583
        %v2712 = vpack.c.b16 %v2584, %v2584
        %v2713 = vpack.c.b16 %v2585, %v2585
        %v2714 = vpack.c.b16 %v2586, %v2586
        %v2715 = vpack.c.b16 %v2587, %v2587
        %v2716 = vpack.c.b16 %v2588, %v2588
        %v2717 = vpack.c.b16 %v2589, %v2589
        %v2718 = vpack.c.b16 %v2590, %v2590
        %v2719 = vpack.c.b16 %v2591, %v2591
        %v2720 = vpack.c.b16 %v2592, %v2592
        %v2721 = vpack.c.b16 %v2593, %v2593
        %v2722 = vpack.c.b16 %v2594, %v2594
        %v2723 = vpack.c.b16 %v2595, %v2595
        %v2724 = vpack.c.b16 %v2596, %v2596
        %v2725 = vpack.c.b16 %v2597, %v2597
        %v2726 = vpack.c.b16 %v2598, %v2598
        %v2727 = vpack.c.b16 %v2599, %v2599
        %v2728 = vpack.c.b16 %v2600, %v2600
        %v2729 = vpack.c.b16 %v2601, %v2601
        %v2730 = vpack.c.b16 %v2602, %v2602
        %v2731 = vpack.c.b16 %v2603, %v2603
        %v2732 = vpack.c.b16 %v2604, %v2604
        %v2733 = vpack.c.b16 %v2605, %v2605
        %v2734 = vpack.c.b16 %v2606, %v2606
        %v2735 = vpack.c.b16 %v2607, %v2607
        %v2736 = vpack.c.b16 %v2608, %v2608
        %v2737 = vpack.c.b16 %v2609, %v2609
        %v2738 = vpack.c.b16 %v2610, %v2610
        %v2739 = vpack.c.b16 %v2611, %v2611
        %v2740 = vpack.c.b16 %v2612, %v2612
        %v2741 = vpack.c.b16 %v2613, %v2613
        %v2742 = vpack.c.b16 %v2614, %v2614
        %v2743 = vpack.c.b16 %v2615, %v2615
        %v2744 = vpack.c.b16 %v2616, %v2616
        %v2745 = vpack.c.b16 %v2617, %v2617
        %v2746 = vpack.c.b16 %v2618, %v2618
        %v2747 = vpack.c.b16 %v2619, %v2619
        %v2748 = vpack.c.b16 %v2620, %v2620
        %v2749 = vpack.c.b16 %v2621, %v2621
        %v2750 = vpack.c.b16 %v2622, %v2622
        %v2751 = vpack.c.b16 %v2623, %v2623
        %v2752 = vpack.c.b16 %v2624, %v2624
        %v2753 = vpack.c.b16 %v2625, %v2625
        %v2754 = vpack.c.b16 %v2626, %v2626
        %v2755 = vpack.c.b16 %v2627, %v2627
        %v2756 = vpack.c.b16 %v2628, %v2628
        %v2757 = vpack.c.b16 %v2629, %v2629
        %v2758 = vpack.c.b16 %v2630, %v2630
        %v2759 = vpack.c.b16 %v2631, %v2631
        %v2760 = vpack.c.b16 %v2632, %v2632
        %v2761 = vpack.c.b16 %v2633, %v2633
        %v2762 = vpack.c.b16 %v2634, %v2634
        %v2763 = vpack.c.b16 %v2635, %v2635
        %v2764 = vpack.c.b16 %v2636, %v2636
        %v2765 = vpack.c.b16 %v2637, %v2637
        %v2766 = vpack.c.b16 %v2638, %v2638
        %v2767 = vpack.c.b16 %v2639, %v2639
        %v2768 = vpack.c.b16 %v2640, %v2640
        %v2769 = vpack.c.b16 %v2641, %v2641
        %v2770 = vpack.c.b16 %v2642, %v2642
        %v2771 = vpack.c.b16 %v2643, %v2643
        %v2772 = vpack.c.b16 %v2644, %v2644
        %v2773 = vpack.c.b16 %v2645, %v2645
        %v2774 = vpack.c.b16 %v2646, %v2646
        %v2775 = vpack.c.b16 %v2647, %v2647
        %v2776 = vpack.c.b16 %v2648, %v2648
        %v2777 = vpack.c.b16 %v2649, %v2649
        %v2778 = vpack.c.b16 %v2650, %v2650
        %v2779 = vpack.c.b16 %v2651, %v2651
        %v2780 = vpack.c.b16 %v2652, %v2652
        %v2781 = vpack.c.b16 %v2653, %v2653
        %v2782 = vpack.c.b16 %v2654, %v2654
        %v2783 = vpack.c.b16 %v2655, %v2655
        %v2784 = vpack.c.b16 %v2656, %v2656
        %v2785 = vpack.c.b16 %v2657, %v2657
        %v2786 = vpack.c.b16 %v2658, %v2658
        %v2787 = vpack.c.b16 %v2659, %v2659
        %v2788 = vpack.c.b16 %v2660, %v2660
        %v2789 = vpack.c.b16 %v2661, %v2661
        %v2790 = vpack.c.b16 %v2662, %v2662
        %v2791 = vpack.c.b16 %v2663, %v2663
        %v2792 = vpack.c.b16 %v2664, %v2664
        %v2793 = vpack.c.b16 %v2665, %v2665
        %v2794 = vpack.c.b16 %v2666, %v2666
        %v2795 = vpack.c.b16 %v2667, %v2667
        %v2796 = vpack.c.b16 %v2668, %v2668
        %v2797 = vpack.c.b16 %v2669, %v2669
        %v2798 = vpack.c.b16 %v2670, %v2670
        %v2799 = vpack.c.b16 %v2671, %v2671
        %v2800 = vpack.c.b16 %v2672, %v2672
        %v2801 = vpack.c.b16 %v2673, %v2673
        %v2802 = vpack.c.b16 %v2674, %v2674
        %v2803 = vpack.c.b16 %v2675, %v2675
        %v2804 = vpack.c.b16 %v2676, %v2676
        %v2805 = vpack.c.b16 %v2677, %v2677
        %v2806 = vpack.c.b16 %v2678, %v2678
        %v2807 = vpack.c.b16 %v2679, %v2679
        %v2808 = vpack.c.b16 %v2680, %v2680
        %v2809 = vpack.c.b16 %v2681, %v2681
        %v2810 = vpack.c.b16 %v2682, %v2682
        %v2811 = vpack.c.b16 %v2683, %v2683
        %v2812 = vpack.c.b16 %v2684, %v2684
        %v2813 = vpack.c.b16 %v2685, %v2685
        %v2814 = vpack.c.b16 %v2686, %v2686
        %v2815 = vpack.c.b16 %v2687, %v2687
        %v2816 = vpack.c.b16 %v2688, %v2688
        %v2817 = vpack.c.b16 %v2689, %v2689
        %v2818 = vpack.c.b16 %v2690, %v2690
        %v2819 = vpack.c.b16 %v2691, %v2691
        %v2820 = vpack.c.b16 %v2692, %v2692
        %v2821 = vpack.c.b16 %v2693, %v2693
        %v2822 = vpack.c.b16 %v2694, %v2694
        %v2823 = vpack.c.b16 %v2695, %v2695
        %v2824 = vpack.c.b16 %v2696, %v2696
        %v2825 = vpack.c.b16 %v2697, %v2697
        %v2826 = vunpack.c.l.b16 %v2698
        %v2827 = vunpack.c.l.b16 %v2699
        %v2828 = vunpack.c.l.b16 %v2700
        %v2829 = vunpack.c.l.b16 %v2701
        %v2830 = vunpack.c.l.b16 %v2702
        %v2831 = vunpack.c.l.b16 %v2703
        %v2832 = vunpack.c.l.b16 %v2704
        %v2833 = vunpack.c.l.b16 %v2705
        %v2834 = vunpack.c.l.b16 %v2706
        %v2835 = vunpack.c.l.b16 %v2707
        %v2836 = vunpack.c.l.b16 %v2708
        %v2837 = vunpack.c.l.b16 %v2709
        %v2838 = vunpack.c.l.b16 %v2710
        %v2839 = vunpack.c.l.b16 %v2711
        %v2840 = vunpack.c.l.b16 %v2712
        %v2841 = vunpack.c.l.b16 %v2713
        %v2842 = vunpack.c.l.b16 %v2714
        %v2843 = vunpack.c.l.b16 %v2715
        %v2844 = vunpack.c.l.b16 %v2716
        %v2845 = vunpack.c.l.b16 %v2717
        %v2846 = vunpack.c.l.b16 %v2718
        %v2847 = vunpack.c.l.b16 %v2719
        %v2848 = vunpack.c.l.b16 %v2720
        %v2849 = vunpack.c.l.b16 %v2721
        %v2850 = vunpack.c.l.b16 %v2722
        %v2851 = vunpack.c.l.b16 %v2723
        %v2852 = vunpack.c.l.b16 %v2724
        %v2853 = vunpack.c.l.b16 %v2725
        %v2854 = vunpack.c.l.b16 %v2726
        %v2855 = vunpack.c.l.b16 %v2727
        %v2856 = vunpack.c.l.b16 %v2728
        %v2857 = vunpack.c.l.b16 %v2729
        %v2858 = vunpack.c.l.b16 %v2730
        %v2859 = vunpack.c.l.b16 %v2731
        %v2860 = vunpack.c.l.b16 %v2732
        %v2861 = vunpack.c.l.b16 %v2733
        %v2862 = vunpack.c.l.b16 %v2734
        %v2863 = vunpack.c.l.b16 %v2735
        %v2864 = vunpack.c.l.b16 %v2736
        %v2865 = vunpack.c.l.b16 %v2737
        %v2866 = vunpack.c.l.b16 %v2738
        %v2867 = vunpack.c.l.b16 %v2739
        %v2868 = vunpack.c.l.b16 %v2740
        %v2869 = vunpack.c.l.b16 %v2741
        %v2870 = vunpack.c.l.b16 %v2742
        %v2871 = vunpack.c.l.b16 %v2743
        %v2872 = vunpack.c.l.b16 %v2744
        %v2873 = vunpack.c.l.b16 %v2745
        %v2874 = vunpack.c.l.b16 %v2746
        %v2875 = vunpack.c.l.b16 %v2747
        %v2876 = vunpack.c.l.b16 %v2748
        %v2877 = vunpack.c.l.b16 %v2749
        %v2878 = vunpack.c.l.b16 %v2750
        %v2879 = vunpack.c.l.b16 %v2751
        %v2880 = vunpack.c.l.b16 %v2752
        %v2881 = vunpack.c.l.b16 %v2753
        %v2882 = vunpack.c.l.b16 %v2754
        %v2883 = vunpack.c.l.b16 %v2755
        %v2884 = vunpack.c.l.b16 %v2756
        %v2885 = vunpack.c.l.b16 %v2757
        %v2886 = vunpack.c.l.b16 %v2758
        %v2887 = vunpack.c.l.b16 %v2759
        %v2888 = vunpack.c.l.b16 %v2760
        %v2889 = vunpack.c.l.b16 %v2761
        %v2890 = vunpack.c.l.b16 %v2762
        %v2891 = vunpack.c.l.b16 %v2763
        %v2892 = vunpack.c.l.b16 %v2764
        %v2893 = vunpack.c.l.b16 %v2765
        %v2894 = vunpack.c.l.b16 %v2766
        %v2895 = vunpack.c.l.b16 %v2767
        %v2896 = vunpack.c.l.b16 %v2768
        %v2897 = vunpack.c.l.b16 %v2769
        %v2898 = vunpack.c.l.b16 %v2770
        %v2899 = vunpack.c.l.b16 %v2771
        %v2900 = vunpack.c.l.b16 %v2772
        %v2901 = vunpack.c.l.b16 %v2773
        %v2902 = vunpack.c.l.b16 %v2774
        %v2903 = vunpack.c.l.b16 %v2775
        %v2904 = vunpack.c.l.b16 %v2776
        %v2905 = vunpack.c.l.b16 %v2777
        %v2906 = vunpack.c.l.b16 %v2778
        %v2907 = vunpack.c.l.b16 %v2779
        %v2908 = vunpack.c.l.b16 %v2780
        %v2909 = vunpack.c.l.b16 %v2781
        %v2910 = vunpack.c.l.b16 %v2782
        %v2911 = vunpack.c.l.b16 %v2783
        %v2912 = vunpack.c.l.b16 %v2784
        %v2913 = vunpack.c.l.b16 %v2785
        %v2914 = vunpack.c.l.b16 %v2786
        %v2915 = vunpack.c.l.b16 %v2787
        %v2916 = vunpack.c.l.b16 %v2788
        %v2917 = vunpack.c.l.b16 %v2789
        %v2918 = vunpack.c.l.b16 %v2790
        %v2919 = vunpack.c.l.b16 %v2791
        %v2920 = vunpack.c.l.b16 %v2792
        %v2921 = vunpack.c.l.b16 %v2793
        %v2922 = vunpack.c.l.b16 %v2794
        %v2923 = vunpack.c.l.b16 %v2795
        %v2924 = vunpack.c.l.b16 %v2796
        %v2925 = vunpack.c.l.b16 %v2797
        %v2926 = vunpack.c.l.b16 %v2798
        %v2927 = vunpack.c.l.b16 %v2799
        %v2928 = vunpack.c.l.b16 %v2800
        %v2929 = vunpack.c.l.b16 %v2801
        %v2930 = vunpack.c.l.b16 %v2802
        %v2931 = vunpack.c.l.b16 %v2803
        %v2932 = vunpack.c.l.b16 %v2804
        %v2933 = vunpack.c.l.b16 %v2805
        %v2934 = vunpack.c.l.b16 %v2806
        %v2935 = vunpack.c.l.b16 %v2807
        %v2936 = vunpack.c.l.b16 %v2808
        %v2937 = vunpack.c.l.b16 %v2809
        %v2938 = vunpack.c.l.b16 %v2810
        %v2939 = vunpack.c.l.b16 %v2811
        %v2940 = vunpack.c.l.b16 %v2812
        %v2941 = vunpack.c.l.b16 %v2813
        %v2942 = vunpack.c.l.b16 %v2814
        %v2943 = vunpack.c.l.b16 %v2815
        %v2944 = vunpack.c.l.b16 %v2816
        %v2945 = vunpack.c.l.b16 %v2817
        %v2946 = vunpack.c.l.b16 %v2818
        %v2947 = vunpack.c.l.b16 %v2819
        %v2948 = vunpack.c.l.b16 %v2820
        %v2949 = vunpack.c.l.b16 %v2821
        %v2950 = vunpack.c.l.b16 %v2822
        %v2951 = vunpack.c.l.b16 %v2823
        %v2952 = vunpack.c.l.b16 %v2824
        %v2953 = vunpack.c.l.b16 %v2825
        %vm2954 = vcmask 1042434
        %v2955 = vsel %vm2954, %v2827, %v2826
        %vm2956 = vcmask 1043459
        %v2957 = vsel %vm2956, %v2828, %v2955
        %vm2958 = vcmask 1044484
        %v2959 = vsel %vm2958, %v2829, %v2957
        %vm2960 = vcmask 1045509
        %v2961 = vsel %vm2960, %v2830, %v2959
        %vm2962 = vcmask 1046534
        %v2963 = vsel %vm2962, %v2831, %v2961
        %vm2964 = vcmask 1047559
        %v2965 = vsel %vm2964, %v2832, %v2963
        %vm2966 = vcmask 1041409
        %v2967 = vsel %vm2966, %v2834, %v2833
        %v2968 = vsel %vm2954, %v2835, %v2967
        %v2969 = vsel %vm2956, %v2836, %v2968
        %v2970 = vsel %vm2958, %v2837, %v2969
        %v2971 = vsel %vm2960, %v2838, %v2970
        %v2972 = vsel %vm2962, %v2839, %v2971
        %v2973 = vsel %vm2964, %v2840, %v2972
        %v2974 = vsel %vm2954, %v2843, %v2842
        %v2975 = vsel %vm2956, %v2844, %v2974
        %v2976 = vsel %vm2958, %v2845, %v2975
        %v2977 = vsel %vm2960, %v2846, %v2976
        %v2978 = vsel %vm2962, %v2847, %v2977
        %v2979 = vsel %vm2964, %v2848, %v2978
        %v2980 = vsel %vm2966, %v2850, %v2849
        %v2981 = vsel %vm2954, %v2851, %v2980
        %v2982 = vsel %vm2956, %v2852, %v2981
        %v2983 = vsel %vm2958, %v2853, %v2982
        %v2984 = vsel %vm2960, %v2854, %v2983
        %v2985 = vsel %vm2962, %v2855, %v2984
        %v2986 = vsel %vm2964, %v2856, %v2985
        %v2987 = vsel %vm2954, %v2859, %v2858
        %v2988 = vsel %vm2956, %v2860, %v2987
        %v2989 = vsel %vm2958, %v2861, %v2988
        %v2990 = vsel %vm2960, %v2862, %v2989
        %v2991 = vsel %vm2962, %v2863, %v2990
        %v2992 = vsel %vm2964, %v2864, %v2991
        %v2993 = vsel %vm2966, %v2866, %v2865
        %v2994 = vsel %vm2954, %v2867, %v2993
        %v2995 = vsel %vm2956, %v2868, %v2994
        %v2996 = vsel %vm2958, %v2869, %v2995
        %v2997 = vsel %vm2960, %v2870, %v2996
        %v2998 = vsel %vm2962, %v2871, %v2997
        %v2999 = vsel %vm2964, %v2872, %v2998
        %v3000 = vsel %vm2954, %v2875, %v2874
        %v3001 = vsel %vm2956, %v2876, %v3000
        %v3002 = vsel %vm2958, %v2877, %v3001
        %v3003 = vsel %vm2960, %v2878, %v3002
        %v3004 = vsel %vm2962, %v2879, %v3003
        %v3005 = vsel %vm2964, %v2880, %v3004
        %v3006 = vsel %vm2966, %v2882, %v2881
        %v3007 = vsel %vm2954, %v2883, %v3006
        %v3008 = vsel %vm2956, %v2884, %v3007
        %v3009 = vsel %vm2958, %v2885, %v3008
        %v3010 = vsel %vm2960, %v2886, %v3009
        %v3011 = vsel %vm2962, %v2887, %v3010
        %v3012 = vsel %vm2964, %v2888, %v3011
        %v3013 = vsel %vm2954, %v2891, %v2890
        %v3014 = vsel %vm2956, %v2892, %v3013
        %v3015 = vsel %vm2958, %v2893, %v3014
        %v3016 = vsel %vm2960, %v2894, %v3015
        %v3017 = vsel %vm2962, %v2895, %v3016
        %v3018 = vsel %vm2964, %v2896, %v3017
        %v3019 = vsel %vm2966, %v2898, %v2897
        %v3020 = vsel %vm2954, %v2899, %v3019
        %v3021 = vsel %vm2956, %v2900, %v3020
        %v3022 = vsel %vm2958, %v2901, %v3021
        %v3023 = vsel %vm2960, %v2902, %v3022
        %v3024 = vsel %vm2962, %v2903, %v3023
        %v3025 = vsel %vm2964, %v2904, %v3024
        %v3026 = vsel %vm2954, %v2907, %v2906
        %v3027 = vsel %vm2956, %v2908, %v3026
        %v3028 = vsel %vm2958, %v2909, %v3027
        %v3029 = vsel %vm2960, %v2910, %v3028
        %v3030 = vsel %vm2962, %v2911, %v3029
        %v3031 = vsel %vm2964, %v2912, %v3030
        %v3032 = vsel %vm2966, %v2914, %v2913
        %v3033 = vsel %vm2954, %v2915, %v3032
        %v3034 = vsel %vm2956, %v2916, %v3033
        %v3035 = vsel %vm2958, %v2917, %v3034
        %v3036 = vsel %vm2960, %v2918, %v3035
        %v3037 = vsel %vm2962, %v2919, %v3036
        %v3038 = vsel %vm2964, %v2920, %v3037
        %v3039 = vsel %vm2954, %v2923, %v2922
        %v3040 = vsel %vm2956, %v2924, %v3039
        %v3041 = vsel %vm2958, %v2925, %v3040
        %v3042 = vsel %vm2960, %v2926, %v3041
        %v3043 = vsel %vm2962, %v2927, %v3042
        %v3044 = vsel %vm2964, %v2928, %v3043
        %v3045 = vsel %vm2966, %v2930, %v2929
        %v3046 = vsel %vm2954, %v2931, %v3045
        %v3047 = vsel %vm2956, %v2932, %v3046
        %v3048 = vsel %vm2958, %v2933, %v3047
        %v3049 = vsel %vm2960, %v2934, %v3048
        %v3050 = vsel %vm2962, %v2935, %v3049
        %v3051 = vsel %vm2964, %v2936, %v3050
        %v3052 = vsel %vm2954, %v2939, %v2938
        %v3053 = vsel %vm2956, %v2940, %v3052
        %v3054 = vsel %vm2958, %v2941, %v3053
        %v3055 = vsel %vm2960, %v2942, %v3054
        %v3056 = vsel %vm2962, %v2943, %v3055
        %v3057 = vsel %vm2964, %v2944, %v3056
        %v3058 = vsel %vm2966, %v2946, %v2945
        %v3059 = vsel %vm2954, %v2947, %v3058
        %v3060 = vsel %vm2956, %v2948, %v3059
        %v3061 = vsel %vm2958, %v2949, %v3060
        %v3062 = vsel %vm2960, %v2950, %v3061
        %v3063 = vsel %vm2962, %v2951, %v3062
        %v3064 = vsel %vm2964, %v2952, %v3063
        %v3065 = vpack.c.b16 %v2965, %v2965
        %v3066 = vpack.c.b16 %v2973, %v2973
        %v3067 = vpack.c.b16 %v2841, %v2841
        %v3068 = vpack.c.b16 %v2979, %v2979
        %v3069 = vpack.c.b16 %v2986, %v2986
        %v3070 = vpack.c.b16 %v2857, %v2857
        %v3071 = vpack.c.b16 %v2992, %v2992
        %v3072 = vpack.c.b16 %v2999, %v2999
        %v3073 = vpack.c.b16 %v2873, %v2873
        %v3074 = vpack.c.b16 %v3005, %v3005
        %v3075 = vpack.c.b16 %v3012, %v3012
        %v3076 = vpack.c.b16 %v2889, %v2889
        %v3077 = vpack.c.b16 %v3018, %v3018
        %v3078 = vpack.c.b16 %v3025, %v3025
        %v3079 = vpack.c.b16 %v2905, %v2905
        %v3080 = vpack.c.b16 %v3031, %v3031
        %v3081 = vpack.c.b16 %v3038, %v3038
        %v3082 = vpack.c.b16 %v2921, %v2921
        %v3083 = vpack.c.b16 %v3044, %v3044
        %v3084 = vpack.c.b16 %v3051, %v3051
        %v3085 = vpack.c.b16 %v2937, %v2937
        %v3086 = vpack.c.b16 %v3057, %v3057
        %v3087 = vpack.c.b16 %v3064, %v3064
        %v3088 = vpack.c.b16 %v2953, %v2953
        %s3113 = scalar_lea.vmem [#allocation2], 12
        %vm3114 = vcmask 519168
        %vm3115 = vsmask.f32 7938
        %vm3116 = vmand %vm3114, %vm3115
        %v3117 = vld [vmem:[%s3113] sm:$0xf]
        %v3118 = vsel %vm3116, %v3065, %v3117
        %3119 = vst [vmem:[%s3113] sm:$0xf] %v3118
        %3120 = vst.msk [vmem:[%s3113 + $0x4] sm:$0xf] %vm1289, %v3066
        %vm3121 = vcmask 516096
        %vm3122 = vsmask.f32 256
        %vm3123 = vmand %vm3121, %vm3122
        %v3124 = vld [vmem:[%s3113 + $0x8] sm:$0x1]
        %v3125 = vsel %vm3123, %v3067, %v3124
        %3126 = vst [vmem:[%s3113 + $0x8] sm:$0x1] %v3125
        %v3127 = vld [vmem:[%s3113 + $0xc] sm:$0xf]
        %v3128 = vsel %vm3116, %v3068, %v3127
        %3129 = vst [vmem:[%s3113 + $0xc] sm:$0xf] %v3128
        %3130 = vst.msk [vmem:[%s3113 + $0x10] sm:$0xf] %vm1289, %v3069
        %v3131 = vld [vmem:[%s3113 + $0x14] sm:$0x1]
        %v3132 = vsel %vm3123, %v3070, %v3131
        %3133 = vst [vmem:[%s3113 + $0x14] sm:$0x1] %v3132
        %v3134 = vld [vmem:[%s3113 + $0x18] sm:$0xf]
        %v3135 = vsel %vm3116, %v3071, %v3134
        %3136 = vst [vmem:[%s3113 + $0x18] sm:$0xf] %v3135
        %3137 = vst.msk [vmem:[%s3113 + $0x1c] sm:$0xf] %vm1289, %v3072
        %v3138 = vld [vmem:[%s3113 + $0x20] sm:$0x1]
        %v3139 = vsel %vm3123, %v3073, %v3138
        %3140 = vst [vmem:[%s3113 + $0x20] sm:$0x1] %v3139
        %v3141 = vld [vmem:[%s3113 + $0x24] sm:$0xf]
        %v3142 = vsel %vm3116, %v3074, %v3141
        %3143 = vst [vmem:[%s3113 + $0x24] sm:$0xf] %v3142
        %3144 = vst.msk [vmem:[%s3113 + $0x28] sm:$0xf] %vm1289, %v3075
        %v3145 = vld [vmem:[%s3113 + $0x2c] sm:$0x1]
        %v3146 = vsel %vm3123, %v3076, %v3145
        %3147 = vst [vmem:[%s3113 + $0x2c] sm:$0x1] %v3146
        %v3148 = vld [vmem:[%s3113 + $0x30] sm:$0xf]
        %v3149 = vsel %vm3116, %v3077, %v3148
        %3150 = vst [vmem:[%s3113 + $0x30] sm:$0xf] %v3149
        %3151 = vst.msk [vmem:[%s3113 + $0x34] sm:$0xf] %vm1289, %v3078
        %v3152 = vld [vmem:[%s3113 + $0x38] sm:$0x1]
        %v3153 = vsel %vm3123, %v3079, %v3152
        %3154 = vst [vmem:[%s3113 + $0x38] sm:$0x1] %v3153
        %v3155 = vld [vmem:[%s3113 + $0x3c] sm:$0xf]
        %v3156 = vsel %vm3116, %v3080, %v3155
        %3157 = vst [vmem:[%s3113 + $0x3c] sm:$0xf] %v3156
        %3158 = vst.msk [vmem:[%s3113 + $0x40] sm:$0xf] %vm1289, %v3081
        %v3159 = vld [vmem:[%s3113 + $0x44] sm:$0x1]
        %v3160 = vsel %vm3123, %v3082, %v3159
        %3161 = vst [vmem:[%s3113 + $0x44] sm:$0x1] %v3160
        %v3162 = vld [vmem:[%s3113 + $0x48] sm:$0xf]
        %v3163 = vsel %vm3116, %v3083, %v3162
        %3164 = vst [vmem:[%s3113 + $0x48] sm:$0xf] %v3163
        %3165 = vst.msk [vmem:[%s3113 + $0x4c] sm:$0xf] %vm1289, %v3084
        %v3166 = vld [vmem:[%s3113 + $0x50] sm:$0x1]
        %v3167 = vsel %vm3123, %v3085, %v3166
        %3168 = vst [vmem:[%s3113 + $0x50] sm:$0x1] %v3167
        %v3169 = vld [vmem:[%s3113 + $0x54] sm:$0xf]
        %v3170 = vsel %vm3116, %v3086, %v3169
        %3171 = vst [vmem:[%s3113 + $0x54] sm:$0xf] %v3170
        %3172 = vst.msk [vmem:[%s3113 + $0x58] sm:$0xf] %vm1289, %v3087
        %v3173 = vld [vmem:[%s3113 + $0x5c] sm:$0x1]
        %v3174 = vsel %vm3123, %v3088, %v3173
        %3175 = vst [vmem:[%s3113 + $0x5c] sm:$0x1] %v3174
        %3176 = vst.msk [vmem:[#allocation2] sm:$0xf] %vm1289, 0
        %3177 = vst.msk [vmem:[#allocation2 + $0x4] sm:$0xf] %vm1289, 0
        %vm3178 = vcmask 516096
        %3179 = vst.msk [vmem:[#allocation2 + $0x8] sm:$0x1] %vm3178, 0
        %s3180 = scalar_lea.vmem [#allocation2], 108
        %3181 = vst.msk [vmem:[%s3180] sm:$0xf] %vm1289, 0
        %3182 = vst.msk [vmem:[%s3180 + $0x4] sm:$0xf] %vm1289, 0
        %3183 = vst.msk [vmem:[%s3180 + $0x8] sm:$0x1] %vm3178, 0
        %v3184 = vld [vmem:[#allocation2] sm:$0x1]
        %v3185 = vsel %vm3123, 0, %v3184
        %3186 = vst [vmem:[#allocation2] sm:$0x1] %v3185
        %v3187 = vld [vmem:[#allocation2 + $0xc] sm:$0x1]
        %v3188 = vsel %vm3123, 0, %v3187
        %3189 = vst [vmem:[#allocation2 + $0xc] sm:$0x1] %v3188
        %v3190 = vld [vmem:[#allocation2 + $0x18] sm:$0x1]
        %v3191 = vsel %vm3123, 0, %v3190
        %3192 = vst [vmem:[#allocation2 + $0x18] sm:$0x1] %v3191
        %v3193 = vld [vmem:[#allocation2 + $0x24] sm:$0x1]
        %v3194 = vsel %vm3123, 0, %v3193
        %3195 = vst [vmem:[#allocation2 + $0x24] sm:$0x1] %v3194
        %v3196 = vld [vmem:[#allocation2 + $0x30] sm:$0x1]
        %v3197 = vsel %vm3123, 0, %v3196
        %3198 = vst [vmem:[#allocation2 + $0x30] sm:$0x1] %v3197
        %v3199 = vld [vmem:[#allocation2 + $0x3c] sm:$0x1]
        %v3200 = vsel %vm3123, 0, %v3199
        %3201 = vst [vmem:[#allocation2 + $0x3c] sm:$0x1] %v3200
        %v3202 = vld [vmem:[#allocation2 + $0x48] sm:$0x1]
        %v3203 = vsel %vm3123, 0, %v3202
        %3204 = vst [vmem:[#allocation2 + $0x48] sm:$0x1] %v3203
        %v3205 = vld [vmem:[#allocation2 + $0x54] sm:$0x1]
        %v3206 = vsel %vm3123, 0, %v3205
        %3207 = vst [vmem:[#allocation2 + $0x54] sm:$0x1] %v3206
        %v3208 = vld [vmem:[#allocation2 + $0x60] sm:$0x1]
        %v3209 = vsel %vm3123, 0, %v3208
        %3210 = vst [vmem:[#allocation2 + $0x60] sm:$0x1] %v3209
        %v3211 = vld [vmem:[#allocation2 + $0x6c] sm:$0x1]
        %v3212 = vsel %vm3123, 0, %v3211
        %3213 = vst [vmem:[#allocation2 + $0x6c] sm:$0x1] %v3212
        %vm3214 = vmand %vm3121, %vm3115
        %v3215 = vld [vmem:[#allocation2 + $0x8] sm:$0x1]
        %v3216 = vsel %vm3214, 0, %v3215
        %3217 = vst [vmem:[#allocation2 + $0x8] sm:$0x1] %v3216
        %v3218 = vld [vmem:[#allocation2 + $0x14] sm:$0x1]
        %v3219 = vsel %vm3214, 0, %v3218
        %3220 = vst [vmem:[#allocation2 + $0x14] sm:$0x1] %v3219
        %v3221 = vld [vmem:[#allocation2 + $0x20] sm:$0x1]
        %v3222 = vsel %vm3214, 0, %v3221
        %3223 = vst [vmem:[#allocation2 + $0x20] sm:$0x1] %v3222
        %v3224 = vld [vmem:[#allocation2 + $0x2c] sm:$0x1]
        %v3225 = vsel %vm3214, 0, %v3224
        %3226 = vst [vmem:[#allocation2 + $0x2c] sm:$0x1] %v3225
        %v3227 = vld [vmem:[#allocation2 + $0x38] sm:$0x1]
        %v3228 = vsel %vm3214, 0, %v3227
        %3229 = vst [vmem:[#allocation2 + $0x38] sm:$0x1] %v3228
        %v3230 = vld [vmem:[#allocation2 + $0x44] sm:$0x1]
        %v3231 = vsel %vm3214, 0, %v3230
        %3232 = vst [vmem:[#allocation2 + $0x44] sm:$0x1] %v3231
        %v3233 = vld [vmem:[#allocation2 + $0x50] sm:$0x1]
        %v3234 = vsel %vm3214, 0, %v3233
        %3235 = vst [vmem:[#allocation2 + $0x50] sm:$0x1] %v3234
        %v3236 = vld [vmem:[#allocation2 + $0x5c] sm:$0x1]
        %v3237 = vsel %vm3214, 0, %v3236
        %3238 = vst [vmem:[#allocation2 + $0x5c] sm:$0x1] %v3237
        %v3239 = vld [vmem:[#allocation2 + $0x68] sm:$0x1]
        %v3240 = vsel %vm3214, 0, %v3239
        %3241 = vst [vmem:[#allocation2 + $0x68] sm:$0x1] %v3240
        %v3242 = vld [vmem:[#allocation2 + $0x74] sm:$0x1]
        %v3243 = vsel %vm3214, 0, %v3242
        %3244 = vst [vmem:[#allocation2 + $0x74] sm:$0x1] %v3243
        %v3245 = vld [vmem:[#allocation2] sm:$0xf]
        %v3246 = vld [vmem:[#allocation2 + $0x4] sm:$0xf]
        %v3247 = vld [vmem:[#allocation2 + $0xc] sm:$0xf]
        %v3248 = vld [vmem:[#allocation2 + $0x10] sm:$0xf]
        %v3249 = vld [vmem:[#allocation2 + $0x18] sm:$0xf]
        %v3250 = vld [vmem:[#allocation2 + $0x1c] sm:$0xf]
        %v3251 = vld [vmem:[#allocation2 + $0x24] sm:$0xf]
        %v3252 = vld [vmem:[#allocation2 + $0x28] sm:$0xf]
        %v3253 = vld [vmem:[#allocation2 + $0x30] sm:$0xf]
        %v3254 = vld [vmem:[#allocation2 + $0x34] sm:$0xf]
        %v3255 = vld [vmem:[#allocation2 + $0x3c] sm:$0xf]
        %v3256 = vld [vmem:[#allocation2 + $0x40] sm:$0xf]
        %v3257 = vld [vmem:[#allocation2 + $0x48] sm:$0xf]
        %v3258 = vld [vmem:[#allocation2 + $0x4c] sm:$0xf]
        %v3259 = vld [vmem:[#allocation2 + $0x54] sm:$0xf]
        %v3260 = vld [vmem:[#allocation2 + $0x58] sm:$0xf]
        %v3261 = vld [vmem:[%s2] sm:$0xf]
        %v3262 = vld [vmem:[%s2 + $0x4] sm:$0xf]
        %v3263 = vld [vmem:[%s2 + $0x8] sm:$0xf]
        %v3264 = vld [vmem:[%s2 + $0xc] sm:$0xf]
        %v3265 = vld [vmem:[%s2 + $0x10] sm:$0xf]
        %v3266 = vld [vmem:[%s2 + $0x14] sm:$0xf]
        %v3267 = vld [vmem:[%s2 + $0x18] sm:$0xf]
        %v3268 = vld [vmem:[%s2 + $0x1c] sm:$0xf]
        %v3269 = vld [vmem:[#allocation2 + $0x8] sm:$0x1]
        %v3270 = vld [vmem:[#allocation2 + $0x14] sm:$0x1]
        %v3271 = vld [vmem:[#allocation2 + $0x20] sm:$0x1]
        %v3272 = vld [vmem:[#allocation2 + $0x2c] sm:$0x1]
        %v3273 = vld [vmem:[#allocation2 + $0x38] sm:$0x1]
        %v3274 = vld [vmem:[#allocation2 + $0x44] sm:$0x1]
        %v3275 = vld [vmem:[#allocation2 + $0x50] sm:$0x1]
        %v3276 = vld [vmem:[#allocation2 + $0x5c] sm:$0x1]
        %vm3277 = vsmask.f32 3328
        %vm3278 = vsmask.f32 7440
        %vm3279 = vmor %vm3277, %vm3278
        %v3281 = vshrl.u32 %v3245, 16
        %v3283 = vrot.slane %v3281, 4
        %v3284 = vshll.u32 %v3245, 16
        %v3286 = vrot.slane %v3284, 5
        %v3287 = vor.u32 %v3283, %v3286
        %v3288 = vrot.slane %v3287, 4
        %v3290 = vshll.u32 %v3246, 16
        %v3292 = vrot.slane %v3290, 5
        %v3293 = vsel %vm3279, %v3288, %v3292
        %v3294 = vshrl.u32 %v3246, 16
        %v3296 = vrot.slane %v3294, 4
        %v3297 = vor.u32 %v3296, %v3292
        %v3298 = vrot.slane %v3297, 4
        %v3300 = vshll.u32 %v3269, 16
        %v3302 = vrot.slane %v3300, 5
        %v3303 = vsel %vm3279, %v3298, %v3302
        %v3305 = vshrl.u32 %v3247, 16
        %v3307 = vrot.slane %v3305, 4
        %v3308 = vshll.u32 %v3247, 16
        %v3310 = vrot.slane %v3308, 5
        %v3311 = vor.u32 %v3307, %v3310
        %v3312 = vrot.slane %v3311, 4
        %v3314 = vshll.u32 %v3248, 16
        %v3316 = vrot.slane %v3314, 5
        %v3317 = vsel %vm3279, %v3312, %v3316
        %v3318 = vshrl.u32 %v3248, 16
        %v3320 = vrot.slane %v3318, 4
        %v3321 = vor.u32 %v3320, %v3316
        %v3322 = vrot.slane %v3321, 4
        %v3324 = vshll.u32 %v3270, 16
        %v3326 = vrot.slane %v3324, 5
        %v3327 = vsel %vm3279, %v3322, %v3326
        %v3329 = vshrl.u32 %v3249, 16
        %v3331 = vrot.slane %v3329, 4
        %v3332 = vshll.u32 %v3249, 16
        %v3334 = vrot.slane %v3332, 5
        %v3335 = vor.u32 %v3331, %v3334
        %v3336 = vrot.slane %v3335, 4
        %v3338 = vshll.u32 %v3250, 16
        %v3340 = vrot.slane %v3338, 5
        %v3341 = vsel %vm3279, %v3336, %v3340
        %v3342 = vshrl.u32 %v3250, 16
        %v3344 = vrot.slane %v3342, 4
        %v3345 = vor.u32 %v3344, %v3340
        %v3346 = vrot.slane %v3345, 4
        %v3348 = vshll.u32 %v3271, 16
        %v3350 = vrot.slane %v3348, 5
        %v3351 = vsel %vm3279, %v3346, %v3350
        %v3353 = vshrl.u32 %v3251, 16
        %v3355 = vrot.slane %v3353, 4
        %v3356 = vshll.u32 %v3251, 16
        %v3358 = vrot.slane %v3356, 5
        %v3359 = vor.u32 %v3355, %v3358
        %v3360 = vrot.slane %v3359, 4
        %v3362 = vshll.u32 %v3252, 16
        %v3364 = vrot.slane %v3362, 5
        %v3365 = vsel %vm3279, %v3360, %v3364
        %v3366 = vshrl.u32 %v3252, 16
        %v3368 = vrot.slane %v3366, 4
        %v3369 = vor.u32 %v3368, %v3364
        %v3370 = vrot.slane %v3369, 4
        %v3372 = vshll.u32 %v3272, 16
        %v3374 = vrot.slane %v3372, 5
        %v3375 = vsel %vm3279, %v3370, %v3374
        %v3377 = vshrl.u32 %v3253, 16
        %v3379 = vrot.slane %v3377, 4
        %v3380 = vshll.u32 %v3253, 16
        %v3382 = vrot.slane %v3380, 5
        %v3383 = vor.u32 %v3379, %v3382
        %v3384 = vrot.slane %v3383, 4
        %v3386 = vshll.u32 %v3254, 16
        %v3388 = vrot.slane %v3386, 5
        %v3389 = vsel %vm3279, %v3384, %v3388
        %v3390 = vshrl.u32 %v3254, 16
        %v3392 = vrot.slane %v3390, 4
        %v3393 = vor.u32 %v3392, %v3388
        %v3394 = vrot.slane %v3393, 4
        %v3396 = vshll.u32 %v3273, 16
        %v3398 = vrot.slane %v3396, 5
        %v3399 = vsel %vm3279, %v3394, %v3398
        %v3401 = vshrl.u32 %v3255, 16
        %v3403 = vrot.slane %v3401, 4
        %v3404 = vshll.u32 %v3255, 16
        %v3406 = vrot.slane %v3404, 5
        %v3407 = vor.u32 %v3403, %v3406
        %v3408 = vrot.slane %v3407, 4
        %v3410 = vshll.u32 %v3256, 16
        %v3412 = vrot.slane %v3410, 5
        %v3413 = vsel %vm3279, %v3408, %v3412
        %v3414 = vshrl.u32 %v3256, 16
        %v3416 = vrot.slane %v3414, 4
        %v3417 = vor.u32 %v3416, %v3412
        %v3418 = vrot.slane %v3417, 4
        %v3420 = vshll.u32 %v3274, 16
        %v3422 = vrot.slane %v3420, 5
        %v3423 = vsel %vm3279, %v3418, %v3422
        %v3425 = vshrl.u32 %v3257, 16
        %v3427 = vrot.slane %v3425, 4
        %v3428 = vshll.u32 %v3257, 16
        %v3430 = vrot.slane %v3428, 5
        %v3431 = vor.u32 %v3427, %v3430
        %v3432 = vrot.slane %v3431, 4
        %v3434 = vshll.u32 %v3258, 16
        %v3436 = vrot.slane %v3434, 5
        %v3437 = vsel %vm3279, %v3432, %v3436
        %v3438 = vshrl.u32 %v3258, 16
        %v3440 = vrot.slane %v3438, 4
        %v3441 = vor.u32 %v3440, %v3436
        %v3442 = vrot.slane %v3441, 4
        %v3444 = vshll.u32 %v3275, 16
        %v3446 = vrot.slane %v3444, 5
        %v3447 = vsel %vm3279, %v3442, %v3446
        %v3449 = vshrl.u32 %v3259, 16
        %v3451 = vrot.slane %v3449, 4
        %v3452 = vshll.u32 %v3259, 16
        %v3454 = vrot.slane %v3452, 5
        %v3455 = vor.u32 %v3451, %v3454
        %v3456 = vrot.slane %v3455, 4
        %v3458 = vshll.u32 %v3260, 16
        %v3460 = vrot.slane %v3458, 5
        %v3461 = vsel %vm3279, %v3456, %v3460
        %v3462 = vshrl.u32 %v3260, 16
        %v3464 = vrot.slane %v3462, 4
        %v3465 = vor.u32 %v3464, %v3460
        %v3466 = vrot.slane %v3465, 4
        %v3468 = vshll.u32 %v3276, 16
        %v3470 = vrot.slane %v3468, 5
        %v3471 = vsel %vm3279, %v3466, %v3470
        %s3472 = scalar_lea.vmem %s2, 32
        %v3473 = vld [vmem:[%s3472] sm:$0xf]
        %v3474 = vld [vmem:[%s3472 + $0x4] sm:$0xf]
        %v3475 = vld [vmem:[%s3472 + $0x8] sm:$0xf]
        %v3476 = vld [vmem:[%s3472 + $0xc] sm:$0xf]
        %v3477 = vld [vmem:[%s3472 + $0x10] sm:$0xf]
        %v3478 = vld [vmem:[%s3472 + $0x14] sm:$0xf]
        %v3479 = vld [vmem:[%s3472 + $0x18] sm:$0xf]
        %v3480 = vld [vmem:[%s3472 + $0x1c] sm:$0xf]
        %v3481 = vunpack.c.l.b16 %v3293
        %v3482 = vunpack.c.l.b16 %v3303
        %v3483 = vunpack.c.l.b16 %v3317
        %v3484 = vunpack.c.l.b16 %v3327
        %v3485 = vunpack.c.l.b16 %v3341
        %v3486 = vunpack.c.l.b16 %v3351
        %v3487 = vunpack.c.l.b16 %v3365
        %v3488 = vunpack.c.l.b16 %v3375
        %v3489 = vunpack.c.l.b16 %v3389
        %v3490 = vunpack.c.l.b16 %v3399
        %v3491 = vunpack.c.l.b16 %v3413
        %v3492 = vunpack.c.l.b16 %v3423
        %v3493 = vunpack.c.l.b16 %v3437
        %v3494 = vunpack.c.l.b16 %v3447
        %v3495 = vunpack.c.l.b16 %v3461
        %v3496 = vunpack.c.l.b16 %v3471
        %v3497 = vpack.c.b16 %v3482, %v3481
        %v3498 = vpack.c.b16 %v3484, %v3483
        %v3499 = vpack.c.b16 %v3486, %v3485
        %v3500 = vpack.c.b16 %v3488, %v3487
        %v3501 = vpack.c.b16 %v3490, %v3489
        %v3502 = vpack.c.b16 %v3492, %v3491
        %v3503 = vpack.c.b16 %v3494, %v3493
        %v3504 = vpack.c.b16 %v3496, %v3495
        %v3513 = vunpack.c.l.b16 %v3473
        %v3514 = vunpack.c.l.b16 %v3474
        %v3515 = vunpack.c.l.b16 %v3475
        %v3516 = vunpack.c.l.b16 %v3476
        %v3517 = vunpack.c.l.b16 %v3477
        %v3518 = vunpack.c.l.b16 %v3478
        %v3519 = vunpack.c.l.b16 %v3479
        %v3520 = vunpack.c.l.b16 %v3480
        %v3521 = vpack.c.b16 %v3514, %v3513
        %v3522 = vpack.c.b16 %v3516, %v3515
        %v3523 = vpack.c.b16 %v3518, %v3517
        %v3524 = vpack.c.b16 %v3520, %v3519
        %vm3529 = vcmask 523264
        %v3531 = vsel %vm3529, %v3497, 0
        %v3534 = vsel %vm3529, %v3498, 0
        %v3537 = vsel %vm3529, %v3499, 0
        %v3540 = vsel %vm3529, %v3500, 0
        %v3543 = vsel %vm3529, %v3501, 0
        %v3546 = vsel %vm3529, %v3502, 0
        %v3549 = vsel %vm3529, %v3503, 0
        %v3552 = vsel %vm3529, %v3504, 0
        %3554 = vmatprep.subr.bf16.mxu0 0
        %3555 = vmatpush1.bf16.msra.mxu0 %v3521
        %3556 = vmatprep.subr.bf16.mxu0 0
        %3557 = vmatpush1.bf16.msra.mxu0 %v3522
        %3558 = vmatprep.subr.bf16.mxu0 0
        %3559 = vmatpush1.bf16.msra.mxu0 %v3523
        %3560 = vmatprep.subr.bf16.mxu0 0
        %3561 = vmatpush1.bf16.msra.mxu0 %v3524
        %3562 = vmatprep.subr.bf16.mxu0 0
        %3563 = vmatpush1.bf16.msra.mxu0 0
        %3564 = vmatprep.subr.bf16.mxu0 0
        %3565 = vmatpush1.bf16.msra.mxu0 0
        %3566 = vmatprep.subr.bf16.mxu0 0
        %3567 = vmatpush1.bf16.msra.mxu0 0
        %3568 = vmatprep.subr.bf16.mxu0 0
        %3569 = vmatpush1.bf16.msra.mxu0 0
        %3570 = vmatprep.subr.bf16.mxu0 0
        %3571 = vmatpush1.bf16.msra.mxu0 0
        %3572 = vmatprep.subr.bf16.mxu0 0
        %3573 = vmatpush1.bf16.msra.mxu0 0
        %3574 = vmatprep.subr.bf16.mxu0 0
        %3575 = vmatpush1.bf16.msra.mxu0 0
        %3576 = vmatprep.subr.bf16.mxu0 0
        %3577 = vmatpush1.bf16.msra.mxu0 0
        %3578 = vmatprep.subr.bf16.mxu0 0
        %3579 = vmatpush1.bf16.msra.mxu0 0
        %3580 = vmatprep.subr.bf16.mxu0 0
        %3581 = vmatpush1.bf16.msra.mxu0 0
        %3582 = vmatprep.subr.bf16.mxu0 0
        %3583 = vmatpush1.bf16.msra.mxu0 0
        %3584 = vmatprep.subr.bf16.mxu0 0
        %3585 = vmatpush1.bf16.msra.mxu0 0
        %3586 = vmatprep.mubr.bf16.mxu0 0
        %3587 = vmatmul.mubr.bf16.gmra.mrb[0].mxu0 %v3531
        %v3588 = vpop.f32.mrb[0].mxu0
        %v3589 = vadd.f32 0.0, %v3588
        %v3590 = vpop.f32.mrb[0].mxu0
        %v3591 = vpop.f32.mrb[0].mxu0
        %v3592 = vadd.f32 0.0, %v3591
        %v3593 = vpop.f32.mrb[0].mxu0
        %3594 = vmatprep.mubr.bf16.mxu0 0
        %3595 = vmatmul.mubr.bf16.gmra.mrb[0].mxu0 %v3534
        %v3596 = vpop.f32.mrb[0].mxu0
        %v3597 = vadd.f32 0.0, %v3596
        %v3598 = vpop.f32.mrb[0].mxu0
        %v3599 = vpop.f32.mrb[0].mxu0
        %v3600 = vadd.f32 0.0, %v3599
        %v3601 = vpop.f32.mrb[0].mxu0
        %3602 = vmatprep.mubr.bf16.mxu0 0
        %3603 = vmatmul.mubr.bf16.gmra.mrb[0].mxu0 %v3537
        %v3604 = vpop.f32.mrb[0].mxu0
        %v3605 = vadd.f32 0.0, %v3604
        %v3606 = vpop.f32.mrb[0].mxu0
        %v3607 = vpop.f32.mrb[0].mxu0
        %v3608 = vadd.f32 0.0, %v3607
        %v3609 = vpop.f32.mrb[0].mxu0
        %3610 = vmatprep.mubr.bf16.mxu0 0
        %3611 = vmatmul.mubr.bf16.gmra.mrb[0].mxu0 %v3540
        %v3612 = vpop.f32.mrb[0].mxu0
        %v3613 = vadd.f32 0.0, %v3612
        %v3614 = vpop.f32.mrb[0].mxu0
        %v3615 = vpop.f32.mrb[0].mxu0
        %v3616 = vadd.f32 0.0, %v3615
        %v3617 = vpop.f32.mrb[0].mxu0
        %3618 = vmatprep.mubr.bf16.mxu0 0
        %3619 = vmatmul.mubr.bf16.gmra.mrb[0].mxu0 %v3543
        %v3620 = vpop.f32.mrb[0].mxu0
        %v3621 = vadd.f32 0.0, %v3620
        %v3622 = vpop.f32.mrb[0].mxu0
        %v3623 = vpop.f32.mrb[0].mxu0
        %v3624 = vadd.f32 0.0, %v3623
        %v3625 = vpop.f32.mrb[0].mxu0
        %3626 = vmatprep.mubr.bf16.mxu0 0
        %3627 = vmatmul.mubr.bf16.gmra.mrb[0].mxu0 %v3546
        %v3628 = vpop.f32.mrb[0].mxu0
        %v3629 = vadd.f32 0.0, %v3628
        %v3630 = vpop.f32.mrb[0].mxu0
        %v3631 = vpop.f32.mrb[0].mxu0
        %v3632 = vadd.f32 0.0, %v3631
        %v3633 = vpop.f32.mrb[0].mxu0
        %3634 = vmatprep.mubr.bf16.mxu0 0
        %3635 = vmatmul.mubr.bf16.gmra.mrb[0].mxu0 %v3549
        %v3636 = vpop.f32.mrb[0].mxu0
        %v3637 = vadd.f32 0.0, %v3636
        %v3638 = vpop.f32.mrb[0].mxu0
        %v3639 = vpop.f32.mrb[0].mxu0
        %v3640 = vadd.f32 0.0, %v3639
        %v3641 = vpop.f32.mrb[0].mxu0
        %3642 = vmatprep.mubr.bf16.mxu0 0
        %3643 = vmatmul.mubr.bf16.gmra.mrb[0].mxu0 %v3552
        %v3644 = vpop.f32.mrb[0].mxu0
        %v3645 = vadd.f32 0.0, %v3644
        %v3646 = vpop.f32.mrb[0].mxu0
        %v3647 = vpop.f32.mrb[0].mxu0
        %v3648 = vadd.f32 0.0, %v3647
        %v3649 = vpop.f32.mrb[0].mxu0
        %3650 = vdwg.mxu0
        %v3667 = vunpack.c.l.b16 %v3245
        %v3668 = vunpack.c.l.b16 %v3246
        %v3669 = vunpack.c.l.b16 %v3247
        %v3670 = vunpack.c.l.b16 %v3248
        %v3671 = vunpack.c.l.b16 %v3249
        %v3672 = vunpack.c.l.b16 %v3250
        %v3673 = vunpack.c.l.b16 %v3251
        %v3674 = vunpack.c.l.b16 %v3252
        %v3675 = vunpack.c.l.b16 %v3253
        %v3676 = vunpack.c.l.b16 %v3254
        %v3677 = vunpack.c.l.b16 %v3255
        %v3678 = vunpack.c.l.b16 %v3256
        %v3679 = vunpack.c.l.b16 %v3257
        %v3680 = vunpack.c.l.b16 %v3258
        %v3681 = vunpack.c.l.b16 %v3259
        %v3682 = vunpack.c.l.b16 %v3260
        %v3683 = vpack.c.b16 %v3668, %v3667
        %v3684 = vpack.c.b16 %v3670, %v3669
        %v3685 = vpack.c.b16 %v3672, %v3671
        %v3686 = vpack.c.b16 %v3674, %v3673
        %v3687 = vpack.c.b16 %v3676, %v3675
        %v3688 = vpack.c.b16 %v3678, %v3677
        %v3689 = vpack.c.b16 %v3680, %v3679
        %v3690 = vpack.c.b16 %v3682, %v3681
        %v3699 = vunpack.c.l.b16 %v3261
        %v3700 = vunpack.c.l.b16 %v3262
        %v3701 = vunpack.c.l.b16 %v3263
        %v3702 = vunpack.c.l.b16 %v3264
        %v3703 = vunpack.c.l.b16 %v3265
        %v3704 = vunpack.c.l.b16 %v3266
        %v3705 = vunpack.c.l.b16 %v3267
        %v3706 = vunpack.c.l.b16 %v3268
        %v3707 = vpack.c.b16 %v3700, %v3699
        %v3708 = vpack.c.b16 %v3702, %v3701
        %v3709 = vpack.c.b16 %v3704, %v3703
        %v3710 = vpack.c.b16 %v3706, %v3705
        %v3716 = vsel %vm3529, %v3683, 0
        %v3719 = vsel %vm3529, %v3684, 0
        %v3722 = vsel %vm3529, %v3685, 0
        %v3725 = vsel %vm3529, %v3686, 0
        %v3728 = vsel %vm3529, %v3687, 0
        %v3731 = vsel %vm3529, %v3688, 0
        %v3734 = vsel %vm3529, %v3689, 0
        %v3737 = vsel %vm3529, %v3690, 0
        %3739 = vmatprep.subr.bf16.mxu0 0
        %3740 = vmatpush1.bf16.msra.mxu0 %v3707
        %3741 = vmatprep.subr.bf16.mxu0 0
        %3742 = vmatpush1.bf16.msra.mxu0 %v3708
        %3743 = vmatprep.subr.bf16.mxu0 0
        %3744 = vmatpush1.bf16.msra.mxu0 %v3709
        %3745 = vmatprep.subr.bf16.mxu0 0
        %3746 = vmatpush1.bf16.msra.mxu0 %v3710
        %3747 = vmatprep.subr.bf16.mxu0 0
        %3748 = vmatpush1.bf16.msra.mxu0 0
        %3749 = vmatprep.subr.bf16.mxu0 0
        %3750 = vmatpush1.bf16.msra.mxu0 0
        %3751 = vmatprep.subr.bf16.mxu0 0
        %3752 = vmatpush1.bf16.msra.mxu0 0
        %3753 = vmatprep.subr.bf16.mxu0 0
        %3754 = vmatpush1.bf16.msra.mxu0 0
        %3755 = vmatprep.subr.bf16.mxu0 0
        %3756 = vmatpush1.bf16.msra.mxu0 0
        %3757 = vmatprep.subr.bf16.mxu0 0
        %3758 = vmatpush1.bf16.msra.mxu0 0
        %3759 = vmatprep.subr.bf16.mxu0 0
        %3760 = vmatpush1.bf16.msra.mxu0 0
        %3761 = vmatprep.subr.bf16.mxu0 0
        %3762 = vmatpush1.bf16.msra.mxu0 0
        %3763 = vmatprep.subr.bf16.mxu0 0
        %3764 = vmatpush1.bf16.msra.mxu0 0
        %3765 = vmatprep.subr.bf16.mxu0 0
        %3766 = vmatpush1.bf16.msra.mxu0 0
        %3767 = vmatprep.subr.bf16.mxu0 0
        %3768 = vmatpush1.bf16.msra.mxu0 0
        %3769 = vmatprep.subr.bf16.mxu0 0
        %3770 = vmatpush1.bf16.msra.mxu0 0
        %3771 = vmatprep.mubr.bf16.mxu0 0
        %3772 = vmatmul.mubr.bf16.gmra.mrb[0].mxu0 %v3716
        %v3773 = vpop.f32.mrb[0].mxu0
        %v3774 = vadd.f32 %v3589, %v3773
        %v3775 = vpop.f32.mrb[0].mxu0
        %v3776 = vpop.f32.mrb[0].mxu0
        %v3777 = vadd.f32 %v3592, %v3776
        %v3778 = vpop.f32.mrb[0].mxu0
        %3779 = vmatprep.mubr.bf16.mxu0 0
        %3780 = vmatmul.mubr.bf16.gmra.mrb[0].mxu0 %v3719
        %v3781 = vpop.f32.mrb[0].mxu0
        %v3782 = vadd.f32 %v3597, %v3781
        %v3783 = vpop.f32.mrb[0].mxu0
        %v3784 = vpop.f32.mrb[0].mxu0
        %v3785 = vadd.f32 %v3600, %v3784
        %v3786 = vpop.f32.mrb[0].mxu0
        %3787 = vmatprep.mubr.bf16.mxu0 0
        %3788 = vmatmul.mubr.bf16.gmra.mrb[0].mxu0 %v3722
        %v3789 = vpop.f32.mrb[0].mxu0
        %v3790 = vadd.f32 %v3605, %v3789
        %v3791 = vpop.f32.mrb[0].mxu0
        %v3792 = vpop.f32.mrb[0].mxu0
        %v3793 = vadd.f32 %v3608, %v3792
        %v3794 = vpop.f32.mrb[0].mxu0
        %3795 = vmatprep.mubr.bf16.mxu0 0
        %3796 = vmatmul.mubr.bf16.gmra.mrb[0].mxu0 %v3725
        %v3797 = vpop.f32.mrb[0].mxu0
        %v3798 = vadd.f32 %v3613, %v3797
        %v3799 = vpop.f32.mrb[0].mxu0
        %v3800 = vpop.f32.mrb[0].mxu0
        %v3801 = vadd.f32 %v3616, %v3800
        %v3802 = vpop.f32.mrb[0].mxu0
        %3803 = vmatprep.mubr.bf16.mxu0 0
        %3804 = vmatmul.mubr.bf16.gmra.mrb[0].mxu0 %v3728
        %v3805 = vpop.f32.mrb[0].mxu0
        %v3806 = vadd.f32 %v3621, %v3805
        %v3807 = vpop.f32.mrb[0].mxu0
        %v3808 = vpop.f32.mrb[0].mxu0
        %v3809 = vadd.f32 %v3624, %v3808
        %v3810 = vpop.f32.mrb[0].mxu0
        %3811 = vmatprep.mubr.bf16.mxu0 0
        %3812 = vmatmul.mubr.bf16.gmra.mrb[0].mxu0 %v3731
        %v3813 = vpop.f32.mrb[0].mxu0
        %v3814 = vadd.f32 %v3629, %v3813
        %v3815 = vpop.f32.mrb[0].mxu0
        %v3816 = vpop.f32.mrb[0].mxu0
        %v3817 = vadd.f32 %v3632, %v3816
        %v3818 = vpop.f32.mrb[0].mxu0
        %3819 = vmatprep.mubr.bf16.mxu0 0
        %3820 = vmatmul.mubr.bf16.gmra.mrb[0].mxu0 %v3734
        %v3821 = vpop.f32.mrb[0].mxu0
        %v3822 = vadd.f32 %v3637, %v3821
        %v3823 = vpop.f32.mrb[0].mxu0
        %v3824 = vpop.f32.mrb[0].mxu0
        %v3825 = vadd.f32 %v3640, %v3824
        %v3826 = vpop.f32.mrb[0].mxu0
        %3827 = vmatprep.mubr.bf16.mxu0 0
        %3828 = vmatmul.mubr.bf16.gmra.mrb[0].mxu0 %v3737
        %v3829 = vpop.f32.mrb[0].mxu0
        %v3830 = vadd.f32 %v3645, %v3829
        %v3831 = vpop.f32.mrb[0].mxu0
        %v3832 = vpop.f32.mrb[0].mxu0
        %v3833 = vadd.f32 %v3648, %v3832
        %v3834 = vpop.f32.mrb[0].mxu0
        %3835 = vdwg.mxu0
        %v3836 = vld [vmem:[#allocation2] sm:$0xe]
        %v3837 = vld [vmem:[#allocation2 + $0xc] sm:$0xe]
        %v3838 = vld [vmem:[#allocation2 + $0x18] sm:$0xe]
        %v3839 = vld [vmem:[#allocation2 + $0x24] sm:$0xe]
        %v3840 = vld [vmem:[#allocation2 + $0x30] sm:$0xe]
        %v3841 = vld [vmem:[#allocation2 + $0x3c] sm:$0xe]
        %v3842 = vld [vmem:[#allocation2 + $0x48] sm:$0xe]
        %v3843 = vld [vmem:[#allocation2 + $0x54] sm:$0xe]
        %vm3860 = vcmask 1042432
        %vm3861 = vcmask 1046532
        %vm3862 = vmor %vm3860, %vm3861
        %v3863 = vrot.slane %v3836, 5
        %v3864 = vrot.slane %v3863, 4
        %v3865 = vrot.slane %v3246, 5
        %v3866 = vsel %vm3862, %v3864, %v3865
        %v3867 = vrot.slane %v3865, 4
        %v3868 = vrot.slane %v3269, 5
        %v3869 = vsel %vm3862, %v3867, %v3868
        %v3870 = vrot.slane %v3837, 5
        %v3871 = vrot.slane %v3870, 4
        %v3872 = vrot.slane %v3248, 5
        %v3873 = vsel %vm3862, %v3871, %v3872
        %v3874 = vrot.slane %v3872, 4
        %v3875 = vrot.slane %v3270, 5
        %v3876 = vsel %vm3862, %v3874, %v3875
        %v3877 = vrot.slane %v3838, 5
        %v3878 = vrot.slane %v3877, 4
        %v3879 = vrot.slane %v3250, 5
        %v3880 = vsel %vm3862, %v3878, %v3879
        %v3881 = vrot.slane %v3879, 4
        %v3882 = vrot.slane %v3271, 5
        %v3883 = vsel %vm3862, %v3881, %v3882
        %v3884 = vrot.slane %v3839, 5
        %v3885 = vrot.slane %v3884, 4
        %v3886 = vrot.slane %v3252, 5
        %v3887 = vsel %vm3862, %v3885, %v3886
        %v3888 = vrot.slane %v3886, 4
        %v3889 = vrot.slane %v3272, 5
        %v3890 = vsel %vm3862, %v3888, %v3889
        %v3891 = vrot.slane %v3840, 5
        %v3892 = vrot.slane %v3891, 4
        %v3893 = vrot.slane %v3254, 5
        %v3894 = vsel %vm3862, %v3892, %v3893
        %v3895 = vrot.slane %v3893, 4
        %v3896 = vrot.slane %v3273, 5
        %v3897 = vsel %vm3862, %v3895, %v3896
        %v3898 = vrot.slane %v3841, 5
        %v3899 = vrot.slane %v3898, 4
        %v3900 = vrot.slane %v3256, 5
        %v3901 = vsel %vm3862, %v3899, %v3900
        %v3902 = vrot.slane %v3900, 4
        %v3903 = vrot.slane %v3274, 5
        %v3904 = vsel %vm3862, %v3902, %v3903
        %v3905 = vrot.slane %v3842, 5
        %v3906 = vrot.slane %v3905, 4
        %v3907 = vrot.slane %v3258, 5
        %v3908 = vsel %vm3862, %v3906, %v3907
        %v3909 = vrot.slane %v3907, 4
        %v3910 = vrot.slane %v3275, 5
        %v3911 = vsel %vm3862, %v3909, %v3910
        %v3912 = vrot.slane %v3843, 5
        %v3913 = vrot.slane %v3912, 4
        %v3914 = vrot.slane %v3260, 5
        %v3915 = vsel %vm3862, %v3913, %v3914
        %v3916 = vrot.slane %v3914, 4
        %v3917 = vrot.slane %v3276, 5
        %v3918 = vsel %vm3862, %v3916, %v3917
        %s3919 = scalar_lea.vmem %s2, 64
        %v3920 = vld [vmem:[%s3919] sm:$0xf]
        %v3921 = vld [vmem:[%s3919 + $0x4] sm:$0xf]
        %v3922 = vld [vmem:[%s3919 + $0x8] sm:$0xf]
        %v3923 = vld [vmem:[%s3919 + $0xc] sm:$0xf]
        %v3924 = vld [vmem:[%s3919 + $0x10] sm:$0xf]
        %v3925 = vld [vmem:[%s3919 + $0x14] sm:$0xf]
        %v3926 = vld [vmem:[%s3919 + $0x18] sm:$0xf]
        %v3927 = vld [vmem:[%s3919 + $0x1c] sm:$0xf]
        %v3928 = vunpack.c.l.b16 %v3866
        %v3929 = vunpack.c.l.b16 %v3869
        %v3930 = vunpack.c.l.b16 %v3873
        %v3931 = vunpack.c.l.b16 %v3876
        %v3932 = vunpack.c.l.b16 %v3880
        %v3933 = vunpack.c.l.b16 %v3883
        %v3934 = vunpack.c.l.b16 %v3887
        %v3935 = vunpack.c.l.b16 %v3890
        %v3936 = vunpack.c.l.b16 %v3894
        %v3937 = vunpack.c.l.b16 %v3897
        %v3938 = vunpack.c.l.b16 %v3901
        %v3939 = vunpack.c.l.b16 %v3904
        %v3940 = vunpack.c.l.b16 %v3908
        %v3941 = vunpack.c.l.b16 %v3911
        %v3942 = vunpack.c.l.b16 %v3915
        %v3943 = vunpack.c.l.b16 %v3918
        %v3944 = vpack.c.b16 %v3929, %v3928
        %v3945 = vpack.c.b16 %v3931, %v3930
        %v3946 = vpack.c.b16 %v3933, %v3932
        %v3947 = vpack.c.b16 %v3935, %v3934
        %v3948 = vpack.c.b16 %v3937, %v3936
        %v3949 = vpack.c.b16 %v3939, %v3938
        %v3950 = vpack.c.b16 %v3941, %v3940
        %v3951 = vpack.c.b16 %v3943, %v3942
        %v3960 = vunpack.c.l.b16 %v3920
        %v3961 = vunpack.c.l.b16 %v3921
        %v3962 = vunpack.c.l.b16 %v3922
        %v3963 = vunpack.c.l.b16 %v3923
        %v3964 = vunpack.c.l.b16 %v3924
        %v3965 = vunpack.c.l.b16 %v3925
        %v3966 = vunpack.c.l.b16 %v3926
        %v3967 = vunpack.c.l.b16 %v3927
        %v3968 = vpack.c.b16 %v3961, %v3960
        %v3969 = vpack.c.b16 %v3963, %v3962
        %v3970 = vpack.c.b16 %v3965, %v3964
        %v3971 = vpack.c.b16 %v3967, %v3966
        %v3977 = vsel %vm3529, %v3944, 0
        %v3980 = vsel %vm3529, %v3945, 0
        %v3983 = vsel %vm3529, %v3946, 0
        %v3986 = vsel %vm3529, %v3947, 0
        %v3989 = vsel %vm3529, %v3948, 0
        %v3992 = vsel %vm3529, %v3949, 0
        %v3995 = vsel %vm3529, %v3950, 0
        %v3998 = vsel %vm3529, %v3951, 0
        %4000 = vmatprep.subr.bf16.mxu0 0
        %4001 = vmatpush1.bf16.msra.mxu0 %v3968
        %4002 = vmatprep.subr.bf16.mxu0 0
        %4003 = vmatpush1.bf16.msra.mxu0 %v3969
        %4004 = vmatprep.subr.bf16.mxu0 0
        %4005 = vmatpush1.bf16.msra.mxu0 %v3970
        %4006 = vmatprep.subr.bf16.mxu0 0
        %4007 = vmatpush1.bf16.msra.mxu0 %v3971
        %4008 = vmatprep.subr.bf16.mxu0 0
        %4009 = vmatpush1.bf16.msra.mxu0 0
        %4010 = vmatprep.subr.bf16.mxu0 0
        %4011 = vmatpush1.bf16.msra.mxu0 0
        %4012 = vmatprep.subr.bf16.mxu0 0
        %4013 = vmatpush1.bf16.msra.mxu0 0
        %4014 = vmatprep.subr.bf16.mxu0 0
        %4015 = vmatpush1.bf16.msra.mxu0 0
        %4016 = vmatprep.subr.bf16.mxu0 0
        %4017 = vmatpush1.bf16.msra.mxu0 0
        %4018 = vmatprep.subr.bf16.mxu0 0
        %4019 = vmatpush1.bf16.msra.mxu0 0
        %4020 = vmatprep.subr.bf16.mxu0 0
        %4021 = vmatpush1.bf16.msra.mxu0 0
        %4022 = vmatprep.subr.bf16.mxu0 0
        %4023 = vmatpush1.bf16.msra.mxu0 0
        %4024 = vmatprep.subr.bf16.mxu0 0
        %4025 = vmatpush1.bf16.msra.mxu0 0
        %4026 = vmatprep.subr.bf16.mxu0 0
        %4027 = vmatpush1.bf16.msra.mxu0 0
        %4028 = vmatprep.subr.bf16.mxu0 0
        %4029 = vmatpush1.bf16.msra.mxu0 0
        %4030 = vmatprep.subr.bf16.mxu0 0
        %4031 = vmatpush1.bf16.msra.mxu0 0
        %4032 = vmatprep.mubr.bf16.mxu0 0
        %4033 = vmatmul.mubr.bf16.gmra.mrb[0].mxu0 %v3977
        %v4034 = vpop.f32.mrb[0].mxu0
        %v4035 = vadd.f32 0.0, %v4034
        %v4036 = vpop.f32.mrb[0].mxu0
        %v4037 = vpop.f32.mrb[0].mxu0
        %v4038 = vadd.f32 0.0, %v4037
        %v4039 = vpop.f32.mrb[0].mxu0
        %4040 = vmatprep.mubr.bf16.mxu0 0
        %4041 = vmatmul.mubr.bf16.gmra.mrb[0].mxu0 %v3980
        %v4042 = vpop.f32.mrb[0].mxu0
        %v4043 = vadd.f32 0.0, %v4042
        %v4044 = vpop.f32.mrb[0].mxu0
        %v4045 = vpop.f32.mrb[0].mxu0
        %v4046 = vadd.f32 0.0, %v4045
        %v4047 = vpop.f32.mrb[0].mxu0
        %4048 = vmatprep.mubr.bf16.mxu0 0
        %4049 = vmatmul.mubr.bf16.gmra.mrb[0].mxu0 %v3983
        %v4050 = vpop.f32.mrb[0].mxu0
        %v4051 = vadd.f32 0.0, %v4050
        %v4052 = vpop.f32.mrb[0].mxu0
        %v4053 = vpop.f32.mrb[0].mxu0
        %v4054 = vadd.f32 0.0, %v4053
        %v4055 = vpop.f32.mrb[0].mxu0
        %4056 = vmatprep.mubr.bf16.mxu0 0
        %4057 = vmatmul.mubr.bf16.gmra.mrb[0].mxu0 %v3986
        %v4058 = vpop.f32.mrb[0].mxu0
        %v4059 = vadd.f32 0.0, %v4058
        %v4060 = vpop.f32.mrb[0].mxu0
        %v4061 = vpop.f32.mrb[0].mxu0
        %v4062 = vadd.f32 0.0, %v4061
        %v4063 = vpop.f32.mrb[0].mxu0
        %4064 = vmatprep.mubr.bf16.mxu0 0
        %4065 = vmatmul.mubr.bf16.gmra.mrb[0].mxu0 %v3989
        %v4066 = vpop.f32.mrb[0].mxu0
        %v4067 = vadd.f32 0.0, %v4066
        %v4068 = vpop.f32.mrb[0].mxu0
        %v4069 = vpop.f32.mrb[0].mxu0
        %v4070 = vadd.f32 0.0, %v4069
        %v4071 = vpop.f32.mrb[0].mxu0
        %4072 = vmatprep.mubr.bf16.mxu0 0
        %4073 = vmatmul.mubr.bf16.gmra.mrb[0].mxu0 %v3992
        %v4074 = vpop.f32.mrb[0].mxu0
        %v4075 = vadd.f32 0.0, %v4074
        %v4076 = vpop.f32.mrb[0].mxu0
        %v4077 = vpop.f32.mrb[0].mxu0
        %v4078 = vadd.f32 0.0, %v4077
        %v4079 = vpop.f32.mrb[0].mxu0
        %4080 = vmatprep.mubr.bf16.mxu0 0
        %4081 = vmatmul.mubr.bf16.gmra.mrb[0].mxu0 %v3995
        %v4082 = vpop.f32.mrb[0].mxu0
        %v4083 = vadd.f32 0.0, %v4082
        %v4084 = vpop.f32.mrb[0].mxu0
        %v4085 = vpop.f32.mrb[0].mxu0
        %v4086 = vadd.f32 0.0, %v4085
        %v4087 = vpop.f32.mrb[0].mxu0
        %4088 = vmatprep.mubr.bf16.mxu0 0
        %4089 = vmatmul.mubr.bf16.gmra.mrb[0].mxu0 %v3998
        %v4090 = vpop.f32.mrb[0].mxu0
        %v4091 = vadd.f32 0.0, %v4090
        %v4092 = vpop.f32.mrb[0].mxu0
        %v4093 = vpop.f32.mrb[0].mxu0
        %v4094 = vadd.f32 0.0, %v4093
        %v4095 = vpop.f32.mrb[0].mxu0
        %4096 = vdwg.mxu0
        %v4097 = vadd.f32 %v3774, %v4035
        %v4098 = vadd.f32 %v3777, %v4038
        %v4099 = vadd.f32 %v3782, %v4043
        %v4100 = vadd.f32 %v3785, %v4046
        %v4101 = vadd.f32 %v3790, %v4051
        %v4102 = vadd.f32 %v3793, %v4054
        %v4103 = vadd.f32 %v3798, %v4059
        %v4104 = vadd.f32 %v3801, %v4062
        %v4105 = vadd.f32 %v3806, %v4067
        %v4106 = vadd.f32 %v3809, %v4070
        %v4107 = vadd.f32 %v3814, %v4075
        %v4108 = vadd.f32 %v3817, %v4078
        %v4109 = vadd.f32 %v3822, %v4083
        %v4110 = vadd.f32 %v3825, %v4086
        %v4111 = vadd.f32 %v3830, %v4091
        %v4112 = vadd.f32 %v3833, %v4094
        %v4113 = vld [vmem:[%s3113] sm:$0xf]
        %v4114 = vld [vmem:[%s3113 + $0x4] sm:$0xf]
        %v4115 = vld [vmem:[%s3113 + $0xc] sm:$0xf]
        %v4116 = vld [vmem:[%s3113 + $0x10] sm:$0xf]
        %v4117 = vld [vmem:[%s3113 + $0x18] sm:$0xf]
        %v4118 = vld [vmem:[%s3113 + $0x1c] sm:$0xf]
        %v4119 = vld [vmem:[%s3113 + $0x24] sm:$0xf]
        %v4120 = vld [vmem:[%s3113 + $0x28] sm:$0xf]
        %v4121 = vld [vmem:[%s3113 + $0x30] sm:$0xf]
        %v4122 = vld [vmem:[%s3113 + $0x34] sm:$0xf]
        %v4123 = vld [vmem:[%s3113 + $0x3c] sm:$0xf]
        %v4124 = vld [vmem:[%s3113 + $0x40] sm:$0xf]
        %v4125 = vld [vmem:[%s3113 + $0x48] sm:$0xf]
        %v4126 = vld [vmem:[%s3113 + $0x4c] sm:$0xf]
        %v4127 = vld [vmem:[%s3113 + $0x54] sm:$0xf]
        %v4128 = vld [vmem:[%s3113 + $0x58] sm:$0xf]
        %s4129 = scalar_lea.vmem %s2, 96
        %v4130 = vld [vmem:[%s4129] sm:$0xf]
        %v4131 = vld [vmem:[%s4129 + $0x4] sm:$0xf]
        %v4132 = vld [vmem:[%s4129 + $0x8] sm:$0xf]
        %v4133 = vld [vmem:[%s4129 + $0xc] sm:$0xf]
        %v4134 = vld [vmem:[%s4129 + $0x10] sm:$0xf]
        %v4135 = vld [vmem:[%s4129 + $0x14] sm:$0xf]
        %v4136 = vld [vmem:[%s4129 + $0x18] sm:$0xf]
        %v4137 = vld [vmem:[%s4129 + $0x1c] sm:$0xf]
        %v4154 = vunpack.c.l.b16 %v4113
        %v4155 = vunpack.c.l.b16 %v4114
        %v4156 = vunpack.c.l.b16 %v4115
        %v4157 = vunpack.c.l.b16 %v4116
        %v4158 = vunpack.c.l.b16 %v4117
        %v4159 = vunpack.c.l.b16 %v4118
        %v4160 = vunpack.c.l.b16 %v4119
        %v4161 = vunpack.c.l.b16 %v4120
        %v4162 = vunpack.c.l.b16 %v4121
        %v4163 = vunpack.c.l.b16 %v4122
        %v4164 = vunpack.c.l.b16 %v4123
        %v4165 = vunpack.c.l.b16 %v4124
        %v4166 = vunpack.c.l.b16 %v4125
        %v4167 = vunpack.c.l.b16 %v4126
        %v4168 = vunpack.c.l.b16 %v4127
        %v4169 = vunpack.c.l.b16 %v4128
        %v4170 = vpack.c.b16 %v4155, %v4154
        %v4171 = vpack.c.b16 %v4157, %v4156
        %v4172 = vpack.c.b16 %v4159, %v4158
        %v4173 = vpack.c.b16 %v4161, %v4160
        %v4174 = vpack.c.b16 %v4163, %v4162
        %v4175 = vpack.c.b16 %v4165, %v4164
        %v4176 = vpack.c.b16 %v4167, %v4166
        %v4177 = vpack.c.b16 %v4169, %v4168
        %v4186 = vunpack.c.l.b16 %v4130
        %v4187 = vunpack.c.l.b16 %v4131
        %v4188 = vunpack.c.l.b16 %v4132
        %v4189 = vunpack.c.l.b16 %v4133
        %v4190 = vunpack.c.l.b16 %v4134
        %v4191 = vunpack.c.l.b16 %v4135
        %v4192 = vunpack.c.l.b16 %v4136
        %v4193 = vunpack.c.l.b16 %v4137
        %v4194 = vpack.c.b16 %v4187, %v4186
        %v4195 = vpack.c.b16 %v4189, %v4188
        %v4196 = vpack.c.b16 %v4191, %v4190
        %v4197 = vpack.c.b16 %v4193, %v4192
        %v4203 = vsel %vm3529, %v4170, 0
        %v4206 = vsel %vm3529, %v4171, 0
        %v4209 = vsel %vm3529, %v4172, 0
        %v4212 = vsel %vm3529, %v4173, 0
        %v4215 = vsel %vm3529, %v4174, 0
        %v4218 = vsel %vm3529, %v4175, 0
        %v4221 = vsel %vm3529, %v4176, 0
        %v4224 = vsel %vm3529, %v4177, 0
        %4226 = vmatprep.subr.bf16.mxu0 0
        %4227 = vmatpush1.bf16.msra.mxu0 %v4194
        %4228 = vmatprep.subr.bf16.mxu0 0
        %4229 = vmatpush1.bf16.msra.mxu0 %v4195
        %4230 = vmatprep.subr.bf16.mxu0 0
        %4231 = vmatpush1.bf16.msra.mxu0 %v4196
        %4232 = vmatprep.subr.bf16.mxu0 0
        %4233 = vmatpush1.bf16.msra.mxu0 %v4197
        %4234 = vmatprep.subr.bf16.mxu0 0
        %4235 = vmatpush1.bf16.msra.mxu0 0
        %4236 = vmatprep.subr.bf16.mxu0 0
        %4237 = vmatpush1.bf16.msra.mxu0 0
        %4238 = vmatprep.subr.bf16.mxu0 0
        %4239 = vmatpush1.bf16.msra.mxu0 0
        %4240 = vmatprep.subr.bf16.mxu0 0
        %4241 = vmatpush1.bf16.msra.mxu0 0
        %4242 = vmatprep.subr.bf16.mxu0 0
        %4243 = vmatpush1.bf16.msra.mxu0 0
        %4244 = vmatprep.subr.bf16.mxu0 0
        %4245 = vmatpush1.bf16.msra.mxu0 0
        %4246 = vmatprep.subr.bf16.mxu0 0
        %4247 = vmatpush1.bf16.msra.mxu0 0
        %4248 = vmatprep.subr.bf16.mxu0 0
        %4249 = vmatpush1.bf16.msra.mxu0 0
        %4250 = vmatprep.subr.bf16.mxu0 0
        %4251 = vmatpush1.bf16.msra.mxu0 0
        %4252 = vmatprep.subr.bf16.mxu0 0
        %4253 = vmatpush1.bf16.msra.mxu0 0
        %4254 = vmatprep.subr.bf16.mxu0 0
        %4255 = vmatpush1.bf16.msra.mxu0 0
        %4256 = vmatprep.subr.bf16.mxu0 0
        %4257 = vmatpush1.bf16.msra.mxu0 0
        %4258 = vmatprep.mubr.bf16.mxu0 0
        %4259 = vmatmul.mubr.bf16.gmra.mrb[0].mxu0 %v4203
        %v4260 = vpop.f32.mrb[0].mxu0
        %v4261 = vadd.f32 0.0, %v4260
        %v4262 = vpop.f32.mrb[0].mxu0
        %v4263 = vpop.f32.mrb[0].mxu0
        %v4264 = vadd.f32 0.0, %v4263
        %v4265 = vpop.f32.mrb[0].mxu0
        %4266 = vmatprep.mubr.bf16.mxu0 0
        %4267 = vmatmul.mubr.bf16.gmra.mrb[0].mxu0 %v4206
        %v4268 = vpop.f32.mrb[0].mxu0
        %v4269 = vadd.f32 0.0, %v4268
        %v4270 = vpop.f32.mrb[0].mxu0
        %v4271 = vpop.f32.mrb[0].mxu0
        %v4272 = vadd.f32 0.0, %v4271
        %v4273 = vpop.f32.mrb[0].mxu0
        %4274 = vmatprep.mubr.bf16.mxu0 0
        %4275 = vmatmul.mubr.bf16.gmra.mrb[0].mxu0 %v4209
        %v4276 = vpop.f32.mrb[0].mxu0
        %v4277 = vadd.f32 0.0, %v4276
        %v4278 = vpop.f32.mrb[0].mxu0
        %v4279 = vpop.f32.mrb[0].mxu0
        %v4280 = vadd.f32 0.0, %v4279
        %v4281 = vpop.f32.mrb[0].mxu0
        %4282 = vmatprep.mubr.bf16.mxu0 0
        %4283 = vmatmul.mubr.bf16.gmra.mrb[0].mxu0 %v4212
        %v4284 = vpop.f32.mrb[0].mxu0
        %v4285 = vadd.f32 0.0, %v4284
        %v4286 = vpop.f32.mrb[0].mxu0
        %v4287 = vpop.f32.mrb[0].mxu0
        %v4288 = vadd.f32 0.0, %v4287
        %v4289 = vpop.f32.mrb[0].mxu0
        %4290 = vmatprep.mubr.bf16.mxu0 0
        %4291 = vmatmul.mubr.bf16.gmra.mrb[0].mxu0 %v4215
        %v4292 = vpop.f32.mrb[0].mxu0
        %v4293 = vadd.f32 0.0, %v4292
        %v4294 = vpop.f32.mrb[0].mxu0
        %v4295 = vpop.f32.mrb[0].mxu0
        %v4296 = vadd.f32 0.0, %v4295
        %v4297 = vpop.f32.mrb[0].mxu0
        %4298 = vmatprep.mubr.bf16.mxu0 0
        %4299 = vmatmul.mubr.bf16.gmra.mrb[0].mxu0 %v4218
        %v4300 = vpop.f32.mrb[0].mxu0
        %v4301 = vadd.f32 0.0, %v4300
        %v4302 = vpop.f32.mrb[0].mxu0
        %v4303 = vpop.f32.mrb[0].mxu0
        %v4304 = vadd.f32 0.0, %v4303
        %v4305 = vpop.f32.mrb[0].mxu0
        %4306 = vmatprep.mubr.bf16.mxu0 0
        %4307 = vmatmul.mubr.bf16.gmra.mrb[0].mxu0 %v4221
        %v4308 = vpop.f32.mrb[0].mxu0
        %v4309 = vadd.f32 0.0, %v4308
        %v4310 = vpop.f32.mrb[0].mxu0
        %v4311 = vpop.f32.mrb[0].mxu0
        %v4312 = vadd.f32 0.0, %v4311
        %v4313 = vpop.f32.mrb[0].mxu0
        %4314 = vmatprep.mubr.bf16.mxu0 0
        %4315 = vmatmul.mubr.bf16.gmra.mrb[0].mxu0 %v4224
        %v4316 = vpop.f32.mrb[0].mxu0
        %v4317 = vadd.f32 0.0, %v4316
        %v4318 = vpop.f32.mrb[0].mxu0
        %v4319 = vpop.f32.mrb[0].mxu0
        %v4320 = vadd.f32 0.0, %v4319
        %v4321 = vpop.f32.mrb[0].mxu0
        %4322 = vdwg.mxu0
        %v4323 = vadd.f32 %v4097, %v4261
        %v4324 = vadd.f32 %v4098, %v4264
        %v4325 = vadd.f32 %v4099, %v4269
        %v4326 = vadd.f32 %v4100, %v4272
        %v4327 = vadd.f32 %v4101, %v4277
        %v4328 = vadd.f32 %v4102, %v4280
        %v4329 = vadd.f32 %v4103, %v4285
        %v4330 = vadd.f32 %v4104, %v4288
        %v4331 = vadd.f32 %v4105, %v4293
        %v4332 = vadd.f32 %v4106, %v4296
        %v4333 = vadd.f32 %v4107, %v4301
        %v4334 = vadd.f32 %v4108, %v4304
        %v4335 = vadd.f32 %v4109, %v4309
        %v4336 = vadd.f32 %v4110, %v4312
        %v4337 = vadd.f32 %v4111, %v4317
        %v4338 = vadd.f32 %v4112, %v4320
        %v4339 = vld [vmem:[%s3113] sm:$0xf]
        %v4340 = vld [vmem:[%s3113 + $0x4] sm:$0xf]
        %v4341 = vld [vmem:[%s3113 + $0x8] sm:$0x1]
        %v4342 = vld [vmem:[%s3113 + $0xc] sm:$0xf]
        %v4343 = vld [vmem:[%s3113 + $0x10] sm:$0xf]
        %v4344 = vld [vmem:[%s3113 + $0x14] sm:$0x1]
        %v4345 = vld [vmem:[%s3113 + $0x18] sm:$0xf]
        %v4346 = vld [vmem:[%s3113 + $0x1c] sm:$0xf]
        %v4347 = vld [vmem:[%s3113 + $0x20] sm:$0x1]
        %v4348 = vld [vmem:[%s3113 + $0x24] sm:$0xf]
        %v4349 = vld [vmem:[%s3113 + $0x28] sm:$0xf]
        %v4350 = vld [vmem:[%s3113 + $0x2c] sm:$0x1]
        %v4351 = vld [vmem:[%s3113 + $0x30] sm:$0xf]
        %v4352 = vld [vmem:[%s3113 + $0x34] sm:$0xf]
        %v4353 = vld [vmem:[%s3113 + $0x38] sm:$0x1]
        %v4354 = vld [vmem:[%s3113 + $0x3c] sm:$0xf]
        %v4355 = vld [vmem:[%s3113 + $0x40] sm:$0xf]
        %v4356 = vld [vmem:[%s3113 + $0x44] sm:$0x1]
        %v4357 = vld [vmem:[%s3113 + $0x48] sm:$0xf]
        %v4358 = vld [vmem:[%s3113 + $0x4c] sm:$0xf]
        %v4359 = vld [vmem:[%s3113 + $0x50] sm:$0x1]
        %v4360 = vld [vmem:[%s3113 + $0x54] sm:$0xf]
        %v4361 = vld [vmem:[%s3113 + $0x58] sm:$0xf]
        %v4362 = vld [vmem:[%s3113 + $0x5c] sm:$0x1]
        %v4364 = vshrl.u32 %v4339, 16
        %v4366 = vrot.slane %v4364, 4
        %v4367 = vshll.u32 %v4339, 16
        %v4369 = vrot.slane %v4367, 5
        %v4370 = vor.u32 %v4366, %v4369
        %v4371 = vrot.slane %v4370, 4
        %v4373 = vshll.u32 %v4340, 16
        %v4375 = vrot.slane %v4373, 5
        %v4376 = vsel %vm3279, %v4371, %v4375
        %v4377 = vshrl.u32 %v4340, 16
        %v4379 = vrot.slane %v4377, 4
        %v4380 = vor.u32 %v4379, %v4375
        %v4381 = vrot.slane %v4380, 4
        %v4383 = vshll.u32 %v4341, 16
        %v4385 = vrot.slane %v4383, 5
        %v4386 = vsel %vm3279, %v4381, %v4385
        %v4388 = vshrl.u32 %v4342, 16
        %v4390 = vrot.slane %v4388, 4
        %v4391 = vshll.u32 %v4342, 16
        %v4393 = vrot.slane %v4391, 5
        %v4394 = vor.u32 %v4390, %v4393
        %v4395 = vrot.slane %v4394, 4
        %v4397 = vshll.u32 %v4343, 16
        %v4399 = vrot.slane %v4397, 5
        %v4400 = vsel %vm3279, %v4395, %v4399
        %v4401 = vshrl.u32 %v4343, 16
        %v4403 = vrot.slane %v4401, 4
        %v4404 = vor.u32 %v4403, %v4399
        %v4405 = vrot.slane %v4404, 4
        %v4407 = vshll.u32 %v4344, 16
        %v4409 = vrot.slane %v4407, 5
        %v4410 = vsel %vm3279, %v4405, %v4409
        %v4412 = vshrl.u32 %v4345, 16
        %v4414 = vrot.slane %v4412, 4
        %v4415 = vshll.u32 %v4345, 16
        %v4417 = vrot.slane %v4415, 5
        %v4418 = vor.u32 %v4414, %v4417
        %v4419 = vrot.slane %v4418, 4
        %v4421 = vshll.u32 %v4346, 16
        %v4423 = vrot.slane %v4421, 5
        %v4424 = vsel %vm3279, %v4419, %v4423
        %v4425 = vshrl.u32 %v4346, 16
        %v4427 = vrot.slane %v4425, 4
        %v4428 = vor.u32 %v4427, %v4423
        %v4429 = vrot.slane %v4428, 4
        %v4431 = vshll.u32 %v4347, 16
        %v4433 = vrot.slane %v4431, 5
        %v4434 = vsel %vm3279, %v4429, %v4433
        %v4436 = vshrl.u32 %v4348, 16
        %v4438 = vrot.slane %v4436, 4
        %v4439 = vshll.u32 %v4348, 16
        %v4441 = vrot.slane %v4439, 5
        %v4442 = vor.u32 %v4438, %v4441
        %v4443 = vrot.slane %v4442, 4
        %v4445 = vshll.u32 %v4349, 16
        %v4447 = vrot.slane %v4445, 5
        %v4448 = vsel %vm3279, %v4443, %v4447
        %v4449 = vshrl.u32 %v4349, 16
        %v4451 = vrot.slane %v4449, 4
        %v4452 = vor.u32 %v4451, %v4447
        %v4453 = vrot.slane %v4452, 4
        %v4455 = vshll.u32 %v4350, 16
        %v4457 = vrot.slane %v4455, 5
        %v4458 = vsel %vm3279, %v4453, %v4457
        %v4460 = vshrl.u32 %v4351, 16
        %v4462 = vrot.slane %v4460, 4
        %v4463 = vshll.u32 %v4351, 16
        %v4465 = vrot.slane %v4463, 5
        %v4466 = vor.u32 %v4462, %v4465
        %v4467 = vrot.slane %v4466, 4
        %v4469 = vshll.u32 %v4352, 16
        %v4471 = vrot.slane %v4469, 5
        %v4472 = vsel %vm3279, %v4467, %v4471
        %v4473 = vshrl.u32 %v4352, 16
        %v4475 = vrot.slane %v4473, 4
        %v4476 = vor.u32 %v4475, %v4471
        %v4477 = vrot.slane %v4476, 4
        %v4479 = vshll.u32 %v4353, 16
        %v4481 = vrot.slane %v4479, 5
        %v4482 = vsel %vm3279, %v4477, %v4481
        %v4484 = vshrl.u32 %v4354, 16
        %v4486 = vrot.slane %v4484, 4
        %v4487 = vshll.u32 %v4354, 16
        %v4489 = vrot.slane %v4487, 5
        %v4490 = vor.u32 %v4486, %v4489
        %v4491 = vrot.slane %v4490, 4
        %v4493 = vshll.u32 %v4355, 16
        %v4495 = vrot.slane %v4493, 5
        %v4496 = vsel %vm3279, %v4491, %v4495
        %v4497 = vshrl.u32 %v4355, 16
        %v4499 = vrot.slane %v4497, 4
        %v4500 = vor.u32 %v4499, %v4495
        %v4501 = vrot.slane %v4500, 4
        %v4503 = vshll.u32 %v4356, 16
        %v4505 = vrot.slane %v4503, 5
        %v4506 = vsel %vm3279, %v4501, %v4505
        %v4508 = vshrl.u32 %v4357, 16
        %v4510 = vrot.slane %v4508, 4
        %v4511 = vshll.u32 %v4357, 16
        %v4513 = vrot.slane %v4511, 5
        %v4514 = vor.u32 %v4510, %v4513
        %v4515 = vrot.slane %v4514, 4
        %v4517 = vshll.u32 %v4358, 16
        %v4519 = vrot.slane %v4517, 5
        %v4520 = vsel %vm3279, %v4515, %v4519
        %v4521 = vshrl.u32 %v4358, 16
        %v4523 = vrot.slane %v4521, 4
        %v4524 = vor.u32 %v4523, %v4519
        %v4525 = vrot.slane %v4524, 4
        %v4527 = vshll.u32 %v4359, 16
        %v4529 = vrot.slane %v4527, 5
        %v4530 = vsel %vm3279, %v4525, %v4529
        %v4532 = vshrl.u32 %v4360, 16
        %v4534 = vrot.slane %v4532, 4
        %v4535 = vshll.u32 %v4360, 16
        %v4537 = vrot.slane %v4535, 5
        %v4538 = vor.u32 %v4534, %v4537
        %v4539 = vrot.slane %v4538, 4
        %v4541 = vshll.u32 %v4361, 16
        %v4543 = vrot.slane %v4541, 5
        %v4544 = vsel %vm3279, %v4539, %v4543
        %v4545 = vshrl.u32 %v4361, 16
        %v4547 = vrot.slane %v4545, 4
        %v4548 = vor.u32 %v4547, %v4543
        %v4549 = vrot.slane %v4548, 4
        %v4551 = vshll.u32 %v4362, 16
        %v4553 = vrot.slane %v4551, 5
        %v4554 = vsel %vm3279, %v4549, %v4553
        %s4555 = scalar_lea.vmem %s2, 128
        %v4556 = vld [vmem:[%s4555] sm:$0xf]
        %v4557 = vld [vmem:[%s4555 + $0x4] sm:$0xf]
        %v4558 = vld [vmem:[%s4555 + $0x8] sm:$0xf]
        %v4559 = vld [vmem:[%s4555 + $0xc] sm:$0xf]
        %v4560 = vld [vmem:[%s4555 + $0x10] sm:$0xf]
        %v4561 = vld [vmem:[%s4555 + $0x14] sm:$0xf]
        %v4562 = vld [vmem:[%s4555 + $0x18] sm:$0xf]
        %v4563 = vld [vmem:[%s4555 + $0x1c] sm:$0xf]
        %v4564 = vunpack.c.l.b16 %v4376
        %v4565 = vunpack.c.l.b16 %v4386
        %v4566 = vunpack.c.l.b16 %v4400
        %v4567 = vunpack.c.l.b16 %v4410
        %v4568 = vunpack.c.l.b16 %v4424
        %v4569 = vunpack.c.l.b16 %v4434
        %v4570 = vunpack.c.l.b16 %v4448
        %v4571 = vunpack.c.l.b16 %v4458
        %v4572 = vunpack.c.l.b16 %v4472
        %v4573 = vunpack.c.l.b16 %v4482
        %v4574 = vunpack.c.l.b16 %v4496
        %v4575 = vunpack.c.l.b16 %v4506
        %v4576 = vunpack.c.l.b16 %v4520
        %v4577 = vunpack.c.l.b16 %v4530
        %v4578 = vunpack.c.l.b16 %v4544
        %v4579 = vunpack.c.l.b16 %v4554
        %v4580 = vpack.c.b16 %v4565, %v4564
        %v4581 = vpack.c.b16 %v4567, %v4566
        %v4582 = vpack.c.b16 %v4569, %v4568
        %v4583 = vpack.c.b16 %v4571, %v4570
        %v4584 = vpack.c.b16 %v4573, %v4572
        %v4585 = vpack.c.b16 %v4575, %v4574
        %v4586 = vpack.c.b16 %v4577, %v4576
        %v4587 = vpack.c.b16 %v4579, %v4578
        %v4596 = vunpack.c.l.b16 %v4556
        %v4597 = vunpack.c.l.b16 %v4557
        %v4598 = vunpack.c.l.b16 %v4558
        %v4599 = vunpack.c.l.b16 %v4559
        %v4600 = vunpack.c.l.b16 %v4560
        %v4601 = vunpack.c.l.b16 %v4561
        %v4602 = vunpack.c.l.b16 %v4562
        %v4603 = vunpack.c.l.b16 %v4563
        %v4604 = vpack.c.b16 %v4597, %v4596
        %v4605 = vpack.c.b16 %v4599, %v4598
        %v4606 = vpack.c.b16 %v4601, %v4600
        %v4607 = vpack.c.b16 %v4603, %v4602
        %v4613 = vsel %vm3529, %v4580, 0
        %v4616 = vsel %vm3529, %v4581, 0
        %v4619 = vsel %vm3529, %v4582, 0
        %v4622 = vsel %vm3529, %v4583, 0
        %v4625 = vsel %vm3529, %v4584, 0
        %v4628 = vsel %vm3529, %v4585, 0
        %v4631 = vsel %vm3529, %v4586, 0
        %v4634 = vsel %vm3529, %v4587, 0
        %4636 = vmatprep.subr.bf16.mxu0 0
        %4637 = vmatpush1.bf16.msra.mxu0 %v4604
        %4638 = vmatprep.subr.bf16.mxu0 0
        %4639 = vmatpush1.bf16.msra.mxu0 %v4605
        %4640 = vmatprep.subr.bf16.mxu0 0
        %4641 = vmatpush1.bf16.msra.mxu0 %v4606
        %4642 = vmatprep.subr.bf16.mxu0 0
        %4643 = vmatpush1.bf16.msra.mxu0 %v4607
        %4644 = vmatprep.subr.bf16.mxu0 0
        %4645 = vmatpush1.bf16.msra.mxu0 0
        %4646 = vmatprep.subr.bf16.mxu0 0
        %4647 = vmatpush1.bf16.msra.mxu0 0
        %4648 = vmatprep.subr.bf16.mxu0 0
        %4649 = vmatpush1.bf16.msra.mxu0 0
        %4650 = vmatprep.subr.bf16.mxu0 0
        %4651 = vmatpush1.bf16.msra.mxu0 0
        %4652 = vmatprep.subr.bf16.mxu0 0
        %4653 = vmatpush1.bf16.msra.mxu0 0
        %4654 = vmatprep.subr.bf16.mxu0 0
        %4655 = vmatpush1.bf16.msra.mxu0 0
        %4656 = vmatprep.subr.bf16.mxu0 0
        %4657 = vmatpush1.bf16.msra.mxu0 0
        %4658 = vmatprep.subr.bf16.mxu0 0
        %4659 = vmatpush1.bf16.msra.mxu0 0
        %4660 = vmatprep.subr.bf16.mxu0 0
        %4661 = vmatpush1.bf16.msra.mxu0 0
        %4662 = vmatprep.subr.bf16.mxu0 0
        %4663 = vmatpush1.bf16.msra.mxu0 0
        %4664 = vmatprep.subr.bf16.mxu0 0
        %4665 = vmatpush1.bf16.msra.mxu0 0
        %4666 = vmatprep.subr.bf16.mxu0 0
        %4667 = vmatpush1.bf16.msra.mxu0 0
        %4668 = vmatprep.mubr.bf16.mxu0 0
        %4669 = vmatmul.mubr.bf16.gmra.mrb[0].mxu0 %v4613
        %v4670 = vpop.f32.mrb[0].mxu0
        %v4671 = vadd.f32 0.0, %v4670
        %v4672 = vpop.f32.mrb[0].mxu0
        %v4673 = vpop.f32.mrb[0].mxu0
        %v4674 = vadd.f32 0.0, %v4673
        %v4675 = vpop.f32.mrb[0].mxu0
        %4676 = vmatprep.mubr.bf16.mxu0 0
        %4677 = vmatmul.mubr.bf16.gmra.mrb[0].mxu0 %v4616
        %v4678 = vpop.f32.mrb[0].mxu0
        %v4679 = vadd.f32 0.0, %v4678
        %v4680 = vpop.f32.mrb[0].mxu0
        %v4681 = vpop.f32.mrb[0].mxu0
        %v4682 = vadd.f32 0.0, %v4681
        %v4683 = vpop.f32.mrb[0].mxu0
        %4684 = vmatprep.mubr.bf16.mxu0 0
        %4685 = vmatmul.mubr.bf16.gmra.mrb[0].mxu0 %v4619
        %v4686 = vpop.f32.mrb[0].mxu0
        %v4687 = vadd.f32 0.0, %v4686
        %v4688 = vpop.f32.mrb[0].mxu0
        %v4689 = vpop.f32.mrb[0].mxu0
        %v4690 = vadd.f32 0.0, %v4689
        %v4691 = vpop.f32.mrb[0].mxu0
        %4692 = vmatprep.mubr.bf16.mxu0 0
        %4693 = vmatmul.mubr.bf16.gmra.mrb[0].mxu0 %v4622
        %v4694 = vpop.f32.mrb[0].mxu0
        %v4695 = vadd.f32 0.0, %v4694
        %v4696 = vpop.f32.mrb[0].mxu0
        %v4697 = vpop.f32.mrb[0].mxu0
        %v4698 = vadd.f32 0.0, %v4697
        %v4699 = vpop.f32.mrb[0].mxu0
        %4700 = vmatprep.mubr.bf16.mxu0 0
        %4701 = vmatmul.mubr.bf16.gmra.mrb[0].mxu0 %v4625
        %v4702 = vpop.f32.mrb[0].mxu0
        %v4703 = vadd.f32 0.0, %v4702
        %v4704 = vpop.f32.mrb[0].mxu0
        %v4705 = vpop.f32.mrb[0].mxu0
        %v4706 = vadd.f32 0.0, %v4705
        %v4707 = vpop.f32.mrb[0].mxu0
        %4708 = vmatprep.mubr.bf16.mxu0 0
        %4709 = vmatmul.mubr.bf16.gmra.mrb[0].mxu0 %v4628
        %v4710 = vpop.f32.mrb[0].mxu0
        %v4711 = vadd.f32 0.0, %v4710
        %v4712 = vpop.f32.mrb[0].mxu0
        %v4713 = vpop.f32.mrb[0].mxu0
        %v4714 = vadd.f32 0.0, %v4713
        %v4715 = vpop.f32.mrb[0].mxu0
        %4716 = vmatprep.mubr.bf16.mxu0 0
        %4717 = vmatmul.mubr.bf16.gmra.mrb[0].mxu0 %v4631
        %v4718 = vpop.f32.mrb[0].mxu0
        %v4719 = vadd.f32 0.0, %v4718
        %v4720 = vpop.f32.mrb[0].mxu0
        %v4721 = vpop.f32.mrb[0].mxu0
        %v4722 = vadd.f32 0.0, %v4721
        %v4723 = vpop.f32.mrb[0].mxu0
        %4724 = vmatprep.mubr.bf16.mxu0 0
        %4725 = vmatmul.mubr.bf16.gmra.mrb[0].mxu0 %v4634
        %v4726 = vpop.f32.mrb[0].mxu0
        %v4727 = vadd.f32 0.0, %v4726
        %v4728 = vpop.f32.mrb[0].mxu0
        %v4729 = vpop.f32.mrb[0].mxu0
        %v4730 = vadd.f32 0.0, %v4729
        %v4731 = vpop.f32.mrb[0].mxu0
        %4732 = vdwg.mxu0
        %v4733 = vadd.f32 %v4323, %v4671
        %v4734 = vadd.f32 %v4324, %v4674
        %v4735 = vadd.f32 %v4325, %v4679
        %v4736 = vadd.f32 %v4326, %v4682
        %v4737 = vadd.f32 %v4327, %v4687
        %v4738 = vadd.f32 %v4328, %v4690
        %v4739 = vadd.f32 %v4329, %v4695
        %v4740 = vadd.f32 %v4330, %v4698
        %v4741 = vadd.f32 %v4331, %v4703
        %v4742 = vadd.f32 %v4332, %v4706
        %v4743 = vadd.f32 %v4333, %v4711
        %v4744 = vadd.f32 %v4334, %v4714
        %v4745 = vadd.f32 %v4335, %v4719
        %v4746 = vadd.f32 %v4336, %v4722
        %v4747 = vadd.f32 %v4337, %v4727
        %v4748 = vadd.f32 %v4338, %v4730
        %v4749 = vld [vmem:[%s3113] sm:$0xe]
        %v4750 = vld [vmem:[%s3113 + $0xc] sm:$0xe]
        %v4751 = vld [vmem:[%s3113 + $0x18] sm:$0xe]
        %v4752 = vld [vmem:[%s3113 + $0x24] sm:$0xe]
        %v4753 = vld [vmem:[%s3113 + $0x30] sm:$0xe]
        %v4754 = vld [vmem:[%s3113 + $0x3c] sm:$0xe]
        %v4755 = vld [vmem:[%s3113 + $0x48] sm:$0xe]
        %v4756 = vld [vmem:[%s3113 + $0x54] sm:$0xe]
        %v4781 = vrot.slane %v4749, 5
        %v4782 = vrot.slane %v4781, 4
        %v4783 = vrot.slane %v4340, 5
        %v4784 = vsel %vm3862, %v4782, %v4783
        %v4785 = vrot.slane %v4783, 4
        %v4786 = vrot.slane %v4341, 5
        %v4787 = vsel %vm3862, %v4785, %v4786
        %v4788 = vrot.slane %v4750, 5
        %v4789 = vrot.slane %v4788, 4
        %v4790 = vrot.slane %v4343, 5
        %v4791 = vsel %vm3862, %v4789, %v4790
        %v4792 = vrot.slane %v4790, 4
        %v4793 = vrot.slane %v4344, 5
        %v4794 = vsel %vm3862, %v4792, %v4793
        %v4795 = vrot.slane %v4751, 5
        %v4796 = vrot.slane %v4795, 4
        %v4797 = vrot.slane %v4346, 5
        %v4798 = vsel %vm3862, %v4796, %v4797
        %v4799 = vrot.slane %v4797, 4
        %v4800 = vrot.slane %v4347, 5
        %v4801 = vsel %vm3862, %v4799, %v4800
        %v4802 = vrot.slane %v4752, 5
        %v4803 = vrot.slane %v4802, 4
        %v4804 = vrot.slane %v4349, 5
        %v4805 = vsel %vm3862, %v4803, %v4804
        %v4806 = vrot.slane %v4804, 4
        %v4807 = vrot.slane %v4350, 5
        %v4808 = vsel %vm3862, %v4806, %v4807
        %v4809 = vrot.slane %v4753, 5
        %v4810 = vrot.slane %v4809, 4
        %v4811 = vrot.slane %v4352, 5
        %v4812 = vsel %vm3862, %v4810, %v4811
        %v4813 = vrot.slane %v4811, 4
        %v4814 = vrot.slane %v4353, 5
        %v4815 = vsel %vm3862, %v4813, %v4814
        %v4816 = vrot.slane %v4754, 5
        %v4817 = vrot.slane %v4816, 4
        %v4818 = vrot.slane %v4355, 5
        %v4819 = vsel %vm3862, %v4817, %v4818
        %v4820 = vrot.slane %v4818, 4
        %v4821 = vrot.slane %v4356, 5
        %v4822 = vsel %vm3862, %v4820, %v4821
        %v4823 = vrot.slane %v4755, 5
        %v4824 = vrot.slane %v4823, 4
        %v4825 = vrot.slane %v4358, 5
        %v4826 = vsel %vm3862, %v4824, %v4825
        %v4827 = vrot.slane %v4825, 4
        %v4828 = vrot.slane %v4359, 5
        %v4829 = vsel %vm3862, %v4827, %v4828
        %v4830 = vrot.slane %v4756, 5
        %v4831 = vrot.slane %v4830, 4
        %v4832 = vrot.slane %v4361, 5
        %v4833 = vsel %vm3862, %v4831, %v4832
        %v4834 = vrot.slane %v4832, 4
        %v4835 = vrot.slane %v4362, 5
        %v4836 = vsel %vm3862, %v4834, %v4835
        %s4837 = scalar_lea.vmem %s2, 160
        %v4838 = vld [vmem:[%s4837] sm:$0xf]
        %v4839 = vld [vmem:[%s4837 + $0x4] sm:$0xf]
        %v4840 = vld [vmem:[%s4837 + $0x8] sm:$0xf]
        %v4841 = vld [vmem:[%s4837 + $0xc] sm:$0xf]
        %v4842 = vld [vmem:[%s4837 + $0x10] sm:$0xf]
        %v4843 = vld [vmem:[%s4837 + $0x14] sm:$0xf]
        %v4844 = vld [vmem:[%s4837 + $0x18] sm:$0xf]
        %v4845 = vld [vmem:[%s4837 + $0x1c] sm:$0xf]
        %v4846 = vunpack.c.l.b16 %v4784
        %v4847 = vunpack.c.l.b16 %v4787
        %v4848 = vunpack.c.l.b16 %v4791
        %v4849 = vunpack.c.l.b16 %v4794
        %v4850 = vunpack.c.l.b16 %v4798
        %v4851 = vunpack.c.l.b16 %v4801
        %v4852 = vunpack.c.l.b16 %v4805
        %v4853 = vunpack.c.l.b16 %v4808
        %v4854 = vunpack.c.l.b16 %v4812
        %v4855 = vunpack.c.l.b16 %v4815
        %v4856 = vunpack.c.l.b16 %v4819
        %v4857 = vunpack.c.l.b16 %v4822
        %v4858 = vunpack.c.l.b16 %v4826
        %v4859 = vunpack.c.l.b16 %v4829
        %v4860 = vunpack.c.l.b16 %v4833
        %v4861 = vunpack.c.l.b16 %v4836
        %v4862 = vpack.c.b16 %v4847, %v4846
        %v4863 = vpack.c.b16 %v4849, %v4848
        %v4864 = vpack.c.b16 %v4851, %v4850
        %v4865 = vpack.c.b16 %v4853, %v4852
        %v4866 = vpack.c.b16 %v4855, %v4854
        %v4867 = vpack.c.b16 %v4857, %v4856
        %v4868 = vpack.c.b16 %v4859, %v4858
        %v4869 = vpack.c.b16 %v4861, %v4860
        %v4878 = vunpack.c.l.b16 %v4838
        %v4879 = vunpack.c.l.b16 %v4839
        %v4880 = vunpack.c.l.b16 %v4840
        %v4881 = vunpack.c.l.b16 %v4841
        %v4882 = vunpack.c.l.b16 %v4842
        %v4883 = vunpack.c.l.b16 %v4843
        %v4884 = vunpack.c.l.b16 %v4844
        %v4885 = vunpack.c.l.b16 %v4845
        %v4886 = vpack.c.b16 %v4879, %v4878
        %v4887 = vpack.c.b16 %v4881, %v4880
        %v4888 = vpack.c.b16 %v4883, %v4882
        %v4889 = vpack.c.b16 %v4885, %v4884
        %v4895 = vsel %vm3529, %v4862, 0
        %v4898 = vsel %vm3529, %v4863, 0
        %v4901 = vsel %vm3529, %v4864, 0
        %v4904 = vsel %vm3529, %v4865, 0
        %v4907 = vsel %vm3529, %v4866, 0
        %v4910 = vsel %vm3529, %v4867, 0
        %v4913 = vsel %vm3529, %v4868, 0
        %v4916 = vsel %vm3529, %v4869, 0
        %4918 = vmatprep.subr.bf16.mxu0 0
        %4919 = vmatpush1.bf16.msra.mxu0 %v4886
        %4920 = vmatprep.subr.bf16.mxu0 0
        %4921 = vmatpush1.bf16.msra.mxu0 %v4887
        %4922 = vmatprep.subr.bf16.mxu0 0
        %4923 = vmatpush1.bf16.msra.mxu0 %v4888
        %4924 = vmatprep.subr.bf16.mxu0 0
        %4925 = vmatpush1.bf16.msra.mxu0 %v4889
        %4926 = vmatprep.subr.bf16.mxu0 0
        %4927 = vmatpush1.bf16.msra.mxu0 0
        %4928 = vmatprep.subr.bf16.mxu0 0
        %4929 = vmatpush1.bf16.msra.mxu0 0
        %4930 = vmatprep.subr.bf16.mxu0 0
        %4931 = vmatpush1.bf16.msra.mxu0 0
        %4932 = vmatprep.subr.bf16.mxu0 0
        %4933 = vmatpush1.bf16.msra.mxu0 0
        %4934 = vmatprep.subr.bf16.mxu0 0
        %4935 = vmatpush1.bf16.msra.mxu0 0
        %4936 = vmatprep.subr.bf16.mxu0 0
        %4937 = vmatpush1.bf16.msra.mxu0 0
        %4938 = vmatprep.subr.bf16.mxu0 0
        %4939 = vmatpush1.bf16.msra.mxu0 0
        %4940 = vmatprep.subr.bf16.mxu0 0
        %4941 = vmatpush1.bf16.msra.mxu0 0
        %4942 = vmatprep.subr.bf16.mxu0 0
        %4943 = vmatpush1.bf16.msra.mxu0 0
        %4944 = vmatprep.subr.bf16.mxu0 0
        %4945 = vmatpush1.bf16.msra.mxu0 0
        %4946 = vmatprep.subr.bf16.mxu0 0
        %4947 = vmatpush1.bf16.msra.mxu0 0
        %4948 = vmatprep.subr.bf16.mxu0 0
        %4949 = vmatpush1.bf16.msra.mxu0 0
        %4950 = vmatprep.mubr.bf16.mxu0 0
        %4951 = vmatmul.mubr.bf16.gmra.mrb[0].mxu0 %v4895
        %v4952 = vpop.f32.mrb[0].mxu0
        %v4953 = vadd.f32 0.0, %v4952
        %v4954 = vpop.f32.mrb[0].mxu0
        %v4955 = vpop.f32.mrb[0].mxu0
        %v4956 = vadd.f32 0.0, %v4955
        %v4957 = vpop.f32.mrb[0].mxu0
        %4958 = vmatprep.mubr.bf16.mxu0 0
        %4959 = vmatmul.mubr.bf16.gmra.mrb[0].mxu0 %v4898
        %v4960 = vpop.f32.mrb[0].mxu0
        %v4961 = vadd.f32 0.0, %v4960
        %v4962 = vpop.f32.mrb[0].mxu0
        %v4963 = vpop.f32.mrb[0].mxu0
        %v4964 = vadd.f32 0.0, %v4963
        %v4965 = vpop.f32.mrb[0].mxu0
        %4966 = vmatprep.mubr.bf16.mxu0 0
        %4967 = vmatmul.mubr.bf16.gmra.mrb[0].mxu0 %v4901
        %v4968 = vpop.f32.mrb[0].mxu0
        %v4969 = vadd.f32 0.0, %v4968
        %v4970 = vpop.f32.mrb[0].mxu0
        %v4971 = vpop.f32.mrb[0].mxu0
        %v4972 = vadd.f32 0.0, %v4971
        %v4973 = vpop.f32.mrb[0].mxu0
        %4974 = vmatprep.mubr.bf16.mxu0 0
        %4975 = vmatmul.mubr.bf16.gmra.mrb[0].mxu0 %v4904
        %v4976 = vpop.f32.mrb[0].mxu0
        %v4977 = vadd.f32 0.0, %v4976
        %v4978 = vpop.f32.mrb[0].mxu0
        %v4979 = vpop.f32.mrb[0].mxu0
        %v4980 = vadd.f32 0.0, %v4979
        %v4981 = vpop.f32.mrb[0].mxu0
        %4982 = vmatprep.mubr.bf16.mxu0 0
        %4983 = vmatmul.mubr.bf16.gmra.mrb[0].mxu0 %v4907
        %v4984 = vpop.f32.mrb[0].mxu0
        %v4985 = vadd.f32 0.0, %v4984
        %v4986 = vpop.f32.mrb[0].mxu0
        %v4987 = vpop.f32.mrb[0].mxu0
        %v4988 = vadd.f32 0.0, %v4987
        %v4989 = vpop.f32.mrb[0].mxu0
        %4990 = vmatprep.mubr.bf16.mxu0 0
        %4991 = vmatmul.mubr.bf16.gmra.mrb[0].mxu0 %v4910
        %v4992 = vpop.f32.mrb[0].mxu0
        %v4993 = vadd.f32 0.0, %v4992
        %v4994 = vpop.f32.mrb[0].mxu0
        %v4995 = vpop.f32.mrb[0].mxu0
        %v4996 = vadd.f32 0.0, %v4995
        %v4997 = vpop.f32.mrb[0].mxu0
        %4998 = vmatprep.mubr.bf16.mxu0 0
        %4999 = vmatmul.mubr.bf16.gmra.mrb[0].mxu0 %v4913
        %v5000 = vpop.f32.mrb[0].mxu0
        %v5001 = vadd.f32 0.0, %v5000
        %v5002 = vpop.f32.mrb[0].mxu0
        %v5003 = vpop.f32.mrb[0].mxu0
        %v5004 = vadd.f32 0.0, %v5003
        %v5005 = vpop.f32.mrb[0].mxu0
        %5006 = vmatprep.mubr.bf16.mxu0 0
        %5007 = vmatmul.mubr.bf16.gmra.mrb[0].mxu0 %v4916
        %v5008 = vpop.f32.mrb[0].mxu0
        %v5009 = vadd.f32 0.0, %v5008
        %v5010 = vpop.f32.mrb[0].mxu0
        %v5011 = vpop.f32.mrb[0].mxu0
        %v5012 = vadd.f32 0.0, %v5011
        %v5013 = vpop.f32.mrb[0].mxu0
        %5014 = vdwg.mxu0
        %v5015 = vadd.f32 %v4733, %v4953
        %v5016 = vadd.f32 %v4734, %v4956
        %v5017 = vadd.f32 %v4735, %v4961
        %v5018 = vadd.f32 %v4736, %v4964
        %v5019 = vadd.f32 %v4737, %v4969
        %v5020 = vadd.f32 %v4738, %v4972
        %v5021 = vadd.f32 %v4739, %v4977
        %v5022 = vadd.f32 %v4740, %v4980
        %v5023 = vadd.f32 %v4741, %v4985
        %v5024 = vadd.f32 %v4742, %v4988
        %v5025 = vadd.f32 %v4743, %v4993
        %v5026 = vadd.f32 %v4744, %v4996
        %v5027 = vadd.f32 %v4745, %v5001
        %v5028 = vadd.f32 %v4746, %v5004
        %v5029 = vadd.f32 %v4747, %v5009
        %v5030 = vadd.f32 %v4748, %v5012
        %s5031 = scalar_lea.vmem [#allocation2], 24
        %v5032 = vld [vmem:[%s5031] sm:$0xf]
        %v5033 = vld [vmem:[%s5031 + $0x4] sm:$0xf]
        %v5034 = vld [vmem:[%s5031 + $0xc] sm:$0xf]
        %v5035 = vld [vmem:[%s5031 + $0x10] sm:$0xf]
        %v5036 = vld [vmem:[%s5031 + $0x18] sm:$0xf]
        %v5037 = vld [vmem:[%s5031 + $0x1c] sm:$0xf]
        %v5038 = vld [vmem:[%s5031 + $0x24] sm:$0xf]
        %v5039 = vld [vmem:[%s5031 + $0x28] sm:$0xf]
        %v5040 = vld [vmem:[%s5031 + $0x30] sm:$0xf]
        %v5041 = vld [vmem:[%s5031 + $0x34] sm:$0xf]
        %v5042 = vld [vmem:[%s5031 + $0x3c] sm:$0xf]
        %v5043 = vld [vmem:[%s5031 + $0x40] sm:$0xf]
        %v5044 = vld [vmem:[%s5031 + $0x48] sm:$0xf]
        %v5045 = vld [vmem:[%s5031 + $0x4c] sm:$0xf]
        %v5046 = vld [vmem:[%s5031 + $0x54] sm:$0xf]
        %v5047 = vld [vmem:[%s5031 + $0x58] sm:$0xf]
        %s5048 = scalar_lea.vmem %s2, 192
        %v5049 = vld [vmem:[%s5048] sm:$0xf]
        %v5050 = vld [vmem:[%s5048 + $0x4] sm:$0xf]
        %v5051 = vld [vmem:[%s5048 + $0x8] sm:$0xf]
        %v5052 = vld [vmem:[%s5048 + $0xc] sm:$0xf]
        %v5053 = vld [vmem:[%s5048 + $0x10] sm:$0xf]
        %v5054 = vld [vmem:[%s5048 + $0x14] sm:$0xf]
        %v5055 = vld [vmem:[%s5048 + $0x18] sm:$0xf]
        %v5056 = vld [vmem:[%s5048 + $0x1c] sm:$0xf]
        %v5073 = vunpack.c.l.b16 %v5032
        %v5074 = vunpack.c.l.b16 %v5033
        %v5075 = vunpack.c.l.b16 %v5034
        %v5076 = vunpack.c.l.b16 %v5035
        %v5077 = vunpack.c.l.b16 %v5036
        %v5078 = vunpack.c.l.b16 %v5037
        %v5079 = vunpack.c.l.b16 %v5038
        %v5080 = vunpack.c.l.b16 %v5039
        %v5081 = vunpack.c.l.b16 %v5040
        %v5082 = vunpack.c.l.b16 %v5041
        %v5083 = vunpack.c.l.b16 %v5042
        %v5084 = vunpack.c.l.b16 %v5043
        %v5085 = vunpack.c.l.b16 %v5044
        %v5086 = vunpack.c.l.b16 %v5045
        %v5087 = vunpack.c.l.b16 %v5046
        %v5088 = vunpack.c.l.b16 %v5047
        %v5089 = vpack.c.b16 %v5074, %v5073
        %v5090 = vpack.c.b16 %v5076, %v5075
        %v5091 = vpack.c.b16 %v5078, %v5077
        %v5092 = vpack.c.b16 %v5080, %v5079
        %v5093 = vpack.c.b16 %v5082, %v5081
        %v5094 = vpack.c.b16 %v5084, %v5083
        %v5095 = vpack.c.b16 %v5086, %v5085
        %v5096 = vpack.c.b16 %v5088, %v5087
        %v5105 = vunpack.c.l.b16 %v5049
        %v5106 = vunpack.c.l.b16 %v5050
        %v5107 = vunpack.c.l.b16 %v5051
        %v5108 = vunpack.c.l.b16 %v5052
        %v5109 = vunpack.c.l.b16 %v5053
        %v5110 = vunpack.c.l.b16 %v5054
        %v5111 = vunpack.c.l.b16 %v5055
        %v5112 = vunpack.c.l.b16 %v5056
        %v5113 = vpack.c.b16 %v5106, %v5105
        %v5114 = vpack.c.b16 %v5108, %v5107
        %v5115 = vpack.c.b16 %v5110, %v5109
        %v5116 = vpack.c.b16 %v5112, %v5111
        %v5122 = vsel %vm3529, %v5089, 0
        %v5125 = vsel %vm3529, %v5090, 0
        %v5128 = vsel %vm3529, %v5091, 0
        %v5131 = vsel %vm3529, %v5092, 0
        %v5134 = vsel %vm3529, %v5093, 0
        %v5137 = vsel %vm3529, %v5094, 0
        %v5140 = vsel %vm3529, %v5095, 0
        %v5143 = vsel %vm3529, %v5096, 0
        %5145 = vmatprep.subr.bf16.mxu0 0
        %5146 = vmatpush1.bf16.msra.mxu0 %v5113
        %5147 = vmatprep.subr.bf16.mxu0 0
        %5148 = vmatpush1.bf16.msra.mxu0 %v5114
        %5149 = vmatprep.subr.bf16.mxu0 0
        %5150 = vmatpush1.bf16.msra.mxu0 %v5115
        %5151 = vmatprep.subr.bf16.mxu0 0
        %5152 = vmatpush1.bf16.msra.mxu0 %v5116
        %5153 = vmatprep.subr.bf16.mxu0 0
        %5154 = vmatpush1.bf16.msra.mxu0 0
        %5155 = vmatprep.subr.bf16.mxu0 0
        %5156 = vmatpush1.bf16.msra.mxu0 0
        %5157 = vmatprep.subr.bf16.mxu0 0
        %5158 = vmatpush1.bf16.msra.mxu0 0
        %5159 = vmatprep.subr.bf16.mxu0 0
        %5160 = vmatpush1.bf16.msra.mxu0 0
        %5161 = vmatprep.subr.bf16.mxu0 0
        %5162 = vmatpush1.bf16.msra.mxu0 0
        %5163 = vmatprep.subr.bf16.mxu0 0
        %5164 = vmatpush1.bf16.msra.mxu0 0
        %5165 = vmatprep.subr.bf16.mxu0 0
        %5166 = vmatpush1.bf16.msra.mxu0 0
        %5167 = vmatprep.subr.bf16.mxu0 0
        %5168 = vmatpush1.bf16.msra.mxu0 0
        %5169 = vmatprep.subr.bf16.mxu0 0
        %5170 = vmatpush1.bf16.msra.mxu0 0
        %5171 = vmatprep.subr.bf16.mxu0 0
        %5172 = vmatpush1.bf16.msra.mxu0 0
        %5173 = vmatprep.subr.bf16.mxu0 0
        %5174 = vmatpush1.bf16.msra.mxu0 0
        %5175 = vmatprep.subr.bf16.mxu0 0
        %5176 = vmatpush1.bf16.msra.mxu0 0
        %5177 = vmatprep.mubr.bf16.mxu0 0
        %5178 = vmatmul.mubr.bf16.gmra.mrb[0].mxu0 %v5122
        %v5179 = vpop.f32.mrb[0].mxu0
        %v5180 = vadd.f32 0.0, %v5179
        %v5181 = vpop.f32.mrb[0].mxu0
        %v5182 = vpop.f32.mrb[0].mxu0
        %v5183 = vadd.f32 0.0, %v5182
        %v5184 = vpop.f32.mrb[0].mxu0
        %5185 = vmatprep.mubr.bf16.mxu0 0
        %5186 = vmatmul.mubr.bf16.gmra.mrb[0].mxu0 %v5125
        %v5187 = vpop.f32.mrb[0].mxu0
        %v5188 = vadd.f32 0.0, %v5187
        %v5189 = vpop.f32.mrb[0].mxu0
        %v5190 = vpop.f32.mrb[0].mxu0
        %v5191 = vadd.f32 0.0, %v5190
        %v5192 = vpop.f32.mrb[0].mxu0
        %5193 = vmatprep.mubr.bf16.mxu0 0
        %5194 = vmatmul.mubr.bf16.gmra.mrb[0].mxu0 %v5128
        %v5195 = vpop.f32.mrb[0].mxu0
        %v5196 = vadd.f32 0.0, %v5195
        %v5197 = vpop.f32.mrb[0].mxu0
        %v5198 = vpop.f32.mrb[0].mxu0
        %v5199 = vadd.f32 0.0, %v5198
        %v5200 = vpop.f32.mrb[0].mxu0
        %5201 = vmatprep.mubr.bf16.mxu0 0
        %5202 = vmatmul.mubr.bf16.gmra.mrb[0].mxu0 %v5131
        %v5203 = vpop.f32.mrb[0].mxu0
        %v5204 = vadd.f32 0.0, %v5203
        %v5205 = vpop.f32.mrb[0].mxu0
        %v5206 = vpop.f32.mrb[0].mxu0
        %v5207 = vadd.f32 0.0, %v5206
        %v5208 = vpop.f32.mrb[0].mxu0
        %5209 = vmatprep.mubr.bf16.mxu0 0
        %5210 = vmatmul.mubr.bf16.gmra.mrb[0].mxu0 %v5134
        %v5211 = vpop.f32.mrb[0].mxu0
        %v5212 = vadd.f32 0.0, %v5211
        %v5213 = vpop.f32.mrb[0].mxu0
        %v5214 = vpop.f32.mrb[0].mxu0
        %v5215 = vadd.f32 0.0, %v5214
        %v5216 = vpop.f32.mrb[0].mxu0
        %5217 = vmatprep.mubr.bf16.mxu0 0
        %5218 = vmatmul.mubr.bf16.gmra.mrb[0].mxu0 %v5137
        %v5219 = vpop.f32.mrb[0].mxu0
        %v5220 = vadd.f32 0.0, %v5219
        %v5221 = vpop.f32.mrb[0].mxu0
        %v5222 = vpop.f32.mrb[0].mxu0
        %v5223 = vadd.f32 0.0, %v5222
        %v5224 = vpop.f32.mrb[0].mxu0
        %5225 = vmatprep.mubr.bf16.mxu0 0
        %5226 = vmatmul.mubr.bf16.gmra.mrb[0].mxu0 %v5140
        %v5227 = vpop.f32.mrb[0].mxu0
        %v5228 = vadd.f32 0.0, %v5227
        %v5229 = vpop.f32.mrb[0].mxu0
        %v5230 = vpop.f32.mrb[0].mxu0
        %v5231 = vadd.f32 0.0, %v5230
        %v5232 = vpop.f32.mrb[0].mxu0
        %5233 = vmatprep.mubr.bf16.mxu0 0
        %5234 = vmatmul.mubr.bf16.gmra.mrb[0].mxu0 %v5143
        %v5235 = vpop.f32.mrb[0].mxu0
        %v5236 = vadd.f32 0.0, %v5235
        %v5237 = vpop.f32.mrb[0].mxu0
        %v5238 = vpop.f32.mrb[0].mxu0
        %v5239 = vadd.f32 0.0, %v5238
        %v5240 = vpop.f32.mrb[0].mxu0
        %5241 = vdwg.mxu0
        %v5242 = vadd.f32 %v5015, %v5180
        %v5243 = vadd.f32 %v5016, %v5183
        %v5244 = vadd.f32 %v5017, %v5188
        %v5245 = vadd.f32 %v5018, %v5191
        %v5246 = vadd.f32 %v5019, %v5196
        %v5247 = vadd.f32 %v5020, %v5199
        %v5248 = vadd.f32 %v5021, %v5204
        %v5249 = vadd.f32 %v5022, %v5207
        %v5250 = vadd.f32 %v5023, %v5212
        %v5251 = vadd.f32 %v5024, %v5215
        %v5252 = vadd.f32 %v5025, %v5220
        %v5253 = vadd.f32 %v5026, %v5223
        %v5254 = vadd.f32 %v5027, %v5228
        %v5255 = vadd.f32 %v5028, %v5231
        %v5256 = vadd.f32 %v5029, %v5236
        %v5257 = vadd.f32 %v5030, %v5239
        %v5258 = vld [vmem:[%s5031] sm:$0xf]
        %v5259 = vld [vmem:[%s5031 + $0x4] sm:$0xf]
        %v5260 = vld [vmem:[%s5031 + $0x8] sm:$0x1]
        %v5261 = vld [vmem:[%s5031 + $0xc] sm:$0xf]
        %v5262 = vld [vmem:[%s5031 + $0x10] sm:$0xf]
        %v5263 = vld [vmem:[%s5031 + $0x14] sm:$0x1]
        %v5264 = vld [vmem:[%s5031 + $0x18] sm:$0xf]
        %v5265 = vld [vmem:[%s5031 + $0x1c] sm:$0xf]
        %v5266 = vld [vmem:[%s5031 + $0x20] sm:$0x1]
        %v5267 = vld [vmem:[%s5031 + $0x24] sm:$0xf]
        %v5268 = vld [vmem:[%s5031 + $0x28] sm:$0xf]
        %v5269 = vld [vmem:[%s5031 + $0x2c] sm:$0x1]
        %v5270 = vld [vmem:[%s5031 + $0x30] sm:$0xf]
        %v5271 = vld [vmem:[%s5031 + $0x34] sm:$0xf]
        %v5272 = vld [vmem:[%s5031 + $0x38] sm:$0x1]
        %v5273 = vld [vmem:[%s5031 + $0x3c] sm:$0xf]
        %v5274 = vld [vmem:[%s5031 + $0x40] sm:$0xf]
        %v5275 = vld [vmem:[%s5031 + $0x44] sm:$0x1]
        %v5276 = vld [vmem:[%s5031 + $0x48] sm:$0xf]
        %v5277 = vld [vmem:[%s5031 + $0x4c] sm:$0xf]
        %v5278 = vld [vmem:[%s5031 + $0x50] sm:$0x1]
        %v5279 = vld [vmem:[%s5031 + $0x54] sm:$0xf]
        %v5280 = vld [vmem:[%s5031 + $0x58] sm:$0xf]
        %v5281 = vld [vmem:[%s5031 + $0x5c] sm:$0x1]
        %v5283 = vshrl.u32 %v5258, 16
        %v5285 = vrot.slane %v5283, 4
        %v5286 = vshll.u32 %v5258, 16
        %v5288 = vrot.slane %v5286, 5
        %v5289 = vor.u32 %v5285, %v5288
        %v5290 = vrot.slane %v5289, 4
        %v5292 = vshll.u32 %v5259, 16
        %v5294 = vrot.slane %v5292, 5
        %v5295 = vsel %vm3279, %v5290, %v5294
        %v5296 = vshrl.u32 %v5259, 16
        %v5298 = vrot.slane %v5296, 4
        %v5299 = vor.u32 %v5298, %v5294
        %v5300 = vrot.slane %v5299, 4
        %v5302 = vshll.u32 %v5260, 16
        %v5304 = vrot.slane %v5302, 5
        %v5305 = vsel %vm3279, %v5300, %v5304
        %v5307 = vshrl.u32 %v5261, 16
        %v5309 = vrot.slane %v5307, 4
        %v5310 = vshll.u32 %v5261, 16
        %v5312 = vrot.slane %v5310, 5
        %v5313 = vor.u32 %v5309, %v5312
        %v5314 = vrot.slane %v5313, 4
        %v5316 = vshll.u32 %v5262, 16
        %v5318 = vrot.slane %v5316, 5
        %v5319 = vsel %vm3279, %v5314, %v5318
        %v5320 = vshrl.u32 %v5262, 16
        %v5322 = vrot.slane %v5320, 4
        %v5323 = vor.u32 %v5322, %v5318
        %v5324 = vrot.slane %v5323, 4
        %v5326 = vshll.u32 %v5263, 16
        %v5328 = vrot.slane %v5326, 5
        %v5329 = vsel %vm3279, %v5324, %v5328
        %v5331 = vshrl.u32 %v5264, 16
        %v5333 = vrot.slane %v5331, 4
        %v5334 = vshll.u32 %v5264, 16
        %v5336 = vrot.slane %v5334, 5
        %v5337 = vor.u32 %v5333, %v5336
        %v5338 = vrot.slane %v5337, 4
        %v5340 = vshll.u32 %v5265, 16
        %v5342 = vrot.slane %v5340, 5
        %v5343 = vsel %vm3279, %v5338, %v5342
        %v5344 = vshrl.u32 %v5265, 16
        %v5346 = vrot.slane %v5344, 4
        %v5347 = vor.u32 %v5346, %v5342
        %v5348 = vrot.slane %v5347, 4
        %v5350 = vshll.u32 %v5266, 16
        %v5352 = vrot.slane %v5350, 5
        %v5353 = vsel %vm3279, %v5348, %v5352
        %v5355 = vshrl.u32 %v5267, 16
        %v5357 = vrot.slane %v5355, 4
        %v5358 = vshll.u32 %v5267, 16
        %v5360 = vrot.slane %v5358, 5
        %v5361 = vor.u32 %v5357, %v5360
        %v5362 = vrot.slane %v5361, 4
        %v5364 = vshll.u32 %v5268, 16
        %v5366 = vrot.slane %v5364, 5
        %v5367 = vsel %vm3279, %v5362, %v5366
        %v5368 = vshrl.u32 %v5268, 16
        %v5370 = vrot.slane %v5368, 4
        %v5371 = vor.u32 %v5370, %v5366
        %v5372 = vrot.slane %v5371, 4
        %v5374 = vshll.u32 %v5269, 16
        %v5376 = vrot.slane %v5374, 5
        %v5377 = vsel %vm3279, %v5372, %v5376
        %v5379 = vshrl.u32 %v5270, 16
        %v5381 = vrot.slane %v5379, 4
        %v5382 = vshll.u32 %v5270, 16
        %v5384 = vrot.slane %v5382, 5
        %v5385 = vor.u32 %v5381, %v5384
        %v5386 = vrot.slane %v5385, 4
        %v5388 = vshll.u32 %v5271, 16
        %v5390 = vrot.slane %v5388, 5
        %v5391 = vsel %vm3279, %v5386, %v5390
        %v5392 = vshrl.u32 %v5271, 16
        %v5394 = vrot.slane %v5392, 4
        %v5395 = vor.u32 %v5394, %v5390
        %v5396 = vrot.slane %v5395, 4
        %v5398 = vshll.u32 %v5272, 16
        %v5400 = vrot.slane %v5398, 5
        %v5401 = vsel %vm3279, %v5396, %v5400
        %v5403 = vshrl.u32 %v5273, 16
        %v5405 = vrot.slane %v5403, 4
        %v5406 = vshll.u32 %v5273, 16
        %v5408 = vrot.slane %v5406, 5
        %v5409 = vor.u32 %v5405, %v5408
        %v5410 = vrot.slane %v5409, 4
        %v5412 = vshll.u32 %v5274, 16
        %v5414 = vrot.slane %v5412, 5
        %v5415 = vsel %vm3279, %v5410, %v5414
        %v5416 = vshrl.u32 %v5274, 16
        %v5418 = vrot.slane %v5416, 4
        %v5419 = vor.u32 %v5418, %v5414
        %v5420 = vrot.slane %v5419, 4
        %v5422 = vshll.u32 %v5275, 16
        %v5424 = vrot.slane %v5422, 5
        %v5425 = vsel %vm3279, %v5420, %v5424
        %v5427 = vshrl.u32 %v5276, 16
        %v5429 = vrot.slane %v5427, 4
        %v5430 = vshll.u32 %v5276, 16
        %v5432 = vrot.slane %v5430, 5
        %v5433 = vor.u32 %v5429, %v5432
        %v5434 = vrot.slane %v5433, 4
        %v5436 = vshll.u32 %v5277, 16
        %v5438 = vrot.slane %v5436, 5
        %v5439 = vsel %vm3279, %v5434, %v5438
        %v5440 = vshrl.u32 %v5277, 16
        %v5442 = vrot.slane %v5440, 4
        %v5443 = vor.u32 %v5442, %v5438
        %v5444 = vrot.slane %v5443, 4
        %v5446 = vshll.u32 %v5278, 16
        %v5448 = vrot.slane %v5446, 5
        %v5449 = vsel %vm3279, %v5444, %v5448
        %v5451 = vshrl.u32 %v5279, 16
        %v5453 = vrot.slane %v5451, 4
        %v5454 = vshll.u32 %v5279, 16
        %v5456 = vrot.slane %v5454, 5
        %v5457 = vor.u32 %v5453, %v5456
        %v5458 = vrot.slane %v5457, 4
        %v5460 = vshll.u32 %v5280, 16
        %v5462 = vrot.slane %v5460, 5
        %v5463 = vsel %vm3279, %v5458, %v5462
        %v5464 = vshrl.u32 %v5280, 16
        %v5466 = vrot.slane %v5464, 4
        %v5467 = vor.u32 %v5466, %v5462
        %v5468 = vrot.slane %v5467, 4
        %v5470 = vshll.u32 %v5281, 16
        %v5472 = vrot.slane %v5470, 5
        %v5473 = vsel %vm3279, %v5468, %v5472
        %s5474 = scalar_lea.vmem %s2, 224
        %v5475 = vld [vmem:[%s5474] sm:$0xf]
        %v5476 = vld [vmem:[%s5474 + $0x4] sm:$0xf]
        %v5477 = vld [vmem:[%s5474 + $0x8] sm:$0xf]
        %v5478 = vld [vmem:[%s5474 + $0xc] sm:$0xf]
        %v5479 = vld [vmem:[%s5474 + $0x10] sm:$0xf]
        %v5480 = vld [vmem:[%s5474 + $0x14] sm:$0xf]
        %v5481 = vld [vmem:[%s5474 + $0x18] sm:$0xf]
        %v5482 = vld [vmem:[%s5474 + $0x1c] sm:$0xf]
        %v5483 = vunpack.c.l.b16 %v5295
        %v5484 = vunpack.c.l.b16 %v5305
        %v5485 = vunpack.c.l.b16 %v5319
        %v5486 = vunpack.c.l.b16 %v5329
        %v5487 = vunpack.c.l.b16 %v5343
        %v5488 = vunpack.c.l.b16 %v5353
        %v5489 = vunpack.c.l.b16 %v5367
        %v5490 = vunpack.c.l.b16 %v5377
        %v5491 = vunpack.c.l.b16 %v5391
        %v5492 = vunpack.c.l.b16 %v5401
        %v5493 = vunpack.c.l.b16 %v5415
        %v5494 = vunpack.c.l.b16 %v5425
        %v5495 = vunpack.c.l.b16 %v5439
        %v5496 = vunpack.c.l.b16 %v5449
        %v5497 = vunpack.c.l.b16 %v5463
        %v5498 = vunpack.c.l.b16 %v5473
        %v5499 = vpack.c.b16 %v5484, %v5483
        %v5500 = vpack.c.b16 %v5486, %v5485
        %v5501 = vpack.c.b16 %v5488, %v5487
        %v5502 = vpack.c.b16 %v5490, %v5489
        %v5503 = vpack.c.b16 %v5492, %v5491
        %v5504 = vpack.c.b16 %v5494, %v5493
        %v5505 = vpack.c.b16 %v5496, %v5495
        %v5506 = vpack.c.b16 %v5498, %v5497
        %v5515 = vunpack.c.l.b16 %v5475
        %v5516 = vunpack.c.l.b16 %v5476
        %v5517 = vunpack.c.l.b16 %v5477
        %v5518 = vunpack.c.l.b16 %v5478
        %v5519 = vunpack.c.l.b16 %v5479
        %v5520 = vunpack.c.l.b16 %v5480
        %v5521 = vunpack.c.l.b16 %v5481
        %v5522 = vunpack.c.l.b16 %v5482
        %v5523 = vpack.c.b16 %v5516, %v5515
        %v5524 = vpack.c.b16 %v5518, %v5517
        %v5525 = vpack.c.b16 %v5520, %v5519
        %v5526 = vpack.c.b16 %v5522, %v5521
        %v5532 = vsel %vm3529, %v5499, 0
        %v5535 = vsel %vm3529, %v5500, 0
        %v5538 = vsel %vm3529, %v5501, 0
        %v5541 = vsel %vm3529, %v5502, 0
        %v5544 = vsel %vm3529, %v5503, 0
        %v5547 = vsel %vm3529, %v5504, 0
        %v5550 = vsel %vm3529, %v5505, 0
        %v5553 = vsel %vm3529, %v5506, 0
        %5555 = vmatprep.subr.bf16.mxu0 0
        %5556 = vmatpush1.bf16.msra.mxu0 %v5523
        %5557 = vmatprep.subr.bf16.mxu0 0
        %5558 = vmatpush1.bf16.msra.mxu0 %v5524
        %5559 = vmatprep.subr.bf16.mxu0 0
        %5560 = vmatpush1.bf16.msra.mxu0 %v5525
        %5561 = vmatprep.subr.bf16.mxu0 0
        %5562 = vmatpush1.bf16.msra.mxu0 %v5526
        %5563 = vmatprep.subr.bf16.mxu0 0
        %5564 = vmatpush1.bf16.msra.mxu0 0
        %5565 = vmatprep.subr.bf16.mxu0 0
        %5566 = vmatpush1.bf16.msra.mxu0 0
        %5567 = vmatprep.subr.bf16.mxu0 0
        %5568 = vmatpush1.bf16.msra.mxu0 0
        %5569 = vmatprep.subr.bf16.mxu0 0
        %5570 = vmatpush1.bf16.msra.mxu0 0
        %5571 = vmatprep.subr.bf16.mxu0 0
        %5572 = vmatpush1.bf16.msra.mxu0 0
        %5573 = vmatprep.subr.bf16.mxu0 0
        %5574 = vmatpush1.bf16.msra.mxu0 0
        %5575 = vmatprep.subr.bf16.mxu0 0
        %5576 = vmatpush1.bf16.msra.mxu0 0
        %5577 = vmatprep.subr.bf16.mxu0 0
        %5578 = vmatpush1.bf16.msra.mxu0 0
        %5579 = vmatprep.subr.bf16.mxu0 0
        %5580 = vmatpush1.bf16.msra.mxu0 0
        %5581 = vmatprep.subr.bf16.mxu0 0
        %5582 = vmatpush1.bf16.msra.mxu0 0
        %5583 = vmatprep.subr.bf16.mxu0 0
        %5584 = vmatpush1.bf16.msra.mxu0 0
        %5585 = vmatprep.subr.bf16.mxu0 0
        %5586 = vmatpush1.bf16.msra.mxu0 0
        %5587 = vmatprep.mubr.bf16.mxu0 0
        %5588 = vmatmul.mubr.bf16.gmra.mrb[0].mxu0 %v5532
        %v5589 = vpop.f32.mrb[0].mxu0
        %v5590 = vadd.f32 0.0, %v5589
        %v5591 = vpop.f32.mrb[0].mxu0
        %v5592 = vpop.f32.mrb[0].mxu0
        %v5593 = vadd.f32 0.0, %v5592
        %v5594 = vpop.f32.mrb[0].mxu0
        %5595 = vmatprep.mubr.bf16.mxu0 0
        %5596 = vmatmul.mubr.bf16.gmra.mrb[0].mxu0 %v5535
        %v5597 = vpop.f32.mrb[0].mxu0
        %v5598 = vadd.f32 0.0, %v5597
        %v5599 = vpop.f32.mrb[0].mxu0
        %v5600 = vpop.f32.mrb[0].mxu0
        %v5601 = vadd.f32 0.0, %v5600
        %v5602 = vpop.f32.mrb[0].mxu0
        %5603 = vmatprep.mubr.bf16.mxu0 0
        %5604 = vmatmul.mubr.bf16.gmra.mrb[0].mxu0 %v5538
        %v5605 = vpop.f32.mrb[0].mxu0
        %v5606 = vadd.f32 0.0, %v5605
        %v5607 = vpop.f32.mrb[0].mxu0
        %v5608 = vpop.f32.mrb[0].mxu0
        %v5609 = vadd.f32 0.0, %v5608
        %v5610 = vpop.f32.mrb[0].mxu0
        %5611 = vmatprep.mubr.bf16.mxu0 0
        %5612 = vmatmul.mubr.bf16.gmra.mrb[0].mxu0 %v5541
        %v5613 = vpop.f32.mrb[0].mxu0
        %v5614 = vadd.f32 0.0, %v5613
        %v5615 = vpop.f32.mrb[0].mxu0
        %v5616 = vpop.f32.mrb[0].mxu0
        %v5617 = vadd.f32 0.0, %v5616
        %v5618 = vpop.f32.mrb[0].mxu0
        %5619 = vmatprep.mubr.bf16.mxu0 0
        %5620 = vmatmul.mubr.bf16.gmra.mrb[0].mxu0 %v5544
        %v5621 = vpop.f32.mrb[0].mxu0
        %v5622 = vadd.f32 0.0, %v5621
        %v5623 = vpop.f32.mrb[0].mxu0
        %v5624 = vpop.f32.mrb[0].mxu0
        %v5625 = vadd.f32 0.0, %v5624
        %v5626 = vpop.f32.mrb[0].mxu0
        %5627 = vmatprep.mubr.bf16.mxu0 0
        %5628 = vmatmul.mubr.bf16.gmra.mrb[0].mxu0 %v5547
        %v5629 = vpop.f32.mrb[0].mxu0
        %v5630 = vadd.f32 0.0, %v5629
        %v5631 = vpop.f32.mrb[0].mxu0
        %v5632 = vpop.f32.mrb[0].mxu0
        %v5633 = vadd.f32 0.0, %v5632
        %v5634 = vpop.f32.mrb[0].mxu0
        %5635 = vmatprep.mubr.bf16.mxu0 0
        %5636 = vmatmul.mubr.bf16.gmra.mrb[0].mxu0 %v5550
        %v5637 = vpop.f32.mrb[0].mxu0
        %v5638 = vadd.f32 0.0, %v5637
        %v5639 = vpop.f32.mrb[0].mxu0
        %v5640 = vpop.f32.mrb[0].mxu0
        %v5641 = vadd.f32 0.0, %v5640
        %v5642 = vpop.f32.mrb[0].mxu0
        %5643 = vmatprep.mubr.bf16.mxu0 0
        %5644 = vmatmul.mubr.bf16.gmra.mrb[0].mxu0 %v5553
        %v5645 = vpop.f32.mrb[0].mxu0
        %v5646 = vadd.f32 0.0, %v5645
        %v5647 = vpop.f32.mrb[0].mxu0
        %v5648 = vpop.f32.mrb[0].mxu0
        %v5649 = vadd.f32 0.0, %v5648
        %v5650 = vpop.f32.mrb[0].mxu0
        %5651 = vdwg.mxu0
        %v5652 = vadd.f32 %v5242, %v5590
        %v5653 = vadd.f32 %v5243, %v5593
        %v5654 = vadd.f32 %v5244, %v5598
        %v5655 = vadd.f32 %v5245, %v5601
        %v5656 = vadd.f32 %v5246, %v5606
        %v5657 = vadd.f32 %v5247, %v5609
        %v5658 = vadd.f32 %v5248, %v5614
        %v5659 = vadd.f32 %v5249, %v5617
        %v5660 = vadd.f32 %v5250, %v5622
        %v5661 = vadd.f32 %v5251, %v5625
        %v5662 = vadd.f32 %v5252, %v5630
        %v5663 = vadd.f32 %v5253, %v5633
        %v5664 = vadd.f32 %v5254, %v5638
        %v5665 = vadd.f32 %v5255, %v5641
        %v5666 = vadd.f32 %v5256, %v5646
        %v5667 = vadd.f32 %v5257, %v5649
        %v5668 = vld [vmem:[%s5031] sm:$0xe]
        %v5669 = vld [vmem:[%s5031 + $0xc] sm:$0xe]
        %v5670 = vld [vmem:[%s5031 + $0x18] sm:$0xe]
        %v5671 = vld [vmem:[%s5031 + $0x24] sm:$0xe]
        %v5672 = vld [vmem:[%s5031 + $0x30] sm:$0xe]
        %v5673 = vld [vmem:[%s5031 + $0x3c] sm:$0xe]
        %v5674 = vld [vmem:[%s5031 + $0x48] sm:$0xe]
        %v5675 = vld [vmem:[%s5031 + $0x54] sm:$0xe]
        %v5700 = vrot.slane %v5668, 5
        %v5701 = vrot.slane %v5700, 4
        %v5702 = vrot.slane %v5259, 5
        %v5703 = vsel %vm3862, %v5701, %v5702
        %v5704 = vrot.slane %v5702, 4
        %v5705 = vrot.slane %v5260, 5
        %v5706 = vsel %vm3862, %v5704, %v5705
        %v5707 = vrot.slane %v5669, 5
        %v5708 = vrot.slane %v5707, 4
        %v5709 = vrot.slane %v5262, 5
        %v5710 = vsel %vm3862, %v5708, %v5709
        %v5711 = vrot.slane %v5709, 4
        %v5712 = vrot.slane %v5263, 5
        %v5713 = vsel %vm3862, %v5711, %v5712
        %v5714 = vrot.slane %v5670, 5
        %v5715 = vrot.slane %v5714, 4
        %v5716 = vrot.slane %v5265, 5
        %v5717 = vsel %vm3862, %v5715, %v5716
        %v5718 = vrot.slane %v5716, 4
        %v5719 = vrot.slane %v5266, 5
        %v5720 = vsel %vm3862, %v5718, %v5719
        %v5721 = vrot.slane %v5671, 5
        %v5722 = vrot.slane %v5721, 4
        %v5723 = vrot.slane %v5268, 5
        %v5724 = vsel %vm3862, %v5722, %v5723
        %v5725 = vrot.slane %v5723, 4
        %v5726 = vrot.slane %v5269, 5
        %v5727 = vsel %vm3862, %v5725, %v5726
        %v5728 = vrot.slane %v5672, 5
        %v5729 = vrot.slane %v5728, 4
        %v5730 = vrot.slane %v5271, 5
        %v5731 = vsel %vm3862, %v5729, %v5730
        %v5732 = vrot.slane %v5730, 4
        %v5733 = vrot.slane %v5272, 5
        %v5734 = vsel %vm3862, %v5732, %v5733
        %v5735 = vrot.slane %v5673, 5
        %v5736 = vrot.slane %v5735, 4
        %v5737 = vrot.slane %v5274, 5
        %v5738 = vsel %vm3862, %v5736, %v5737
        %v5739 = vrot.slane %v5737, 4
        %v5740 = vrot.slane %v5275, 5
        %v5741 = vsel %vm3862, %v5739, %v5740
        %v5742 = vrot.slane %v5674, 5
        %v5743 = vrot.slane %v5742, 4
        %v5744 = vrot.slane %v5277, 5
        %v5745 = vsel %vm3862, %v5743, %v5744
        %v5746 = vrot.slane %v5744, 4
        %v5747 = vrot.slane %v5278, 5
        %v5748 = vsel %vm3862, %v5746, %v5747
        %v5749 = vrot.slane %v5675, 5
        %v5750 = vrot.slane %v5749, 4
        %v5751 = vrot.slane %v5280, 5
        %v5752 = vsel %vm3862, %v5750, %v5751
        %v5753 = vrot.slane %v5751, 4
        %v5754 = vrot.slane %v5281, 5
        %v5755 = vsel %vm3862, %v5753, %v5754
        %s5756 = scalar_lea.vmem %s2, 256
        %v5757 = vld [vmem:[%s5756] sm:$0xf]
        %v5758 = vld [vmem:[%s5756 + $0x4] sm:$0xf]
        %v5759 = vld [vmem:[%s5756 + $0x8] sm:$0xf]
        %v5760 = vld [vmem:[%s5756 + $0xc] sm:$0xf]
        %v5761 = vld [vmem:[%s5756 + $0x10] sm:$0xf]
        %v5762 = vld [vmem:[%s5756 + $0x14] sm:$0xf]
        %v5763 = vld [vmem:[%s5756 + $0x18] sm:$0xf]
        %v5764 = vld [vmem:[%s5756 + $0x1c] sm:$0xf]
        %v5765 = vunpack.c.l.b16 %v5703
        %v5766 = vunpack.c.l.b16 %v5706
        %v5767 = vunpack.c.l.b16 %v5710
        %v5768 = vunpack.c.l.b16 %v5713
        %v5769 = vunpack.c.l.b16 %v5717
        %v5770 = vunpack.c.l.b16 %v5720
        %v5771 = vunpack.c.l.b16 %v5724
        %v5772 = vunpack.c.l.b16 %v5727
        %v5773 = vunpack.c.l.b16 %v5731
        %v5774 = vunpack.c.l.b16 %v5734
        %v5775 = vunpack.c.l.b16 %v5738
        %v5776 = vunpack.c.l.b16 %v5741
        %v5777 = vunpack.c.l.b16 %v5745
        %v5778 = vunpack.c.l.b16 %v5748
        %v5779 = vunpack.c.l.b16 %v5752
        %v5780 = vunpack.c.l.b16 %v5755
        %v5781 = vpack.c.b16 %v5766, %v5765
        %v5782 = vpack.c.b16 %v5768, %v5767
        %v5783 = vpack.c.b16 %v5770, %v5769
        %v5784 = vpack.c.b16 %v5772, %v5771
        %v5785 = vpack.c.b16 %v5774, %v5773
        %v5786 = vpack.c.b16 %v5776, %v5775
        %v5787 = vpack.c.b16 %v5778, %v5777
        %v5788 = vpack.c.b16 %v5780, %v5779
        %v5797 = vunpack.c.l.b16 %v5757
        %v5798 = vunpack.c.l.b16 %v5758
        %v5799 = vunpack.c.l.b16 %v5759
        %v5800 = vunpack.c.l.b16 %v5760
        %v5801 = vunpack.c.l.b16 %v5761
        %v5802 = vunpack.c.l.b16 %v5762
        %v5803 = vunpack.c.l.b16 %v5763
        %v5804 = vunpack.c.l.b16 %v5764
        %v5805 = vpack.c.b16 %v5798, %v5797
        %v5806 = vpack.c.b16 %v5800, %v5799
        %v5807 = vpack.c.b16 %v5802, %v5801
        %v5808 = vpack.c.b16 %v5804, %v5803
        %v5814 = vsel %vm3529, %v5781, 0
        %v5817 = vsel %vm3529, %v5782, 0
        %v5820 = vsel %vm3529, %v5783, 0
        %v5823 = vsel %vm3529, %v5784, 0
        %v5826 = vsel %vm3529, %v5785, 0
        %v5829 = vsel %vm3529, %v5786, 0
        %v5832 = vsel %vm3529, %v5787, 0
        %v5835 = vsel %vm3529, %v5788, 0
        %5837 = vmatprep.subr.bf16.mxu0 0
        %5838 = vmatpush1.bf16.msra.mxu0 %v5805
        %5839 = vmatprep.subr.bf16.mxu0 0
        %5840 = vmatpush1.bf16.msra.mxu0 %v5806
        %5841 = vmatprep.subr.bf16.mxu0 0
        %5842 = vmatpush1.bf16.msra.mxu0 %v5807
        %5843 = vmatprep.subr.bf16.mxu0 0
        %5844 = vmatpush1.bf16.msra.mxu0 %v5808
        %5845 = vmatprep.subr.bf16.mxu0 0
        %5846 = vmatpush1.bf16.msra.mxu0 0
        %5847 = vmatprep.subr.bf16.mxu0 0
        %5848 = vmatpush1.bf16.msra.mxu0 0
        %5849 = vmatprep.subr.bf16.mxu0 0
        %5850 = vmatpush1.bf16.msra.mxu0 0
        %5851 = vmatprep.subr.bf16.mxu0 0
        %5852 = vmatpush1.bf16.msra.mxu0 0
        %5853 = vmatprep.subr.bf16.mxu0 0
        %5854 = vmatpush1.bf16.msra.mxu0 0
        %5855 = vmatprep.subr.bf16.mxu0 0
        %5856 = vmatpush1.bf16.msra.mxu0 0
        %5857 = vmatprep.subr.bf16.mxu0 0
        %5858 = vmatpush1.bf16.msra.mxu0 0
        %5859 = vmatprep.subr.bf16.mxu0 0
        %5860 = vmatpush1.bf16.msra.mxu0 0
        %5861 = vmatprep.subr.bf16.mxu0 0
        %5862 = vmatpush1.bf16.msra.mxu0 0
        %5863 = vmatprep.subr.bf16.mxu0 0
        %5864 = vmatpush1.bf16.msra.mxu0 0
        %5865 = vmatprep.subr.bf16.mxu0 0
        %5866 = vmatpush1.bf16.msra.mxu0 0
        %5867 = vmatprep.subr.bf16.mxu0 0
        %5868 = vmatpush1.bf16.msra.mxu0 0
        %5869 = vmatprep.mubr.bf16.mxu0 0
        %5870 = vmatmul.mubr.bf16.gmra.mrb[0].mxu0 %v5814
        %v5871 = vpop.f32.mrb[0].mxu0
        %v5872 = vadd.f32 0.0, %v5871
        %v5873 = vpop.f32.mrb[0].mxu0
        %v5874 = vpop.f32.mrb[0].mxu0
        %v5875 = vadd.f32 0.0, %v5874
        %v5876 = vpop.f32.mrb[0].mxu0
        %5877 = vmatprep.mubr.bf16.mxu0 0
        %5878 = vmatmul.mubr.bf16.gmra.mrb[0].mxu0 %v5817
        %v5879 = vpop.f32.mrb[0].mxu0
        %v5880 = vadd.f32 0.0, %v5879
        %v5881 = vpop.f32.mrb[0].mxu0
        %v5882 = vpop.f32.mrb[0].mxu0
        %v5883 = vadd.f32 0.0, %v5882
        %v5884 = vpop.f32.mrb[0].mxu0
        %5885 = vmatprep.mubr.bf16.mxu0 0
        %5886 = vmatmul.mubr.bf16.gmra.mrb[0].mxu0 %v5820
        %v5887 = vpop.f32.mrb[0].mxu0
        %v5888 = vadd.f32 0.0, %v5887
        %v5889 = vpop.f32.mrb[0].mxu0
        %v5890 = vpop.f32.mrb[0].mxu0
        %v5891 = vadd.f32 0.0, %v5890
        %v5892 = vpop.f32.mrb[0].mxu0
        %5893 = vmatprep.mubr.bf16.mxu0 0
        %5894 = vmatmul.mubr.bf16.gmra.mrb[0].mxu0 %v5823
        %v5895 = vpop.f32.mrb[0].mxu0
        %v5896 = vadd.f32 0.0, %v5895
        %v5897 = vpop.f32.mrb[0].mxu0
        %v5898 = vpop.f32.mrb[0].mxu0
        %v5899 = vadd.f32 0.0, %v5898
        %v5900 = vpop.f32.mrb[0].mxu0
        %5901 = vmatprep.mubr.bf16.mxu0 0
        %5902 = vmatmul.mubr.bf16.gmra.mrb[0].mxu0 %v5826
        %v5903 = vpop.f32.mrb[0].mxu0
        %v5904 = vadd.f32 0.0, %v5903
        %v5905 = vpop.f32.mrb[0].mxu0
        %v5906 = vpop.f32.mrb[0].mxu0
        %v5907 = vadd.f32 0.0, %v5906
        %v5908 = vpop.f32.mrb[0].mxu0
        %5909 = vmatprep.mubr.bf16.mxu0 0
        %5910 = vmatmul.mubr.bf16.gmra.mrb[0].mxu0 %v5829
        %v5911 = vpop.f32.mrb[0].mxu0
        %v5912 = vadd.f32 0.0, %v5911
        %v5913 = vpop.f32.mrb[0].mxu0
        %v5914 = vpop.f32.mrb[0].mxu0
        %v5915 = vadd.f32 0.0, %v5914
        %v5916 = vpop.f32.mrb[0].mxu0
        %5917 = vmatprep.mubr.bf16.mxu0 0
        %5918 = vmatmul.mubr.bf16.gmra.mrb[0].mxu0 %v5832
        %v5919 = vpop.f32.mrb[0].mxu0
        %v5920 = vadd.f32 0.0, %v5919
        %v5921 = vpop.f32.mrb[0].mxu0
        %v5922 = vpop.f32.mrb[0].mxu0
        %v5923 = vadd.f32 0.0, %v5922
        %v5924 = vpop.f32.mrb[0].mxu0
        %5925 = vmatprep.mubr.bf16.mxu0 0
        %5926 = vmatmul.mubr.bf16.gmra.mrb[0].mxu0 %v5835
        %v5927 = vpop.f32.mrb[0].mxu0
        %v5928 = vadd.f32 0.0, %v5927
        %v5929 = vpop.f32.mrb[0].mxu0
        %v5930 = vpop.f32.mrb[0].mxu0
        %v5931 = vadd.f32 0.0, %v5930
        %v5932 = vpop.f32.mrb[0].mxu0
        %5933 = vdwg.mxu0
        %v5934 = vadd.f32 %v5652, %v5872
        %v5935 = vadd.f32 %v5653, %v5875
        %v5936 = vadd.f32 %v5654, %v5880
        %v5937 = vadd.f32 %v5655, %v5883
        %v5938 = vadd.f32 %v5656, %v5888
        %v5939 = vadd.f32 %v5657, %v5891
        %v5940 = vadd.f32 %v5658, %v5896
        %v5941 = vadd.f32 %v5659, %v5899
        %v5942 = vadd.f32 %v5660, %v5904
        %v5943 = vadd.f32 %v5661, %v5907
        %v5944 = vadd.f32 %v5662, %v5912
        %v5945 = vadd.f32 %v5663, %v5915
        %v5946 = vadd.f32 %v5664, %v5920
        %v5947 = vadd.f32 %v5665, %v5923
        %v5948 = vadd.f32 %v5666, %v5928
        %v5949 = vadd.f32 %v5667, %v5931
        %v5950 = vld [vmem:[%s4 + $0x1] sm:$0x1]
        %v5951 = vlaneseq
        %v5952 = vshrl.u32 %v5951, 7
        %v5953 = vsub.s32 0, %v5952
        %v5954 = vrot.slane %v5950, %v5953
        %v5955 = vmul.f32 %v5934, %v5954
        %v5956 = vmul.f32 %v5935, %v5954
        %v5957 = vmul.f32 %v5936, %v5954
        %v5958 = vmul.f32 %v5937, %v5954
        %v5959 = vmul.f32 %v5938, %v5954
        %v5960 = vmul.f32 %v5939, %v5954
        %v5961 = vmul.f32 %v5940, %v5954
        %v5962 = vmul.f32 %v5941, %v5954
        %v5963 = vmul.f32 %v5942, %v5954
        %v5964 = vmul.f32 %v5943, %v5954
        %v5965 = vmul.f32 %v5944, %v5954
        %v5966 = vmul.f32 %v5945, %v5954
        %v5967 = vmul.f32 %v5946, %v5954
        %v5968 = vmul.f32 %v5947, %v5954
        %v5969 = vmul.f32 %v5948, %v5954
        %v5970 = vmul.f32 %v5949, %v5954
        %v5971 = vld [vmem:[%s5 + $0x1] sm:$0x1]
        %v5972 = vlaneseq
        %v5973 = vshrl.u32 %v5972, 7
        %v5974 = vsub.s32 0, %v5973
        %v5975 = vrot.slane %v5971, %v5974
        %v5976 = vadd.f32 %v5955, %v5975
        %v5977 = vadd.f32 %v5956, %v5975
        %v5978 = vadd.f32 %v5957, %v5975
        %v5979 = vadd.f32 %v5958, %v5975
        %v5980 = vadd.f32 %v5959, %v5975
        %v5981 = vadd.f32 %v5960, %v5975
        %v5982 = vadd.f32 %v5961, %v5975
        %v5983 = vadd.f32 %v5962, %v5975
        %v5984 = vadd.f32 %v5963, %v5975
        %v5985 = vadd.f32 %v5964, %v5975
        %v5986 = vadd.f32 %v5965, %v5975
        %v5987 = vadd.f32 %v5966, %v5975
        %v5988 = vadd.f32 %v5967, %v5975
        %v5989 = vadd.f32 %v5968, %v5975
        %v5990 = vadd.f32 %v5969, %v5975
        %v5991 = vadd.f32 %v5970, %v5975
        %v5992 = vmax.f32 %v5976, 0.0
        %v5993 = vmax.f32 %v5977, 0.0
        %v5994 = vmax.f32 %v5978, 0.0
        %v5995 = vmax.f32 %v5979, 0.0
        %v5996 = vmax.f32 %v5980, 0.0
        %v5997 = vmax.f32 %v5981, 0.0
        %v5998 = vmax.f32 %v5982, 0.0
        %v5999 = vmax.f32 %v5983, 0.0
        %v6000 = vmax.f32 %v5984, 0.0
        %v6001 = vmax.f32 %v5985, 0.0
        %v6002 = vmax.f32 %v5986, 0.0
        %v6003 = vmax.f32 %v5987, 0.0
        %v6004 = vmax.f32 %v5988, 0.0
        %v6005 = vmax.f32 %v5989, 0.0
        %v6006 = vmax.f32 %v5990, 0.0
        %v6007 = vmax.f32 %v5991, 0.0
        %v6024 = vcombine.high %v5992, %v5992
        %v6025 = vcombine.high %v5993, %v5993
        %v6026 = vcombine.high %v5994, %v5994
        %v6027 = vcombine.high %v5995, %v5995
        %v6028 = vcombine.high %v5996, %v5996
        %v6029 = vcombine.high %v5997, %v5997
        %v6030 = vcombine.high %v5998, %v5998
        %v6031 = vcombine.high %v5999, %v5999
        %v6032 = vcombine.high %v6000, %v6000
        %v6033 = vcombine.high %v6001, %v6001
        %v6034 = vcombine.high %v6002, %v6002
        %v6035 = vcombine.high %v6003, %v6003
        %v6036 = vcombine.high %v6004, %v6004
        %v6037 = vcombine.high %v6005, %v6005
        %v6038 = vcombine.high %v6006, %v6006
        %v6039 = vcombine.high %v6007, %v6007
        %v6056 = vsel %vm1289, %v5992, 0.0
        %v6057 = vrot.slane %v6056, 4
        %v6058 = vadd.f32 %v6056, %v6057
        %v6059 = vrot.slane %v6058, 2
        %v6060 = vadd.f32 %v6058, %v6059
        %v6061 = vrot.slane %v6060, 1
        %v6062 = vadd.f32 %v6060, %v6061
        %v6063 = vsel %vm1289, %v6024, 0.0
        %v6064 = vrot.slane %v6063, 4
        %v6065 = vadd.f32 %v6063, %v6064
        %v6066 = vrot.slane %v6065, 2
        %v6067 = vadd.f32 %v6065, %v6066
        %v6068 = vrot.slane %v6067, 1
        %v6069 = vadd.f32 %v6067, %v6068
        %v6070 = vsel %vm1289, %v5993, 0.0
        %v6071 = vrot.slane %v6070, 4
        %v6072 = vadd.f32 %v6070, %v6071
        %v6073 = vrot.slane %v6072, 2
        %v6074 = vadd.f32 %v6072, %v6073
        %v6075 = vrot.slane %v6074, 1
        %v6076 = vadd.f32 %v6074, %v6075
        %v6077 = vsel %vm1289, %v6025, 0.0
        %v6078 = vrot.slane %v6077, 4
        %v6079 = vadd.f32 %v6077, %v6078
        %v6080 = vrot.slane %v6079, 2
        %v6081 = vadd.f32 %v6079, %v6080
        %v6082 = vrot.slane %v6081, 1
        %v6083 = vadd.f32 %v6081, %v6082
        %v6084 = vsel %vm1289, %v5994, 0.0
        %v6085 = vrot.slane %v6084, 4
        %v6086 = vadd.f32 %v6084, %v6085
        %v6087 = vrot.slane %v6086, 2
        %v6088 = vadd.f32 %v6086, %v6087
        %v6089 = vrot.slane %v6088, 1
        %v6090 = vadd.f32 %v6088, %v6089
        %v6091 = vsel %vm1289, %v6026, 0.0
        %v6092 = vrot.slane %v6091, 4
        %v6093 = vadd.f32 %v6091, %v6092
        %v6094 = vrot.slane %v6093, 2
        %v6095 = vadd.f32 %v6093, %v6094
        %v6096 = vrot.slane %v6095, 1
        %v6097 = vadd.f32 %v6095, %v6096
        %v6098 = vsel %vm1289, %v5995, 0.0
        %v6099 = vrot.slane %v6098, 4
        %v6100 = vadd.f32 %v6098, %v6099
        %v6101 = vrot.slane %v6100, 2
        %v6102 = vadd.f32 %v6100, %v6101
        %v6103 = vrot.slane %v6102, 1
        %v6104 = vadd.f32 %v6102, %v6103
        %v6105 = vsel %vm1289, %v6027, 0.0
        %v6106 = vrot.slane %v6105, 4
        %v6107 = vadd.f32 %v6105, %v6106
        %v6108 = vrot.slane %v6107, 2
        %v6109 = vadd.f32 %v6107, %v6108
        %v6110 = vrot.slane %v6109, 1
        %v6111 = vadd.f32 %v6109, %v6110
        %v6112 = vsel %vm1289, %v5996, 0.0
        %v6113 = vrot.slane %v6112, 4
        %v6114 = vadd.f32 %v6112, %v6113
        %v6115 = vrot.slane %v6114, 2
        %v6116 = vadd.f32 %v6114, %v6115
        %v6117 = vrot.slane %v6116, 1
        %v6118 = vadd.f32 %v6116, %v6117
        %v6119 = vsel %vm1289, %v6028, 0.0
        %v6120 = vrot.slane %v6119, 4
        %v6121 = vadd.f32 %v6119, %v6120
        %v6122 = vrot.slane %v6121, 2
        %v6123 = vadd.f32 %v6121, %v6122
        %v6124 = vrot.slane %v6123, 1
        %v6125 = vadd.f32 %v6123, %v6124
        %v6126 = vsel %vm1289, %v5997, 0.0
        %v6127 = vrot.slane %v6126, 4
        %v6128 = vadd.f32 %v6126, %v6127
        %v6129 = vrot.slane %v6128, 2
        %v6130 = vadd.f32 %v6128, %v6129
        %v6131 = vrot.slane %v6130, 1
        %v6132 = vadd.f32 %v6130, %v6131
        %v6133 = vsel %vm1289, %v6029, 0.0
        %v6134 = vrot.slane %v6133, 4
        %v6135 = vadd.f32 %v6133, %v6134
        %v6136 = vrot.slane %v6135, 2
        %v6137 = vadd.f32 %v6135, %v6136
        %v6138 = vrot.slane %v6137, 1
        %v6139 = vadd.f32 %v6137, %v6138
        %v6140 = vsel %vm1289, %v5998, 0.0
        %v6141 = vrot.slane %v6140, 4
        %v6142 = vadd.f32 %v6140, %v6141
        %v6143 = vrot.slane %v6142, 2
        %v6144 = vadd.f32 %v6142, %v6143
        %v6145 = vrot.slane %v6144, 1
        %v6146 = vadd.f32 %v6144, %v6145
        %v6147 = vsel %vm1289, %v6030, 0.0
        %v6148 = vrot.slane %v6147, 4
        %v6149 = vadd.f32 %v6147, %v6148
        %v6150 = vrot.slane %v6149, 2
        %v6151 = vadd.f32 %v6149, %v6150
        %v6152 = vrot.slane %v6151, 1
        %v6153 = vadd.f32 %v6151, %v6152
        %v6154 = vsel %vm1289, %v5999, 0.0
        %v6155 = vrot.slane %v6154, 4
        %v6156 = vadd.f32 %v6154, %v6155
        %v6157 = vrot.slane %v6156, 2
        %v6158 = vadd.f32 %v6156, %v6157
        %v6159 = vrot.slane %v6158, 1
        %v6160 = vadd.f32 %v6158, %v6159
        %v6161 = vsel %vm1289, %v6031, 0.0
        %v6162 = vrot.slane %v6161, 4
        %v6163 = vadd.f32 %v6161, %v6162
        %v6164 = vrot.slane %v6163, 2
        %v6165 = vadd.f32 %v6163, %v6164
        %v6166 = vrot.slane %v6165, 1
        %v6167 = vadd.f32 %v6165, %v6166
        %v6168 = vsel %vm1289, %v6000, 0.0
        %v6169 = vrot.slane %v6168, 4
        %v6170 = vadd.f32 %v6168, %v6169
        %v6171 = vrot.slane %v6170, 2
        %v6172 = vadd.f32 %v6170, %v6171
        %v6173 = vrot.slane %v6172, 1
        %v6174 = vadd.f32 %v6172, %v6173
        %v6175 = vsel %vm1289, %v6032, 0.0
        %v6176 = vrot.slane %v6175, 4
        %v6177 = vadd.f32 %v6175, %v6176
        %v6178 = vrot.slane %v6177, 2
        %v6179 = vadd.f32 %v6177, %v6178
        %v6180 = vrot.slane %v6179, 1
        %v6181 = vadd.f32 %v6179, %v6180
        %v6182 = vsel %vm1289, %v6001, 0.0
        %v6183 = vrot.slane %v6182, 4
        %v6184 = vadd.f32 %v6182, %v6183
        %v6185 = vrot.slane %v6184, 2
        %v6186 = vadd.f32 %v6184, %v6185
        %v6187 = vrot.slane %v6186, 1
        %v6188 = vadd.f32 %v6186, %v6187
        %v6189 = vsel %vm1289, %v6033, 0.0
        %v6190 = vrot.slane %v6189, 4
        %v6191 = vadd.f32 %v6189, %v6190
        %v6192 = vrot.slane %v6191, 2
        %v6193 = vadd.f32 %v6191, %v6192
        %v6194 = vrot.slane %v6193, 1
        %v6195 = vadd.f32 %v6193, %v6194
        %v6196 = vsel %vm1289, %v6002, 0.0
        %v6197 = vrot.slane %v6196, 4
        %v6198 = vadd.f32 %v6196, %v6197
        %v6199 = vrot.slane %v6198, 2
        %v6200 = vadd.f32 %v6198, %v6199
        %v6201 = vrot.slane %v6200, 1
        %v6202 = vadd.f32 %v6200, %v6201
        %v6203 = vsel %vm1289, %v6034, 0.0
        %v6204 = vrot.slane %v6203, 4
        %v6205 = vadd.f32 %v6203, %v6204
        %v6206 = vrot.slane %v6205, 2
        %v6207 = vadd.f32 %v6205, %v6206
        %v6208 = vrot.slane %v6207, 1
        %v6209 = vadd.f32 %v6207, %v6208
        %v6210 = vsel %vm1289, %v6003, 0.0
        %v6211 = vrot.slane %v6210, 4
        %v6212 = vadd.f32 %v6210, %v6211
        %v6213 = vrot.slane %v6212, 2
        %v6214 = vadd.f32 %v6212, %v6213
        %v6215 = vrot.slane %v6214, 1
        %v6216 = vadd.f32 %v6214, %v6215
        %v6217 = vsel %vm1289, %v6035, 0.0
        %v6218 = vrot.slane %v6217, 4
        %v6219 = vadd.f32 %v6217, %v6218
        %v6220 = vrot.slane %v6219, 2
        %v6221 = vadd.f32 %v6219, %v6220
        %v6222 = vrot.slane %v6221, 1
        %v6223 = vadd.f32 %v6221, %v6222
        %v6224 = vsel %vm1289, %v6004, 0.0
        %v6225 = vrot.slane %v6224, 4
        %v6226 = vadd.f32 %v6224, %v6225
        %v6227 = vrot.slane %v6226, 2
        %v6228 = vadd.f32 %v6226, %v6227
        %v6229 = vrot.slane %v6228, 1
        %v6230 = vadd.f32 %v6228, %v6229
        %v6231 = vsel %vm1289, %v6036, 0.0
        %v6232 = vrot.slane %v6231, 4
        %v6233 = vadd.f32 %v6231, %v6232
        %v6234 = vrot.slane %v6233, 2
        %v6235 = vadd.f32 %v6233, %v6234
        %v6236 = vrot.slane %v6235, 1
        %v6237 = vadd.f32 %v6235, %v6236
        %v6238 = vsel %vm1289, %v6005, 0.0
        %v6239 = vrot.slane %v6238, 4
        %v6240 = vadd.f32 %v6238, %v6239
        %v6241 = vrot.slane %v6240, 2
        %v6242 = vadd.f32 %v6240, %v6241
        %v6243 = vrot.slane %v6242, 1
        %v6244 = vadd.f32 %v6242, %v6243
        %v6245 = vsel %vm1289, %v6037, 0.0
        %v6246 = vrot.slane %v6245, 4
        %v6247 = vadd.f32 %v6245, %v6246
        %v6248 = vrot.slane %v6247, 2
        %v6249 = vadd.f32 %v6247, %v6248
        %v6250 = vrot.slane %v6249, 1
        %v6251 = vadd.f32 %v6249, %v6250
        %v6252 = vsel %vm1289, %v6006, 0.0
        %v6253 = vrot.slane %v6252, 4
        %v6254 = vadd.f32 %v6252, %v6253
        %v6255 = vrot.slane %v6254, 2
        %v6256 = vadd.f32 %v6254, %v6255
        %v6257 = vrot.slane %v6256, 1
        %v6258 = vadd.f32 %v6256, %v6257
        %v6259 = vsel %vm1289, %v6038, 0.0
        %v6260 = vrot.slane %v6259, 4
        %v6261 = vadd.f32 %v6259, %v6260
        %v6262 = vrot.slane %v6261, 2
        %v6263 = vadd.f32 %v6261, %v6262
        %v6264 = vrot.slane %v6263, 1
        %v6265 = vadd.f32 %v6263, %v6264
        %v6266 = vsel %vm1289, %v6007, 0.0
        %v6267 = vrot.slane %v6266, 4
        %v6268 = vadd.f32 %v6266, %v6267
        %v6269 = vrot.slane %v6268, 2
        %v6270 = vadd.f32 %v6268, %v6269
        %v6271 = vrot.slane %v6270, 1
        %v6272 = vadd.f32 %v6270, %v6271
        %v6273 = vsel %vm1289, %v6039, 0.0
        %v6274 = vrot.slane %v6273, 4
        %v6275 = vadd.f32 %v6273, %v6274
        %v6276 = vrot.slane %v6275, 2
        %v6277 = vadd.f32 %v6275, %v6276
        %v6278 = vrot.slane %v6277, 1
        %v6279 = vadd.f32 %v6277, %v6278
        %v6280 = vmul.f32 %v6062, 0.25
        %v6281 = vmul.f32 %v6069, 0.25
        %v6282 = vmul.f32 %v6076, 0.25
        %v6283 = vmul.f32 %v6083, 0.25
        %v6284 = vmul.f32 %v6090, 0.25
        %v6285 = vmul.f32 %v6097, 0.25
        %v6286 = vmul.f32 %v6104, 0.25
        %v6287 = vmul.f32 %v6111, 0.25
        %v6288 = vmul.f32 %v6118, 0.25
        %v6289 = vmul.f32 %v6125, 0.25
        %v6290 = vmul.f32 %v6132, 0.25
        %v6291 = vmul.f32 %v6139, 0.25
        %v6292 = vmul.f32 %v6146, 0.25
        %v6293 = vmul.f32 %v6153, 0.25
        %v6294 = vmul.f32 %v6160, 0.25
        %v6295 = vmul.f32 %v6167, 0.25
        %v6296 = vmul.f32 %v6174, 0.25
        %v6297 = vmul.f32 %v6181, 0.25
        %v6298 = vmul.f32 %v6188, 0.25
        %v6299 = vmul.f32 %v6195, 0.25
        %v6300 = vmul.f32 %v6202, 0.25
        %v6301 = vmul.f32 %v6209, 0.25
        %v6302 = vmul.f32 %v6216, 0.25
        %v6303 = vmul.f32 %v6223, 0.25
        %v6304 = vmul.f32 %v6230, 0.25
        %v6305 = vmul.f32 %v6237, 0.25
        %v6306 = vmul.f32 %v6244, 0.25
        %v6307 = vmul.f32 %v6251, 0.25
        %v6308 = vmul.f32 %v6258, 0.25
        %v6309 = vmul.f32 %v6265, 0.25
        %v6310 = vmul.f32 %v6272, 0.25
        %v6311 = vmul.f32 %v6279, 0.25
        %v6312 = vpack.c.bf16 %v6280, %v6280
        %v6313 = vpack.c.bf16 %v6281, %v6281
        %v6314 = vpack.c.bf16 %v6282, %v6282
        %v6315 = vpack.c.bf16 %v6283, %v6283
        %v6316 = vpack.c.bf16 %v6284, %v6284
        %v6317 = vpack.c.bf16 %v6285, %v6285
        %v6318 = vpack.c.bf16 %v6286, %v6286
        %v6319 = vpack.c.bf16 %v6287, %v6287
        %v6320 = vpack.c.bf16 %v6288, %v6288
        %v6321 = vpack.c.bf16 %v6289, %v6289
        %v6322 = vpack.c.bf16 %v6290, %v6290
        %v6323 = vpack.c.bf16 %v6291, %v6291
        %v6324 = vpack.c.bf16 %v6292, %v6292
        %v6325 = vpack.c.bf16 %v6293, %v6293
        %v6326 = vpack.c.bf16 %v6294, %v6294
        %v6327 = vpack.c.bf16 %v6295, %v6295
        %v6328 = vpack.c.bf16 %v6296, %v6296
        %v6329 = vpack.c.bf16 %v6297, %v6297
        %v6330 = vpack.c.bf16 %v6298, %v6298
        %v6331 = vpack.c.bf16 %v6299, %v6299
        %v6332 = vpack.c.bf16 %v6300, %v6300
        %v6333 = vpack.c.bf16 %v6301, %v6301
        %v6334 = vpack.c.bf16 %v6302, %v6302
        %v6335 = vpack.c.bf16 %v6303, %v6303
        %v6336 = vpack.c.bf16 %v6304, %v6304
        %v6337 = vpack.c.bf16 %v6305, %v6305
        %v6338 = vpack.c.bf16 %v6306, %v6306
        %v6339 = vpack.c.bf16 %v6307, %v6307
        %v6340 = vpack.c.bf16 %v6308, %v6308
        %v6341 = vpack.c.bf16 %v6309, %v6309
        %v6342 = vpack.c.bf16 %v6310, %v6310
        %v6343 = vpack.c.bf16 %v6311, %v6311
        %v6376 = vunpack.c.l.b16 %v6312
        %v6377 = vunpack.c.l.b16 %v6313
        %v6378 = vunpack.c.l.b16 %v6314
        %v6379 = vunpack.c.l.b16 %v6315
        %v6380 = vunpack.c.l.b16 %v6316
        %v6381 = vunpack.c.l.b16 %v6317
        %v6382 = vunpack.c.l.b16 %v6318
        %v6383 = vunpack.c.l.b16 %v6319
        %v6384 = vunpack.c.l.b16 %v6320
        %v6385 = vunpack.c.l.b16 %v6321
        %v6386 = vunpack.c.l.b16 %v6322
        %v6387 = vunpack.c.l.b16 %v6323
        %v6388 = vunpack.c.l.b16 %v6324
        %v6389 = vunpack.c.l.b16 %v6325
        %v6390 = vunpack.c.l.b16 %v6326
        %v6391 = vunpack.c.l.b16 %v6327
        %v6392 = vunpack.c.l.b16 %v6328
        %v6393 = vunpack.c.l.b16 %v6329
        %v6394 = vunpack.c.l.b16 %v6330
        %v6395 = vunpack.c.l.b16 %v6331
        %v6396 = vunpack.c.l.b16 %v6332
        %v6397 = vunpack.c.l.b16 %v6333
        %v6398 = vunpack.c.l.b16 %v6334
        %v6399 = vunpack.c.l.b16 %v6335
        %v6400 = vunpack.c.l.b16 %v6336
        %v6401 = vunpack.c.l.b16 %v6337
        %v6402 = vunpack.c.l.b16 %v6338
        %v6403 = vunpack.c.l.b16 %v6339
        %v6404 = vunpack.c.l.b16 %v6340
        %v6405 = vunpack.c.l.b16 %v6341
        %v6406 = vunpack.c.l.b16 %v6342
        %v6407 = vunpack.c.l.b16 %v6343
        %v6408 = vpack.c.b16 %v6376, %v6376
        %v6409 = vpack.c.b16 %v6377, %v6377
        %v6410 = vpack.c.b16 %v6378, %v6378
        %v6411 = vpack.c.b16 %v6379, %v6379
        %v6412 = vpack.c.b16 %v6380, %v6380
        %v6413 = vpack.c.b16 %v6381, %v6381
        %v6414 = vpack.c.b16 %v6382, %v6382
        %v6415 = vpack.c.b16 %v6383, %v6383
        %v6416 = vpack.c.b16 %v6384, %v6384
        %v6417 = vpack.c.b16 %v6385, %v6385
        %v6418 = vpack.c.b16 %v6386, %v6386
        %v6419 = vpack.c.b16 %v6387, %v6387
        %v6420 = vpack.c.b16 %v6388, %v6388
        %v6421 = vpack.c.b16 %v6389, %v6389
        %v6422 = vpack.c.b16 %v6390, %v6390
        %v6423 = vpack.c.b16 %v6391, %v6391
        %v6424 = vpack.c.b16 %v6392, %v6392
        %v6425 = vpack.c.b16 %v6393, %v6393
        %v6426 = vpack.c.b16 %v6394, %v6394
        %v6427 = vpack.c.b16 %v6395, %v6395
        %v6428 = vpack.c.b16 %v6396, %v6396
        %v6429 = vpack.c.b16 %v6397, %v6397
        %v6430 = vpack.c.b16 %v6398, %v6398
        %v6431 = vpack.c.b16 %v6399, %v6399
        %v6432 = vpack.c.b16 %v6400, %v6400
        %v6433 = vpack.c.b16 %v6401, %v6401
        %v6434 = vpack.c.b16 %v6402, %v6402
        %v6435 = vpack.c.b16 %v6403, %v6403
        %v6436 = vpack.c.b16 %v6404, %v6404
        %v6437 = vpack.c.b16 %v6405, %v6405
        %v6438 = vpack.c.b16 %v6406, %v6406
        %v6439 = vpack.c.b16 %v6407, %v6407
        %v6440 = vunpack.c.l.b16 %v6408
        %v6441 = vunpack.c.l.b16 %v6409
        %v6442 = vunpack.c.l.b16 %v6410
        %v6443 = vunpack.c.l.b16 %v6411
        %v6444 = vunpack.c.l.b16 %v6412
        %v6445 = vunpack.c.l.b16 %v6413
        %v6446 = vunpack.c.l.b16 %v6414
        %v6447 = vunpack.c.l.b16 %v6415
        %v6448 = vunpack.c.l.b16 %v6416
        %v6449 = vunpack.c.l.b16 %v6417
        %v6450 = vunpack.c.l.b16 %v6418
        %v6451 = vunpack.c.l.b16 %v6419
        %v6452 = vunpack.c.l.b16 %v6420
        %v6453 = vunpack.c.l.b16 %v6421
        %v6454 = vunpack.c.l.b16 %v6422
        %v6455 = vunpack.c.l.b16 %v6423
        %v6456 = vunpack.c.l.b16 %v6424
        %v6457 = vunpack.c.l.b16 %v6425
        %v6458 = vunpack.c.l.b16 %v6426
        %v6459 = vunpack.c.l.b16 %v6427
        %v6460 = vunpack.c.l.b16 %v6428
        %v6461 = vunpack.c.l.b16 %v6429
        %v6462 = vunpack.c.l.b16 %v6430
        %v6463 = vunpack.c.l.b16 %v6431
        %v6464 = vunpack.c.l.b16 %v6432
        %v6465 = vunpack.c.l.b16 %v6433
        %v6466 = vunpack.c.l.b16 %v6434
        %v6467 = vunpack.c.l.b16 %v6435
        %v6468 = vunpack.c.l.b16 %v6436
        %v6469 = vunpack.c.l.b16 %v6437
        %v6470 = vunpack.c.l.b16 %v6438
        %v6471 = vunpack.c.l.b16 %v6439
        %v6472 = vsel %vm2954, %v6441, %v6440
        %v6473 = vsel %vm2956, %v6442, %v6472
        %v6474 = vsel %vm2958, %v6443, %v6473
        %v6475 = vsel %vm2954, %v6445, %v6444
        %v6476 = vsel %vm2956, %v6446, %v6475
        %v6477 = vsel %vm2958, %v6447, %v6476
        %v6478 = vsel %vm2954, %v6449, %v6448
        %v6479 = vsel %vm2956, %v6450, %v6478
        %v6480 = vsel %vm2958, %v6451, %v6479
        %v6481 = vsel %vm2954, %v6453, %v6452
        %v6482 = vsel %vm2956, %v6454, %v6481
        %v6483 = vsel %vm2958, %v6455, %v6482
        %v6484 = vsel %vm2954, %v6457, %v6456
        %v6485 = vsel %vm2956, %v6458, %v6484
        %v6486 = vsel %vm2958, %v6459, %v6485
        %v6487 = vsel %vm2954, %v6461, %v6460
        %v6488 = vsel %vm2956, %v6462, %v6487
        %v6489 = vsel %vm2958, %v6463, %v6488
        %v6490 = vsel %vm2954, %v6465, %v6464
        %v6491 = vsel %vm2956, %v6466, %v6490
        %v6492 = vsel %vm2958, %v6467, %v6491
        %v6493 = vsel %vm2954, %v6469, %v6468
        %v6494 = vsel %vm2956, %v6470, %v6493
        %v6495 = vsel %vm2958, %v6471, %v6494
        %v6496 = vpack.c.b16 %v6474, %v6474
        %v6497 = vpack.c.b16 %v6477, %v6477
        %v6498 = vpack.c.b16 %v6480, %v6480
        %v6499 = vpack.c.b16 %v6483, %v6483
        %v6500 = vpack.c.b16 %v6486, %v6486
        %v6501 = vpack.c.b16 %v6489, %v6489
        %v6502 = vpack.c.b16 %v6492, %v6492
        %v6503 = vpack.c.b16 %v6495, %v6495
        %s6512 = scalar_lea.vmem [#allocation3], 4
        %vm6513 = vcmask 518144
        %vm6514 = vsmask.f32 2306
        %vm6515 = vmand %vm6513, %vm6514
        %v6516 = vld [vmem:[%s6512] sm:$0x7]
        %v6517 = vsel %vm6515, %v6496, %v6516
        %6518 = vst [vmem:[%s6512] sm:$0x7] %v6517
        %v6519 = vld [vmem:[%s6512 + $0x4] sm:$0x7]
        %v6520 = vsel %vm6515, %v6497, %v6519
        %6521 = vst [vmem:[%s6512 + $0x4] sm:$0x7] %v6520
        %v6522 = vld [vmem:[%s6512 + $0x8] sm:$0x7]
        %v6523 = vsel %vm6515, %v6498, %v6522
        %6524 = vst [vmem:[%s6512 + $0x8] sm:$0x7] %v6523
        %v6525 = vld [vmem:[%s6512 + $0xc] sm:$0x7]
        %v6526 = vsel %vm6515, %v6499, %v6525
        %6527 = vst [vmem:[%s6512 + $0xc] sm:$0x7] %v6526
        %v6528 = vld [vmem:[%s6512 + $0x10] sm:$0x7]
        %v6529 = vsel %vm6515, %v6500, %v6528
        %6530 = vst [vmem:[%s6512 + $0x10] sm:$0x7] %v6529
        %v6531 = vld [vmem:[%s6512 + $0x14] sm:$0x7]
        %v6532 = vsel %vm6515, %v6501, %v6531
        %6533 = vst [vmem:[%s6512 + $0x14] sm:$0x7] %v6532
        %v6534 = vld [vmem:[%s6512 + $0x18] sm:$0x7]
        %v6535 = vsel %vm6515, %v6502, %v6534
        %6536 = vst [vmem:[%s6512 + $0x18] sm:$0x7] %v6535
        %v6537 = vld [vmem:[%s6512 + $0x1c] sm:$0x7]
        %v6538 = vsel %vm6515, %v6503, %v6537
        %6539 = vst [vmem:[%s6512 + $0x1c] sm:$0x7] %v6538
        %vm6540 = vcmask 518144
        %6541 = vst.msk [vmem:[#allocation3] sm:$0x7] %vm6540, 0
        %s6542 = scalar_lea.vmem [#allocation3], 36
        %6543 = vst.msk [vmem:[%s6542] sm:$0x7] %vm6540, 0
        %v6544 = vld [vmem:[#allocation3] sm:$0x1]
        %v6545 = vsel %vm3123, 0, %v6544
        %6546 = vst [vmem:[#allocation3] sm:$0x1] %v6545
        %v6547 = vld [vmem:[#allocation3 + $0x4] sm:$0x1]
        %v6548 = vsel %vm3123, 0, %v6547
        %6549 = vst [vmem:[#allocation3 + $0x4] sm:$0x1] %v6548
        %v6550 = vld [vmem:[#allocation3 + $0x8] sm:$0x1]
        %v6551 = vsel %vm3123, 0, %v6550
        %6552 = vst [vmem:[#allocation3 + $0x8] sm:$0x1] %v6551
        %v6553 = vld [vmem:[#allocation3 + $0xc] sm:$0x1]
        %v6554 = vsel %vm3123, 0, %v6553
        %6555 = vst [vmem:[#allocation3 + $0xc] sm:$0x1] %v6554
        %v6556 = vld [vmem:[#allocation3 + $0x10] sm:$0x1]
        %v6557 = vsel %vm3123, 0, %v6556
        %6558 = vst [vmem:[#allocation3 + $0x10] sm:$0x1] %v6557
        %v6559 = vld [vmem:[#allocation3 + $0x14] sm:$0x1]
        %v6560 = vsel %vm3123, 0, %v6559
        %6561 = vst [vmem:[#allocation3 + $0x14] sm:$0x1] %v6560
        %v6562 = vld [vmem:[#allocation3 + $0x18] sm:$0x1]
        %v6563 = vsel %vm3123, 0, %v6562
        %6564 = vst [vmem:[#allocation3 + $0x18] sm:$0x1] %v6563
        %v6565 = vld [vmem:[#allocation3 + $0x1c] sm:$0x1]
        %v6566 = vsel %vm3123, 0, %v6565
        %6567 = vst [vmem:[#allocation3 + $0x1c] sm:$0x1] %v6566
        %v6568 = vld [vmem:[#allocation3 + $0x20] sm:$0x1]
        %v6569 = vsel %vm3123, 0, %v6568
        %6570 = vst [vmem:[#allocation3 + $0x20] sm:$0x1] %v6569
        %v6571 = vld [vmem:[#allocation3 + $0x24] sm:$0x1]
        %v6572 = vsel %vm3123, 0, %v6571
        %6573 = vst [vmem:[#allocation3 + $0x24] sm:$0x1] %v6572
        %vm6574 = vcmask 518146
        %vm6575 = vsmask.f32 7946
        %vm6576 = vmand %vm6574, %vm6575
        %v6577 = vld [vmem:[#allocation3] sm:$0x4]
        %v6578 = vsel %vm6576, 0, %v6577
        %6579 = vst [vmem:[#allocation3] sm:$0x4] %v6578
        %v6580 = vld [vmem:[#allocation3 + $0x4] sm:$0x4]
        %v6581 = vsel %vm6576, 0, %v6580
        %6582 = vst [vmem:[#allocation3 + $0x4] sm:$0x4] %v6581
        %v6583 = vld [vmem:[#allocation3 + $0x8] sm:$0x4]
        %v6584 = vsel %vm6576, 0, %v6583
        %6585 = vst [vmem:[#allocation3 + $0x8] sm:$0x4] %v6584
        %v6586 = vld [vmem:[#allocation3 + $0xc] sm:$0x4]
        %v6587 = vsel %vm6576, 0, %v6586
        %6588 = vst [vmem:[#allocation3 + $0xc] sm:$0x4] %v6587
        %v6589 = vld [vmem:[#allocation3 + $0x10] sm:$0x4]
        %v6590 = vsel %vm6576, 0, %v6589
        %6591 = vst [vmem:[#allocation3 + $0x10] sm:$0x4] %v6590
        %v6592 = vld [vmem:[#allocation3 + $0x14] sm:$0x4]
        %v6593 = vsel %vm6576, 0, %v6592
        %6594 = vst [vmem:[#allocation3 + $0x14] sm:$0x4] %v6593
        %v6595 = vld [vmem:[#allocation3 + $0x18] sm:$0x4]
        %v6596 = vsel %vm6576, 0, %v6595
        %6597 = vst [vmem:[#allocation3 + $0x18] sm:$0x4] %v6596
        %v6598 = vld [vmem:[#allocation3 + $0x1c] sm:$0x4]
        %v6599 = vsel %vm6576, 0, %v6598
        %6600 = vst [vmem:[#allocation3 + $0x1c] sm:$0x4] %v6599
        %v6601 = vld [vmem:[#allocation3 + $0x20] sm:$0x4]
        %v6602 = vsel %vm6576, 0, %v6601
        %6603 = vst [vmem:[#allocation3 + $0x20] sm:$0x4] %v6602
        %v6604 = vld [vmem:[#allocation3 + $0x24] sm:$0x4]
        %v6605 = vsel %vm6576, 0, %v6604
        %6606 = vst [vmem:[#allocation3 + $0x24] sm:$0x4] %v6605
        %v6607 = vld [vmem:[#allocation3] sm:$0x3]
        %v6608 = vld [vmem:[#allocation3 + $0x4] sm:$0x3]
        %v6609 = vld [vmem:[#allocation3 + $0x8] sm:$0x3]
        %v6610 = vld [vmem:[#allocation3 + $0xc] sm:$0x3]
        %v6611 = vld [vmem:[#allocation3 + $0x10] sm:$0x3]
        %v6612 = vld [vmem:[#allocation3 + $0x14] sm:$0x3]
        %v6613 = vld [vmem:[#allocation3 + $0x18] sm:$0x3]
        %v6614 = vld [vmem:[#allocation3 + $0x1c] sm:$0x3]
        %v6615 = vld [vmem:[%s3] sm:$0xf]
        %v6616 = vld [vmem:[%s3 + $0x4] sm:$0xf]
        %v6617 = vld [vmem:[%s3 + $0x8] sm:$0xf]
        %v6618 = vld [vmem:[%s3 + $0xc] sm:$0xf]
        %v6619 = vld [vmem:[%s3 + $0x10] sm:$0xf]
        %v6620 = vld [vmem:[%s3 + $0x14] sm:$0xf]
        %v6621 = vld [vmem:[%s3 + $0x18] sm:$0xf]
        %v6622 = vld [vmem:[%s3 + $0x1c] sm:$0xf]
        %v6623 = vld [vmem:[#allocation3] sm:$0x7]
        %v6624 = vld [vmem:[#allocation3 + $0x4] sm:$0x7]
        %v6625 = vld [vmem:[#allocation3 + $0x8] sm:$0x7]
        %v6626 = vld [vmem:[#allocation3 + $0xc] sm:$0x7]
        %v6627 = vld [vmem:[#allocation3 + $0x10] sm:$0x7]
        %v6628 = vld [vmem:[#allocation3 + $0x14] sm:$0x7]
        %v6629 = vld [vmem:[#allocation3 + $0x18] sm:$0x7]
        %v6630 = vld [vmem:[#allocation3 + $0x1c] sm:$0x7]
        %v6640 = vunpack.c.l.s4 1983009808
        %v6641 = vunpack.c.0.s8 %v6640
        %v6642 = vlaneseq
        %v6643 = vshrl.u32 %v6642, 7
        %v6644 = vsub.s32 %v6641, %v6643
        %v6645 = vrot.slane %v6623, %v6644
        %v6646 = vcombine.high %v6645, %v6645
        %v6648 = vunpack.c.l.s4 1983009808
        %v6649 = vunpack.c.0.s8 %v6648
        %v6650 = vlaneseq
        %v6651 = vshrl.u32 %v6650, 7
        %v6652 = vsub.s32 %v6649, %v6651
        %v6653 = vrot.slane %v6624, %v6652
        %v6654 = vcombine.high %v6653, %v6653
        %v6656 = vunpack.c.l.s4 1983009808
        %v6657 = vunpack.c.0.s8 %v6656
        %v6658 = vlaneseq
        %v6659 = vshrl.u32 %v6658, 7
        %v6660 = vsub.s32 %v6657, %v6659
        %v6661 = vrot.slane %v6625, %v6660
        %v6662 = vcombine.high %v6661, %v6661
        %v6664 = vunpack.c.l.s4 1983009808
        %v6665 = vunpack.c.0.s8 %v6664
        %v6666 = vlaneseq
        %v6667 = vshrl.u32 %v6666, 7
        %v6668 = vsub.s32 %v6665, %v6667
        %v6669 = vrot.slane %v6626, %v6668
        %v6670 = vcombine.high %v6669, %v6669
        %v6672 = vunpack.c.l.s4 1983009808
        %v6673 = vunpack.c.0.s8 %v6672
        %v6674 = vlaneseq
        %v6675 = vshrl.u32 %v6674, 7
        %v6676 = vsub.s32 %v6673, %v6675
        %v6677 = vrot.slane %v6627, %v6676
        %v6678 = vcombine.high %v6677, %v6677
        %v6680 = vunpack.c.l.s4 1983009808
        %v6681 = vunpack.c.0.s8 %v6680
        %v6682 = vlaneseq
        %v6683 = vshrl.u32 %v6682, 7
        %v6684 = vsub.s32 %v6681, %v6683
        %v6685 = vrot.slane %v6628, %v6684
        %v6686 = vcombine.high %v6685, %v6685
        %v6688 = vunpack.c.l.s4 1983009808
        %v6689 = vunpack.c.0.s8 %v6688
        %v6690 = vlaneseq
        %v6691 = vshrl.u32 %v6690, 7
        %v6692 = vsub.s32 %v6689, %v6691
        %v6693 = vrot.slane %v6629, %v6692
        %v6694 = vcombine.high %v6693, %v6693
        %v6696 = vunpack.c.l.s4 1983009808
        %v6697 = vunpack.c.0.s8 %v6696
        %v6698 = vlaneseq
        %v6699 = vshrl.u32 %v6698, 7
        %v6700 = vsub.s32 %v6697, %v6699
        %v6701 = vrot.slane %v6630, %v6700
        %v6702 = vcombine.high %v6701, %v6701
        %vm6703 = vsmask.f32 1280
        %vm6704 = vsmask.f32 3336
        %vm6705 = vmor %vm6703, %vm6704
        %vm6706 = vsmask.f32 5392
        %vm6707 = vmor %vm6705, %vm6706
        %vm6708 = vsmask.f32 7448
        %vm6709 = vmor %vm6707, %vm6708
        %v6711 = vshrl.u32 %v6645, 16
        %v6713 = vrot.slane %v6711, 6
        %v6714 = vshll.u32 %v6645, 16
        %v6716 = vrot.slane %v6714, 7
        %v6717 = vor.u32 %v6713, %v6716
        %v6718 = vrot.slane %v6717, 2
        %v6720 = vshll.u32 %v6646, 16
        %v6722 = vrot.slane %v6720, 7
        %v6723 = vsel %vm6709, %v6718, %v6722
        %v6725 = vshrl.u32 %v6653, 16
        %v6727 = vrot.slane %v6725, 6
        %v6728 = vshll.u32 %v6653, 16
        %v6730 = vrot.slane %v6728, 7
        %v6731 = vor.u32 %v6727, %v6730
        %v6732 = vrot.slane %v6731, 2
        %v6734 = vshll.u32 %v6654, 16
        %v6736 = vrot.slane %v6734, 7
        %v6737 = vsel %vm6709, %v6732, %v6736
        %v6739 = vshrl.u32 %v6661, 16
        %v6741 = vrot.slane %v6739, 6
        %v6742 = vshll.u32 %v6661, 16
        %v6744 = vrot.slane %v6742, 7
        %v6745 = vor.u32 %v6741, %v6744
        %v6746 = vrot.slane %v6745, 2
        %v6748 = vshll.u32 %v6662, 16
        %v6750 = vrot.slane %v6748, 7
        %v6751 = vsel %vm6709, %v6746, %v6750
        %v6753 = vshrl.u32 %v6669, 16
        %v6755 = vrot.slane %v6753, 6
        %v6756 = vshll.u32 %v6669, 16
        %v6758 = vrot.slane %v6756, 7
        %v6759 = vor.u32 %v6755, %v6758
        %v6760 = vrot.slane %v6759, 2
        %v6762 = vshll.u32 %v6670, 16
        %v6764 = vrot.slane %v6762, 7
        %v6765 = vsel %vm6709, %v6760, %v6764
        %v6767 = vshrl.u32 %v6677, 16
        %v6769 = vrot.slane %v6767, 6
        %v6770 = vshll.u32 %v6677, 16
        %v6772 = vrot.slane %v6770, 7
        %v6773 = vor.u32 %v6769, %v6772
        %v6774 = vrot.slane %v6773, 2
        %v6776 = vshll.u32 %v6678, 16
        %v6778 = vrot.slane %v6776, 7
        %v6779 = vsel %vm6709, %v6774, %v6778
        %v6781 = vshrl.u32 %v6685, 16
        %v6783 = vrot.slane %v6781, 6
        %v6784 = vshll.u32 %v6685, 16
        %v6786 = vrot.slane %v6784, 7
        %v6787 = vor.u32 %v6783, %v6786
        %v6788 = vrot.slane %v6787, 2
        %v6790 = vshll.u32 %v6686, 16
        %v6792 = vrot.slane %v6790, 7
        %v6793 = vsel %vm6709, %v6788, %v6792
        %v6795 = vshrl.u32 %v6693, 16
        %v6797 = vrot.slane %v6795, 6
        %v6798 = vshll.u32 %v6693, 16
        %v6800 = vrot.slane %v6798, 7
        %v6801 = vor.u32 %v6797, %v6800
        %v6802 = vrot.slane %v6801, 2
        %v6804 = vshll.u32 %v6694, 16
        %v6806 = vrot.slane %v6804, 7
        %v6807 = vsel %vm6709, %v6802, %v6806
        %v6809 = vshrl.u32 %v6701, 16
        %v6811 = vrot.slane %v6809, 6
        %v6812 = vshll.u32 %v6701, 16
        %v6814 = vrot.slane %v6812, 7
        %v6815 = vor.u32 %v6811, %v6814
        %v6816 = vrot.slane %v6815, 2
        %v6818 = vshll.u32 %v6702, 16
        %v6820 = vrot.slane %v6818, 7
        %v6821 = vsel %vm6709, %v6816, %v6820
        %s6822 = scalar_lea.vmem %s3, 32
        %v6823 = vld [vmem:[%s6822] sm:$0xf]
        %v6824 = vld [vmem:[%s6822 + $0x4] sm:$0xf]
        %v6825 = vld [vmem:[%s6822 + $0x8] sm:$0xf]
        %v6826 = vld [vmem:[%s6822 + $0xc] sm:$0xf]
        %v6827 = vld [vmem:[%s6822 + $0x10] sm:$0xf]
        %v6828 = vld [vmem:[%s6822 + $0x14] sm:$0xf]
        %v6829 = vld [vmem:[%s6822 + $0x18] sm:$0xf]
        %v6830 = vld [vmem:[%s6822 + $0x1c] sm:$0xf]
        %v6831 = vcombine.low %v6723, %v6737
        %v6832 = vcombine.low %v6751, %v6765
        %v6834 = vunpack.c.l.s4 1983009808
        %v6835 = vunpack.c.0.s8 %v6834
        %v6836 = vlaneseq
        %v6837 = vshrl.u32 %v6836, 7
        %v6838 = vsub.s32 %v6835, %v6837
        %v6839 = vrot.slane %v6831, %v6838
        %v6841 = vunpack.c.l.s4 1983009808
        %v6842 = vunpack.c.0.s8 %v6841
        %v6843 = vlaneseq
        %v6844 = vshrl.u32 %v6843, 7
        %v6845 = vsub.s32 %v6842, %v6844
        %v6846 = vrot.slane %v6832, %v6845
        %v6847 = vcombine.low %v6839, %v6846
        %v6848 = vcombine.low %v6779, %v6793
        %v6849 = vcombine.low %v6807, %v6821
        %v6851 = vunpack.c.l.s4 1983009808
        %v6852 = vunpack.c.0.s8 %v6851
        %v6853 = vlaneseq
        %v6854 = vshrl.u32 %v6853, 7
        %v6855 = vsub.s32 %v6852, %v6854
        %v6856 = vrot.slane %v6848, %v6855
        %v6858 = vunpack.c.l.s4 1983009808
        %v6859 = vunpack.c.0.s8 %v6858
        %v6860 = vlaneseq
        %v6861 = vshrl.u32 %v6860, 7
        %v6862 = vsub.s32 %v6859, %v6861
        %v6863 = vrot.slane %v6849, %v6862
        %v6864 = vcombine.low %v6856, %v6863
        %v6873 = vunpack.c.l.b16 %v6823
        %v6874 = vunpack.c.l.b16 %v6824
        %v6875 = vunpack.c.l.b16 %v6825
        %v6876 = vunpack.c.l.b16 %v6826
        %v6877 = vunpack.c.l.b16 %v6827
        %v6878 = vunpack.c.l.b16 %v6828
        %v6879 = vunpack.c.l.b16 %v6829
        %v6880 = vunpack.c.l.b16 %v6830
        %v6881 = vpack.c.b16 %v6874, %v6873
        %v6882 = vpack.c.b16 %v6876, %v6875
        %v6883 = vpack.c.b16 %v6878, %v6877
        %v6884 = vpack.c.b16 %v6880, %v6879
        %v6890 = vsel %vm3529, %v6847, 0
        %v6893 = vsel %vm3529, %v6864, 0
        %6895 = vmatprep.subr.bf16.mxu0 0
        %6896 = vmatpush1.bf16.msra.mxu0 %v6881
        %6897 = vmatprep.subr.bf16.mxu0 0
        %6898 = vmatpush1.bf16.msra.mxu0 %v6882
        %6899 = vmatprep.subr.bf16.mxu0 0
        %6900 = vmatpush1.bf16.msra.mxu0 %v6883
        %6901 = vmatprep.subr.bf16.mxu0 0
        %6902 = vmatpush1.bf16.msra.mxu0 %v6884
        %6903 = vmatprep.subr.bf16.mxu0 0
        %6904 = vmatpush1.bf16.msra.mxu0 0
        %6905 = vmatprep.subr.bf16.mxu0 0
        %6906 = vmatpush1.bf16.msra.mxu0 0
        %6907 = vmatprep.subr.bf16.mxu0 0
        %6908 = vmatpush1.bf16.msra.mxu0 0
        %6909 = vmatprep.subr.bf16.mxu0 0
        %6910 = vmatpush1.bf16.msra.mxu0 0
        %6911 = vmatprep.subr.bf16.mxu0 0
        %6912 = vmatpush1.bf16.msra.mxu0 0
        %6913 = vmatprep.subr.bf16.mxu0 0
        %6914 = vmatpush1.bf16.msra.mxu0 0
        %6915 = vmatprep.subr.bf16.mxu0 0
        %6916 = vmatpush1.bf16.msra.mxu0 0
        %6917 = vmatprep.subr.bf16.mxu0 0
        %6918 = vmatpush1.bf16.msra.mxu0 0
        %6919 = vmatprep.subr.bf16.mxu0 0
        %6920 = vmatpush1.bf16.msra.mxu0 0
        %6921 = vmatprep.subr.bf16.mxu0 0
        %6922 = vmatpush1.bf16.msra.mxu0 0
        %6923 = vmatprep.subr.bf16.mxu0 0
        %6924 = vmatpush1.bf16.msra.mxu0 0
        %6925 = vmatprep.subr.bf16.mxu0 0
        %6926 = vmatpush1.bf16.msra.mxu0 0
        %6927 = vmatprep.mubr.bf16.mxu0 0
        %6928 = vmatmul.mubr.bf16.gmra.mrb[0].mxu0 %v6890
        %v6929 = vpop.f32.mrb[0].mxu0
        %v6930 = vadd.f32 0.0, %v6929
        %v6931 = vpop.f32.mrb[0].mxu0
        %v6932 = vpop.f32.mrb[0].mxu0
        %v6933 = vadd.f32 0.0, %v6932
        %v6934 = vpop.f32.mrb[0].mxu0
        %6935 = vmatprep.mubr.bf16.mxu0 0
        %6936 = vmatmul.mubr.bf16.gmra.mrb[0].mxu0 %v6893
        %v6937 = vpop.f32.mrb[0].mxu0
        %v6938 = vadd.f32 0.0, %v6937
        %v6939 = vpop.f32.mrb[0].mxu0
        %v6940 = vpop.f32.mrb[0].mxu0
        %v6941 = vadd.f32 0.0, %v6940
        %v6942 = vpop.f32.mrb[0].mxu0
        %6943 = vdwg.mxu0
        %v6952 = vcombine.low %v6607, %v6608
        %v6953 = vcombine.low %v6609, %v6610
        %v6955 = vunpack.c.l.s4 1983009808
        %v6956 = vunpack.c.0.s8 %v6955
        %v6957 = vlaneseq
        %v6958 = vshrl.u32 %v6957, 7
        %v6959 = vsub.s32 %v6956, %v6958
        %v6960 = vrot.slane %v6952, %v6959
        %v6962 = vunpack.c.l.s4 1983009808
        %v6963 = vunpack.c.0.s8 %v6962
        %v6964 = vlaneseq
        %v6965 = vshrl.u32 %v6964, 7
        %v6966 = vsub.s32 %v6963, %v6965
        %v6967 = vrot.slane %v6953, %v6966
        %v6968 = vcombine.low %v6960, %v6967
        %v6969 = vcombine.low %v6611, %v6612
        %v6970 = vcombine.low %v6613, %v6614
        %v6972 = vunpack.c.l.s4 1983009808
        %v6973 = vunpack.c.0.s8 %v6972
        %v6974 = vlaneseq
        %v6975 = vshrl.u32 %v6974, 7
        %v6976 = vsub.s32 %v6973, %v6975
        %v6977 = vrot.slane %v6969, %v6976
        %v6979 = vunpack.c.l.s4 1983009808
        %v6980 = vunpack.c.0.s8 %v6979
        %v6981 = vlaneseq
        %v6982 = vshrl.u32 %v6981, 7
        %v6983 = vsub.s32 %v6980, %v6982
        %v6984 = vrot.slane %v6970, %v6983
        %v6985 = vcombine.low %v6977, %v6984
        %v6994 = vunpack.c.l.b16 %v6615
        %v6995 = vunpack.c.l.b16 %v6616
        %v6996 = vunpack.c.l.b16 %v6617
        %v6997 = vunpack.c.l.b16 %v6618
        %v6998 = vunpack.c.l.b16 %v6619
        %v6999 = vunpack.c.l.b16 %v6620
        %v7000 = vunpack.c.l.b16 %v6621
        %v7001 = vunpack.c.l.b16 %v6622
        %v7002 = vpack.c.b16 %v6995, %v6994
        %v7003 = vpack.c.b16 %v6997, %v6996
        %v7004 = vpack.c.b16 %v6999, %v6998
        %v7005 = vpack.c.b16 %v7001, %v7000
        %v7011 = vsel %vm3529, %v6968, 0
        %v7014 = vsel %vm3529, %v6985, 0
        %7016 = vmatprep.subr.bf16.mxu0 0
        %7017 = vmatpush1.bf16.msra.mxu0 %v7002
        %7018 = vmatprep.subr.bf16.mxu0 0
        %7019 = vmatpush1.bf16.msra.mxu0 %v7003
        %7020 = vmatprep.subr.bf16.mxu0 0
        %7021 = vmatpush1.bf16.msra.mxu0 %v7004
        %7022 = vmatprep.subr.bf16.mxu0 0
        %7023 = vmatpush1.bf16.msra.mxu0 %v7005
        %7024 = vmatprep.subr.bf16.mxu0 0
        %7025 = vmatpush1.bf16.msra.mxu0 0
        %7026 = vmatprep.subr.bf16.mxu0 0
        %7027 = vmatpush1.bf16.msra.mxu0 0
        %7028 = vmatprep.subr.bf16.mxu0 0
        %7029 = vmatpush1.bf16.msra.mxu0 0
        %7030 = vmatprep.subr.bf16.mxu0 0
        %7031 = vmatpush1.bf16.msra.mxu0 0
        %7032 = vmatprep.subr.bf16.mxu0 0
        %7033 = vmatpush1.bf16.msra.mxu0 0
        %7034 = vmatprep.subr.bf16.mxu0 0
        %7035 = vmatpush1.bf16.msra.mxu0 0
        %7036 = vmatprep.subr.bf16.mxu0 0
        %7037 = vmatpush1.bf16.msra.mxu0 0
        %7038 = vmatprep.subr.bf16.mxu0 0
        %7039 = vmatpush1.bf16.msra.mxu0 0
        %7040 = vmatprep.subr.bf16.mxu0 0
        %7041 = vmatpush1.bf16.msra.mxu0 0
        %7042 = vmatprep.subr.bf16.mxu0 0
        %7043 = vmatpush1.bf16.msra.mxu0 0
        %7044 = vmatprep.subr.bf16.mxu0 0
        %7045 = vmatpush1.bf16.msra.mxu0 0
        %7046 = vmatprep.subr.bf16.mxu0 0
        %7047 = vmatpush1.bf16.msra.mxu0 0
        %7048 = vmatprep.mubr.bf16.mxu0 0
        %7049 = vmatmul.mubr.bf16.gmra.mrb[0].mxu0 %v7011
        %v7050 = vpop.f32.mrb[0].mxu0
        %v7051 = vadd.f32 %v6930, %v7050
        %v7052 = vpop.f32.mrb[0].mxu0
        %v7053 = vpop.f32.mrb[0].mxu0
        %v7054 = vadd.f32 %v6933, %v7053
        %v7055 = vpop.f32.mrb[0].mxu0
        %7056 = vmatprep.mubr.bf16.mxu0 0
        %7057 = vmatmul.mubr.bf16.gmra.mrb[0].mxu0 %v7014
        %v7058 = vpop.f32.mrb[0].mxu0
        %v7059 = vadd.f32 %v6938, %v7058
        %v7060 = vpop.f32.mrb[0].mxu0
        %v7061 = vpop.f32.mrb[0].mxu0
        %v7062 = vadd.f32 %v6941, %v7061
        %v7063 = vpop.f32.mrb[0].mxu0
        %7064 = vdwg.mxu0
        %v7065 = vld [vmem:[#allocation3] sm:$0x6]
        %v7066 = vld [vmem:[#allocation3 + $0x4] sm:$0x6]
        %v7067 = vld [vmem:[#allocation3 + $0x8] sm:$0x6]
        %v7068 = vld [vmem:[#allocation3 + $0xc] sm:$0x6]
        %v7069 = vld [vmem:[#allocation3 + $0x10] sm:$0x6]
        %v7070 = vld [vmem:[#allocation3 + $0x14] sm:$0x6]
        %v7071 = vld [vmem:[#allocation3 + $0x18] sm:$0x6]
        %v7072 = vld [vmem:[#allocation3 + $0x1c] sm:$0x6]
        %v7082 = vunpack.c.l.s4 1983009808
        %v7083 = vunpack.c.0.s8 %v7082
        %v7084 = vlaneseq
        %v7085 = vshrl.u32 %v7084, 7
        %v7086 = vsub.s32 %v7083, %v7085
        %v7087 = vrot.slane %v7065, %v7086
        %v7088 = vcombine.high %v7087, %v7087
        %v7090 = vunpack.c.l.s4 1983009808
        %v7091 = vunpack.c.0.s8 %v7090
        %v7092 = vlaneseq
        %v7093 = vshrl.u32 %v7092, 7
        %v7094 = vsub.s32 %v7091, %v7093
        %v7095 = vrot.slane %v7066, %v7094
        %v7096 = vcombine.high %v7095, %v7095
        %v7098 = vunpack.c.l.s4 1983009808
        %v7099 = vunpack.c.0.s8 %v7098
        %v7100 = vlaneseq
        %v7101 = vshrl.u32 %v7100, 7
        %v7102 = vsub.s32 %v7099, %v7101
        %v7103 = vrot.slane %v7067, %v7102
        %v7104 = vcombine.high %v7103, %v7103
        %v7106 = vunpack.c.l.s4 1983009808
        %v7107 = vunpack.c.0.s8 %v7106
        %v7108 = vlaneseq
        %v7109 = vshrl.u32 %v7108, 7
        %v7110 = vsub.s32 %v7107, %v7109
        %v7111 = vrot.slane %v7068, %v7110
        %v7112 = vcombine.high %v7111, %v7111
        %v7114 = vunpack.c.l.s4 1983009808
        %v7115 = vunpack.c.0.s8 %v7114
        %v7116 = vlaneseq
        %v7117 = vshrl.u32 %v7116, 7
        %v7118 = vsub.s32 %v7115, %v7117
        %v7119 = vrot.slane %v7069, %v7118
        %v7120 = vcombine.high %v7119, %v7119
        %v7122 = vunpack.c.l.s4 1983009808
        %v7123 = vunpack.c.0.s8 %v7122
        %v7124 = vlaneseq
        %v7125 = vshrl.u32 %v7124, 7
        %v7126 = vsub.s32 %v7123, %v7125
        %v7127 = vrot.slane %v7070, %v7126
        %v7128 = vcombine.high %v7127, %v7127
        %v7130 = vunpack.c.l.s4 1983009808
        %v7131 = vunpack.c.0.s8 %v7130
        %v7132 = vlaneseq
        %v7133 = vshrl.u32 %v7132, 7
        %v7134 = vsub.s32 %v7131, %v7133
        %v7135 = vrot.slane %v7071, %v7134
        %v7136 = vcombine.high %v7135, %v7135
        %v7138 = vunpack.c.l.s4 1983009808
        %v7139 = vunpack.c.0.s8 %v7138
        %v7140 = vlaneseq
        %v7141 = vshrl.u32 %v7140, 7
        %v7142 = vsub.s32 %v7139, %v7141
        %v7143 = vrot.slane %v7072, %v7142
        %v7144 = vcombine.high %v7143, %v7143
        %vm7145 = vcmask 1040384
        %vm7146 = vcmask 1042434
        %vm7147 = vmor %vm7145, %vm7146
        %vm7148 = vcmask 1044484
        %vm7149 = vmor %vm7147, %vm7148
        %vm7150 = vcmask 1046534
        %vm7151 = vmor %vm7149, %vm7150
        %v7152 = vrot.slane %v7087, 7
        %v7153 = vrot.slane %v7152, 2
        %v7154 = vrot.slane %v7088, 7
        %v7155 = vsel %vm7151, %v7153, %v7154
        %v7156 = vrot.slane %v7095, 7
        %v7157 = vrot.slane %v7156, 2
        %v7158 = vrot.slane %v7096, 7
        %v7159 = vsel %vm7151, %v7157, %v7158
        %v7160 = vrot.slane %v7103, 7
        %v7161 = vrot.slane %v7160, 2
        %v7162 = vrot.slane %v7104, 7
        %v7163 = vsel %vm7151, %v7161, %v7162
        %v7164 = vrot.slane %v7111, 7
        %v7165 = vrot.slane %v7164, 2
        %v7166 = vrot.slane %v7112, 7
        %v7167 = vsel %vm7151, %v7165, %v7166
        %v7168 = vrot.slane %v7119, 7
        %v7169 = vrot.slane %v7168, 2
        %v7170 = vrot.slane %v7120, 7
        %v7171 = vsel %vm7151, %v7169, %v7170
        %v7172 = vrot.slane %v7127, 7
        %v7173 = vrot.slane %v7172, 2
        %v7174 = vrot.slane %v7128, 7
        %v7175 = vsel %vm7151, %v7173, %v7174
        %v7176 = vrot.slane %v7135, 7
        %v7177 = vrot.slane %v7176, 2
        %v7178 = vrot.slane %v7136, 7
        %v7179 = vsel %vm7151, %v7177, %v7178
        %v7180 = vrot.slane %v7143, 7
        %v7181 = vrot.slane %v7180, 2
        %v7182 = vrot.slane %v7144, 7
        %v7183 = vsel %vm7151, %v7181, %v7182
        %s7184 = scalar_lea.vmem %s3, 64
        %v7185 = vld [vmem:[%s7184] sm:$0xf]
        %v7186 = vld [vmem:[%s7184 + $0x4] sm:$0xf]
        %v7187 = vld [vmem:[%s7184 + $0x8] sm:$0xf]
        %v7188 = vld [vmem:[%s7184 + $0xc] sm:$0xf]
        %v7189 = vld [vmem:[%s7184 + $0x10] sm:$0xf]
        %v7190 = vld [vmem:[%s7184 + $0x14] sm:$0xf]
        %v7191 = vld [vmem:[%s7184 + $0x18] sm:$0xf]
        %v7192 = vld [vmem:[%s7184 + $0x1c] sm:$0xf]
        %v7193 = vcombine.low %v7155, %v7159
        %v7194 = vcombine.low %v7163, %v7167
        %v7196 = vunpack.c.l.s4 1983009808
        %v7197 = vunpack.c.0.s8 %v7196
        %v7198 = vlaneseq
        %v7199 = vshrl.u32 %v7198, 7
        %v7200 = vsub.s32 %v7197, %v7199
        %v7201 = vrot.slane %v7193, %v7200
        %v7203 = vunpack.c.l.s4 1983009808
        %v7204 = vunpack.c.0.s8 %v7203
        %v7205 = vlaneseq
        %v7206 = vshrl.u32 %v7205, 7
        %v7207 = vsub.s32 %v7204, %v7206
        %v7208 = vrot.slane %v7194, %v7207
        %v7209 = vcombine.low %v7201, %v7208
        %v7210 = vcombine.low %v7171, %v7175
        %v7211 = vcombine.low %v7179, %v7183
        %v7213 = vunpack.c.l.s4 1983009808
        %v7214 = vunpack.c.0.s8 %v7213
        %v7215 = vlaneseq
        %v7216 = vshrl.u32 %v7215, 7
        %v7217 = vsub.s32 %v7214, %v7216
        %v7218 = vrot.slane %v7210, %v7217
        %v7220 = vunpack.c.l.s4 1983009808
        %v7221 = vunpack.c.0.s8 %v7220
        %v7222 = vlaneseq
        %v7223 = vshrl.u32 %v7222, 7
        %v7224 = vsub.s32 %v7221, %v7223
        %v7225 = vrot.slane %v7211, %v7224
        %v7226 = vcombine.low %v7218, %v7225
        %v7235 = vunpack.c.l.b16 %v7185
        %v7236 = vunpack.c.l.b16 %v7186
        %v7237 = vunpack.c.l.b16 %v7187
        %v7238 = vunpack.c.l.b16 %v7188
        %v7239 = vunpack.c.l.b16 %v7189
        %v7240 = vunpack.c.l.b16 %v7190
        %v7241 = vunpack.c.l.b16 %v7191
        %v7242 = vunpack.c.l.b16 %v7192
        %v7243 = vpack.c.b16 %v7236, %v7235
        %v7244 = vpack.c.b16 %v7238, %v7237
        %v7245 = vpack.c.b16 %v7240, %v7239
        %v7246 = vpack.c.b16 %v7242, %v7241
        %v7252 = vsel %vm3529, %v7209, 0
        %v7255 = vsel %vm3529, %v7226, 0
        %7257 = vmatprep.subr.bf16.mxu0 0
        %7258 = vmatpush1.bf16.msra.mxu0 %v7243
        %7259 = vmatprep.subr.bf16.mxu0 0
        %7260 = vmatpush1.bf16.msra.mxu0 %v7244
        %7261 = vmatprep.subr.bf16.mxu0 0
        %7262 = vmatpush1.bf16.msra.mxu0 %v7245
        %7263 = vmatprep.subr.bf16.mxu0 0
        %7264 = vmatpush1.bf16.msra.mxu0 %v7246
        %7265 = vmatprep.subr.bf16.mxu0 0
        %7266 = vmatpush1.bf16.msra.mxu0 0
        %7267 = vmatprep.subr.bf16.mxu0 0
        %7268 = vmatpush1.bf16.msra.mxu0 0
        %7269 = vmatprep.subr.bf16.mxu0 0
        %7270 = vmatpush1.bf16.msra.mxu0 0
        %7271 = vmatprep.subr.bf16.mxu0 0
        %7272 = vmatpush1.bf16.msra.mxu0 0
        %7273 = vmatprep.subr.bf16.mxu0 0
        %7274 = vmatpush1.bf16.msra.mxu0 0
        %7275 = vmatprep.subr.bf16.mxu0 0
        %7276 = vmatpush1.bf16.msra.mxu0 0
        %7277 = vmatprep.subr.bf16.mxu0 0
        %7278 = vmatpush1.bf16.msra.mxu0 0
        %7279 = vmatprep.subr.bf16.mxu0 0
        %7280 = vmatpush1.bf16.msra.mxu0 0
        %7281 = vmatprep.subr.bf16.mxu0 0
        %7282 = vmatpush1.bf16.msra.mxu0 0
        %7283 = vmatprep.subr.bf16.mxu0 0
        %7284 = vmatpush1.bf16.msra.mxu0 0
        %7285 = vmatprep.subr.bf16.mxu0 0
        %7286 = vmatpush1.bf16.msra.mxu0 0
        %7287 = vmatprep.subr.bf16.mxu0 0
        %7288 = vmatpush1.bf16.msra.mxu0 0
        %7289 = vmatprep.mubr.bf16.mxu0 0
        %7290 = vmatmul.mubr.bf16.gmra.mrb[0].mxu0 %v7252
        %v7291 = vpop.f32.mrb[0].mxu0
        %v7292 = vadd.f32 0.0, %v7291
        %v7293 = vpop.f32.mrb[0].mxu0
        %v7294 = vpop.f32.mrb[0].mxu0
        %v7295 = vadd.f32 0.0, %v7294
        %v7296 = vpop.f32.mrb[0].mxu0
        %7297 = vmatprep.mubr.bf16.mxu0 0
        %7298 = vmatmul.mubr.bf16.gmra.mrb[0].mxu0 %v7255
        %v7299 = vpop.f32.mrb[0].mxu0
        %v7300 = vadd.f32 0.0, %v7299
        %v7301 = vpop.f32.mrb[0].mxu0
        %v7302 = vpop.f32.mrb[0].mxu0
        %v7303 = vadd.f32 0.0, %v7302
        %v7304 = vpop.f32.mrb[0].mxu0
        %7305 = vdwg.mxu0
        %v7306 = vadd.f32 %v7051, %v7292
        %v7307 = vadd.f32 %v7054, %v7295
        %v7308 = vadd.f32 %v7059, %v7300
        %v7309 = vadd.f32 %v7062, %v7303
        %v7310 = vld [vmem:[%s6512] sm:$0x3]
        %v7311 = vld [vmem:[%s6512 + $0x4] sm:$0x3]
        %v7312 = vld [vmem:[%s6512 + $0x8] sm:$0x3]
        %v7313 = vld [vmem:[%s6512 + $0xc] sm:$0x3]
        %v7314 = vld [vmem:[%s6512 + $0x10] sm:$0x3]
        %v7315 = vld [vmem:[%s6512 + $0x14] sm:$0x3]
        %v7316 = vld [vmem:[%s6512 + $0x18] sm:$0x3]
        %v7317 = vld [vmem:[%s6512 + $0x1c] sm:$0x3]
        %s7318 = scalar_lea.vmem %s3, 96
        %v7319 = vld [vmem:[%s7318] sm:$0xf]
        %v7320 = vld [vmem:[%s7318 + $0x4] sm:$0xf]
        %v7321 = vld [vmem:[%s7318 + $0x8] sm:$0xf]
        %v7322 = vld [vmem:[%s7318 + $0xc] sm:$0xf]
        %v7323 = vld [vmem:[%s7318 + $0x10] sm:$0xf]
        %v7324 = vld [vmem:[%s7318 + $0x14] sm:$0xf]
        %v7325 = vld [vmem:[%s7318 + $0x18] sm:$0xf]
        %v7326 = vld [vmem:[%s7318 + $0x1c] sm:$0xf]
        %v7335 = vcombine.low %v7310, %v7311
        %v7336 = vcombine.low %v7312, %v7313
        %v7338 = vunpack.c.l.s4 1983009808
        %v7339 = vunpack.c.0.s8 %v7338
        %v7340 = vlaneseq
        %v7341 = vshrl.u32 %v7340, 7
        %v7342 = vsub.s32 %v7339, %v7341
        %v7343 = vrot.slane %v7335, %v7342
        %v7345 = vunpack.c.l.s4 1983009808
        %v7346 = vunpack.c.0.s8 %v7345
        %v7347 = vlaneseq
        %v7348 = vshrl.u32 %v7347, 7
        %v7349 = vsub.s32 %v7346, %v7348
        %v7350 = vrot.slane %v7336, %v7349
        %v7351 = vcombine.low %v7343, %v7350
        %v7352 = vcombine.low %v7314, %v7315
        %v7353 = vcombine.low %v7316, %v7317
        %v7355 = vunpack.c.l.s4 1983009808
        %v7356 = vunpack.c.0.s8 %v7355
        %v7357 = vlaneseq
        %v7358 = vshrl.u32 %v7357, 7
        %v7359 = vsub.s32 %v7356, %v7358
        %v7360 = vrot.slane %v7352, %v7359
        %v7362 = vunpack.c.l.s4 1983009808
        %v7363 = vunpack.c.0.s8 %v7362
        %v7364 = vlaneseq
        %v7365 = vshrl.u32 %v7364, 7
        %v7366 = vsub.s32 %v7363, %v7365
        %v7367 = vrot.slane %v7353, %v7366
        %v7368 = vcombine.low %v7360, %v7367
        %v7377 = vunpack.c.l.b16 %v7319
        %v7378 = vunpack.c.l.b16 %v7320
        %v7379 = vunpack.c.l.b16 %v7321
        %v7380 = vunpack.c.l.b16 %v7322
        %v7381 = vunpack.c.l.b16 %v7323
        %v7382 = vunpack.c.l.b16 %v7324
        %v7383 = vunpack.c.l.b16 %v7325
        %v7384 = vunpack.c.l.b16 %v7326
        %v7385 = vpack.c.b16 %v7378, %v7377
        %v7386 = vpack.c.b16 %v7380, %v7379
        %v7387 = vpack.c.b16 %v7382, %v7381
        %v7388 = vpack.c.b16 %v7384, %v7383
        %v7394 = vsel %vm3529, %v7351, 0
        %v7397 = vsel %vm3529, %v7368, 0
        %7399 = vmatprep.subr.bf16.mxu0 0
        %7400 = vmatpush1.bf16.msra.mxu0 %v7385
        %7401 = vmatprep.subr.bf16.mxu0 0
        %7402 = vmatpush1.bf16.msra.mxu0 %v7386
        %7403 = vmatprep.subr.bf16.mxu0 0
        %7404 = vmatpush1.bf16.msra.mxu0 %v7387
        %7405 = vmatprep.subr.bf16.mxu0 0
        %7406 = vmatpush1.bf16.msra.mxu0 %v7388
        %7407 = vmatprep.subr.bf16.mxu0 0
        %7408 = vmatpush1.bf16.msra.mxu0 0
        %7409 = vmatprep.subr.bf16.mxu0 0
        %7410 = vmatpush1.bf16.msra.mxu0 0
        %7411 = vmatprep.subr.bf16.mxu0 0
        %7412 = vmatpush1.bf16.msra.mxu0 0
        %7413 = vmatprep.subr.bf16.mxu0 0
        %7414 = vmatpush1.bf16.msra.mxu0 0
        %7415 = vmatprep.subr.bf16.mxu0 0
        %7416 = vmatpush1.bf16.msra.mxu0 0
        %7417 = vmatprep.subr.bf16.mxu0 0
        %7418 = vmatpush1.bf16.msra.mxu0 0
        %7419 = vmatprep.subr.bf16.mxu0 0
        %7420 = vmatpush1.bf16.msra.mxu0 0
        %7421 = vmatprep.subr.bf16.mxu0 0
        %7422 = vmatpush1.bf16.msra.mxu0 0
        %7423 = vmatprep.subr.bf16.mxu0 0
        %7424 = vmatpush1.bf16.msra.mxu0 0
        %7425 = vmatprep.subr.bf16.mxu0 0
        %7426 = vmatpush1.bf16.msra.mxu0 0
        %7427 = vmatprep.subr.bf16.mxu0 0
        %7428 = vmatpush1.bf16.msra.mxu0 0
        %7429 = vmatprep.subr.bf16.mxu0 0
        %7430 = vmatpush1.bf16.msra.mxu0 0
        %7431 = vmatprep.mubr.bf16.mxu0 0
        %7432 = vmatmul.mubr.bf16.gmra.mrb[0].mxu0 %v7394
        %v7433 = vpop.f32.mrb[0].mxu0
        %v7434 = vadd.f32 0.0, %v7433
        %v7435 = vpop.f32.mrb[0].mxu0
        %v7436 = vpop.f32.mrb[0].mxu0
        %v7437 = vadd.f32 0.0, %v7436
        %v7438 = vpop.f32.mrb[0].mxu0
        %7439 = vmatprep.mubr.bf16.mxu0 0
        %7440 = vmatmul.mubr.bf16.gmra.mrb[0].mxu0 %v7397
        %v7441 = vpop.f32.mrb[0].mxu0
        %v7442 = vadd.f32 0.0, %v7441
        %v7443 = vpop.f32.mrb[0].mxu0
        %v7444 = vpop.f32.mrb[0].mxu0
        %v7445 = vadd.f32 0.0, %v7444
        %v7446 = vpop.f32.mrb[0].mxu0
        %7447 = vdwg.mxu0
        %v7448 = vadd.f32 %v7306, %v7434
        %v7449 = vadd.f32 %v7307, %v7437
        %v7450 = vadd.f32 %v7308, %v7442
        %v7451 = vadd.f32 %v7309, %v7445
        %v7452 = vld [vmem:[%s6512] sm:$0x7]
        %v7453 = vld [vmem:[%s6512 + $0x4] sm:$0x7]
        %v7454 = vld [vmem:[%s6512 + $0x8] sm:$0x7]
        %v7455 = vld [vmem:[%s6512 + $0xc] sm:$0x7]
        %v7456 = vld [vmem:[%s6512 + $0x10] sm:$0x7]
        %v7457 = vld [vmem:[%s6512 + $0x14] sm:$0x7]
        %v7458 = vld [vmem:[%s6512 + $0x18] sm:$0x7]
        %v7459 = vld [vmem:[%s6512 + $0x1c] sm:$0x7]
        %v7469 = vunpack.c.l.s4 1983009808
        %v7470 = vunpack.c.0.s8 %v7469
        %v7471 = vlaneseq
        %v7472 = vshrl.u32 %v7471, 7
        %v7473 = vsub.s32 %v7470, %v7472
        %v7474 = vrot.slane %v7452, %v7473
        %v7475 = vcombine.high %v7474, %v7474
        %v7477 = vunpack.c.l.s4 1983009808
        %v7478 = vunpack.c.0.s8 %v7477
        %v7479 = vlaneseq
        %v7480 = vshrl.u32 %v7479, 7
        %v7481 = vsub.s32 %v7478, %v7480
        %v7482 = vrot.slane %v7453, %v7481
        %v7483 = vcombine.high %v7482, %v7482
        %v7485 = vunpack.c.l.s4 1983009808
        %v7486 = vunpack.c.0.s8 %v7485
        %v7487 = vlaneseq
        %v7488 = vshrl.u32 %v7487, 7
        %v7489 = vsub.s32 %v7486, %v7488
        %v7490 = vrot.slane %v7454, %v7489
        %v7491 = vcombine.high %v7490, %v7490
        %v7493 = vunpack.c.l.s4 1983009808
        %v7494 = vunpack.c.0.s8 %v7493
        %v7495 = vlaneseq
        %v7496 = vshrl.u32 %v7495, 7
        %v7497 = vsub.s32 %v7494, %v7496
        %v7498 = vrot.slane %v7455, %v7497
        %v7499 = vcombine.high %v7498, %v7498
        %v7501 = vunpack.c.l.s4 1983009808
        %v7502 = vunpack.c.0.s8 %v7501
        %v7503 = vlaneseq
        %v7504 = vshrl.u32 %v7503, 7
        %v7505 = vsub.s32 %v7502, %v7504
        %v7506 = vrot.slane %v7456, %v7505
        %v7507 = vcombine.high %v7506, %v7506
        %v7509 = vunpack.c.l.s4 1983009808
        %v7510 = vunpack.c.0.s8 %v7509
        %v7511 = vlaneseq
        %v7512 = vshrl.u32 %v7511, 7
        %v7513 = vsub.s32 %v7510, %v7512
        %v7514 = vrot.slane %v7457, %v7513
        %v7515 = vcombine.high %v7514, %v7514
        %v7517 = vunpack.c.l.s4 1983009808
        %v7518 = vunpack.c.0.s8 %v7517
        %v7519 = vlaneseq
        %v7520 = vshrl.u32 %v7519, 7
        %v7521 = vsub.s32 %v7518, %v7520
        %v7522 = vrot.slane %v7458, %v7521
        %v7523 = vcombine.high %v7522, %v7522
        %v7525 = vunpack.c.l.s4 1983009808
        %v7526 = vunpack.c.0.s8 %v7525
        %v7527 = vlaneseq
        %v7528 = vshrl.u32 %v7527, 7
        %v7529 = vsub.s32 %v7526, %v7528
        %v7530 = vrot.slane %v7459, %v7529
        %v7531 = vcombine.high %v7530, %v7530
        %v7533 = vshrl.u32 %v7474, 16
        %v7535 = vrot.slane %v7533, 6
        %v7536 = vshll.u32 %v7474, 16
        %v7538 = vrot.slane %v7536, 7
        %v7539 = vor.u32 %v7535, %v7538
        %v7540 = vrot.slane %v7539, 2
        %v7542 = vshll.u32 %v7475, 16
        %v7544 = vrot.slane %v7542, 7
        %v7545 = vsel %vm6709, %v7540, %v7544
        %v7547 = vshrl.u32 %v7482, 16
        %v7549 = vrot.slane %v7547, 6
        %v7550 = vshll.u32 %v7482, 16
        %v7552 = vrot.slane %v7550, 7
        %v7553 = vor.u32 %v7549, %v7552
        %v7554 = vrot.slane %v7553, 2
        %v7556 = vshll.u32 %v7483, 16
        %v7558 = vrot.slane %v7556, 7
        %v7559 = vsel %vm6709, %v7554, %v7558
        %v7561 = vshrl.u32 %v7490, 16
        %v7563 = vrot.slane %v7561, 6
        %v7564 = vshll.u32 %v7490, 16
        %v7566 = vrot.slane %v7564, 7
        %v7567 = vor.u32 %v7563, %v7566
        %v7568 = vrot.slane %v7567, 2
        %v7570 = vshll.u32 %v7491, 16
        %v7572 = vrot.slane %v7570, 7
        %v7573 = vsel %vm6709, %v7568, %v7572
        %v7575 = vshrl.u32 %v7498, 16
        %v7577 = vrot.slane %v7575, 6
        %v7578 = vshll.u32 %v7498, 16
        %v7580 = vrot.slane %v7578, 7
        %v7581 = vor.u32 %v7577, %v7580
        %v7582 = vrot.slane %v7581, 2
        %v7584 = vshll.u32 %v7499, 16
        %v7586 = vrot.slane %v7584, 7
        %v7587 = vsel %vm6709, %v7582, %v7586
        %v7589 = vshrl.u32 %v7506, 16
        %v7591 = vrot.slane %v7589, 6
        %v7592 = vshll.u32 %v7506, 16
        %v7594 = vrot.slane %v7592, 7
        %v7595 = vor.u32 %v7591, %v7594
        %v7596 = vrot.slane %v7595, 2
        %v7598 = vshll.u32 %v7507, 16
        %v7600 = vrot.slane %v7598, 7
        %v7601 = vsel %vm6709, %v7596, %v7600
        %v7603 = vshrl.u32 %v7514, 16
        %v7605 = vrot.slane %v7603, 6
        %v7606 = vshll.u32 %v7514, 16
        %v7608 = vrot.slane %v7606, 7
        %v7609 = vor.u32 %v7605, %v7608
        %v7610 = vrot.slane %v7609, 2
        %v7612 = vshll.u32 %v7515, 16
        %v7614 = vrot.slane %v7612, 7
        %v7615 = vsel %vm6709, %v7610, %v7614
        %v7617 = vshrl.u32 %v7522, 16
        %v7619 = vrot.slane %v7617, 6
        %v7620 = vshll.u32 %v7522, 16
        %v7622 = vrot.slane %v7620, 7
        %v7623 = vor.u32 %v7619, %v7622
        %v7624 = vrot.slane %v7623, 2
        %v7626 = vshll.u32 %v7523, 16
        %v7628 = vrot.slane %v7626, 7
        %v7629 = vsel %vm6709, %v7624, %v7628
        %v7631 = vshrl.u32 %v7530, 16
        %v7633 = vrot.slane %v7631, 6
        %v7634 = vshll.u32 %v7530, 16
        %v7636 = vrot.slane %v7634, 7
        %v7637 = vor.u32 %v7633, %v7636
        %v7638 = vrot.slane %v7637, 2
        %v7640 = vshll.u32 %v7531, 16
        %v7642 = vrot.slane %v7640, 7
        %v7643 = vsel %vm6709, %v7638, %v7642
        %s7644 = scalar_lea.vmem %s3, 128
        %v7645 = vld [vmem:[%s7644] sm:$0xf]
        %v7646 = vld [vmem:[%s7644 + $0x4] sm:$0xf]
        %v7647 = vld [vmem:[%s7644 + $0x8] sm:$0xf]
        %v7648 = vld [vmem:[%s7644 + $0xc] sm:$0xf]
        %v7649 = vld [vmem:[%s7644 + $0x10] sm:$0xf]
        %v7650 = vld [vmem:[%s7644 + $0x14] sm:$0xf]
        %v7651 = vld [vmem:[%s7644 + $0x18] sm:$0xf]
        %v7652 = vld [vmem:[%s7644 + $0x1c] sm:$0xf]
        %v7653 = vcombine.low %v7545, %v7559
        %v7654 = vcombine.low %v7573, %v7587
        %v7656 = vunpack.c.l.s4 1983009808
        %v7657 = vunpack.c.0.s8 %v7656
        %v7658 = vlaneseq
        %v7659 = vshrl.u32 %v7658, 7
        %v7660 = vsub.s32 %v7657, %v7659
        %v7661 = vrot.slane %v7653, %v7660
        %v7663 = vunpack.c.l.s4 1983009808
        %v7664 = vunpack.c.0.s8 %v7663
        %v7665 = vlaneseq
        %v7666 = vshrl.u32 %v7665, 7
        %v7667 = vsub.s32 %v7664, %v7666
        %v7668 = vrot.slane %v7654, %v7667
        %v7669 = vcombine.low %v7661, %v7668
        %v7670 = vcombine.low %v7601, %v7615
        %v7671 = vcombine.low %v7629, %v7643
        %v7673 = vunpack.c.l.s4 1983009808
        %v7674 = vunpack.c.0.s8 %v7673
        %v7675 = vlaneseq
        %v7676 = vshrl.u32 %v7675, 7
        %v7677 = vsub.s32 %v7674, %v7676
        %v7678 = vrot.slane %v7670, %v7677
        %v7680 = vunpack.c.l.s4 1983009808
        %v7681 = vunpack.c.0.s8 %v7680
        %v7682 = vlaneseq
        %v7683 = vshrl.u32 %v7682, 7
        %v7684 = vsub.s32 %v7681, %v7683
        %v7685 = vrot.slane %v7671, %v7684
        %v7686 = vcombine.low %v7678, %v7685
        %v7695 = vunpack.c.l.b16 %v7645
        %v7696 = vunpack.c.l.b16 %v7646
        %v7697 = vunpack.c.l.b16 %v7647
        %v7698 = vunpack.c.l.b16 %v7648
        %v7699 = vunpack.c.l.b16 %v7649
        %v7700 = vunpack.c.l.b16 %v7650
        %v7701 = vunpack.c.l.b16 %v7651
        %v7702 = vunpack.c.l.b16 %v7652
        %v7703 = vpack.c.b16 %v7696, %v7695
        %v7704 = vpack.c.b16 %v7698, %v7697
        %v7705 = vpack.c.b16 %v7700, %v7699
        %v7706 = vpack.c.b16 %v7702, %v7701
        %v7712 = vsel %vm3529, %v7669, 0
        %v7715 = vsel %vm3529, %v7686, 0
        %7717 = vmatprep.subr.bf16.mxu0 0
        %7718 = vmatpush1.bf16.msra.mxu0 %v7703
        %7719 = vmatprep.subr.bf16.mxu0 0
        %7720 = vmatpush1.bf16.msra.mxu0 %v7704
        %7721 = vmatprep.subr.bf16.mxu0 0
        %7722 = vmatpush1.bf16.msra.mxu0 %v7705
        %7723 = vmatprep.subr.bf16.mxu0 0
        %7724 = vmatpush1.bf16.msra.mxu0 %v7706
        %7725 = vmatprep.subr.bf16.mxu0 0
        %7726 = vmatpush1.bf16.msra.mxu0 0
        %7727 = vmatprep.subr.bf16.mxu0 0
        %7728 = vmatpush1.bf16.msra.mxu0 0
        %7729 = vmatprep.subr.bf16.mxu0 0
        %7730 = vmatpush1.bf16.msra.mxu0 0
        %7731 = vmatprep.subr.bf16.mxu0 0
        %7732 = vmatpush1.bf16.msra.mxu0 0
        %7733 = vmatprep.subr.bf16.mxu0 0
        %7734 = vmatpush1.bf16.msra.mxu0 0
        %7735 = vmatprep.subr.bf16.mxu0 0
        %7736 = vmatpush1.bf16.msra.mxu0 0
        %7737 = vmatprep.subr.bf16.mxu0 0
        %7738 = vmatpush1.bf16.msra.mxu0 0
        %7739 = vmatprep.subr.bf16.mxu0 0
        %7740 = vmatpush1.bf16.msra.mxu0 0
        %7741 = vmatprep.subr.bf16.mxu0 0
        %7742 = vmatpush1.bf16.msra.mxu0 0
        %7743 = vmatprep.subr.bf16.mxu0 0
        %7744 = vmatpush1.bf16.msra.mxu0 0
        %7745 = vmatprep.subr.bf16.mxu0 0
        %7746 = vmatpush1.bf16.msra.mxu0 0
        %7747 = vmatprep.subr.bf16.mxu0 0
        %7748 = vmatpush1.bf16.msra.mxu0 0
        %7749 = vmatprep.mubr.bf16.mxu0 0
        %7750 = vmatmul.mubr.bf16.gmra.mrb[0].mxu0 %v7712
        %v7751 = vpop.f32.mrb[0].mxu0
        %v7752 = vadd.f32 0.0, %v7751
        %v7753 = vpop.f32.mrb[0].mxu0
        %v7754 = vpop.f32.mrb[0].mxu0
        %v7755 = vadd.f32 0.0, %v7754
        %v7756 = vpop.f32.mrb[0].mxu0
        %7757 = vmatprep.mubr.bf16.mxu0 0
        %7758 = vmatmul.mubr.bf16.gmra.mrb[0].mxu0 %v7715
        %v7759 = vpop.f32.mrb[0].mxu0
        %v7760 = vadd.f32 0.0, %v7759
        %v7761 = vpop.f32.mrb[0].mxu0
        %v7762 = vpop.f32.mrb[0].mxu0
        %v7763 = vadd.f32 0.0, %v7762
        %v7764 = vpop.f32.mrb[0].mxu0
        %7765 = vdwg.mxu0
        %v7766 = vadd.f32 %v7448, %v7752
        %v7767 = vadd.f32 %v7449, %v7755
        %v7768 = vadd.f32 %v7450, %v7760
        %v7769 = vadd.f32 %v7451, %v7763
        %v7770 = vld [vmem:[%s6512] sm:$0x6]
        %v7771 = vld [vmem:[%s6512 + $0x4] sm:$0x6]
        %v7772 = vld [vmem:[%s6512 + $0x8] sm:$0x6]
        %v7773 = vld [vmem:[%s6512 + $0xc] sm:$0x6]
        %v7774 = vld [vmem:[%s6512 + $0x10] sm:$0x6]
        %v7775 = vld [vmem:[%s6512 + $0x14] sm:$0x6]
        %v7776 = vld [vmem:[%s6512 + $0x18] sm:$0x6]
        %v7777 = vld [vmem:[%s6512 + $0x1c] sm:$0x6]
        %v7787 = vunpack.c.l.s4 1983009808
        %v7788 = vunpack.c.0.s8 %v7787
        %v7789 = vlaneseq
        %v7790 = vshrl.u32 %v7789, 7
        %v7791 = vsub.s32 %v7788, %v7790
        %v7792 = vrot.slane %v7770, %v7791
        %v7793 = vcombine.high %v7792, %v7792
        %v7795 = vunpack.c.l.s4 1983009808
        %v7796 = vunpack.c.0.s8 %v7795
        %v7797 = vlaneseq
        %v7798 = vshrl.u32 %v7797, 7
        %v7799 = vsub.s32 %v7796, %v7798
        %v7800 = vrot.slane %v7771, %v7799
        %v7801 = vcombine.high %v7800, %v7800
        %v7803 = vunpack.c.l.s4 1983009808
        %v7804 = vunpack.c.0.s8 %v7803
        %v7805 = vlaneseq
        %v7806 = vshrl.u32 %v7805, 7
        %v7807 = vsub.s32 %v7804, %v7806
        %v7808 = vrot.slane %v7772, %v7807
        %v7809 = vcombine.high %v7808, %v7808
        %v7811 = vunpack.c.l.s4 1983009808
        %v7812 = vunpack.c.0.s8 %v7811
        %v7813 = vlaneseq
        %v7814 = vshrl.u32 %v7813, 7
        %v7815 = vsub.s32 %v7812, %v7814
        %v7816 = vrot.slane %v7773, %v7815
        %v7817 = vcombine.high %v7816, %v7816
        %v7819 = vunpack.c.l.s4 1983009808
        %v7820 = vunpack.c.0.s8 %v7819
        %v7821 = vlaneseq
        %v7822 = vshrl.u32 %v7821, 7
        %v7823 = vsub.s32 %v7820, %v7822
        %v7824 = vrot.slane %v7774, %v7823
        %v7825 = vcombine.high %v7824, %v7824
        %v7827 = vunpack.c.l.s4 1983009808
        %v7828 = vunpack.c.0.s8 %v7827
        %v7829 = vlaneseq
        %v7830 = vshrl.u32 %v7829, 7
        %v7831 = vsub.s32 %v7828, %v7830
        %v7832 = vrot.slane %v7775, %v7831
        %v7833 = vcombine.high %v7832, %v7832
        %v7835 = vunpack.c.l.s4 1983009808
        %v7836 = vunpack.c.0.s8 %v7835
        %v7837 = vlaneseq
        %v7838 = vshrl.u32 %v7837, 7
        %v7839 = vsub.s32 %v7836, %v7838
        %v7840 = vrot.slane %v7776, %v7839
        %v7841 = vcombine.high %v7840, %v7840
        %v7843 = vunpack.c.l.s4 1983009808
        %v7844 = vunpack.c.0.s8 %v7843
        %v7845 = vlaneseq
        %v7846 = vshrl.u32 %v7845, 7
        %v7847 = vsub.s32 %v7844, %v7846
        %v7848 = vrot.slane %v7777, %v7847
        %v7849 = vcombine.high %v7848, %v7848
        %v7850 = vrot.slane %v7792, 7
        %v7851 = vrot.slane %v7850, 2
        %v7852 = vrot.slane %v7793, 7
        %v7853 = vsel %vm7151, %v7851, %v7852
        %v7854 = vrot.slane %v7800, 7
        %v7855 = vrot.slane %v7854, 2
        %v7856 = vrot.slane %v7801, 7
        %v7857 = vsel %vm7151, %v7855, %v7856
        %v7858 = vrot.slane %v7808, 7
        %v7859 = vrot.slane %v7858, 2
        %v7860 = vrot.slane %v7809, 7
        %v7861 = vsel %vm7151, %v7859, %v7860
        %v7862 = vrot.slane %v7816, 7
        %v7863 = vrot.slane %v7862, 2
        %v7864 = vrot.slane %v7817, 7
        %v7865 = vsel %vm7151, %v7863, %v7864
        %v7866 = vrot.slane %v7824, 7
        %v7867 = vrot.slane %v7866, 2
        %v7868 = vrot.slane %v7825, 7
        %v7869 = vsel %vm7151, %v7867, %v7868
        %v7870 = vrot.slane %v7832, 7
        %v7871 = vrot.slane %v7870, 2
        %v7872 = vrot.slane %v7833, 7
        %v7873 = vsel %vm7151, %v7871, %v7872
        %v7874 = vrot.slane %v7840, 7
        %v7875 = vrot.slane %v7874, 2
        %v7876 = vrot.slane %v7841, 7
        %v7877 = vsel %vm7151, %v7875, %v7876
        %v7878 = vrot.slane %v7848, 7
        %v7879 = vrot.slane %v7878, 2
        %v7880 = vrot.slane %v7849, 7
        %v7881 = vsel %vm7151, %v7879, %v7880
        %s7882 = scalar_lea.vmem %s3, 160
        %v7883 = vld [vmem:[%s7882] sm:$0xf]
        %v7884 = vld [vmem:[%s7882 + $0x4] sm:$0xf]
        %v7885 = vld [vmem:[%s7882 + $0x8] sm:$0xf]
        %v7886 = vld [vmem:[%s7882 + $0xc] sm:$0xf]
        %v7887 = vld [vmem:[%s7882 + $0x10] sm:$0xf]
        %v7888 = vld [vmem:[%s7882 + $0x14] sm:$0xf]
        %v7889 = vld [vmem:[%s7882 + $0x18] sm:$0xf]
        %v7890 = vld [vmem:[%s7882 + $0x1c] sm:$0xf]
        %v7891 = vcombine.low %v7853, %v7857
        %v7892 = vcombine.low %v7861, %v7865
        %v7894 = vunpack.c.l.s4 1983009808
        %v7895 = vunpack.c.0.s8 %v7894
        %v7896 = vlaneseq
        %v7897 = vshrl.u32 %v7896, 7
        %v7898 = vsub.s32 %v7895, %v7897
        %v7899 = vrot.slane %v7891, %v7898
        %v7901 = vunpack.c.l.s4 1983009808
        %v7902 = vunpack.c.0.s8 %v7901
        %v7903 = vlaneseq
        %v7904 = vshrl.u32 %v7903, 7
        %v7905 = vsub.s32 %v7902, %v7904
        %v7906 = vrot.slane %v7892, %v7905
        %v7907 = vcombine.low %v7899, %v7906
        %v7908 = vcombine.low %v7869, %v7873
        %v7909 = vcombine.low %v7877, %v7881
        %v7911 = vunpack.c.l.s4 1983009808
        %v7912 = vunpack.c.0.s8 %v7911
        %v7913 = vlaneseq
        %v7914 = vshrl.u32 %v7913, 7
        %v7915 = vsub.s32 %v7912, %v7914
        %v7916 = vrot.slane %v7908, %v7915
        %v7918 = vunpack.c.l.s4 1983009808
        %v7919 = vunpack.c.0.s8 %v7918
        %v7920 = vlaneseq
        %v7921 = vshrl.u32 %v7920, 7
        %v7922 = vsub.s32 %v7919, %v7921
        %v7923 = vrot.slane %v7909, %v7922
        %v7924 = vcombine.low %v7916, %v7923
        %v7933 = vunpack.c.l.b16 %v7883
        %v7934 = vunpack.c.l.b16 %v7884
        %v7935 = vunpack.c.l.b16 %v7885
        %v7936 = vunpack.c.l.b16 %v7886
        %v7937 = vunpack.c.l.b16 %v7887
        %v7938 = vunpack.c.l.b16 %v7888
        %v7939 = vunpack.c.l.b16 %v7889
        %v7940 = vunpack.c.l.b16 %v7890
        %v7941 = vpack.c.b16 %v7934, %v7933
        %v7942 = vpack.c.b16 %v7936, %v7935
        %v7943 = vpack.c.b16 %v7938, %v7937
        %v7944 = vpack.c.b16 %v7940, %v7939
        %v7950 = vsel %vm3529, %v7907, 0
        %v7953 = vsel %vm3529, %v7924, 0
        %7955 = vmatprep.subr.bf16.mxu0 0
        %7956 = vmatpush1.bf16.msra.mxu0 %v7941
        %7957 = vmatprep.subr.bf16.mxu0 0
        %7958 = vmatpush1.bf16.msra.mxu0 %v7942
        %7959 = vmatprep.subr.bf16.mxu0 0
        %7960 = vmatpush1.bf16.msra.mxu0 %v7943
        %7961 = vmatprep.subr.bf16.mxu0 0
        %7962 = vmatpush1.bf16.msra.mxu0 %v7944
        %7963 = vmatprep.subr.bf16.mxu0 0
        %7964 = vmatpush1.bf16.msra.mxu0 0
        %7965 = vmatprep.subr.bf16.mxu0 0
        %7966 = vmatpush1.bf16.msra.mxu0 0
        %7967 = vmatprep.subr.bf16.mxu0 0
        %7968 = vmatpush1.bf16.msra.mxu0 0
        %7969 = vmatprep.subr.bf16.mxu0 0
        %7970 = vmatpush1.bf16.msra.mxu0 0
        %7971 = vmatprep.subr.bf16.mxu0 0
        %7972 = vmatpush1.bf16.msra.mxu0 0
        %7973 = vmatprep.subr.bf16.mxu0 0
        %7974 = vmatpush1.bf16.msra.mxu0 0
        %7975 = vmatprep.subr.bf16.mxu0 0
        %7976 = vmatpush1.bf16.msra.mxu0 0
        %7977 = vmatprep.subr.bf16.mxu0 0
        %7978 = vmatpush1.bf16.msra.mxu0 0
        %7979 = vmatprep.subr.bf16.mxu0 0
        %7980 = vmatpush1.bf16.msra.mxu0 0
        %7981 = vmatprep.subr.bf16.mxu0 0
        %7982 = vmatpush1.bf16.msra.mxu0 0
        %7983 = vmatprep.subr.bf16.mxu0 0
        %7984 = vmatpush1.bf16.msra.mxu0 0
        %7985 = vmatprep.subr.bf16.mxu0 0
        %7986 = vmatpush1.bf16.msra.mxu0 0
        %7987 = vmatprep.mubr.bf16.mxu0 0
        %7988 = vmatmul.mubr.bf16.gmra.mrb[0].mxu0 %v7950
        %v7989 = vpop.f32.mrb[0].mxu0
        %v7990 = vadd.f32 0.0, %v7989
        %v7991 = vpop.f32.mrb[0].mxu0
        %v7992 = vpop.f32.mrb[0].mxu0
        %v7993 = vadd.f32 0.0, %v7992
        %v7994 = vpop.f32.mrb[0].mxu0
        %7995 = vmatprep.mubr.bf16.mxu0 0
        %7996 = vmatmul.mubr.bf16.gmra.mrb[0].mxu0 %v7953
        %v7997 = vpop.f32.mrb[0].mxu0
        %v7998 = vadd.f32 0.0, %v7997
        %v7999 = vpop.f32.mrb[0].mxu0
        %v8000 = vpop.f32.mrb[0].mxu0
        %v8001 = vadd.f32 0.0, %v8000
        %v8002 = vpop.f32.mrb[0].mxu0
        %8003 = vdwg.mxu0
        %v8004 = vadd.f32 %v7766, %v7990
        %v8005 = vadd.f32 %v7767, %v7993
        %v8006 = vadd.f32 %v7768, %v7998
        %v8007 = vadd.f32 %v7769, %v8001
        %s8008 = scalar_lea.vmem [#allocation3], 8
        %v8009 = vld [vmem:[%s8008] sm:$0x3]
        %v8010 = vld [vmem:[%s8008 + $0x4] sm:$0x3]
        %v8011 = vld [vmem:[%s8008 + $0x8] sm:$0x3]
        %v8012 = vld [vmem:[%s8008 + $0xc] sm:$0x3]
        %v8013 = vld [vmem:[%s8008 + $0x10] sm:$0x3]
        %v8014 = vld [vmem:[%s8008 + $0x14] sm:$0x3]
        %v8015 = vld [vmem:[%s8008 + $0x18] sm:$0x3]
        %v8016 = vld [vmem:[%s8008 + $0x1c] sm:$0x3]
        %s8017 = scalar_lea.vmem %s3, 192
        %v8018 = vld [vmem:[%s8017] sm:$0xf]
        %v8019 = vld [vmem:[%s8017 + $0x4] sm:$0xf]
        %v8020 = vld [vmem:[%s8017 + $0x8] sm:$0xf]
        %v8021 = vld [vmem:[%s8017 + $0xc] sm:$0xf]
        %v8022 = vld [vmem:[%s8017 + $0x10] sm:$0xf]
        %v8023 = vld [vmem:[%s8017 + $0x14] sm:$0xf]
        %v8024 = vld [vmem:[%s8017 + $0x18] sm:$0xf]
        %v8025 = vld [vmem:[%s8017 + $0x1c] sm:$0xf]
        %v8034 = vcombine.low %v8009, %v8010
        %v8035 = vcombine.low %v8011, %v8012
        %v8037 = vunpack.c.l.s4 1983009808
        %v8038 = vunpack.c.0.s8 %v8037
        %v8039 = vlaneseq
        %v8040 = vshrl.u32 %v8039, 7
        %v8041 = vsub.s32 %v8038, %v8040
        %v8042 = vrot.slane %v8034, %v8041
        %v8044 = vunpack.c.l.s4 1983009808
        %v8045 = vunpack.c.0.s8 %v8044
        %v8046 = vlaneseq
        %v8047 = vshrl.u32 %v8046, 7
        %v8048 = vsub.s32 %v8045, %v8047
        %v8049 = vrot.slane %v8035, %v8048
        %v8050 = vcombine.low %v8042, %v8049
        %v8051 = vcombine.low %v8013, %v8014
        %v8052 = vcombine.low %v8015, %v8016
        %v8054 = vunpack.c.l.s4 1983009808
        %v8055 = vunpack.c.0.s8 %v8054
        %v8056 = vlaneseq
        %v8057 = vshrl.u32 %v8056, 7
        %v8058 = vsub.s32 %v8055, %v8057
        %v8059 = vrot.slane %v8051, %v8058
        %v8061 = vunpack.c.l.s4 1983009808
        %v8062 = vunpack.c.0.s8 %v8061
        %v8063 = vlaneseq
        %v8064 = vshrl.u32 %v8063, 7
        %v8065 = vsub.s32 %v8062, %v8064
        %v8066 = vrot.slane %v8052, %v8065
        %v8067 = vcombine.low %v8059, %v8066
        %v8076 = vunpack.c.l.b16 %v8018
        %v8077 = vunpack.c.l.b16 %v8019
        %v8078 = vunpack.c.l.b16 %v8020
        %v8079 = vunpack.c.l.b16 %v8021
        %v8080 = vunpack.c.l.b16 %v8022
        %v8081 = vunpack.c.l.b16 %v8023
        %v8082 = vunpack.c.l.b16 %v8024
        %v8083 = vunpack.c.l.b16 %v8025
        %v8084 = vpack.c.b16 %v8077, %v8076
        %v8085 = vpack.c.b16 %v8079, %v8078
        %v8086 = vpack.c.b16 %v8081, %v8080
        %v8087 = vpack.c.b16 %v8083, %v8082
        %v8093 = vsel %vm3529, %v8050, 0
        %v8096 = vsel %vm3529, %v8067, 0
        %8098 = vmatprep.subr.bf16.mxu0 0
        %8099 = vmatpush1.bf16.msra.mxu0 %v8084
        %8100 = vmatprep.subr.bf16.mxu0 0
        %8101 = vmatpush1.bf16.msra.mxu0 %v8085
        %8102 = vmatprep.subr.bf16.mxu0 0
        %8103 = vmatpush1.bf16.msra.mxu0 %v8086
        %8104 = vmatprep.subr.bf16.mxu0 0
        %8105 = vmatpush1.bf16.msra.mxu0 %v8087
        %8106 = vmatprep.subr.bf16.mxu0 0
        %8107 = vmatpush1.bf16.msra.mxu0 0
        %8108 = vmatprep.subr.bf16.mxu0 0
        %8109 = vmatpush1.bf16.msra.mxu0 0
        %8110 = vmatprep.subr.bf16.mxu0 0
        %8111 = vmatpush1.bf16.msra.mxu0 0
        %8112 = vmatprep.subr.bf16.mxu0 0
        %8113 = vmatpush1.bf16.msra.mxu0 0
        %8114 = vmatprep.subr.bf16.mxu0 0
        %8115 = vmatpush1.bf16.msra.mxu0 0
        %8116 = vmatprep.subr.bf16.mxu0 0
        %8117 = vmatpush1.bf16.msra.mxu0 0
        %8118 = vmatprep.subr.bf16.mxu0 0
        %8119 = vmatpush1.bf16.msra.mxu0 0
        %8120 = vmatprep.subr.bf16.mxu0 0
        %8121 = vmatpush1.bf16.msra.mxu0 0
        %8122 = vmatprep.subr.bf16.mxu0 0
        %8123 = vmatpush1.bf16.msra.mxu0 0
        %8124 = vmatprep.subr.bf16.mxu0 0
        %8125 = vmatpush1.bf16.msra.mxu0 0
        %8126 = vmatprep.subr.bf16.mxu0 0
        %8127 = vmatpush1.bf16.msra.mxu0 0
        %8128 = vmatprep.subr.bf16.mxu0 0
        %8129 = vmatpush1.bf16.msra.mxu0 0
        %8130 = vmatprep.mubr.bf16.mxu0 0
        %8131 = vmatmul.mubr.bf16.gmra.mrb[0].mxu0 %v8093
        %v8132 = vpop.f32.mrb[0].mxu0
        %v8133 = vadd.f32 0.0, %v8132
        %v8134 = vpop.f32.mrb[0].mxu0
        %v8135 = vpop.f32.mrb[0].mxu0
        %v8136 = vadd.f32 0.0, %v8135
        %v8137 = vpop.f32.mrb[0].mxu0
        %8138 = vmatprep.mubr.bf16.mxu0 0
        %8139 = vmatmul.mubr.bf16.gmra.mrb[0].mxu0 %v8096
        %v8140 = vpop.f32.mrb[0].mxu0
        %v8141 = vadd.f32 0.0, %v8140
        %v8142 = vpop.f32.mrb[0].mxu0
        %v8143 = vpop.f32.mrb[0].mxu0
        %v8144 = vadd.f32 0.0, %v8143
        %v8145 = vpop.f32.mrb[0].mxu0
        %8146 = vdwg.mxu0
        %v8147 = vadd.f32 %v8004, %v8133
        %v8148 = vadd.f32 %v8005, %v8136
        %v8149 = vadd.f32 %v8006, %v8141
        %v8150 = vadd.f32 %v8007, %v8144
        %v8151 = vld [vmem:[%s8008] sm:$0x7]
        %v8152 = vld [vmem:[%s8008 + $0x4] sm:$0x7]
        %v8153 = vld [vmem:[%s8008 + $0x8] sm:$0x7]
        %v8154 = vld [vmem:[%s8008 + $0xc] sm:$0x7]
        %v8155 = vld [vmem:[%s8008 + $0x10] sm:$0x7]
        %v8156 = vld [vmem:[%s8008 + $0x14] sm:$0x7]
        %v8157 = vld [vmem:[%s8008 + $0x18] sm:$0x7]
        %v8158 = vld [vmem:[%s8008 + $0x1c] sm:$0x7]
        %v8168 = vunpack.c.l.s4 1983009808
        %v8169 = vunpack.c.0.s8 %v8168
        %v8170 = vlaneseq
        %v8171 = vshrl.u32 %v8170, 7
        %v8172 = vsub.s32 %v8169, %v8171
        %v8173 = vrot.slane %v8151, %v8172
        %v8174 = vcombine.high %v8173, %v8173
        %v8176 = vunpack.c.l.s4 1983009808
        %v8177 = vunpack.c.0.s8 %v8176
        %v8178 = vlaneseq
        %v8179 = vshrl.u32 %v8178, 7
        %v8180 = vsub.s32 %v8177, %v8179
        %v8181 = vrot.slane %v8152, %v8180
        %v8182 = vcombine.high %v8181, %v8181
        %v8184 = vunpack.c.l.s4 1983009808
        %v8185 = vunpack.c.0.s8 %v8184
        %v8186 = vlaneseq
        %v8187 = vshrl.u32 %v8186, 7
        %v8188 = vsub.s32 %v8185, %v8187
        %v8189 = vrot.slane %v8153, %v8188
        %v8190 = vcombine.high %v8189, %v8189
        %v8192 = vunpack.c.l.s4 1983009808
        %v8193 = vunpack.c.0.s8 %v8192
        %v8194 = vlaneseq
        %v8195 = vshrl.u32 %v8194, 7
        %v8196 = vsub.s32 %v8193, %v8195
        %v8197 = vrot.slane %v8154, %v8196
        %v8198 = vcombine.high %v8197, %v8197
        %v8200 = vunpack.c.l.s4 1983009808
        %v8201 = vunpack.c.0.s8 %v8200
        %v8202 = vlaneseq
        %v8203 = vshrl.u32 %v8202, 7
        %v8204 = vsub.s32 %v8201, %v8203
        %v8205 = vrot.slane %v8155, %v8204
        %v8206 = vcombine.high %v8205, %v8205
        %v8208 = vunpack.c.l.s4 1983009808
        %v8209 = vunpack.c.0.s8 %v8208
        %v8210 = vlaneseq
        %v8211 = vshrl.u32 %v8210, 7
        %v8212 = vsub.s32 %v8209, %v8211
        %v8213 = vrot.slane %v8156, %v8212
        %v8214 = vcombine.high %v8213, %v8213
        %v8216 = vunpack.c.l.s4 1983009808
        %v8217 = vunpack.c.0.s8 %v8216
        %v8218 = vlaneseq
        %v8219 = vshrl.u32 %v8218, 7
        %v8220 = vsub.s32 %v8217, %v8219
        %v8221 = vrot.slane %v8157, %v8220
        %v8222 = vcombine.high %v8221, %v8221
        %v8224 = vunpack.c.l.s4 1983009808
        %v8225 = vunpack.c.0.s8 %v8224
        %v8226 = vlaneseq
        %v8227 = vshrl.u32 %v8226, 7
        %v8228 = vsub.s32 %v8225, %v8227
        %v8229 = vrot.slane %v8158, %v8228
        %v8230 = vcombine.high %v8229, %v8229
        %v8232 = vshrl.u32 %v8173, 16
        %v8234 = vrot.slane %v8232, 6
        %v8235 = vshll.u32 %v8173, 16
        %v8237 = vrot.slane %v8235, 7
        %v8238 = vor.u32 %v8234, %v8237
        %v8239 = vrot.slane %v8238, 2
        %v8241 = vshll.u32 %v8174, 16
        %v8243 = vrot.slane %v8241, 7
        %v8244 = vsel %vm6709, %v8239, %v8243
        %v8246 = vshrl.u32 %v8181, 16
        %v8248 = vrot.slane %v8246, 6
        %v8249 = vshll.u32 %v8181, 16
        %v8251 = vrot.slane %v8249, 7
        %v8252 = vor.u32 %v8248, %v8251
        %v8253 = vrot.slane %v8252, 2
        %v8255 = vshll.u32 %v8182, 16
        %v8257 = vrot.slane %v8255, 7
        %v8258 = vsel %vm6709, %v8253, %v8257
        %v8260 = vshrl.u32 %v8189, 16
        %v8262 = vrot.slane %v8260, 6
        %v8263 = vshll.u32 %v8189, 16
        %v8265 = vrot.slane %v8263, 7
        %v8266 = vor.u32 %v8262, %v8265
        %v8267 = vrot.slane %v8266, 2
        %v8269 = vshll.u32 %v8190, 16
        %v8271 = vrot.slane %v8269, 7
        %v8272 = vsel %vm6709, %v8267, %v8271
        %v8274 = vshrl.u32 %v8197, 16
        %v8276 = vrot.slane %v8274, 6
        %v8277 = vshll.u32 %v8197, 16
        %v8279 = vrot.slane %v8277, 7
        %v8280 = vor.u32 %v8276, %v8279
        %v8281 = vrot.slane %v8280, 2
        %v8283 = vshll.u32 %v8198, 16
        %v8285 = vrot.slane %v8283, 7
        %v8286 = vsel %vm6709, %v8281, %v8285
        %v8288 = vshrl.u32 %v8205, 16
        %v8290 = vrot.slane %v8288, 6
        %v8291 = vshll.u32 %v8205, 16
        %v8293 = vrot.slane %v8291, 7
        %v8294 = vor.u32 %v8290, %v8293
        %v8295 = vrot.slane %v8294, 2
        %v8297 = vshll.u32 %v8206, 16
        %v8299 = vrot.slane %v8297, 7
        %v8300 = vsel %vm6709, %v8295, %v8299
        %v8302 = vshrl.u32 %v8213, 16
        %v8304 = vrot.slane %v8302, 6
        %v8305 = vshll.u32 %v8213, 16
        %v8307 = vrot.slane %v8305, 7
        %v8308 = vor.u32 %v8304, %v8307
        %v8309 = vrot.slane %v8308, 2
        %v8311 = vshll.u32 %v8214, 16
        %v8313 = vrot.slane %v8311, 7
        %v8314 = vsel %vm6709, %v8309, %v8313
        %v8316 = vshrl.u32 %v8221, 16
        %v8318 = vrot.slane %v8316, 6
        %v8319 = vshll.u32 %v8221, 16
        %v8321 = vrot.slane %v8319, 7
        %v8322 = vor.u32 %v8318, %v8321
        %v8323 = vrot.slane %v8322, 2
        %v8325 = vshll.u32 %v8222, 16
        %v8327 = vrot.slane %v8325, 7
        %v8328 = vsel %vm6709, %v8323, %v8327
        %v8330 = vshrl.u32 %v8229, 16
        %v8332 = vrot.slane %v8330, 6
        %v8333 = vshll.u32 %v8229, 16
        %v8335 = vrot.slane %v8333, 7
        %v8336 = vor.u32 %v8332, %v8335
        %v8337 = vrot.slane %v8336, 2
        %v8339 = vshll.u32 %v8230, 16
        %v8341 = vrot.slane %v8339, 7
        %v8342 = vsel %vm6709, %v8337, %v8341
        %s8343 = scalar_lea.vmem %s3, 224
        %v8344 = vld [vmem:[%s8343] sm:$0xf]
        %v8345 = vld [vmem:[%s8343 + $0x4] sm:$0xf]
        %v8346 = vld [vmem:[%s8343 + $0x8] sm:$0xf]
        %v8347 = vld [vmem:[%s8343 + $0xc] sm:$0xf]
        %v8348 = vld [vmem:[%s8343 + $0x10] sm:$0xf]
        %v8349 = vld [vmem:[%s8343 + $0x14] sm:$0xf]
        %v8350 = vld [vmem:[%s8343 + $0x18] sm:$0xf]
        %v8351 = vld [vmem:[%s8343 + $0x1c] sm:$0xf]
        %v8352 = vcombine.low %v8244, %v8258
        %v8353 = vcombine.low %v8272, %v8286
        %v8355 = vunpack.c.l.s4 1983009808
        %v8356 = vunpack.c.0.s8 %v8355
        %v8357 = vlaneseq
        %v8358 = vshrl.u32 %v8357, 7
        %v8359 = vsub.s32 %v8356, %v8358
        %v8360 = vrot.slane %v8352, %v8359
        %v8362 = vunpack.c.l.s4 1983009808
        %v8363 = vunpack.c.0.s8 %v8362
        %v8364 = vlaneseq
        %v8365 = vshrl.u32 %v8364, 7
        %v8366 = vsub.s32 %v8363, %v8365
        %v8367 = vrot.slane %v8353, %v8366
        %v8368 = vcombine.low %v8360, %v8367
        %v8369 = vcombine.low %v8300, %v8314
        %v8370 = vcombine.low %v8328, %v8342
        %v8372 = vunpack.c.l.s4 1983009808
        %v8373 = vunpack.c.0.s8 %v8372
        %v8374 = vlaneseq
        %v8375 = vshrl.u32 %v8374, 7
        %v8376 = vsub.s32 %v8373, %v8375
        %v8377 = vrot.slane %v8369, %v8376
        %v8379 = vunpack.c.l.s4 1983009808
        %v8380 = vunpack.c.0.s8 %v8379
        %v8381 = vlaneseq
        %v8382 = vshrl.u32 %v8381, 7
        %v8383 = vsub.s32 %v8380, %v8382
        %v8384 = vrot.slane %v8370, %v8383
        %v8385 = vcombine.low %v8377, %v8384
        %v8394 = vunpack.c.l.b16 %v8344
        %v8395 = vunpack.c.l.b16 %v8345
        %v8396 = vunpack.c.l.b16 %v8346
        %v8397 = vunpack.c.l.b16 %v8347
        %v8398 = vunpack.c.l.b16 %v8348
        %v8399 = vunpack.c.l.b16 %v8349
        %v8400 = vunpack.c.l.b16 %v8350
        %v8401 = vunpack.c.l.b16 %v8351
        %v8402 = vpack.c.b16 %v8395, %v8394
        %v8403 = vpack.c.b16 %v8397, %v8396
        %v8404 = vpack.c.b16 %v8399, %v8398
        %v8405 = vpack.c.b16 %v8401, %v8400
        %v8411 = vsel %vm3529, %v8368, 0
        %v8414 = vsel %vm3529, %v8385, 0
        %8416 = vmatprep.subr.bf16.mxu0 0
        %8417 = vmatpush1.bf16.msra.mxu0 %v8402
        %8418 = vmatprep.subr.bf16.mxu0 0
        %8419 = vmatpush1.bf16.msra.mxu0 %v8403
        %8420 = vmatprep.subr.bf16.mxu0 0
        %8421 = vmatpush1.bf16.msra.mxu0 %v8404
        %8422 = vmatprep.subr.bf16.mxu0 0
        %8423 = vmatpush1.bf16.msra.mxu0 %v8405
        %8424 = vmatprep.subr.bf16.mxu0 0
        %8425 = vmatpush1.bf16.msra.mxu0 0
        %8426 = vmatprep.subr.bf16.mxu0 0
        %8427 = vmatpush1.bf16.msra.mxu0 0
        %8428 = vmatprep.subr.bf16.mxu0 0
        %8429 = vmatpush1.bf16.msra.mxu0 0
        %8430 = vmatprep.subr.bf16.mxu0 0
        %8431 = vmatpush1.bf16.msra.mxu0 0
        %8432 = vmatprep.subr.bf16.mxu0 0
        %8433 = vmatpush1.bf16.msra.mxu0 0
        %8434 = vmatprep.subr.bf16.mxu0 0
        %8435 = vmatpush1.bf16.msra.mxu0 0
        %8436 = vmatprep.subr.bf16.mxu0 0
        %8437 = vmatpush1.bf16.msra.mxu0 0
        %8438 = vmatprep.subr.bf16.mxu0 0
        %8439 = vmatpush1.bf16.msra.mxu0 0
        %8440 = vmatprep.subr.bf16.mxu0 0
        %8441 = vmatpush1.bf16.msra.mxu0 0
        %8442 = vmatprep.subr.bf16.mxu0 0
        %8443 = vmatpush1.bf16.msra.mxu0 0
        %8444 = vmatprep.subr.bf16.mxu0 0
        %8445 = vmatpush1.bf16.msra.mxu0 0
        %8446 = vmatprep.subr.bf16.mxu0 0
        %8447 = vmatpush1.bf16.msra.mxu0 0
        %8448 = vmatprep.mubr.bf16.mxu0 0
        %8449 = vmatmul.mubr.bf16.gmra.mrb[0].mxu0 %v8411
        %v8450 = vpop.f32.mrb[0].mxu0
        %v8451 = vadd.f32 0.0, %v8450
        %v8452 = vpop.f32.mrb[0].mxu0
        %v8453 = vpop.f32.mrb[0].mxu0
        %v8454 = vadd.f32 0.0, %v8453
        %v8455 = vpop.f32.mrb[0].mxu0
        %8456 = vmatprep.mubr.bf16.mxu0 0
        %8457 = vmatmul.mubr.bf16.gmra.mrb[0].mxu0 %v8414
        %v8458 = vpop.f32.mrb[0].mxu0
        %v8459 = vadd.f32 0.0, %v8458
        %v8460 = vpop.f32.mrb[0].mxu0
        %v8461 = vpop.f32.mrb[0].mxu0
        %v8462 = vadd.f32 0.0, %v8461
        %v8463 = vpop.f32.mrb[0].mxu0
        %8464 = vdwg.mxu0
        %v8465 = vadd.f32 %v8147, %v8451
        %v8466 = vadd.f32 %v8148, %v8454
        %v8467 = vadd.f32 %v8149, %v8459
        %v8468 = vadd.f32 %v8150, %v8462
        %v8469 = vld [vmem:[%s8008] sm:$0x6]
        %v8470 = vld [vmem:[%s8008 + $0x4] sm:$0x6]
        %v8471 = vld [vmem:[%s8008 + $0x8] sm:$0x6]
        %v8472 = vld [vmem:[%s8008 + $0xc] sm:$0x6]
        %v8473 = vld [vmem:[%s8008 + $0x10] sm:$0x6]
        %v8474 = vld [vmem:[%s8008 + $0x14] sm:$0x6]
        %v8475 = vld [vmem:[%s8008 + $0x18] sm:$0x6]
        %v8476 = vld [vmem:[%s8008 + $0x1c] sm:$0x6]
        %v8486 = vunpack.c.l.s4 1983009808
        %v8487 = vunpack.c.0.s8 %v8486
        %v8488 = vlaneseq
        %v8489 = vshrl.u32 %v8488, 7
        %v8490 = vsub.s32 %v8487, %v8489
        %v8491 = vrot.slane %v8469, %v8490
        %v8492 = vcombine.high %v8491, %v8491
        %v8494 = vunpack.c.l.s4 1983009808
        %v8495 = vunpack.c.0.s8 %v8494
        %v8496 = vlaneseq
        %v8497 = vshrl.u32 %v8496, 7
        %v8498 = vsub.s32 %v8495, %v8497
        %v8499 = vrot.slane %v8470, %v8498
        %v8500 = vcombine.high %v8499, %v8499
        %v8502 = vunpack.c.l.s4 1983009808
        %v8503 = vunpack.c.0.s8 %v8502
        %v8504 = vlaneseq
        %v8505 = vshrl.u32 %v8504, 7
        %v8506 = vsub.s32 %v8503, %v8505
        %v8507 = vrot.slane %v8471, %v8506
        %v8508 = vcombine.high %v8507, %v8507
        %v8510 = vunpack.c.l.s4 1983009808
        %v8511 = vunpack.c.0.s8 %v8510
        %v8512 = vlaneseq
        %v8513 = vshrl.u32 %v8512, 7
        %v8514 = vsub.s32 %v8511, %v8513
        %v8515 = vrot.slane %v8472, %v8514
        %v8516 = vcombine.high %v8515, %v8515
        %v8518 = vunpack.c.l.s4 1983009808
        %v8519 = vunpack.c.0.s8 %v8518
        %v8520 = vlaneseq
        %v8521 = vshrl.u32 %v8520, 7
        %v8522 = vsub.s32 %v8519, %v8521
        %v8523 = vrot.slane %v8473, %v8522
        %v8524 = vcombine.high %v8523, %v8523
        %v8526 = vunpack.c.l.s4 1983009808
        %v8527 = vunpack.c.0.s8 %v8526
        %v8528 = vlaneseq
        %v8529 = vshrl.u32 %v8528, 7
        %v8530 = vsub.s32 %v8527, %v8529
        %v8531 = vrot.slane %v8474, %v8530
        %v8532 = vcombine.high %v8531, %v8531
        %v8534 = vunpack.c.l.s4 1983009808
        %v8535 = vunpack.c.0.s8 %v8534
        %v8536 = vlaneseq
        %v8537 = vshrl.u32 %v8536, 7
        %v8538 = vsub.s32 %v8535, %v8537
        %v8539 = vrot.slane %v8475, %v8538
        %v8540 = vcombine.high %v8539, %v8539
        %v8542 = vunpack.c.l.s4 1983009808
        %v8543 = vunpack.c.0.s8 %v8542
        %v8544 = vlaneseq
        %v8545 = vshrl.u32 %v8544, 7
        %v8546 = vsub.s32 %v8543, %v8545
        %v8547 = vrot.slane %v8476, %v8546
        %v8548 = vcombine.high %v8547, %v8547
        %v8549 = vrot.slane %v8491, 7
        %v8550 = vrot.slane %v8549, 2
        %v8551 = vrot.slane %v8492, 7
        %v8552 = vsel %vm7151, %v8550, %v8551
        %v8553 = vrot.slane %v8499, 7
        %v8554 = vrot.slane %v8553, 2
        %v8555 = vrot.slane %v8500, 7
        %v8556 = vsel %vm7151, %v8554, %v8555
        %v8557 = vrot.slane %v8507, 7
        %v8558 = vrot.slane %v8557, 2
        %v8559 = vrot.slane %v8508, 7
        %v8560 = vsel %vm7151, %v8558, %v8559
        %v8561 = vrot.slane %v8515, 7
        %v8562 = vrot.slane %v8561, 2
        %v8563 = vrot.slane %v8516, 7
        %v8564 = vsel %vm7151, %v8562, %v8563
        %v8565 = vrot.slane %v8523, 7
        %v8566 = vrot.slane %v8565, 2
        %v8567 = vrot.slane %v8524, 7
        %v8568 = vsel %vm7151, %v8566, %v8567
        %v8569 = vrot.slane %v8531, 7
        %v8570 = vrot.slane %v8569, 2
        %v8571 = vrot.slane %v8532, 7
        %v8572 = vsel %vm7151, %v8570, %v8571
        %v8573 = vrot.slane %v8539, 7
        %v8574 = vrot.slane %v8573, 2
        %v8575 = vrot.slane %v8540, 7
        %v8576 = vsel %vm7151, %v8574, %v8575
        %v8577 = vrot.slane %v8547, 7
        %v8578 = vrot.slane %v8577, 2
        %v8579 = vrot.slane %v8548, 7
        %v8580 = vsel %vm7151, %v8578, %v8579
        %s8581 = scalar_lea.vmem %s3, 256
        %v8582 = vld [vmem:[%s8581] sm:$0xf]
        %v8583 = vld [vmem:[%s8581 + $0x4] sm:$0xf]
        %v8584 = vld [vmem:[%s8581 + $0x8] sm:$0xf]
        %v8585 = vld [vmem:[%s8581 + $0xc] sm:$0xf]
        %v8586 = vld [vmem:[%s8581 + $0x10] sm:$0xf]
        %v8587 = vld [vmem:[%s8581 + $0x14] sm:$0xf]
        %v8588 = vld [vmem:[%s8581 + $0x18] sm:$0xf]
        %v8589 = vld [vmem:[%s8581 + $0x1c] sm:$0xf]
        %v8590 = vcombine.low %v8552, %v8556
        %v8591 = vcombine.low %v8560, %v8564
        %v8593 = vunpack.c.l.s4 1983009808
        %v8594 = vunpack.c.0.s8 %v8593
        %v8595 = vlaneseq
        %v8596 = vshrl.u32 %v8595, 7
        %v8597 = vsub.s32 %v8594, %v8596
        %v8598 = vrot.slane %v8590, %v8597
        %v8600 = vunpack.c.l.s4 1983009808
        %v8601 = vunpack.c.0.s8 %v8600
        %v8602 = vlaneseq
        %v8603 = vshrl.u32 %v8602, 7
        %v8604 = vsub.s32 %v8601, %v8603
        %v8605 = vrot.slane %v8591, %v8604
        %v8606 = vcombine.low %v8598, %v8605
        %v8607 = vcombine.low %v8568, %v8572
        %v8608 = vcombine.low %v8576, %v8580
        %v8610 = vunpack.c.l.s4 1983009808
        %v8611 = vunpack.c.0.s8 %v8610
        %v8612 = vlaneseq
        %v8613 = vshrl.u32 %v8612, 7
        %v8614 = vsub.s32 %v8611, %v8613
        %v8615 = vrot.slane %v8607, %v8614
        %v8617 = vunpack.c.l.s4 1983009808
        %v8618 = vunpack.c.0.s8 %v8617
        %v8619 = vlaneseq
        %v8620 = vshrl.u32 %v8619, 7
        %v8621 = vsub.s32 %v8618, %v8620
        %v8622 = vrot.slane %v8608, %v8621
        %v8623 = vcombine.low %v8615, %v8622
        %v8632 = vunpack.c.l.b16 %v8582
        %v8633 = vunpack.c.l.b16 %v8583
        %v8634 = vunpack.c.l.b16 %v8584
        %v8635 = vunpack.c.l.b16 %v8585
        %v8636 = vunpack.c.l.b16 %v8586
        %v8637 = vunpack.c.l.b16 %v8587
        %v8638 = vunpack.c.l.b16 %v8588
        %v8639 = vunpack.c.l.b16 %v8589
        %v8640 = vpack.c.b16 %v8633, %v8632
        %v8641 = vpack.c.b16 %v8635, %v8634
        %v8642 = vpack.c.b16 %v8637, %v8636
        %v8643 = vpack.c.b16 %v8639, %v8638
        %v8649 = vsel %vm3529, %v8606, 0
        %v8652 = vsel %vm3529, %v8623, 0
        %8654 = vmatprep.subr.bf16.mxu0 0
        %8655 = vmatpush1.bf16.msra.mxu0 %v8640
        %8656 = vmatprep.subr.bf16.mxu0 0
        %8657 = vmatpush1.bf16.msra.mxu0 %v8641
        %8658 = vmatprep.subr.bf16.mxu0 0
        %8659 = vmatpush1.bf16.msra.mxu0 %v8642
        %8660 = vmatprep.subr.bf16.mxu0 0
        %8661 = vmatpush1.bf16.msra.mxu0 %v8643
        %8662 = vmatprep.subr.bf16.mxu0 0
        %8663 = vmatpush1.bf16.msra.mxu0 0
        %8664 = vmatprep.subr.bf16.mxu0 0
        %8665 = vmatpush1.bf16.msra.mxu0 0
        %8666 = vmatprep.subr.bf16.mxu0 0
        %8667 = vmatpush1.bf16.msra.mxu0 0
        %8668 = vmatprep.subr.bf16.mxu0 0
        %8669 = vmatpush1.bf16.msra.mxu0 0
        %8670 = vmatprep.subr.bf16.mxu0 0
        %8671 = vmatpush1.bf16.msra.mxu0 0
        %8672 = vmatprep.subr.bf16.mxu0 0
        %8673 = vmatpush1.bf16.msra.mxu0 0
        %8674 = vmatprep.subr.bf16.mxu0 0
        %8675 = vmatpush1.bf16.msra.mxu0 0
        %8676 = vmatprep.subr.bf16.mxu0 0
        %8677 = vmatpush1.bf16.msra.mxu0 0
        %8678 = vmatprep.subr.bf16.mxu0 0
        %8679 = vmatpush1.bf16.msra.mxu0 0
        %8680 = vmatprep.subr.bf16.mxu0 0
        %8681 = vmatpush1.bf16.msra.mxu0 0
        %8682 = vmatprep.subr.bf16.mxu0 0
        %8683 = vmatpush1.bf16.msra.mxu0 0
        %8684 = vmatprep.subr.bf16.mxu0 0
        %8685 = vmatpush1.bf16.msra.mxu0 0
        %8686 = vmatprep.mubr.bf16.mxu0 0
        %8687 = vmatmul.mubr.bf16.gmra.mrb[0].mxu0 %v8649
        %v8688 = vpop.f32.mrb[0].mxu0
        %v8689 = vadd.f32 0.0, %v8688
        %v8690 = vpop.f32.mrb[0].mxu0
        %v8691 = vpop.f32.mrb[0].mxu0
        %v8692 = vadd.f32 0.0, %v8691
        %v8693 = vpop.f32.mrb[0].mxu0
        %8694 = vmatprep.mubr.bf16.mxu0 0
        %8695 = vmatmul.mubr.bf16.gmra.mrb[0].mxu0 %v8652
        %v8696 = vpop.f32.mrb[0].mxu0
        %v8697 = vadd.f32 0.0, %v8696
        %v8698 = vpop.f32.mrb[0].mxu0
        %v8699 = vpop.f32.mrb[0].mxu0
        %v8700 = vadd.f32 0.0, %v8699
        %v8701 = vpop.f32.mrb[0].mxu0
        %8702 = vdwg.mxu0
        %v8703 = vadd.f32 %v8465, %v8689
        %v8704 = vadd.f32 %v8466, %v8692
        %v8705 = vadd.f32 %v8467, %v8697
        %v8706 = vadd.f32 %v8468, %v8700
        %v8707 = vld [vmem:[%s4 + $0x2] sm:$0x1]
        %v8708 = vlaneseq
        %v8709 = vshrl.u32 %v8708, 7
        %v8710 = vsub.s32 0, %v8709
        %v8711 = vrot.slane %v8707, %v8710
        %v8712 = vmul.f32 %v8703, %v8711
        %v8713 = vmul.f32 %v8704, %v8711
        %v8714 = vmul.f32 %v8705, %v8711
        %v8715 = vmul.f32 %v8706, %v8711
        %v8716 = vld [vmem:[%s5 + $0x2] sm:$0x1]
        %v8717 = vlaneseq
        %v8718 = vshrl.u32 %v8717, 7
        %v8719 = vsub.s32 0, %v8718
        %v8720 = vrot.slane %v8716, %v8719
        %v8721 = vadd.f32 %v8712, %v8720
        %v8722 = vadd.f32 %v8713, %v8720
        %v8723 = vadd.f32 %v8714, %v8720
        %v8724 = vadd.f32 %v8715, %v8720
        %v8725 = vmax.f32 %v8721, 0.0
        %v8726 = vmax.f32 %v8722, 0.0
        %v8727 = vmax.f32 %v8723, 0.0
        %v8728 = vmax.f32 %v8724, 0.0
        %v8733 = vcombine.high %v8725, %v8725
        %v8734 = vcombine.high %v8726, %v8726
        %v8735 = vcombine.high %v8727, %v8727
        %v8736 = vcombine.high %v8728, %v8728
        %v8741 = vsel %vm1289, %v8725, 0.0
        %v8742 = vrot.slane %v8741, 4
        %v8743 = vadd.f32 %v8741, %v8742
        %v8744 = vrot.slane %v8743, 2
        %v8745 = vadd.f32 %v8743, %v8744
        %v8746 = vrot.slane %v8745, 1
        %v8747 = vadd.f32 %v8745, %v8746
        %v8748 = vsel %vm1289, %v8733, 0.0
        %v8749 = vrot.slane %v8748, 4
        %v8750 = vadd.f32 %v8748, %v8749
        %v8751 = vrot.slane %v8750, 2
        %v8752 = vadd.f32 %v8750, %v8751
        %v8753 = vrot.slane %v8752, 1
        %v8754 = vadd.f32 %v8752, %v8753
        %v8755 = vsel %vm1289, %v8726, 0.0
        %v8756 = vrot.slane %v8755, 4
        %v8757 = vadd.f32 %v8755, %v8756
        %v8758 = vrot.slane %v8757, 2
        %v8759 = vadd.f32 %v8757, %v8758
        %v8760 = vrot.slane %v8759, 1
        %v8761 = vadd.f32 %v8759, %v8760
        %v8762 = vsel %vm1289, %v8734, 0.0
        %v8763 = vrot.slane %v8762, 4
        %v8764 = vadd.f32 %v8762, %v8763
        %v8765 = vrot.slane %v8764, 2
        %v8766 = vadd.f32 %v8764, %v8765
        %v8767 = vrot.slane %v8766, 1
        %v8768 = vadd.f32 %v8766, %v8767
        %v8769 = vsel %vm1289, %v8727, 0.0
        %v8770 = vrot.slane %v8769, 4
        %v8771 = vadd.f32 %v8769, %v8770
        %v8772 = vrot.slane %v8771, 2
        %v8773 = vadd.f32 %v8771, %v8772
        %v8774 = vrot.slane %v8773, 1
        %v8775 = vadd.f32 %v8773, %v8774
        %v8776 = vsel %vm1289, %v8735, 0.0
        %v8777 = vrot.slane %v8776, 4
        %v8778 = vadd.f32 %v8776, %v8777
        %v8779 = vrot.slane %v8778, 2
        %v8780 = vadd.f32 %v8778, %v8779
        %v8781 = vrot.slane %v8780, 1
        %v8782 = vadd.f32 %v8780, %v8781
        %v8783 = vsel %vm1289, %v8728, 0.0
        %v8784 = vrot.slane %v8783, 4
        %v8785 = vadd.f32 %v8783, %v8784
        %v8786 = vrot.slane %v8785, 2
        %v8787 = vadd.f32 %v8785, %v8786
        %v8788 = vrot.slane %v8787, 1
        %v8789 = vadd.f32 %v8787, %v8788
        %v8790 = vsel %vm1289, %v8736, 0.0
        %v8791 = vrot.slane %v8790, 4
        %v8792 = vadd.f32 %v8790, %v8791
        %v8793 = vrot.slane %v8792, 2
        %v8794 = vadd.f32 %v8792, %v8793
        %v8795 = vrot.slane %v8794, 1
        %v8796 = vadd.f32 %v8794, %v8795
        %v8797 = vmul.f32 %v8747, 0.25
        %v8798 = vmul.f32 %v8754, 0.25
        %v8799 = vmul.f32 %v8761, 0.25
        %v8800 = vmul.f32 %v8768, 0.25
        %v8801 = vmul.f32 %v8775, 0.25
        %v8802 = vmul.f32 %v8782, 0.25
        %v8803 = vmul.f32 %v8789, 0.25
        %v8804 = vmul.f32 %v8796, 0.25
        %v8813 = vsel %vm2966, %v8798, %v8797
        %v8814 = vsel %vm2954, %v8799, %v8813
        %v8815 = vsel %vm2956, %v8800, %v8814
        %v8816 = vsel %vm2958, %v8801, %v8815
        %v8817 = vsel %vm2960, %v8802, %v8816
        %v8818 = vsel %vm2962, %v8803, %v8817
        %v8819 = vsel %vm2964, %v8804, %v8818
        %8821 = vst.msk [vmem:[%s244] sm:$0xff] %vm3529, %v8819
        %s8822 = sand.u32 %s159, 1
        %s8823 = scalar_lea.sflag [#allocation5], %s8822
        %s8824 = sand.u32 %s159, 1
        %s8825 = smul.addr %s8824, 8
        %s8826 = scalar_lea.vmem [#allocation4], %s8825
        // Predicated region
        $region45: #{tpu_custom_call.1} parent=43 // pred_check
          %p8827 = pneg %p169
        $region46: #{tpu_custom_call.1} parent=43 // pred_check_branch
          %8829 = sbr.rel (%p8827) target = $region48
        $region47: #{tpu_custom_call.1} parent=43 // pred_region
          %s8831 = ssub.s32 128, 128
          %8832 = vsyncadd %s8823, %s8831
          %s8833 = smul.addr %s20, 128
          %s8834 = scalar_lea.hbm %s6, %s8833
          %s8836 = sshll.u32 %s8826, 4
          %s8837 = int_to_ptr.vmem [resolvable:$true] %s8836
          %8839 = dma.vmem_to_hbm [thread:$0]  %s8837, 128, %s8834, %s8823
        $region48: #{tpu_custom_call.1} parent=43 // pred_fallthru
          _
      $region44: #{tpu_custom_call.1} parent=5 // pred_fallthru
        _
      %p8840 = scmp.le.s32.totalorder 2, %s15
      // Predicated region
      $region49: #{tpu_custom_call.1} parent=5 // pred_check
        %p8841 = pneg %p8840
      $region50: #{tpu_custom_call.1} parent=5 // pred_check_branch
        %8843 = sbr.rel (%p8841) target = $region52
      $region51: #{tpu_custom_call.1} parent=5 // pred_region
        %s8844 = ssub.s32 %s15, 2
        // Predicated region
        $region53: #{tpu_custom_call.1} parent=51 // pred_check
          %p8845 = pneg %p175
        $region54: #{tpu_custom_call.1} parent=51 // pred_check_branch
          %8847 = sbr.rel (%p8845) target = $region56
        $region55: #{tpu_custom_call.1} parent=51 // pred_region
          %s8848 = sand.u32 %s160, 1
          %s8849 = scalar_lea.sflag [#allocation5], %s8848
          %s8850 = sand.u32 %s160, 1
          %s8851 = smul.addr %s8850, 8
          %s8852 = scalar_lea.vmem [#allocation4], %s8851
          %8853 = dma.done %s8849, 128
        $region56: #{tpu_custom_call.1} parent=51 // pred_fallthru
          _
      $region52: #{tpu_custom_call.1} parent=5 // pred_fallthru
        _
    $region6: #{tpu_custom_call.1} parent=1 // loop_footer
      %s19 = sadd.s32 1, %s15
    $region7: #{tpu_custom_call.1} parent=1 // loop_footer_branch
      %14 = sbr.rel target = $region3
    $region8: #{tpu_custom_call.1} parent=1 // loop_exit
      _
    %8854 = vsyncpa [#allocation5], 1
    %s8855 = scalar_lea.sflag [#allocation5], 1
    %8856 = vsyncpa %s8855, 1

</llo_original>
